<compile_context>
chip_gen: v5e
topology: v5e:2x2
jax: 0.10.0
libtpu: 0.0.40
codegen_flags: <defaults>
</compile_context>

<pallas_src>
import jax
import jax.numpy as jnp
from jax import lax
from jax.experimental import pallas as pl
from jax.experimental.pallas import tpu as pltpu

BN_EPS = 1e-5


# ----------------------------------------------------------------------------
# Kernel
# ----------------------------------------------------------------------------
def _make_basic_block_kernel(n_im, n_lane, wp, has_proj):
    """Builds the fused basic-block kernel body.

    n_im    : images packed per grid step (block_batch)
    n_lane  : lane-aligned flattened padded-image size (multiple of 128)
    wp      : padded image width (W + 2)
    has_proj: True -> shortcut is a (BN-folded) 1x1 conv, else identity
    """
    ntot = n_im * n_lane
    # flattened-lane offset of conv tap (dy, dx), dy/dx in {0,1,2}
    tap_offsets = [(dy - 1) * wp + (dx - 1) for dy in range(3) for dx in range(3)]

    def conv3x3(x_flat, w_taps_ref):
        # x_flat: (Cin, ntot) f32; w_taps_ref: (9, Cout, Cin)
        acc = None
        for k, off in enumerate(tap_offsets):
            if off == 0:
                shifted = x_flat
            else:
                # result[:, p] = x_flat[:, p + off] (wrap-around only pollutes
                # border/pad lanes which are masked or discarded).
                shifted = pltpu.roll(x_flat, shift=(-off) % ntot, axis=1)
            t = jnp.dot(w_taps_ref[k], shifted, preferred_element_type=jnp.float32)
            acc = t if acc is None else acc + t
        return acc

    if has_proj:
        def kernel(x_ref, mask_ref, w1_ref, b1_ref, w2_ref, b2_ref,
                   wsc_ref, bsc_ref, o_ref):
            x = x_ref[...].astype(jnp.float32)                    # (Cin, ntot)
            mask = mask_ref[...]                                  # (1, ntot)
            mid = jnp.maximum(conv3x3(x, w1_ref) + b1_ref[...], 0.0) * mask
            out = conv3x3(mid, w2_ref) + b2_ref[...]
            out = out + jnp.dot(wsc_ref[...], x,
                                preferred_element_type=jnp.float32) + bsc_ref[...]
            o_ref[...] = jnp.maximum(out, 0.0).astype(o_ref.dtype)
    else:
        def kernel(x_ref, mask_ref, w1_ref, b1_ref, w2_ref, b2_ref, o_ref):
            x = x_ref[...].astype(jnp.float32)                    # (C, ntot)
            mask = mask_ref[...]                                  # (1, ntot)
            mid = jnp.maximum(conv3x3(x, w1_ref) + b1_ref[...], 0.0) * mask
            out = conv3x3(mid, w2_ref) + b2_ref[...] + x          # identity shortcut
            o_ref[...] = jnp.maximum(out, 0.0).astype(o_ref.dtype)

    return kernel


# ----------------------------------------------------------------------------
# Wrapper
# ----------------------------------------------------------------------------
def _fold_bn(w, gamma, beta, mean, var, eps=BN_EPS):
    """Fold inference-mode BatchNorm into conv weight; returns (w_folded, bias)."""
    inv = gamma * lax.rsqrt(var + eps)
    return w * inv[:, None, None, None], beta - mean * inv


def basic_block_forward(x, params, *, stride=1, block_batch=1):
    """Pallas forward for BasicBlock_Tiny (inference-mode BatchNorm).

    x: (B, Cin, H, W) float32 NCHW. params: dict (see __main__).
    """
    if stride != 1:
        # TODO(synk): stride != 1 (strided conv1 + strided 1x1 shortcut) not implemented.
        raise NotImplementedError("only stride=1 is supported by the Pallas kernel")

    B, cin, H, W = x.shape
    planes = params["conv1_w"].shape[0]
    has_proj = (cin != planes)            # (stride == 1 here)

    hp, wp = H + 2, W + 2
    npad_raw = hp * wp
    n_lane = ((npad_raw + 127) // 128) * 128      # lane-aligned per-image width
    bb = block_batch
    assert B % bb == 0, "batch must be divisible by block_batch"
    ntot = bb * n_lane

    # ---- fold BN into the convs; rearrange 3x3 weights tap-major (9, Cout, Cin) ----
    w1, b1 = _fold_bn(params["conv1_w"], params["bn1_gamma"], params["bn1_beta"],
                      params["bn1_mean"], params["bn1_var"])
    w2, b2 = _fold_bn(params["conv2_w"], params["bn2_gamma"], params["bn2_beta"],
                      params["bn2_mean"], params["bn2_var"])
    w1_taps = jnp.transpose(w1, (2, 3, 0, 1)).reshape(9, planes, cin).astype(jnp.float32)
    w2_taps = jnp.transpose(w2, (2, 3, 0, 1)).reshape(9, planes, planes).astype(jnp.float32)
    b1c = b1[:, None].astype(jnp.float32)     # (planes, 1)
    b2c = b2[:, None].astype(jnp.float32)

    if has_proj:
        wsc, bsc = _fold_bn(params["sc_w"], params["sc_gamma"], params["sc_beta"],
                            params["sc_mean"], params["sc_var"])
        wsc2 = wsc[:, :, 0, 0].astype(jnp.float32)   # (planes, cin)
        bscc = bsc[:, None].astype(jnp.float32)

    # ---- layout plumbing: pad, flatten, lane-align, pack batch on the lane axis ----
    xp = jnp.pad(x, ((0, 0), (0, 0), (1, 1), (1, 1)))              # (B, Cin, Hp, Wp)
    xf = xp.reshape(B, cin, npad_raw)
    xf = jnp.pad(xf, ((0, 0), (0, 0), (0, n_lane - npad_raw)))     # (B, Cin, n_lane)
    xf = jnp.transpose(xf, (1, 0, 2)).reshape(cin, B * n_lane)     # (Cin, B*n_lane)

    # interior mask: 1 at lanes that correspond to a real HxW pixel, 0 at border/pad
    idx = jnp.arange(n_lane)
    rr, cc = idx // wp, idx % wp
    interior = (idx < npad_raw) & (rr >= 1) & (rr <= H) & (cc >= 1) & (cc <= W)
    mask = jnp.tile(interior.astype(jnp.float32)[None, :], (1, bb))  # (1, ntot)

    kernel = _make_basic_block_kernel(bb, n_lane, wp, has_proj)

    in_specs = [
        pl.BlockSpec((cin, ntot), lambda i: (0, i)),          # x slab (per batch block)
        pl.BlockSpec((1, ntot), lambda i: (0, 0)),            # interior mask
        pl.BlockSpec((9, planes, cin), lambda i: (0, 0, 0)),  # conv1 taps (BN folded)
        pl.BlockSpec((planes, 1), lambda i: (0, 0)),          # bias1
        pl.BlockSpec((9, planes, planes), lambda i: (0, 0, 0)),  # conv2 taps
        pl.BlockSpec((planes, 1), lambda i: (0, 0)),          # bias2
    ]
    args = [xf, mask, w1_taps, b1c, w2_taps, b2c]
    if has_proj:
        in_specs += [pl.BlockSpec((planes, cin), lambda i: (0, 0)),
                     pl.BlockSpec((planes, 1), lambda i: (0, 0))]
        args += [wsc2, bscc]

    out_flat = pl.pallas_call(
        kernel,
        out_shape=jax.ShapeDtypeStruct((planes, B * n_lane), x.dtype),
        grid_spec=pltpu.PrefetchScalarGridSpec(
            num_scalar_prefetch=0,
            grid=(B // bb,),
            in_specs=in_specs,
            out_specs=pl.BlockSpec((planes, ntot), lambda i: (0, i)),
        ),
        compiler_params=pltpu.CompilerParams(
            dimension_semantics=("parallel",)),
    )(*args)

    # ---- undo the layout plumbing: drop alignment pad + spatial border ----
    out = out_flat.reshape(planes, B, n_lane)[:, :, :npad_raw]
    out = out.reshape(planes, B, hp, wp)[:, :, 1:H + 1, 1:W + 1]
    return jnp.transpose(out, (1, 0, 2, 3))                      # (B, planes, H, W)


# ----------------------------------------------------------------------------
# Pure-JAX reference (conv + inference BN + relu, un-fused)
# ----------------------------------------------------------------------------
def _conv(x, w, stride, pad):
    return lax.conv_general_dilated(
        x, w, window_strides=(stride, stride), padding=((pad, pad), (pad, pad)),
        dimension_numbers=("NCHW", "OIHW", "NCHW"),
        precision=lax.Precision.HIGHEST)


def basic_block_reference(x, params, *, stride=1):
    def bn(y, g, b, m, v):
        inv = g * lax.rsqrt(v + BN_EPS)
        return y * inv[None, :, None, None] + (b - m * inv)[None, :, None, None]

    cin = x.shape[1]
    planes = params["conv1_w"].shape[0]
    out = jax.nn.relu(bn(_conv(x, params["conv1_w"], stride, 1),
                         params["bn1_gamma"], params["bn1_beta"],
                         params["bn1_mean"], params["bn1_var"]))
    out = bn(_conv(out, params["conv2_w"], 1, 1),
             params["bn2_gamma"], params["bn2_beta"],
             params["bn2_mean"], params["bn2_var"])
    if stride != 1 or cin != planes:
        sc = bn(_conv(x, params["sc_w"], stride, 0),
                params["sc_gamma"], params["sc_beta"],
                params["sc_mean"], params["sc_var"])
    else:
        sc = x
    return jax.nn.relu(out + sc)


# ----------------------------------------------------------------------------
# Demo / self-check
# ----------------------------------------------------------------------------
if __name__ == "__main__":
    key = jax.random.PRNGKey(0)

    def make_params(k, cin, planes, with_proj):
        ks = list(jax.random.split(k, 15))
        nrm = lambda kk, shape, s=0.1: s * jax.random.normal(kk, shape, jnp.float32)
        p = {
            "conv1_w": nrm(ks[0], (planes, cin, 3, 3)),
            "bn1_gamma": 1.0 + nrm(ks[1], (planes,)),
            "bn1_beta": nrm(ks[2], (planes,)),
            "bn1_mean": nrm(ks[3], (planes,)),
            "bn1_var": 0.5 + jnp.abs(nrm(ks[4], (planes,), 0.5)),
            "conv2_w": nrm(ks[5], (planes, planes, 3, 3)),
            "bn2_gamma": 1.0 + nrm(ks[6], (planes,)),
            "bn2_beta": nrm(ks[7], (planes,)),
            "bn2_mean": nrm(ks[8], (planes,)),
            "bn2_var": 0.5 + jnp.abs(nrm(ks[9], (planes,), 0.5)),
        }
        if with_proj:
            p.update({
                "sc_w": nrm(ks[10], (planes, cin, 1, 1)),
                "sc_gamma": 1.0 + nrm(ks[11], (planes,)),
                "sc_beta": nrm(ks[12], (planes,)),
                "sc_mean": nrm(ks[13], (planes,)),
                "sc_var": 0.5 + jnp.abs(nrm(ks[14], (planes,), 0.5)),
            })
        return p

    kx1, kp1, kx2, kp2 = jax.random.split(key, 4)
    fwd = jax.jit(basic_block_forward, static_argnames=("stride", "block_batch"))

    # Config A: identity shortcut (in_planes == planes, stride=1), 2 images / grid step
    B, C, H, W = 4, 64, 16, 16
    x = jax.random.normal(kx1, (B, C, H, W), dtype=jnp.float32)
    params = make_params(kp1, C, C, with_proj=False)
    out = jax.block_until_ready(fwd(x, params, block_batch=2))
    ref = jax.block_until_ready(basic_block_reference(x, params))
    assert out.shape == (B, C, H, W), out.shape
    err = float(jnp.max(jnp.abs(out - ref)))
    assert err < 1e-2, f"identity-shortcut mismatch, max abs err {err}"

    # Config B: projection shortcut (in_planes != planes, stride=1)
    B2, Cin2, P2 = 2, 32, 64
    x2 = jax.random.normal(kx2, (B2, Cin2, H, W), dtype=jnp.float32)
    params2 = make_params(kp2, Cin2, P2, with_proj=True)
    out2 = jax.block_until_ready(fwd(x2, params2, block_batch=1))
    ref2 = jax.block_until_ready(basic_block_reference(x2, params2))
    assert out2.shape == (B2, P2, H, W), out2.shape
    err2 = float(jnp.max(jnp.abs(out2 - ref2)))
    assert err2 < 1e-2, f"projection-shortcut mismatch, max abs err {err2}"

    print("KERNEL_OK")
</pallas_src>

<mosaic_0001>
module attributes {stable_mosaic.version = 11 : i64} {
  func.func @kernel(%arg0: i32, %arg1: memref<64x768xf32, #tpu.memory_space<vmem>>, %arg2: memref<1x768xf32, #tpu.memory_space<vmem>>, %arg3: memref<9x64x64xf32, #tpu.memory_space<vmem>>, %arg4: memref<64x1xf32, #tpu.memory_space<vmem>>, %arg5: memref<9x64x64xf32, #tpu.memory_space<vmem>>, %arg6: memref<64x1xf32, #tpu.memory_space<vmem>>, %arg7: memref<64x768xf32, #tpu.memory_space<vmem>>) attributes {dimension_semantics = [#tpu.dimension_semantics<parallel>], iteration_bounds = array<i64: 2>, scalar_prefetch = 0 : i64, scratch_operands = 0 : i64, tpu.core_type = #tpu.core_type<tc>, window_params = [{transform_indices = @transform_0, window_bounds = array<i64: 64, 768>}, {pipeline_mode = #tpu.pipeline_mode<synchronous>, transform_indices = @transform_1, window_bounds = array<i64: 1, 768>}, {pipeline_mode = #tpu.pipeline_mode<synchronous>, transform_indices = @transform_2, window_bounds = array<i64: 9, 64, 64>}, {pipeline_mode = #tpu.pipeline_mode<synchronous>, transform_indices = @transform_3, window_bounds = array<i64: 64, 1>}, {pipeline_mode = #tpu.pipeline_mode<synchronous>, transform_indices = @transform_4, window_bounds = array<i64: 9, 64, 64>}, {pipeline_mode = #tpu.pipeline_mode<synchronous>, transform_indices = @transform_5, window_bounds = array<i64: 64, 1>}, {transform_indices = @transform_6, window_bounds = array<i64: 64, 768>}]} {
    %c0 = arith.constant 0 : index
    %c0_0 = arith.constant 0 : index
    %0 = vector.load %arg1[%c0, %c0_0] : memref<64x768xf32, #tpu.memory_space<vmem>>, vector<64x768xf32>
    %c0_1 = arith.constant 0 : index
    %c0_2 = arith.constant 0 : index
    %1 = vector.load %arg2[%c0_1, %c0_2] : memref<1x768xf32, #tpu.memory_space<vmem>>, vector<1x768xf32>
    %c19_i32 = arith.constant 19 : i32
    %2 = tpu.dynamic_rotate %0 by %c19_i32 dim 1 : vector<64x768xf32>, i32 -> vector<64x768xf32>
    %c0_3 = arith.constant 0 : index
    %c0_4 = arith.constant 0 : index
    %c0_5 = arith.constant 0 : index
    %3 = vector.load %arg3[%c0_3, %c0_4, %c0_5] : memref<9x64x64xf32, #tpu.memory_space<vmem>>, vector<1x64x64xf32>
    %4 = vector.shape_cast %3 : vector<1x64x64xf32> to vector<64x64xf32>
    %cst = arith.constant dense<0.000000e+00> : vector<64x768xf32>
    %5 = tpu.matmul %4, %2, %cst {dimension_numbers = #tpu.dot_dimension_numbers<[1], [0], [0], [1], [0, 0, 1, 1], [], []>} : vector<64x64xf32>, vector<64x768xf32>, vector<64x768xf32> -> vector<64x768xf32>
    %c18_i32 = arith.constant 18 : i32
    %6 = tpu.dynamic_rotate %0 by %c18_i32 dim 1 : vector<64x768xf32>, i32 -> vector<64x768xf32>
    %c1 = arith.constant 1 : index
    %c0_6 = arith.constant 0 : index
    %c0_7 = arith.constant 0 : index
    %7 = vector.load %arg3[%c1, %c0_6, %c0_7] : memref<9x64x64xf32, #tpu.memory_space<vmem>>, vector<1x64x64xf32>
    %8 = vector.shape_cast %7 : vector<1x64x64xf32> to vector<64x64xf32>
    %cst_8 = arith.constant dense<0.000000e+00> : vector<64x768xf32>
    %9 = tpu.matmul %8, %6, %cst_8 {dimension_numbers = #tpu.dot_dimension_numbers<[1], [0], [0], [1], [0, 0, 1, 1], [], []>} : vector<64x64xf32>, vector<64x768xf32>, vector<64x768xf32> -> vector<64x768xf32>
    %10 = arith.addf %5, %9 : vector<64x768xf32>
    %c17_i32 = arith.constant 17 : i32
    %11 = tpu.dynamic_rotate %0 by %c17_i32 dim 1 : vector<64x768xf32>, i32 -> vector<64x768xf32>
    %c2 = arith.constant 2 : index
    %c0_9 = arith.constant 0 : index
    %c0_10 = arith.constant 0 : index
    %12 = vector.load %arg3[%c2, %c0_9, %c0_10] : memref<9x64x64xf32, #tpu.memory_space<vmem>>, vector<1x64x64xf32>
    %13 = vector.shape_cast %12 : vector<1x64x64xf32> to vector<64x64xf32>
    %cst_11 = arith.constant dense<0.000000e+00> : vector<64x768xf32>
    %14 = tpu.matmul %13, %11, %cst_11 {dimension_numbers = #tpu.dot_dimension_numbers<[1], [0], [0], [1], [0, 0, 1, 1], [], []>} : vector<64x64xf32>, vector<64x768xf32>, vector<64x768xf32> -> vector<64x768xf32>
    %15 = arith.addf %10, %14 : vector<64x768xf32>
    %c1_i32 = arith.constant 1 : i32
    %16 = tpu.dynamic_rotate %0 by %c1_i32 dim 1 : vector<64x768xf32>, i32 -> vector<64x768xf32>
    %c3 = arith.constant 3 : index
    %c0_12 = arith.constant 0 : index
    %c0_13 = arith.constant 0 : index
    %17 = vector.load %arg3[%c3, %c0_12, %c0_13] : memref<9x64x64xf32, #tpu.memory_space<vmem>>, vector<1x64x64xf32>
    %18 = vector.shape_cast %17 : vector<1x64x64xf32> to vector<64x64xf32>
    %cst_14 = arith.constant dense<0.000000e+00> : vector<64x768xf32>
    %19 = tpu.matmul %18, %16, %cst_14 {dimension_numbers = #tpu.dot_dimension_numbers<[1], [0], [0], [1], [0, 0, 1, 1], [], []>} : vector<64x64xf32>, vector<64x768xf32>, vector<64x768xf32> -> vector<64x768xf32>
    %20 = arith.addf %15, %19 : vector<64x768xf32>
    %c4 = arith.constant 4 : index
    %c0_15 = arith.constant 0 : index
    %c0_16 = arith.constant 0 : index
    %21 = vector.load %arg3[%c4, %c0_15, %c0_16] : memref<9x64x64xf32, #tpu.memory_space<vmem>>, vector<1x64x64xf32>
    %22 = vector.shape_cast %21 : vector<1x64x64xf32> to vector<64x64xf32>
    %cst_17 = arith.constant dense<0.000000e+00> : vector<64x768xf32>
    %23 = tpu.matmul %22, %0, %cst_17 {dimension_numbers = #tpu.dot_dimension_numbers<[1], [0], [0], [1], [0, 0, 1, 1], [], []>} : vector<64x64xf32>, vector<64x768xf32>, vector<64x768xf32> -> vector<64x768xf32>
    %24 = arith.addf %20, %23 : vector<64x768xf32>
    %c767_i32 = arith.constant 767 : i32
    %25 = tpu.dynamic_rotate %0 by %c767_i32 dim 1 : vector<64x768xf32>, i32 -> vector<64x768xf32>
    %c5 = arith.constant 5 : index
    %c0_18 = arith.constant 0 : index
    %c0_19 = arith.constant 0 : index
    %26 = vector.load %arg3[%c5, %c0_18, %c0_19] : memref<9x64x64xf32, #tpu.memory_space<vmem>>, vector<1x64x64xf32>
    %27 = vector.shape_cast %26 : vector<1x64x64xf32> to vector<64x64xf32>
    %cst_20 = arith.constant dense<0.000000e+00> : vector<64x768xf32>
    %28 = tpu.matmul %27, %25, %cst_20 {dimension_numbers = #tpu.dot_dimension_numbers<[1], [0], [0], [1], [0, 0, 1, 1], [], []>} : vector<64x64xf32>, vector<64x768xf32>, vector<64x768xf32> -> vector<64x768xf32>
    %29 = arith.addf %24, %28 : vector<64x768xf32>
    %c751_i32 = arith.constant 751 : i32
    %30 = tpu.dynamic_rotate %0 by %c751_i32 dim 1 : vector<64x768xf32>, i32 -> vector<64x768xf32>
    %c6 = arith.constant 6 : index
    %c0_21 = arith.constant 0 : index
    %c0_22 = arith.constant 0 : index
    %31 = vector.load %arg3[%c6, %c0_21, %c0_22] : memref<9x64x64xf32, #tpu.memory_space<vmem>>, vector<1x64x64xf32>
    %32 = vector.shape_cast %31 : vector<1x64x64xf32> to vector<64x64xf32>
    %cst_23 = arith.constant dense<0.000000e+00> : vector<64x768xf32>
    %33 = tpu.matmul %32, %30, %cst_23 {dimension_numbers = #tpu.dot_dimension_numbers<[1], [0], [0], [1], [0, 0, 1, 1], [], []>} : vector<64x64xf32>, vector<64x768xf32>, vector<64x768xf32> -> vector<64x768xf32>
    %34 = arith.addf %29, %33 : vector<64x768xf32>
    %c750_i32 = arith.constant 750 : i32
    %35 = tpu.dynamic_rotate %0 by %c750_i32 dim 1 : vector<64x768xf32>, i32 -> vector<64x768xf32>
    %c7 = arith.constant 7 : index
    %c0_24 = arith.constant 0 : index
    %c0_25 = arith.constant 0 : index
    %36 = vector.load %arg3[%c7, %c0_24, %c0_25] : memref<9x64x64xf32, #tpu.memory_space<vmem>>, vector<1x64x64xf32>
    %37 = vector.shape_cast %36 : vector<1x64x64xf32> to vector<64x64xf32>
    %cst_26 = arith.constant dense<0.000000e+00> : vector<64x768xf32>
    %38 = tpu.matmul %37, %35, %cst_26 {dimension_numbers = #tpu.dot_dimension_numbers<[1], [0], [0], [1], [0, 0, 1, 1], [], []>} : vector<64x64xf32>, vector<64x768xf32>, vector<64x768xf32> -> vector<64x768xf32>
    %39 = arith.addf %34, %38 : vector<64x768xf32>
    %c749_i32 = arith.constant 749 : i32
    %40 = tpu.dynamic_rotate %0 by %c749_i32 dim 1 : vector<64x768xf32>, i32 -> vector<64x768xf32>
    %c8 = arith.constant 8 : index
    %c0_27 = arith.constant 0 : index
    %c0_28 = arith.constant 0 : index
    %41 = vector.load %arg3[%c8, %c0_27, %c0_28] : memref<9x64x64xf32, #tpu.memory_space<vmem>>, vector<1x64x64xf32>
    %42 = vector.shape_cast %41 : vector<1x64x64xf32> to vector<64x64xf32>
    %cst_29 = arith.constant dense<0.000000e+00> : vector<64x768xf32>
    %43 = tpu.matmul %42, %40, %cst_29 {dimension_numbers = #tpu.dot_dimension_numbers<[1], [0], [0], [1], [0, 0, 1, 1], [], []>} : vector<64x64xf32>, vector<64x768xf32>, vector<64x768xf32> -> vector<64x768xf32>
    %44 = arith.addf %39, %43 : vector<64x768xf32>
    %c0_30 = arith.constant 0 : index
    %c0_31 = arith.constant 0 : index
    %45 = vector.load %arg4[%c0_30, %c0_31] : memref<64x1xf32, #tpu.memory_space<vmem>>, vector<64x1xf32>
    %46 = vector.broadcast %45 : vector<64x1xf32> to vector<64x768xf32>
    %47 = arith.addf %44, %46 : vector<64x768xf32>
    %cst_32 = arith.constant 0.000000e+00 : f32
    %48 = vector.broadcast %cst_32 : f32 to vector<64x768xf32>
    %49 = arith.maximumf %47, %48 : vector<64x768xf32>
    %50 = vector.broadcast %1 : vector<1x768xf32> to vector<64x768xf32>
    %51 = arith.mulf %49, %50 : vector<64x768xf32>
    %c19_i32_33 = arith.constant 19 : i32
    %52 = tpu.dynamic_rotate %51 by %c19_i32_33 dim 1 : vector<64x768xf32>, i32 -> vector<64x768xf32>
    %c0_34 = arith.constant 0 : index
    %c0_35 = arith.constant 0 : index
    %c0_36 = arith.constant 0 : index
    %53 = vector.load %arg5[%c0_34, %c0_35, %c0_36] : memref<9x64x64xf32, #tpu.memory_space<vmem>>, vector<1x64x64xf32>
    %54 = vector.shape_cast %53 : vector<1x64x64xf32> to vector<64x64xf32>
    %cst_37 = arith.constant dense<0.000000e+00> : vector<64x768xf32>
    %55 = tpu.matmul %54, %52, %cst_37 {dimension_numbers = #tpu.dot_dimension_numbers<[1], [0], [0], [1], [0, 0, 1, 1], [], []>} : vector<64x64xf32>, vector<64x768xf32>, vector<64x768xf32> -> vector<64x768xf32>
    %c18_i32_38 = arith.constant 18 : i32
    %56 = tpu.dynamic_rotate %51 by %c18_i32_38 dim 1 : vector<64x768xf32>, i32 -> vector<64x768xf32>
    %c1_39 = arith.constant 1 : index
    %c0_40 = arith.constant 0 : index
    %c0_41 = arith.constant 0 : index
    %57 = vector.load %arg5[%c1_39, %c0_40, %c0_41] : memref<9x64x64xf32, #tpu.memory_space<vmem>>, vector<1x64x64xf32>
    %58 = vector.shape_cast %57 : vector<1x64x64xf32> to vector<64x64xf32>
    %cst_42 = arith.constant dense<0.000000e+00> : vector<64x768xf32>
    %59 = tpu.matmul %58, %56, %cst_42 {dimension_numbers = #tpu.dot_dimension_numbers<[1], [0], [0], [1], [0, 0, 1, 1], [], []>} : vector<64x64xf32>, vector<64x768xf32>, vector<64x768xf32> -> vector<64x768xf32>
    %60 = arith.addf %55, %59 : vector<64x768xf32>
    %c17_i32_43 = arith.constant 17 : i32
    %61 = tpu.dynamic_rotate %51 by %c17_i32_43 dim 1 : vector<64x768xf32>, i32 -> vector<64x768xf32>
    %c2_44 = arith.constant 2 : index
    %c0_45 = arith.constant 0 : index
    %c0_46 = arith.constant 0 : index
    %62 = vector.load %arg5[%c2_44, %c0_45, %c0_46] : memref<9x64x64xf32, #tpu.memory_space<vmem>>, vector<1x64x64xf32>
    %63 = vector.shape_cast %62 : vector<1x64x64xf32> to vector<64x64xf32>
    %cst_47 = arith.constant dense<0.000000e+00> : vector<64x768xf32>
    %64 = tpu.matmul %63, %61, %cst_47 {dimension_numbers = #tpu.dot_dimension_numbers<[1], [0], [0], [1], [0, 0, 1, 1], [], []>} : vector<64x64xf32>, vector<64x768xf32>, vector<64x768xf32> -> vector<64x768xf32>
    %65 = arith.addf %60, %64 : vector<64x768xf32>
    %c1_i32_48 = arith.constant 1 : i32
    %66 = tpu.dynamic_rotate %51 by %c1_i32_48 dim 1 : vector<64x768xf32>, i32 -> vector<64x768xf32>
    %c3_49 = arith.constant 3 : index
    %c0_50 = arith.constant 0 : index
    %c0_51 = arith.constant 0 : index
    %67 = vector.load %arg5[%c3_49, %c0_50, %c0_51] : memref<9x64x64xf32, #tpu.memory_space<vmem>>, vector<1x64x64xf32>
    %68 = vector.shape_cast %67 : vector<1x64x64xf32> to vector<64x64xf32>
    %cst_52 = arith.constant dense<0.000000e+00> : vector<64x768xf32>
    %69 = tpu.matmul %68, %66, %cst_52 {dimension_numbers = #tpu.dot_dimension_numbers<[1], [0], [0], [1], [0, 0, 1, 1], [], []>} : vector<64x64xf32>, vector<64x768xf32>, vector<64x768xf32> -> vector<64x768xf32>
    %70 = arith.addf %65, %69 : vector<64x768xf32>
    %c4_53 = arith.constant 4 : index
    %c0_54 = arith.constant 0 : index
    %c0_55 = arith.constant 0 : index
    %71 = vector.load %arg5[%c4_53, %c0_54, %c0_55] : memref<9x64x64xf32, #tpu.memory_space<vmem>>, vector<1x64x64xf32>
    %72 = vector.shape_cast %71 : vector<1x64x64xf32> to vector<64x64xf32>
    %cst_56 = arith.constant dense<0.000000e+00> : vector<64x768xf32>
    %73 = tpu.matmul %72, %51, %cst_56 {dimension_numbers = #tpu.dot_dimension_numbers<[1], [0], [0], [1], [0, 0, 1, 1], [], []>} : vector<64x64xf32>, vector<64x768xf32>, vector<64x768xf32> -> vector<64x768xf32>
    %74 = arith.addf %70, %73 : vector<64x768xf32>
    %c767_i32_57 = arith.constant 767 : i32
    %75 = tpu.dynamic_rotate %51 by %c767_i32_57 dim 1 : vector<64x768xf32>, i32 -> vector<64x768xf32>
    %c5_58 = arith.constant 5 : index
    %c0_59 = arith.constant 0 : index
    %c0_60 = arith.constant 0 : index
    %76 = vector.load %arg5[%c5_58, %c0_59, %c0_60] : memref<9x64x64xf32, #tpu.memory_space<vmem>>, vector<1x64x64xf32>
    %77 = vector.shape_cast %76 : vector<1x64x64xf32> to vector<64x64xf32>
    %cst_61 = arith.constant dense<0.000000e+00> : vector<64x768xf32>
    %78 = tpu.matmul %77, %75, %cst_61 {dimension_numbers = #tpu.dot_dimension_numbers<[1], [0], [0], [1], [0, 0, 1, 1], [], []>} : vector<64x64xf32>, vector<64x768xf32>, vector<64x768xf32> -> vector<64x768xf32>
    %79 = arith.addf %74, %78 : vector<64x768xf32>
    %c751_i32_62 = arith.constant 751 : i32
    %80 = tpu.dynamic_rotate %51 by %c751_i32_62 dim 1 : vector<64x768xf32>, i32 -> vector<64x768xf32>
    %c6_63 = arith.constant 6 : index
    %c0_64 = arith.constant 0 : index
    %c0_65 = arith.constant 0 : index
    %81 = vector.load %arg5[%c6_63, %c0_64, %c0_65] : memref<9x64x64xf32, #tpu.memory_space<vmem>>, vector<1x64x64xf32>
    %82 = vector.shape_cast %81 : vector<1x64x64xf32> to vector<64x64xf32>
    %cst_66 = arith.constant dense<0.000000e+00> : vector<64x768xf32>
    %83 = tpu.matmul %82, %80, %cst_66 {dimension_numbers = #tpu.dot_dimension_numbers<[1], [0], [0], [1], [0, 0, 1, 1], [], []>} : vector<64x64xf32>, vector<64x768xf32>, vector<64x768xf32> -> vector<64x768xf32>
    %84 = arith.addf %79, %83 : vector<64x768xf32>
    %c750_i32_67 = arith.constant 750 : i32
    %85 = tpu.dynamic_rotate %51 by %c750_i32_67 dim 1 : vector<64x768xf32>, i32 -> vector<64x768xf32>
    %c7_68 = arith.constant 7 : index
    %c0_69 = arith.constant 0 : index
    %c0_70 = arith.constant 0 : index
    %86 = vector.load %arg5[%c7_68, %c0_69, %c0_70] : memref<9x64x64xf32, #tpu.memory_space<vmem>>, vector<1x64x64xf32>
    %87 = vector.shape_cast %86 : vector<1x64x64xf32> to vector<64x64xf32>
    %cst_71 = arith.constant dense<0.000000e+00> : vector<64x768xf32>
    %88 = tpu.matmul %87, %85, %cst_71 {dimension_numbers = #tpu.dot_dimension_numbers<[1], [0], [0], [1], [0, 0, 1, 1], [], []>} : vector<64x64xf32>, vector<64x768xf32>, vector<64x768xf32> -> vector<64x768xf32>
    %89 = arith.addf %84, %88 : vector<64x768xf32>
    %c749_i32_72 = arith.constant 749 : i32
    %90 = tpu.dynamic_rotate %51 by %c749_i32_72 dim 1 : vector<64x768xf32>, i32 -> vector<64x768xf32>
    %c8_73 = arith.constant 8 : index
    %c0_74 = arith.constant 0 : index
    %c0_75 = arith.constant 0 : index
    %91 = vector.load %arg5[%c8_73, %c0_74, %c0_75] : memref<9x64x64xf32, #tpu.memory_space<vmem>>, vector<1x64x64xf32>
    %92 = vector.shape_cast %91 : vector<1x64x64xf32> to vector<64x64xf32>
    %cst_76 = arith.constant dense<0.000000e+00> : vector<64x768xf32>
    %93 = tpu.matmul %92, %90, %cst_76 {dimension_numbers = #tpu.dot_dimension_numbers<[1], [0], [0], [1], [0, 0, 1, 1], [], []>} : vector<64x64xf32>, vector<64x768xf32>, vector<64x768xf32> -> vector<64x768xf32>
    %94 = arith.addf %89, %93 : vector<64x768xf32>
    %c0_77 = arith.constant 0 : index
    %c0_78 = arith.constant 0 : index
    %95 = vector.load %arg6[%c0_77, %c0_78] : memref<64x1xf32, #tpu.memory_space<vmem>>, vector<64x1xf32>
    %96 = vector.broadcast %95 : vector<64x1xf32> to vector<64x768xf32>
    %97 = arith.addf %94, %96 : vector<64x768xf32>
    %98 = arith.addf %97, %0 : vector<64x768xf32>
    %cst_79 = arith.constant 0.000000e+00 : f32
    %99 = vector.broadcast %cst_79 : f32 to vector<64x768xf32>
    %100 = arith.maximumf %98, %99 : vector<64x768xf32>
    %c0_80 = arith.constant 0 : index
    %c0_81 = arith.constant 0 : index
    %101 = vector.load %arg7[%c0_80, %c0_81] : memref<64x768xf32, #tpu.memory_space<vmem>>, vector<64x768xf32>
    tpu.vector_store %arg7[%c0_80, %c0_81], %100 {strides = array<i32>} : memref<64x768xf32, #tpu.memory_space<vmem>>, vector<64x768xf32>,
    return
  }
  func.func @transform_0(%arg0: i32) -> (i32, i32) {
    %c0_i32 = arith.constant 0 : i32
    %c0_i32_0 = arith.constant 0 : i32
    return %c0_i32, %arg0 : i32, i32
  }
  func.func @transform_1(%arg0: i32) -> (i32, i32) {
    %c0_i32 = arith.constant 0 : i32
    %c0_i32_0 = arith.constant 0 : i32
    %c0_i32_1 = arith.constant 0 : i32
    return %c0_i32, %c0_i32_0 : i32, i32
  }
  func.func @transform_2(%arg0: i32) -> (i32, i32, i32) {
    %c0_i32 = arith.constant 0 : i32
    %c0_i32_0 = arith.constant 0 : i32
    %c0_i32_1 = arith.constant 0 : i32
    %c0_i32_2 = arith.constant 0 : i32
    return %c0_i32, %c0_i32_0, %c0_i32_1 : i32, i32, i32
  }
  func.func @transform_3(%arg0: i32) -> (i32, i32) {
    %c0_i32 = arith.constant 0 : i32
    %c0_i32_0 = arith.constant 0 : i32
    %c0_i32_1 = arith.constant 0 : i32
    return %c0_i32, %c0_i32_0 : i32, i32
  }
  func.func @transform_4(%arg0: i32) -> (i32, i32, i32) {
    %c0_i32 = arith.constant 0 : i32
    %c0_i32_0 = arith.constant 0 : i32
    %c0_i32_1 = arith.constant 0 : i32
    %c0_i32_2 = arith.constant 0 : i32
    return %c0_i32, %c0_i32_0, %c0_i32_1 : i32, i32, i32
  }
  func.func @transform_5(%arg0: i32) -> (i32, i32) {
    %c0_i32 = arith.constant 0 : i32
    %c0_i32_0 = arith.constant 0 : i32
    %c0_i32_1 = arith.constant 0 : i32
    return %c0_i32, %c0_i32_0 : i32, i32
  }
  func.func @transform_6(%arg0: i32) -> (i32, i32) {
    %c0_i32 = arith.constant 0 : i32
    %c0_i32_0 = arith.constant 0 : i32
    return %c0_i32, %arg0 : i32, i32
  }
}

</mosaic_0001>

<llo_original>
// kernel: basic_block_forward.1
$region0: #{basic_block_forward.1}
  #allocation0 [shape = 'u32[]', space=smem, size = 0x4, offset = 0x4, fixed_abs, tag = 'smem constant byte address 0x4 - core index']
  #allocation1 [shape = 'u32[72,128]{1,0:T(1,128)}', space=vmem, size = 0x9000, scoped, tag = 'internal scratch']
  %s0 = inlined_call_operand.vmem [shape: f32[64,1536], index: 0, kind: input, shape index: {}]
  %s1 = inlined_call_operand.vmem [shape: f32[1,768], index: 1, kind: input, shape index: {}]
  %s2 = inlined_call_operand.vmem [shape: f32[9,64,64], index: 2, kind: input, shape index: {}]
  %s3 = inlined_call_operand.vmem [shape: f32[64,1], index: 3, kind: input, shape index: {}]
  %s4 = inlined_call_operand.vmem [shape: f32[9,64,64], index: 4, kind: input, shape index: {}]
  %s5 = inlined_call_operand.vmem [shape: f32[64,1], index: 5, kind: input, shape index: {}]
  %s6 = inlined_call_operand.vmem [shape: f32[64,1536], index: 6, kind: output, shape index: {}]
  %s7 = sld [smem:[#allocation0]]
  $region99: #{basic_block_forward.1} parent=0
    _
  %s9 = ssub.s32 1, %s7
  %s10 = scalar_select 0, %s9, %s7
  $region1: #{basic_block_forward.1} parent=0
    #allocation2 [shape = 'u8[393216]{0}', space=vmem, size = 0x60000, scoped, tag = 'input window, operand 0']
    #allocation3 [shape = 'u8[393216]{0}', space=vmem, size = 0x60000, scoped, tag = 'output window, operand 0']
    loop: start=0, step=1, limit=4
    $region2: #{basic_block_forward.1} parent=1 // loop_pre_header
      _
    $region3: #{basic_block_forward.1} parent=1 // loop_header
      %s12 = sphi 0, %s16
      %p13 = scmp.ge.s32.totalorder %s12, 4
      %s22 = sphi 0, %s24
      %s25 = sphi 0, %s22
      %s26 = sphi 0, %s25
      %s42 = sphi 0, %s26
      %s46 = sphi 0, %s46
      %s48 = sphi 0, %s46
      %s49 = sphi 0, %s48
      %s63 = sphi 0, %s49
      %s67 = sphi 0, %s67
      %s69 = sphi 0, %s67
      %s70 = sphi 0, %s69
      %s84 = sphi 0, %s70
      %s88 = sphi 0, %s88
      %s90 = sphi 0, %s88
      %s91 = sphi 0, %s90
      %s105 = sphi 0, %s91
      %s109 = sphi 0, %s109
      %s111 = sphi 0, %s109
      %s112 = sphi 0, %s111
      %s126 = sphi 0, %s112
      %s130 = sphi 0, %s130
      %s132 = sphi 0, %s130
      %s133 = sphi 0, %s132
      %s147 = sphi 0, %s133
      %s153 = sphi 0, %s155
      %s156 = sphi 0, %s153
      %s157 = sphi 0, %s156
      %s173 = sphi 0, %s157
    $region4: #{basic_block_forward.1} parent=1 // loop_header_branch
      %15 = sbr.rel (%p13) target = $region8
    $region5: #{basic_block_forward.1} parent=1 // loop_body
      %s17 = ssub.s32 %s12, 1
      %s18 = ssub.s32 %s12, 2
      %s19 = sadd.s32 %s12, 1
      %s20 = ssub.s32 %s12, %s19
      %p21 = scmp.eq.s32.totalorder %s20, 0
      %s23 = sadd.s32 %s22, 1
      %s24 = scalar_select %p21, %s22, %s23
      %p27 = pneg %p21
      %p28 = scmp.eq.s32.totalorder %s12, 1
      %p29 = por %p27, %p28
      %p30 = scmp.ne.s32.totalorder %s22, %s25
      %p31 = scmp.eq.s32.totalorder %s12, 0
      %p32 = por %p30, %p31
      %p33 = scmp.ne.s32.totalorder %s22, %s25
      %p34 = scmp.eq.s32.totalorder %s17, 1
      %p35 = por %p33, %p34
      %p36 = scmp.ne.s32.totalorder %s25, %s26
      %p37 = scmp.eq.s32.totalorder %s17, 0
      %p38 = por %p36, %p37
      %p39 = scmp.ne.s32.totalorder %s25, %s26
      %p40 = scmp.eq.s32.totalorder %s18, 1
      %p41 = por %p39, %p40
      %p43 = scmp.ne.s32.totalorder %s26, %s42
      %p44 = scmp.eq.s32.totalorder %s18, 0
      %p45 = por %p43, %p44
      %s47 = sadd.s32 %s46, 1
      %p50 = scmp.eq.s32.totalorder %s12, 1
      %p51 = scmp.ne.s32.totalorder %s46, %s48
      %p52 = scmp.eq.s32.totalorder %s12, 0
      %p53 = por %p51, %p52
      %p54 = scmp.ne.s32.totalorder %s46, %s48
      %p55 = scmp.eq.s32.totalorder %s17, 1
      %p56 = por %p54, %p55
      %p57 = scmp.ne.s32.totalorder %s48, %s49
      %p58 = scmp.eq.s32.totalorder %s17, 0
      %p59 = por %p57, %p58
      %p60 = scmp.ne.s32.totalorder %s48, %s49
      %p61 = scmp.eq.s32.totalorder %s18, 1
      %p62 = por %p60, %p61
      %p64 = scmp.ne.s32.totalorder %s49, %s63
      %p65 = scmp.eq.s32.totalorder %s18, 0
      %p66 = por %p64, %p65
      %s68 = sadd.s32 %s67, 1
      %p71 = scmp.eq.s32.totalorder %s12, 1
      %p72 = scmp.ne.s32.totalorder %s67, %s69
      %p73 = scmp.eq.s32.totalorder %s12, 0
      %p74 = por %p72, %p73
      %p75 = scmp.ne.s32.totalorder %s67, %s69
      %p76 = scmp.eq.s32.totalorder %s17, 1
      %p77 = por %p75, %p76
      %p78 = scmp.ne.s32.totalorder %s69, %s70
      %p79 = scmp.eq.s32.totalorder %s17, 0
      %p80 = por %p78, %p79
      %p81 = scmp.ne.s32.totalorder %s69, %s70
      %p82 = scmp.eq.s32.totalorder %s18, 1
      %p83 = por %p81, %p82
      %p85 = scmp.ne.s32.totalorder %s70, %s84
      %p86 = scmp.eq.s32.totalorder %s18, 0
      %p87 = por %p85, %p86
      %s89 = sadd.s32 %s88, 1
      %p92 = scmp.eq.s32.totalorder %s12, 1
      %p93 = scmp.ne.s32.totalorder %s88, %s90
      %p94 = scmp.eq.s32.totalorder %s12, 0
      %p95 = por %p93, %p94
      %p96 = scmp.ne.s32.totalorder %s88, %s90
      %p97 = scmp.eq.s32.totalorder %s17, 1
      %p98 = por %p96, %p97
      %p99 = scmp.ne.s32.totalorder %s90, %s91
      %p100 = scmp.eq.s32.totalorder %s17, 0
      %p101 = por %p99, %p100
      %p102 = scmp.ne.s32.totalorder %s90, %s91
      %p103 = scmp.eq.s32.totalorder %s18, 1
      %p104 = por %p102, %p103
      %p106 = scmp.ne.s32.totalorder %s91, %s105
      %p107 = scmp.eq.s32.totalorder %s18, 0
      %p108 = por %p106, %p107
      %s110 = sadd.s32 %s109, 1
      %p113 = scmp.eq.s32.totalorder %s12, 1
      %p114 = scmp.ne.s32.totalorder %s109, %s111
      %p115 = scmp.eq.s32.totalorder %s12, 0
      %p116 = por %p114, %p115
      %p117 = scmp.ne.s32.totalorder %s109, %s111
      %p118 = scmp.eq.s32.totalorder %s17, 1
      %p119 = por %p117, %p118
      %p120 = scmp.ne.s32.totalorder %s111, %s112
      %p121 = scmp.eq.s32.totalorder %s17, 0
      %p122 = por %p120, %p121
      %p123 = scmp.ne.s32.totalorder %s111, %s112
      %p124 = scmp.eq.s32.totalorder %s18, 1
      %p125 = por %p123, %p124
      %p127 = scmp.ne.s32.totalorder %s112, %s126
      %p128 = scmp.eq.s32.totalorder %s18, 0
      %p129 = por %p127, %p128
      %s131 = sadd.s32 %s130, 1
      %p134 = scmp.eq.s32.totalorder %s12, 1
      %p135 = scmp.ne.s32.totalorder %s130, %s132
      %p136 = scmp.eq.s32.totalorder %s12, 0
      %p137 = por %p135, %p136
      %p138 = scmp.ne.s32.totalorder %s130, %s132
      %p139 = scmp.eq.s32.totalorder %s17, 1
      %p140 = por %p138, %p139
      %p141 = scmp.ne.s32.totalorder %s132, %s133
      %p142 = scmp.eq.s32.totalorder %s17, 0
      %p143 = por %p141, %p142
      %p144 = scmp.ne.s32.totalorder %s132, %s133
      %p145 = scmp.eq.s32.totalorder %s18, 1
      %p146 = por %p144, %p145
      %p148 = scmp.ne.s32.totalorder %s133, %s147
      %p149 = scmp.eq.s32.totalorder %s18, 0
      %p150 = por %p148, %p149
      %s151 = ssub.s32 %s12, %s19
      %p152 = scmp.eq.s32.totalorder %s151, 0
      %s154 = sadd.s32 %s153, 1
      %s155 = scalar_select %p152, %s153, %s154
      %p158 = pneg %p152
      %p159 = scmp.eq.s32.totalorder %s12, 1
      %p160 = por %p158, %p159
      %p161 = scmp.ne.s32.totalorder %s153, %s156
      %p162 = scmp.eq.s32.totalorder %s12, 0
      %p163 = por %p161, %p162
      %p164 = scmp.ne.s32.totalorder %s153, %s156
      %p165 = scmp.eq.s32.totalorder %s17, 1
      %p166 = por %p164, %p165
      %p167 = scmp.ne.s32.totalorder %s156, %s157
      %p168 = scmp.eq.s32.totalorder %s17, 0
      %p169 = por %p167, %p168
      %p170 = scmp.ne.s32.totalorder %s156, %s157
      %p171 = scmp.eq.s32.totalorder %s18, 1
      %p172 = por %p170, %p171
      %p174 = scmp.ne.s32.totalorder %s157, %s173
      %p175 = scmp.eq.s32.totalorder %s18, 0
      %p176 = por %p174, %p175
      %p177 = scmp.le.s32.totalorder 1, %s12
      %p178 = scmp.lt.s32.totalorder %s12, 3
      %p179 = pnand %p177, %p178
      %p180 = pneg %p179
      // Predicated region
      $region9: #{basic_block_forward.1} parent=5 // pred_check
        _
      $region10: #{basic_block_forward.1} parent=5 // pred_check_branch
        %182 = sbr.rel (%p179) target = $region12
      $region11: #{basic_block_forward.1} parent=5 // pred_region
        %s183 = ssub.s32 %s12, 1
        // Predicated region
        $region13: #{basic_block_forward.1} parent=11 // pred_check
          %p184 = pneg %p59
        $region14: #{basic_block_forward.1} parent=11 // pred_check_branch
          %186 = sbr.rel (%p184) target = $region16
        $region15: #{basic_block_forward.1} parent=11 // pred_region
          _
        $region16: #{basic_block_forward.1} parent=11 // pred_fallthru
          _
        // Predicated region
        $region17: #{basic_block_forward.1} parent=11 // pred_check
          %p187 = pneg %p80
        $region18: #{basic_block_forward.1} parent=11 // pred_check_branch
          %189 = sbr.rel (%p187) target = $region20
        $region19: #{basic_block_forward.1} parent=11 // pred_region
          _
        $region20: #{basic_block_forward.1} parent=11 // pred_fallthru
          _
        // Predicated region
        $region21: #{basic_block_forward.1} parent=11 // pred_check
          %p190 = pneg %p101
        $region22: #{basic_block_forward.1} parent=11 // pred_check_branch
          %192 = sbr.rel (%p190) target = $region24
        $region23: #{basic_block_forward.1} parent=11 // pred_region
          _
        $region24: #{basic_block_forward.1} parent=11 // pred_fallthru
          _
        // Predicated region
        $region25: #{basic_block_forward.1} parent=11 // pred_check
          %p193 = pneg %p122
        $region26: #{basic_block_forward.1} parent=11 // pred_check_branch
          %195 = sbr.rel (%p193) target = $region28
        $region27: #{basic_block_forward.1} parent=11 // pred_region
          _
        $region28: #{basic_block_forward.1} parent=11 // pred_fallthru
          _
        // Predicated region
        $region29: #{basic_block_forward.1} parent=11 // pred_check
          %p196 = pneg %p143
        $region30: #{basic_block_forward.1} parent=11 // pred_check_branch
          %198 = sbr.rel (%p196) target = $region32
        $region31: #{basic_block_forward.1} parent=11 // pred_region
          _
        $region32: #{basic_block_forward.1} parent=11 // pred_fallthru
          _
      $region12: #{basic_block_forward.1} parent=5 // pred_fallthru
        _
      %p199 = scmp.lt.s32.totalorder %s12, 2
      // Predicated region
      $region33: #{basic_block_forward.1} parent=5 // pred_check
        %p200 = pneg %p199
      $region34: #{basic_block_forward.1} parent=5 // pred_check_branch
        %202 = sbr.rel (%p200) target = $region36
      $region35: #{basic_block_forward.1} parent=5 // pred_region
        // Predicated region
        $region37: #{basic_block_forward.1} parent=35 // pred_check
          %p203 = pneg %p32
        $region38: #{basic_block_forward.1} parent=35 // pred_check_branch
          %205 = sbr.rel (%p203) target = $region40
        $region39: #{basic_block_forward.1} parent=35 // pred_region
          %s206 = sand.u32 %s22, 1
          %s207 = sand.u32 %s22, 1
          %s208 = smul.addr %s207, 384
          %s209 = scalar_lea.vmem [#allocation2], %s208
          %s210 = smul.u32 6, %s12
          %s211 = smul.addr %s210, 8
          %s212 = scalar_lea.vmem %s0, %s211
          // Predicated region
          $region41: #{basic_block_forward.1} parent=39 // pred_check
            _
          $region42: #{basic_block_forward.1} parent=39 // pred_check_branch
            %214 = sbr.rel (0) target = $region44
          $region43: #{basic_block_forward.1} parent=39 // pred_region
            // Predicated region
            $region45: #{basic_block_forward.1} parent=43 // pred_check
              _
            $region46: #{basic_block_forward.1} parent=43 // pred_check_branch
              %216 = sbr.rel (0) target = $region48
            $region47: #{basic_block_forward.1} parent=43 // pred_region
              loop: start=0, step=1, limit=1
              $region49: #{basic_block_forward.1} parent=47 // loop_pre_header
                _
              $region50: #{basic_block_forward.1} parent=47 // loop_header
                %s218 = sphi 0, %s222
                %p219 = scmp.ge.s32.totalorder %s218, 1
                %s223 = sphi %s212, %s212
                %s224 = sphi %s209, %s209
              $region51: #{basic_block_forward.1} parent=47 // loop_header_branch
                %221 = sbr.rel (%p219) target = $region55
              $region52: #{basic_block_forward.1} parent=47 // loop_body
                %v225 = vld [vmem:[%s223] sm:$0xff]
                %226 = vst [vmem:[%s224] sm:$0xff] %v225
                %v227 = vld [vmem:[%s223 + $0x8] sm:$0xff]
                %228 = vst [vmem:[%s224 + $0x8] sm:$0xff] %v227
                %v229 = vld [vmem:[%s223 + $0x10] sm:$0xff]
                %230 = vst [vmem:[%s224 + $0x10] sm:$0xff] %v229
                %v231 = vld [vmem:[%s223 + $0x18] sm:$0xff]
                %232 = vst [vmem:[%s224 + $0x18] sm:$0xff] %v231
                %v233 = vld [vmem:[%s223 + $0x20] sm:$0xff]
                %234 = vst [vmem:[%s224 + $0x20] sm:$0xff] %v233
                %v235 = vld [vmem:[%s223 + $0x28] sm:$0xff]
                %236 = vst [vmem:[%s224 + $0x28] sm:$0xff] %v235
                %v237 = vld [vmem:[%s223 + $0x60] sm:$0xff]
                %238 = vst [vmem:[%s224 + $0x30] sm:$0xff] %v237
                %v239 = vld [vmem:[%s223 + $0x68] sm:$0xff]
                %240 = vst [vmem:[%s224 + $0x38] sm:$0xff] %v239
                %v241 = vld [vmem:[%s223 + $0x70] sm:$0xff]
                %242 = vst [vmem:[%s224 + $0x40] sm:$0xff] %v241
                %v243 = vld [vmem:[%s223 + $0x78] sm:$0xff]
                %244 = vst [vmem:[%s224 + $0x48] sm:$0xff] %v243
                %v245 = vld [vmem:[%s223 + $0x80] sm:$0xff]
                %246 = vst [vmem:[%s224 + $0x50] sm:$0xff] %v245
                %v247 = vld [vmem:[%s223 + $0x88] sm:$0xff]
                %248 = vst [vmem:[%s224 + $0x58] sm:$0xff] %v247
                %v249 = vld [vmem:[%s223 + $0xc0] sm:$0xff]
                %250 = vst [vmem:[%s224 + $0x60] sm:$0xff] %v249
                %v251 = vld [vmem:[%s223 + $0xc8] sm:$0xff]
                %252 = vst [vmem:[%s224 + $0x68] sm:$0xff] %v251
                %v253 = vld [vmem:[%s223 + $0xd0] sm:$0xff]
                %254 = vst [vmem:[%s224 + $0x70] sm:$0xff] %v253
                %v255 = vld [vmem:[%s223 + $0xd8] sm:$0xff]
                %256 = vst [vmem:[%s224 + $0x78] sm:$0xff] %v255
                %v257 = vld [vmem:[%s223 + $0xe0] sm:$0xff]
                %258 = vst [vmem:[%s224 + $0x80] sm:$0xff] %v257
                %v259 = vld [vmem:[%s223 + $0xe8] sm:$0xff]
                %260 = vst [vmem:[%s224 + $0x88] sm:$0xff] %v259
                %v261 = vld [vmem:[%s223 + $0x120] sm:$0xff]
                %262 = vst [vmem:[%s224 + $0x90] sm:$0xff] %v261
                %v263 = vld [vmem:[%s223 + $0x128] sm:$0xff]
                %264 = vst [vmem:[%s224 + $0x98] sm:$0xff] %v263
                %v265 = vld [vmem:[%s223 + $0x130] sm:$0xff]
                %266 = vst [vmem:[%s224 + $0xa0] sm:$0xff] %v265
                %v267 = vld [vmem:[%s223 + $0x138] sm:$0xff]
                %268 = vst [vmem:[%s224 + $0xa8] sm:$0xff] %v267
                %v269 = vld [vmem:[%s223 + $0x140] sm:$0xff]
                %270 = vst [vmem:[%s224 + $0xb0] sm:$0xff] %v269
                %v271 = vld [vmem:[%s223 + $0x148] sm:$0xff]
                %272 = vst [vmem:[%s224 + $0xb8] sm:$0xff] %v271
                %v273 = vld [vmem:[%s223 + $0x180] sm:$0xff]
                %274 = vst [vmem:[%s224 + $0xc0] sm:$0xff] %v273
                %v275 = vld [vmem:[%s223 + $0x188] sm:$0xff]
                %276 = vst [vmem:[%s224 + $0xc8] sm:$0xff] %v275
                %v277 = vld [vmem:[%s223 + $0x190] sm:$0xff]
                %278 = vst [vmem:[%s224 + $0xd0] sm:$0xff] %v277
                %v279 = vld [vmem:[%s223 + $0x198] sm:$0xff]
                %280 = vst [vmem:[%s224 + $0xd8] sm:$0xff] %v279
                %v281 = vld [vmem:[%s223 + $0x1a0] sm:$0xff]
                %282 = vst [vmem:[%s224 + $0xe0] sm:$0xff] %v281
                %v283 = vld [vmem:[%s223 + $0x1a8] sm:$0xff]
                %284 = vst [vmem:[%s224 + $0xe8] sm:$0xff] %v283
                %v285 = vld [vmem:[%s223 + $0x1e0] sm:$0xff]
                %286 = vst [vmem:[%s224 + $0xf0] sm:$0xff] %v285
                %v287 = vld [vmem:[%s223 + $0x1e8] sm:$0xff]
                %288 = vst [vmem:[%s224 + $0xf8] sm:$0xff] %v287
                %v289 = vld [vmem:[%s223 + $0x1f0] sm:$0xff]
                %290 = vst [vmem:[%s224 + $0x100] sm:$0xff] %v289
                %v291 = vld [vmem:[%s223 + $0x1f8] sm:$0xff]
                %292 = vst [vmem:[%s224 + $0x108] sm:$0xff] %v291
                %v293 = vld [vmem:[%s223 + $0x200] sm:$0xff]
                %294 = vst [vmem:[%s224 + $0x110] sm:$0xff] %v293
                %v295 = vld [vmem:[%s223 + $0x208] sm:$0xff]
                %296 = vst [vmem:[%s224 + $0x118] sm:$0xff] %v295
                %v297 = vld [vmem:[%s223 + $0x240] sm:$0xff]
                %298 = vst [vmem:[%s224 + $0x120] sm:$0xff] %v297
                %v299 = vld [vmem:[%s223 + $0x248] sm:$0xff]
                %300 = vst [vmem:[%s224 + $0x128] sm:$0xff] %v299
                %v301 = vld [vmem:[%s223 + $0x250] sm:$0xff]
                %302 = vst [vmem:[%s224 + $0x130] sm:$0xff] %v301
                %v303 = vld [vmem:[%s223 + $0x258] sm:$0xff]
                %304 = vst [vmem:[%s224 + $0x138] sm:$0xff] %v303
                %v305 = vld [vmem:[%s223 + $0x260] sm:$0xff]
                %306 = vst [vmem:[%s224 + $0x140] sm:$0xff] %v305
                %v307 = vld [vmem:[%s223 + $0x268] sm:$0xff]
                %308 = vst [vmem:[%s224 + $0x148] sm:$0xff] %v307
                %v309 = vld [vmem:[%s223 + $0x2a0] sm:$0xff]
                %310 = vst [vmem:[%s224 + $0x150] sm:$0xff] %v309
                %v311 = vld [vmem:[%s223 + $0x2a8] sm:$0xff]
                %312 = vst [vmem:[%s224 + $0x158] sm:$0xff] %v311
                %v313 = vld [vmem:[%s223 + $0x2b0] sm:$0xff]
                %314 = vst [vmem:[%s224 + $0x160] sm:$0xff] %v313
                %v315 = vld [vmem:[%s223 + $0x2b8] sm:$0xff]
                %316 = vst [vmem:[%s224 + $0x168] sm:$0xff] %v315
                %v317 = vld [vmem:[%s223 + $0x2c0] sm:$0xff]
                %318 = vst [vmem:[%s224 + $0x170] sm:$0xff] %v317
                %v319 = vld [vmem:[%s223 + $0x2c8] sm:$0xff]
                %320 = vst [vmem:[%s224 + $0x178] sm:$0xff] %v319
              $region53: #{basic_block_forward.1} parent=47 // loop_footer
                %s222 = sadd.s32 1, %s218
              $region54: #{basic_block_forward.1} parent=47 // loop_footer_branch
                %217 = sbr.rel target = $region50
              $region55: #{basic_block_forward.1} parent=47 // loop_exit
                _
            $region48: #{basic_block_forward.1} parent=43 // pred_fallthru
              _
            // Predicated region
            $region56: #{basic_block_forward.1} parent=43 // pred_check
              _
            $region57: #{basic_block_forward.1} parent=43 // pred_check_branch
              %322 = sbr.rel target = $region59
            $region58: #{basic_block_forward.1} parent=43 // pred_region
              _
            $region59: #{basic_block_forward.1} parent=43 // pred_fallthru
              _
          $region44: #{basic_block_forward.1} parent=39 // pred_fallthru
            _
          %323 = vnop
        $region40: #{basic_block_forward.1} parent=35 // pred_fallthru
          _
      $region36: #{basic_block_forward.1} parent=5 // pred_fallthru
        _
      %p324 = scmp.le.s32.totalorder 1, %s12
      %p325 = scmp.lt.s32.totalorder %s12, 3
      %p326 = pnand %p324, %p325
      %p327 = pneg %p326
      // Predicated region
      $region60: #{basic_block_forward.1} parent=5 // pred_check
        _
      $region61: #{basic_block_forward.1} parent=5 // pred_check_branch
        %329 = sbr.rel (%p326) target = $region63
      $region62: #{basic_block_forward.1} parent=5 // pred_region
        %s330 = ssub.s32 %s12, 1
        %s331 = sand.u32 %s25, 1
        %s332 = sand.u32 %s25, 1
        %s333 = smul.addr %s332, 384
        %s334 = scalar_lea.vmem [#allocation2], %s333
        // Predicated region
        $region64: #{basic_block_forward.1} parent=62 // pred_check
          %p335 = pneg %p38
        $region65: #{basic_block_forward.1} parent=62 // pred_check_branch
          %337 = sbr.rel (%p335) target = $region67
        $region66: #{basic_block_forward.1} parent=62 // pred_region
          _
        $region67: #{basic_block_forward.1} parent=62 // pred_fallthru
          _
        %s338 = sand.u32 %s25, 1
        %s339 = sand.u32 %s25, 1
        %s340 = smul.addr %s339, 384
        %s341 = scalar_lea.vmem [#allocation2], %s340
        %p342 = pneg %p38
        %p343 = pneg %p35
        %p344 = pneg %p59
        %p345 = pneg %p56
        %p346 = pneg %p80
        %p347 = pneg %p77
        %p348 = pneg %p101
        %p349 = pneg %p98
        %p350 = pneg %p122
        %p351 = pneg %p119
        %p352 = pneg %p143
        %p353 = pneg %p140
        %p354 = pneg %p169
        %p355 = pneg %p166
        %s356 = sand.u32 %s156, 1
        %s357 = sand.u32 %s156, 1
        %s358 = smul.addr %s357, 384
        %s359 = scalar_lea.vmem [#allocation3], %s358
        %s360 = smul.u32 6, %s17
        %s361 = smul.u32 6, %s17
        %v362 = vld [vmem:[%s334] sm:$0xff]
        %v363 = vld [vmem:[%s334 + $0x8] sm:$0xff]
        %v364 = vld [vmem:[%s334 + $0x10] sm:$0xff]
        %v365 = vld [vmem:[%s334 + $0x18] sm:$0xff]
        %v366 = vld [vmem:[%s334 + $0x20] sm:$0xff]
        %v367 = vld [vmem:[%s334 + $0x28] sm:$0xff]
        %v368 = vld [vmem:[%s334 + $0x30] sm:$0xff]
        %v369 = vld [vmem:[%s334 + $0x38] sm:$0xff]
        %v370 = vld [vmem:[%s334 + $0x40] sm:$0xff]
        %v371 = vld [vmem:[%s334 + $0x48] sm:$0xff]
        %v372 = vld [vmem:[%s334 + $0x50] sm:$0xff]
        %v373 = vld [vmem:[%s334 + $0x58] sm:$0xff]
        %v374 = vld [vmem:[%s334 + $0x60] sm:$0xff]
        %v375 = vld [vmem:[%s334 + $0x68] sm:$0xff]
        %v376 = vld [vmem:[%s334 + $0x70] sm:$0xff]
        %v377 = vld [vmem:[%s334 + $0x78] sm:$0xff]
        %v378 = vld [vmem:[%s334 + $0x80] sm:$0xff]
        %v379 = vld [vmem:[%s334 + $0x88] sm:$0xff]
        %v380 = vld [vmem:[%s334 + $0x90] sm:$0xff]
        %v381 = vld [vmem:[%s334 + $0x98] sm:$0xff]
        %v382 = vld [vmem:[%s334 + $0xa0] sm:$0xff]
        %v383 = vld [vmem:[%s334 + $0xa8] sm:$0xff]
        %v384 = vld [vmem:[%s334 + $0xb0] sm:$0xff]
        %v385 = vld [vmem:[%s334 + $0xb8] sm:$0xff]
        %v386 = vld [vmem:[%s334 + $0xc0] sm:$0xff]
        %v387 = vld [vmem:[%s334 + $0xc8] sm:$0xff]
        %v388 = vld [vmem:[%s334 + $0xd0] sm:$0xff]
        %v389 = vld [vmem:[%s334 + $0xd8] sm:$0xff]
        %v390 = vld [vmem:[%s334 + $0xe0] sm:$0xff]
        %v391 = vld [vmem:[%s334 + $0xe8] sm:$0xff]
        %v392 = vld [vmem:[%s334 + $0xf0] sm:$0xff]
        %v393 = vld [vmem:[%s334 + $0xf8] sm:$0xff]
        %v394 = vld [vmem:[%s334 + $0x100] sm:$0xff]
        %v395 = vld [vmem:[%s334 + $0x108] sm:$0xff]
        %v396 = vld [vmem:[%s334 + $0x110] sm:$0xff]
        %v397 = vld [vmem:[%s334 + $0x118] sm:$0xff]
        %v398 = vld [vmem:[%s334 + $0x120] sm:$0xff]
        %v399 = vld [vmem:[%s334 + $0x128] sm:$0xff]
        %v400 = vld [vmem:[%s334 + $0x130] sm:$0xff]
        %v401 = vld [vmem:[%s334 + $0x138] sm:$0xff]
        %v402 = vld [vmem:[%s334 + $0x140] sm:$0xff]
        %v403 = vld [vmem:[%s334 + $0x148] sm:$0xff]
        %v404 = vld [vmem:[%s334 + $0x150] sm:$0xff]
        %v405 = vld [vmem:[%s334 + $0x158] sm:$0xff]
        %v406 = vld [vmem:[%s334 + $0x160] sm:$0xff]
        %v407 = vld [vmem:[%s334 + $0x168] sm:$0xff]
        %v408 = vld [vmem:[%s334 + $0x170] sm:$0xff]
        %v409 = vld [vmem:[%s334 + $0x178] sm:$0xff]
        %v410 = vld [vmem:[%s1] sm:$0x3f]
        %411 = vrot.lane.b32.xlu0 %v362, 19
        %v412 = vpop.permute.xlu0 %411
        %413 = vrot.lane.b32.xlu0 %v368, 19
        %v414 = vpop.permute.xlu0 %413
        %415 = vrot.lane.b32.xlu0 %v374, 19
        %v416 = vpop.permute.xlu0 %415
        %417 = vrot.lane.b32.xlu0 %v380, 19
        %v418 = vpop.permute.xlu0 %417
        %419 = vrot.lane.b32.xlu0 %v386, 19
        %v420 = vpop.permute.xlu0 %419
        %421 = vrot.lane.b32.xlu0 %v392, 19
        %v422 = vpop.permute.xlu0 %421
        %423 = vrot.lane.b32.xlu0 %v398, 19
        %v424 = vpop.permute.xlu0 %423
        %425 = vrot.lane.b32.xlu0 %v404, 19
        %v426 = vpop.permute.xlu0 %425
        %427 = vrot.lane.b32.xlu0 %v363, 19
        %v428 = vpop.permute.xlu0 %427
        %429 = vrot.lane.b32.xlu0 %v369, 19
        %v430 = vpop.permute.xlu0 %429
        %431 = vrot.lane.b32.xlu0 %v375, 19
        %v432 = vpop.permute.xlu0 %431
        %433 = vrot.lane.b32.xlu0 %v381, 19
        %v434 = vpop.permute.xlu0 %433
        %435 = vrot.lane.b32.xlu0 %v387, 19
        %v436 = vpop.permute.xlu0 %435
        %437 = vrot.lane.b32.xlu0 %v393, 19
        %v438 = vpop.permute.xlu0 %437
        %439 = vrot.lane.b32.xlu0 %v399, 19
        %v440 = vpop.permute.xlu0 %439
        %441 = vrot.lane.b32.xlu0 %v405, 19
        %v442 = vpop.permute.xlu0 %441
        %443 = vrot.lane.b32.xlu0 %v364, 19
        %v444 = vpop.permute.xlu0 %443
        %445 = vrot.lane.b32.xlu0 %v370, 19
        %v446 = vpop.permute.xlu0 %445
        %447 = vrot.lane.b32.xlu0 %v376, 19
        %v448 = vpop.permute.xlu0 %447
        %449 = vrot.lane.b32.xlu0 %v382, 19
        %v450 = vpop.permute.xlu0 %449
        %451 = vrot.lane.b32.xlu0 %v388, 19
        %v452 = vpop.permute.xlu0 %451
        %453 = vrot.lane.b32.xlu0 %v394, 19
        %v454 = vpop.permute.xlu0 %453
        %455 = vrot.lane.b32.xlu0 %v400, 19
        %v456 = vpop.permute.xlu0 %455
        %457 = vrot.lane.b32.xlu0 %v406, 19
        %v458 = vpop.permute.xlu0 %457
        %459 = vrot.lane.b32.xlu0 %v365, 19
        %v460 = vpop.permute.xlu0 %459
        %461 = vrot.lane.b32.xlu0 %v371, 19
        %v462 = vpop.permute.xlu0 %461
        %463 = vrot.lane.b32.xlu0 %v377, 19
        %v464 = vpop.permute.xlu0 %463
        %465 = vrot.lane.b32.xlu0 %v383, 19
        %v466 = vpop.permute.xlu0 %465
        %467 = vrot.lane.b32.xlu0 %v389, 19
        %v468 = vpop.permute.xlu0 %467
        %469 = vrot.lane.b32.xlu0 %v395, 19
        %v470 = vpop.permute.xlu0 %469
        %471 = vrot.lane.b32.xlu0 %v401, 19
        %v472 = vpop.permute.xlu0 %471
        %473 = vrot.lane.b32.xlu0 %v407, 19
        %v474 = vpop.permute.xlu0 %473
        %475 = vrot.lane.b32.xlu0 %v366, 19
        %v476 = vpop.permute.xlu0 %475
        %477 = vrot.lane.b32.xlu0 %v372, 19
        %v478 = vpop.permute.xlu0 %477
        %479 = vrot.lane.b32.xlu0 %v378, 19
        %v480 = vpop.permute.xlu0 %479
        %481 = vrot.lane.b32.xlu0 %v384, 19
        %v482 = vpop.permute.xlu0 %481
        %483 = vrot.lane.b32.xlu0 %v390, 19
        %v484 = vpop.permute.xlu0 %483
        %485 = vrot.lane.b32.xlu0 %v396, 19
        %v486 = vpop.permute.xlu0 %485
        %487 = vrot.lane.b32.xlu0 %v402, 19
        %v488 = vpop.permute.xlu0 %487
        %489 = vrot.lane.b32.xlu0 %v408, 19
        %v490 = vpop.permute.xlu0 %489
        %491 = vrot.lane.b32.xlu0 %v367, 19
        %v492 = vpop.permute.xlu0 %491
        %493 = vrot.lane.b32.xlu0 %v373, 19
        %v494 = vpop.permute.xlu0 %493
        %495 = vrot.lane.b32.xlu0 %v379, 19
        %v496 = vpop.permute.xlu0 %495
        %497 = vrot.lane.b32.xlu0 %v385, 19
        %v498 = vpop.permute.xlu0 %497
        %499 = vrot.lane.b32.xlu0 %v391, 19
        %v500 = vpop.permute.xlu0 %499
        %501 = vrot.lane.b32.xlu0 %v397, 19
        %v502 = vpop.permute.xlu0 %501
        %503 = vrot.lane.b32.xlu0 %v403, 19
        %v504 = vpop.permute.xlu0 %503
        %505 = vrot.lane.b32.xlu0 %v409, 19
        %v506 = vpop.permute.xlu0 %505
        %v507 = vlaneseq
        %v508 = vand.u32 %v507, 127
        %vm509 = vcmp.lt.s32.totalorder %v508, 19
        %v510 = vsel %vm509, %v476, %v492
        %v511 = vsel %vm509, %v478, %v494
        %v512 = vsel %vm509, %v480, %v496
        %v513 = vsel %vm509, %v482, %v498
        %v514 = vsel %vm509, %v484, %v500
        %v515 = vsel %vm509, %v486, %v502
        %v516 = vsel %vm509, %v488, %v504
        %v517 = vsel %vm509, %v490, %v506
        %v518 = vsel %vm509, %v460, %v476
        %v519 = vsel %vm509, %v462, %v478
        %v520 = vsel %vm509, %v464, %v480
        %v521 = vsel %vm509, %v466, %v482
        %v522 = vsel %vm509, %v468, %v484
        %v523 = vsel %vm509, %v470, %v486
        %v524 = vsel %vm509, %v472, %v488
        %v525 = vsel %vm509, %v474, %v490
        %v526 = vsel %vm509, %v444, %v460
        %v527 = vsel %vm509, %v446, %v462
        %v528 = vsel %vm509, %v448, %v464
        %v529 = vsel %vm509, %v450, %v466
        %v530 = vsel %vm509, %v452, %v468
        %v531 = vsel %vm509, %v454, %v470
        %v532 = vsel %vm509, %v456, %v472
        %v533 = vsel %vm509, %v458, %v474
        %v534 = vsel %vm509, %v428, %v444
        %v535 = vsel %vm509, %v430, %v446
        %v536 = vsel %vm509, %v432, %v448
        %v537 = vsel %vm509, %v434, %v450
        %v538 = vsel %vm509, %v436, %v452
        %v539 = vsel %vm509, %v438, %v454
        %v540 = vsel %vm509, %v440, %v456
        %v541 = vsel %vm509, %v442, %v458
        %v542 = vsel %vm509, %v412, %v428
        %v543 = vsel %vm509, %v414, %v430
        %v544 = vsel %vm509, %v416, %v432
        %v545 = vsel %vm509, %v418, %v434
        %v546 = vsel %vm509, %v420, %v436
        %v547 = vsel %vm509, %v422, %v438
        %v548 = vsel %vm509, %v424, %v440
        %v549 = vsel %vm509, %v426, %v442
        %v550 = vsel %vm509, %v492, %v412
        %v551 = vsel %vm509, %v494, %v414
        %v552 = vsel %vm509, %v496, %v416
        %v553 = vsel %vm509, %v498, %v418
        %v554 = vsel %vm509, %v500, %v420
        %v555 = vsel %vm509, %v502, %v422
        %v556 = vsel %vm509, %v504, %v424
        %v557 = vsel %vm509, %v506, %v426
        %v558 = vld [vmem:[%s2] sm:$0xff]
        %v559 = vld [vmem:[%s2 + $0x8] sm:$0xff]
        %v560 = vld [vmem:[%s2 + $0x10] sm:$0xff]
        %v561 = vld [vmem:[%s2 + $0x18] sm:$0xff]
        %v562 = vld [vmem:[%s2 + $0x20] sm:$0xff]
        %v563 = vld [vmem:[%s2 + $0x28] sm:$0xff]
        %v564 = vld [vmem:[%s2 + $0x30] sm:$0xff]
        %v565 = vld [vmem:[%s2 + $0x38] sm:$0xff]
        %566 = vrot.lane.b32.xlu0 %v362, 18
        %v567 = vpop.permute.xlu0 %566
        %568 = vrot.lane.b32.xlu0 %v368, 18
        %v569 = vpop.permute.xlu0 %568
        %570 = vrot.lane.b32.xlu0 %v374, 18
        %v571 = vpop.permute.xlu0 %570
        %572 = vrot.lane.b32.xlu0 %v380, 18
        %v573 = vpop.permute.xlu0 %572
        %574 = vrot.lane.b32.xlu0 %v386, 18
        %v575 = vpop.permute.xlu0 %574
        %576 = vrot.lane.b32.xlu0 %v392, 18
        %v577 = vpop.permute.xlu0 %576
        %578 = vrot.lane.b32.xlu0 %v398, 18
        %v579 = vpop.permute.xlu0 %578
        %580 = vrot.lane.b32.xlu0 %v404, 18
        %v581 = vpop.permute.xlu0 %580
        %582 = vrot.lane.b32.xlu0 %v363, 18
        %v583 = vpop.permute.xlu0 %582
        %584 = vrot.lane.b32.xlu0 %v369, 18
        %v585 = vpop.permute.xlu0 %584
        %586 = vrot.lane.b32.xlu0 %v375, 18
        %v587 = vpop.permute.xlu0 %586
        %588 = vrot.lane.b32.xlu0 %v381, 18
        %v589 = vpop.permute.xlu0 %588
        %590 = vrot.lane.b32.xlu0 %v387, 18
        %v591 = vpop.permute.xlu0 %590
        %592 = vrot.lane.b32.xlu0 %v393, 18
        %v593 = vpop.permute.xlu0 %592
        %594 = vrot.lane.b32.xlu0 %v399, 18
        %v595 = vpop.permute.xlu0 %594
        %596 = vrot.lane.b32.xlu0 %v405, 18
        %v597 = vpop.permute.xlu0 %596
        %598 = vrot.lane.b32.xlu0 %v364, 18
        %v599 = vpop.permute.xlu0 %598
        %600 = vrot.lane.b32.xlu0 %v370, 18
        %v601 = vpop.permute.xlu0 %600
        %602 = vrot.lane.b32.xlu0 %v376, 18
        %v603 = vpop.permute.xlu0 %602
        %604 = vrot.lane.b32.xlu0 %v382, 18
        %v605 = vpop.permute.xlu0 %604
        %606 = vrot.lane.b32.xlu0 %v388, 18
        %v607 = vpop.permute.xlu0 %606
        %608 = vrot.lane.b32.xlu0 %v394, 18
        %v609 = vpop.permute.xlu0 %608
        %610 = vrot.lane.b32.xlu0 %v400, 18
        %v611 = vpop.permute.xlu0 %610
        %612 = vrot.lane.b32.xlu0 %v406, 18
        %v613 = vpop.permute.xlu0 %612
        %614 = vrot.lane.b32.xlu0 %v365, 18
        %v615 = vpop.permute.xlu0 %614
        %616 = vrot.lane.b32.xlu0 %v371, 18
        %v617 = vpop.permute.xlu0 %616
        %618 = vrot.lane.b32.xlu0 %v377, 18
        %v619 = vpop.permute.xlu0 %618
        %620 = vrot.lane.b32.xlu0 %v383, 18
        %v621 = vpop.permute.xlu0 %620
        %622 = vrot.lane.b32.xlu0 %v389, 18
        %v623 = vpop.permute.xlu0 %622
        %624 = vrot.lane.b32.xlu0 %v395, 18
        %v625 = vpop.permute.xlu0 %624
        %626 = vrot.lane.b32.xlu0 %v401, 18
        %v627 = vpop.permute.xlu0 %626
        %628 = vrot.lane.b32.xlu0 %v407, 18
        %v629 = vpop.permute.xlu0 %628
        %630 = vrot.lane.b32.xlu0 %v366, 18
        %v631 = vpop.permute.xlu0 %630
        %632 = vrot.lane.b32.xlu0 %v372, 18
        %v633 = vpop.permute.xlu0 %632
        %634 = vrot.lane.b32.xlu0 %v378, 18
        %v635 = vpop.permute.xlu0 %634
        %636 = vrot.lane.b32.xlu0 %v384, 18
        %v637 = vpop.permute.xlu0 %636
        %638 = vrot.lane.b32.xlu0 %v390, 18
        %v639 = vpop.permute.xlu0 %638
        %640 = vrot.lane.b32.xlu0 %v396, 18
        %v641 = vpop.permute.xlu0 %640
        %642 = vrot.lane.b32.xlu0 %v402, 18
        %v643 = vpop.permute.xlu0 %642
        %644 = vrot.lane.b32.xlu0 %v408, 18
        %v645 = vpop.permute.xlu0 %644
        %646 = vrot.lane.b32.xlu0 %v367, 18
        %v647 = vpop.permute.xlu0 %646
        %648 = vrot.lane.b32.xlu0 %v373, 18
        %v649 = vpop.permute.xlu0 %648
        %650 = vrot.lane.b32.xlu0 %v379, 18
        %v651 = vpop.permute.xlu0 %650
        %652 = vrot.lane.b32.xlu0 %v385, 18
        %v653 = vpop.permute.xlu0 %652
        %654 = vrot.lane.b32.xlu0 %v391, 18
        %v655 = vpop.permute.xlu0 %654
        %656 = vrot.lane.b32.xlu0 %v397, 18
        %v657 = vpop.permute.xlu0 %656
        %658 = vrot.lane.b32.xlu0 %v403, 18
        %v659 = vpop.permute.xlu0 %658
        %660 = vrot.lane.b32.xlu0 %v409, 18
        %v661 = vpop.permute.xlu0 %660
        %vm662 = vcmp.lt.s32.totalorder %v508, 18
        %v663 = vsel %vm662, %v631, %v647
        %v664 = vsel %vm662, %v633, %v649
        %v665 = vsel %vm662, %v635, %v651
        %v666 = vsel %vm662, %v637, %v653
        %v667 = vsel %vm662, %v639, %v655
        %v668 = vsel %vm662, %v641, %v657
        %v669 = vsel %vm662, %v643, %v659
        %v670 = vsel %vm662, %v645, %v661
        %v671 = vsel %vm662, %v615, %v631
        %v672 = vsel %vm662, %v617, %v633
        %v673 = vsel %vm662, %v619, %v635
        %v674 = vsel %vm662, %v621, %v637
        %v675 = vsel %vm662, %v623, %v639
        %v676 = vsel %vm662, %v625, %v641
        %v677 = vsel %vm662, %v627, %v643
        %v678 = vsel %vm662, %v629, %v645
        %v679 = vsel %vm662, %v599, %v615
        %v680 = vsel %vm662, %v601, %v617
        %v681 = vsel %vm662, %v603, %v619
        %v682 = vsel %vm662, %v605, %v621
        %v683 = vsel %vm662, %v607, %v623
        %v684 = vsel %vm662, %v609, %v625
        %v685 = vsel %vm662, %v611, %v627
        %v686 = vsel %vm662, %v613, %v629
        %v687 = vsel %vm662, %v583, %v599
        %v688 = vsel %vm662, %v585, %v601
        %v689 = vsel %vm662, %v587, %v603
        %v690 = vsel %vm662, %v589, %v605
        %v691 = vsel %vm662, %v591, %v607
        %v692 = vsel %vm662, %v593, %v609
        %v693 = vsel %vm662, %v595, %v611
        %v694 = vsel %vm662, %v597, %v613
        %v695 = vsel %vm662, %v567, %v583
        %v696 = vsel %vm662, %v569, %v585
        %v697 = vsel %vm662, %v571, %v587
        %v698 = vsel %vm662, %v573, %v589
        %v699 = vsel %vm662, %v575, %v591
        %v700 = vsel %vm662, %v577, %v593
        %v701 = vsel %vm662, %v579, %v595
        %v702 = vsel %vm662, %v581, %v597
        %v703 = vsel %vm662, %v647, %v567
        %v704 = vsel %vm662, %v649, %v569
        %v705 = vsel %vm662, %v651, %v571
        %v706 = vsel %vm662, %v653, %v573
        %v707 = vsel %vm662, %v655, %v575
        %v708 = vsel %vm662, %v657, %v577
        %v709 = vsel %vm662, %v659, %v579
        %v710 = vsel %vm662, %v661, %v581
        %s711 = scalar_lea.vmem %s2, 64
        %v712 = vld [vmem:[%s711] sm:$0xff]
        %v713 = vld [vmem:[%s711 + $0x8] sm:$0xff]
        %v714 = vld [vmem:[%s711 + $0x10] sm:$0xff]
        %v715 = vld [vmem:[%s711 + $0x18] sm:$0xff]
        %v716 = vld [vmem:[%s711 + $0x20] sm:$0xff]
        %v717 = vld [vmem:[%s711 + $0x28] sm:$0xff]
        %v718 = vld [vmem:[%s711 + $0x30] sm:$0xff]
        %v719 = vld [vmem:[%s711 + $0x38] sm:$0xff]
        %vm720 = vcmask 523264
        %v722 = vsel %vm720, %v712, 0
        %v725 = vsel %vm720, %v713, 0
        %v728 = vsel %vm720, %v714, 0
        %v731 = vsel %vm720, %v715, 0
        %v734 = vsel %vm720, %v716, 0
        %v737 = vsel %vm720, %v717, 0
        %v740 = vsel %vm720, %v718, 0
        %v743 = vsel %vm720, %v719, 0
        %745 = vmatpush.msra.mxu0 0.0
        %746 = vmatpush.msra.mxu0 0.0
        %747 = vmatpush.msra.mxu0 0.0
        %748 = vmatpush.msra.mxu0 0.0
        %749 = vmatpush.msra.mxu0 0.0
        %750 = vmatpush.msra.mxu0 0.0
        %751 = vmatpush.msra.mxu0 0.0
        %752 = vmatpush.msra.mxu0 0.0
        %753 = vmatpush.msra.mxu0 %v710
        %754 = vmatpush.msra.mxu0 %v709
        %755 = vmatpush.msra.mxu0 %v708
        %756 = vmatpush.msra.mxu0 %v707
        %757 = vmatpush.msra.mxu0 %v706
        %758 = vmatpush.msra.mxu0 %v705
        %759 = vmatpush.msra.mxu0 %v704
        %760 = vmatpush.msra.mxu0 %v703
        %761 = vmatmul.f32.gmra.mxu0 %v722
        %v762 = vpop.f32.mrf.mxu0
        %v763 = vadd.f32 0.0, %v762
        %764 = vmatmul.f32.gmra.mxu0 %v725
        %v765 = vpop.f32.mrf.mxu0
        %v766 = vadd.f32 0.0, %v765
        %767 = vmatmul.f32.gmra.mxu0 %v728
        %v768 = vpop.f32.mrf.mxu0
        %v769 = vadd.f32 0.0, %v768
        %770 = vmatmul.f32.gmra.mxu0 %v731
        %v771 = vpop.f32.mrf.mxu0
        %v772 = vadd.f32 0.0, %v771
        %773 = vmatmul.f32.gmra.mxu0 %v734
        %v774 = vpop.f32.mrf.mxu0
        %v775 = vadd.f32 0.0, %v774
        %776 = vmatmul.f32.gmra.mxu0 %v737
        %v777 = vpop.f32.mrf.mxu0
        %v778 = vadd.f32 0.0, %v777
        %779 = vmatmul.f32.gmra.mxu0 %v740
        %v780 = vpop.f32.mrf.mxu0
        %v781 = vadd.f32 0.0, %v780
        %782 = vmatmul.f32.gmra.mxu0 %v743
        %v783 = vpop.f32.mrf.mxu0
        %v784 = vadd.f32 0.0, %v783
        %785 = vdwg.mxu0
        %786 = vmatpush.msra.mxu0 0.0
        %787 = vmatpush.msra.mxu0 0.0
        %788 = vmatpush.msra.mxu0 0.0
        %789 = vmatpush.msra.mxu0 0.0
        %790 = vmatpush.msra.mxu0 0.0
        %791 = vmatpush.msra.mxu0 0.0
        %792 = vmatpush.msra.mxu0 0.0
        %793 = vmatpush.msra.mxu0 0.0
        %794 = vmatpush.msra.mxu0 %v702
        %795 = vmatpush.msra.mxu0 %v701
        %796 = vmatpush.msra.mxu0 %v700
        %797 = vmatpush.msra.mxu0 %v699
        %798 = vmatpush.msra.mxu0 %v698
        %799 = vmatpush.msra.mxu0 %v697
        %800 = vmatpush.msra.mxu0 %v696
        %801 = vmatpush.msra.mxu0 %v695
        %802 = vmatmul.f32.gmra.mxu0 %v722
        %v803 = vpop.f32.mrf.mxu0
        %v804 = vadd.f32 0.0, %v803
        %805 = vmatmul.f32.gmra.mxu0 %v725
        %v806 = vpop.f32.mrf.mxu0
        %v807 = vadd.f32 0.0, %v806
        %808 = vmatmul.f32.gmra.mxu0 %v728
        %v809 = vpop.f32.mrf.mxu0
        %v810 = vadd.f32 0.0, %v809
        %811 = vmatmul.f32.gmra.mxu0 %v731
        %v812 = vpop.f32.mrf.mxu0
        %v813 = vadd.f32 0.0, %v812
        %814 = vmatmul.f32.gmra.mxu0 %v734
        %v815 = vpop.f32.mrf.mxu0
        %v816 = vadd.f32 0.0, %v815
        %817 = vmatmul.f32.gmra.mxu0 %v737
        %v818 = vpop.f32.mrf.mxu0
        %v819 = vadd.f32 0.0, %v818
        %820 = vmatmul.f32.gmra.mxu0 %v740
        %v821 = vpop.f32.mrf.mxu0
        %v822 = vadd.f32 0.0, %v821
        %823 = vmatmul.f32.gmra.mxu0 %v743
        %v824 = vpop.f32.mrf.mxu0
        %v825 = vadd.f32 0.0, %v824
        %826 = vdwg.mxu0
        %827 = vmatpush.msra.mxu0 0.0
        %828 = vmatpush.msra.mxu0 0.0
        %829 = vmatpush.msra.mxu0 0.0
        %830 = vmatpush.msra.mxu0 0.0
        %831 = vmatpush.msra.mxu0 0.0
        %832 = vmatpush.msra.mxu0 0.0
        %833 = vmatpush.msra.mxu0 0.0
        %834 = vmatpush.msra.mxu0 0.0
        %835 = vmatpush.msra.mxu0 %v694
        %836 = vmatpush.msra.mxu0 %v693
        %837 = vmatpush.msra.mxu0 %v692
        %838 = vmatpush.msra.mxu0 %v691
        %839 = vmatpush.msra.mxu0 %v690
        %840 = vmatpush.msra.mxu0 %v689
        %841 = vmatpush.msra.mxu0 %v688
        %842 = vmatpush.msra.mxu0 %v687
        %843 = vmatmul.f32.gmra.mxu0 %v722
        %v844 = vpop.f32.mrf.mxu0
        %v845 = vadd.f32 0.0, %v844
        %846 = vmatmul.f32.gmra.mxu0 %v725
        %v847 = vpop.f32.mrf.mxu0
        %v848 = vadd.f32 0.0, %v847
        %849 = vmatmul.f32.gmra.mxu0 %v728
        %v850 = vpop.f32.mrf.mxu0
        %v851 = vadd.f32 0.0, %v850
        %852 = vmatmul.f32.gmra.mxu0 %v731
        %v853 = vpop.f32.mrf.mxu0
        %v854 = vadd.f32 0.0, %v853
        %855 = vmatmul.f32.gmra.mxu0 %v734
        %v856 = vpop.f32.mrf.mxu0
        %v857 = vadd.f32 0.0, %v856
        %858 = vmatmul.f32.gmra.mxu0 %v737
        %v859 = vpop.f32.mrf.mxu0
        %v860 = vadd.f32 0.0, %v859
        %861 = vmatmul.f32.gmra.mxu0 %v740
        %v862 = vpop.f32.mrf.mxu0
        %v863 = vadd.f32 0.0, %v862
        %864 = vmatmul.f32.gmra.mxu0 %v743
        %v865 = vpop.f32.mrf.mxu0
        %v866 = vadd.f32 0.0, %v865
        %867 = vdwg.mxu0
        %868 = vmatpush.msra.mxu0 0.0
        %869 = vmatpush.msra.mxu0 0.0
        %870 = vmatpush.msra.mxu0 0.0
        %871 = vmatpush.msra.mxu0 0.0
        %872 = vmatpush.msra.mxu0 0.0
        %873 = vmatpush.msra.mxu0 0.0
        %874 = vmatpush.msra.mxu0 0.0
        %875 = vmatpush.msra.mxu0 0.0
        %876 = vmatpush.msra.mxu0 %v686
        %877 = vmatpush.msra.mxu0 %v685
        %878 = vmatpush.msra.mxu0 %v684
        %879 = vmatpush.msra.mxu0 %v683
        %880 = vmatpush.msra.mxu0 %v682
        %881 = vmatpush.msra.mxu0 %v681
        %882 = vmatpush.msra.mxu0 %v680
        %883 = vmatpush.msra.mxu0 %v679
        %884 = vmatmul.f32.gmra.mxu0 %v722
        %v885 = vpop.f32.mrf.mxu0
        %v886 = vadd.f32 0.0, %v885
        %887 = vmatmul.f32.gmra.mxu0 %v725
        %v888 = vpop.f32.mrf.mxu0
        %v889 = vadd.f32 0.0, %v888
        %890 = vmatmul.f32.gmra.mxu0 %v728
        %v891 = vpop.f32.mrf.mxu0
        %v892 = vadd.f32 0.0, %v891
        %893 = vmatmul.f32.gmra.mxu0 %v731
        %v894 = vpop.f32.mrf.mxu0
        %v895 = vadd.f32 0.0, %v894
        %896 = vmatmul.f32.gmra.mxu0 %v734
        %v897 = vpop.f32.mrf.mxu0
        %v898 = vadd.f32 0.0, %v897
        %899 = vmatmul.f32.gmra.mxu0 %v737
        %v900 = vpop.f32.mrf.mxu0
        %v901 = vadd.f32 0.0, %v900
        %902 = vmatmul.f32.gmra.mxu0 %v740
        %v903 = vpop.f32.mrf.mxu0
        %v904 = vadd.f32 0.0, %v903
        %905 = vmatmul.f32.gmra.mxu0 %v743
        %v906 = vpop.f32.mrf.mxu0
        %v907 = vadd.f32 0.0, %v906
        %908 = vdwg.mxu0
        %909 = vmatpush.msra.mxu0 0.0
        %910 = vmatpush.msra.mxu0 0.0
        %911 = vmatpush.msra.mxu0 0.0
        %912 = vmatpush.msra.mxu0 0.0
        %913 = vmatpush.msra.mxu0 0.0
        %914 = vmatpush.msra.mxu0 0.0
        %915 = vmatpush.msra.mxu0 0.0
        %916 = vmatpush.msra.mxu0 0.0
        %917 = vmatpush.msra.mxu0 %v678
        %918 = vmatpush.msra.mxu0 %v677
        %919 = vmatpush.msra.mxu0 %v676
        %920 = vmatpush.msra.mxu0 %v675
        %921 = vmatpush.msra.mxu0 %v674
        %922 = vmatpush.msra.mxu0 %v673
        %923 = vmatpush.msra.mxu0 %v672
        %924 = vmatpush.msra.mxu0 %v671
        %925 = vmatmul.f32.gmra.mxu0 %v722
        %v926 = vpop.f32.mrf.mxu0
        %v927 = vadd.f32 0.0, %v926
        %928 = vmatmul.f32.gmra.mxu0 %v725
        %v929 = vpop.f32.mrf.mxu0
        %v930 = vadd.f32 0.0, %v929
        %931 = vmatmul.f32.gmra.mxu0 %v728
        %v932 = vpop.f32.mrf.mxu0
        %v933 = vadd.f32 0.0, %v932
        %934 = vmatmul.f32.gmra.mxu0 %v731
        %v935 = vpop.f32.mrf.mxu0
        %v936 = vadd.f32 0.0, %v935
        %937 = vmatmul.f32.gmra.mxu0 %v734
        %v938 = vpop.f32.mrf.mxu0
        %v939 = vadd.f32 0.0, %v938
        %940 = vmatmul.f32.gmra.mxu0 %v737
        %v941 = vpop.f32.mrf.mxu0
        %v942 = vadd.f32 0.0, %v941
        %943 = vmatmul.f32.gmra.mxu0 %v740
        %v944 = vpop.f32.mrf.mxu0
        %v945 = vadd.f32 0.0, %v944
        %946 = vmatmul.f32.gmra.mxu0 %v743
        %v947 = vpop.f32.mrf.mxu0
        %v948 = vadd.f32 0.0, %v947
        %949 = vdwg.mxu0
        %950 = vmatpush.msra.mxu0 0.0
        %951 = vmatpush.msra.mxu0 0.0
        %952 = vmatpush.msra.mxu0 0.0
        %953 = vmatpush.msra.mxu0 0.0
        %954 = vmatpush.msra.mxu0 0.0
        %955 = vmatpush.msra.mxu0 0.0
        %956 = vmatpush.msra.mxu0 0.0
        %957 = vmatpush.msra.mxu0 0.0
        %958 = vmatpush.msra.mxu0 %v670
        %959 = vmatpush.msra.mxu0 %v669
        %960 = vmatpush.msra.mxu0 %v668
        %961 = vmatpush.msra.mxu0 %v667
        %962 = vmatpush.msra.mxu0 %v666
        %963 = vmatpush.msra.mxu0 %v665
        %964 = vmatpush.msra.mxu0 %v664
        %965 = vmatpush.msra.mxu0 %v663
        %966 = vmatmul.f32.gmra.mxu0 %v722
        %v967 = vpop.f32.mrf.mxu0
        %v968 = vadd.f32 0.0, %v967
        %969 = vmatmul.f32.gmra.mxu0 %v725
        %v970 = vpop.f32.mrf.mxu0
        %v971 = vadd.f32 0.0, %v970
        %972 = vmatmul.f32.gmra.mxu0 %v728
        %v973 = vpop.f32.mrf.mxu0
        %v974 = vadd.f32 0.0, %v973
        %975 = vmatmul.f32.gmra.mxu0 %v731
        %v976 = vpop.f32.mrf.mxu0
        %v977 = vadd.f32 0.0, %v976
        %978 = vmatmul.f32.gmra.mxu0 %v734
        %v979 = vpop.f32.mrf.mxu0
        %v980 = vadd.f32 0.0, %v979
        %981 = vmatmul.f32.gmra.mxu0 %v737
        %v982 = vpop.f32.mrf.mxu0
        %v983 = vadd.f32 0.0, %v982
        %984 = vmatmul.f32.gmra.mxu0 %v740
        %v985 = vpop.f32.mrf.mxu0
        %v986 = vadd.f32 0.0, %v985
        %987 = vmatmul.f32.gmra.mxu0 %v743
        %v988 = vpop.f32.mrf.mxu0
        %v989 = vadd.f32 0.0, %v988
        %990 = vdwg.mxu0
        %v992 = vsel %vm720, %v558, 0
        %v995 = vsel %vm720, %v559, 0
        %v998 = vsel %vm720, %v560, 0
        %v1001 = vsel %vm720, %v561, 0
        %v1004 = vsel %vm720, %v562, 0
        %v1007 = vsel %vm720, %v563, 0
        %v1010 = vsel %vm720, %v564, 0
        %v1013 = vsel %vm720, %v565, 0
        %1015 = vmatpush.msra.mxu0 0.0
        %1016 = vmatpush.msra.mxu0 0.0
        %1017 = vmatpush.msra.mxu0 0.0
        %1018 = vmatpush.msra.mxu0 0.0
        %1019 = vmatpush.msra.mxu0 0.0
        %1020 = vmatpush.msra.mxu0 0.0
        %1021 = vmatpush.msra.mxu0 0.0
        %1022 = vmatpush.msra.mxu0 0.0
        %1023 = vmatpush.msra.mxu0 %v557
        %1024 = vmatpush.msra.mxu0 %v556
        %1025 = vmatpush.msra.mxu0 %v555
        %1026 = vmatpush.msra.mxu0 %v554
        %1027 = vmatpush.msra.mxu0 %v553
        %1028 = vmatpush.msra.mxu0 %v552
        %1029 = vmatpush.msra.mxu0 %v551
        %1030 = vmatpush.msra.mxu0 %v550
        %1031 = vmatmul.f32.gmra.mxu0 %v992
        %v1032 = vpop.f32.mrf.mxu0
        %v1033 = vadd.f32 %v763, %v1032
        %1034 = vmatmul.f32.gmra.mxu0 %v995
        %v1035 = vpop.f32.mrf.mxu0
        %v1036 = vadd.f32 %v766, %v1035
        %1037 = vmatmul.f32.gmra.mxu0 %v998
        %v1038 = vpop.f32.mrf.mxu0
        %v1039 = vadd.f32 %v769, %v1038
        %1040 = vmatmul.f32.gmra.mxu0 %v1001
        %v1041 = vpop.f32.mrf.mxu0
        %v1042 = vadd.f32 %v772, %v1041
        %1043 = vmatmul.f32.gmra.mxu0 %v1004
        %v1044 = vpop.f32.mrf.mxu0
        %v1045 = vadd.f32 %v775, %v1044
        %1046 = vmatmul.f32.gmra.mxu0 %v1007
        %v1047 = vpop.f32.mrf.mxu0
        %v1048 = vadd.f32 %v778, %v1047
        %1049 = vmatmul.f32.gmra.mxu0 %v1010
        %v1050 = vpop.f32.mrf.mxu0
        %v1051 = vadd.f32 %v781, %v1050
        %1052 = vmatmul.f32.gmra.mxu0 %v1013
        %v1053 = vpop.f32.mrf.mxu0
        %v1054 = vadd.f32 %v784, %v1053
        %1055 = vdwg.mxu0
        %1056 = vmatpush.msra.mxu0 0.0
        %1057 = vmatpush.msra.mxu0 0.0
        %1058 = vmatpush.msra.mxu0 0.0
        %1059 = vmatpush.msra.mxu0 0.0
        %1060 = vmatpush.msra.mxu0 0.0
        %1061 = vmatpush.msra.mxu0 0.0
        %1062 = vmatpush.msra.mxu0 0.0
        %1063 = vmatpush.msra.mxu0 0.0
        %1064 = vmatpush.msra.mxu0 %v549
        %1065 = vmatpush.msra.mxu0 %v548
        %1066 = vmatpush.msra.mxu0 %v547
        %1067 = vmatpush.msra.mxu0 %v546
        %1068 = vmatpush.msra.mxu0 %v545
        %1069 = vmatpush.msra.mxu0 %v544
        %1070 = vmatpush.msra.mxu0 %v543
        %1071 = vmatpush.msra.mxu0 %v542
        %1072 = vmatmul.f32.gmra.mxu0 %v992
        %v1073 = vpop.f32.mrf.mxu0
        %v1074 = vadd.f32 %v804, %v1073
        %1075 = vmatmul.f32.gmra.mxu0 %v995
        %v1076 = vpop.f32.mrf.mxu0
        %v1077 = vadd.f32 %v807, %v1076
        %1078 = vmatmul.f32.gmra.mxu0 %v998
        %v1079 = vpop.f32.mrf.mxu0
        %v1080 = vadd.f32 %v810, %v1079
        %1081 = vmatmul.f32.gmra.mxu0 %v1001
        %v1082 = vpop.f32.mrf.mxu0
        %v1083 = vadd.f32 %v813, %v1082
        %1084 = vmatmul.f32.gmra.mxu0 %v1004
        %v1085 = vpop.f32.mrf.mxu0
        %v1086 = vadd.f32 %v816, %v1085
        %1087 = vmatmul.f32.gmra.mxu0 %v1007
        %v1088 = vpop.f32.mrf.mxu0
        %v1089 = vadd.f32 %v819, %v1088
        %1090 = vmatmul.f32.gmra.mxu0 %v1010
        %v1091 = vpop.f32.mrf.mxu0
        %v1092 = vadd.f32 %v822, %v1091
        %1093 = vmatmul.f32.gmra.mxu0 %v1013
        %v1094 = vpop.f32.mrf.mxu0
        %v1095 = vadd.f32 %v825, %v1094
        %1096 = vdwg.mxu0
        %1097 = vmatpush.msra.mxu0 0.0
        %1098 = vmatpush.msra.mxu0 0.0
        %1099 = vmatpush.msra.mxu0 0.0
        %1100 = vmatpush.msra.mxu0 0.0
        %1101 = vmatpush.msra.mxu0 0.0
        %1102 = vmatpush.msra.mxu0 0.0
        %1103 = vmatpush.msra.mxu0 0.0
        %1104 = vmatpush.msra.mxu0 0.0
        %1105 = vmatpush.msra.mxu0 %v541
        %1106 = vmatpush.msra.mxu0 %v540
        %1107 = vmatpush.msra.mxu0 %v539
        %1108 = vmatpush.msra.mxu0 %v538
        %1109 = vmatpush.msra.mxu0 %v537
        %1110 = vmatpush.msra.mxu0 %v536
        %1111 = vmatpush.msra.mxu0 %v535
        %1112 = vmatpush.msra.mxu0 %v534
        %1113 = vmatmul.f32.gmra.mxu0 %v992
        %v1114 = vpop.f32.mrf.mxu0
        %v1115 = vadd.f32 %v845, %v1114
        %1116 = vmatmul.f32.gmra.mxu0 %v995
        %v1117 = vpop.f32.mrf.mxu0
        %v1118 = vadd.f32 %v848, %v1117
        %1119 = vmatmul.f32.gmra.mxu0 %v998
        %v1120 = vpop.f32.mrf.mxu0
        %v1121 = vadd.f32 %v851, %v1120
        %1122 = vmatmul.f32.gmra.mxu0 %v1001
        %v1123 = vpop.f32.mrf.mxu0
        %v1124 = vadd.f32 %v854, %v1123
        %1125 = vmatmul.f32.gmra.mxu0 %v1004
        %v1126 = vpop.f32.mrf.mxu0
        %v1127 = vadd.f32 %v857, %v1126
        %1128 = vmatmul.f32.gmra.mxu0 %v1007
        %v1129 = vpop.f32.mrf.mxu0
        %v1130 = vadd.f32 %v860, %v1129
        %1131 = vmatmul.f32.gmra.mxu0 %v1010
        %v1132 = vpop.f32.mrf.mxu0
        %v1133 = vadd.f32 %v863, %v1132
        %1134 = vmatmul.f32.gmra.mxu0 %v1013
        %v1135 = vpop.f32.mrf.mxu0
        %v1136 = vadd.f32 %v866, %v1135
        %1137 = vdwg.mxu0
        %1138 = vmatpush.msra.mxu0 0.0
        %1139 = vmatpush.msra.mxu0 0.0
        %1140 = vmatpush.msra.mxu0 0.0
        %1141 = vmatpush.msra.mxu0 0.0
        %1142 = vmatpush.msra.mxu0 0.0
        %1143 = vmatpush.msra.mxu0 0.0
        %1144 = vmatpush.msra.mxu0 0.0
        %1145 = vmatpush.msra.mxu0 0.0
        %1146 = vmatpush.msra.mxu0 %v533
        %1147 = vmatpush.msra.mxu0 %v532
        %1148 = vmatpush.msra.mxu0 %v531
        %1149 = vmatpush.msra.mxu0 %v530
        %1150 = vmatpush.msra.mxu0 %v529
        %1151 = vmatpush.msra.mxu0 %v528
        %1152 = vmatpush.msra.mxu0 %v527
        %1153 = vmatpush.msra.mxu0 %v526
        %1154 = vmatmul.f32.gmra.mxu0 %v992
        %v1155 = vpop.f32.mrf.mxu0
        %v1156 = vadd.f32 %v886, %v1155
        %1157 = vmatmul.f32.gmra.mxu0 %v995
        %v1158 = vpop.f32.mrf.mxu0
        %v1159 = vadd.f32 %v889, %v1158
        %1160 = vmatmul.f32.gmra.mxu0 %v998
        %v1161 = vpop.f32.mrf.mxu0
        %v1162 = vadd.f32 %v892, %v1161
        %1163 = vmatmul.f32.gmra.mxu0 %v1001
        %v1164 = vpop.f32.mrf.mxu0
        %v1165 = vadd.f32 %v895, %v1164
        %1166 = vmatmul.f32.gmra.mxu0 %v1004
        %v1167 = vpop.f32.mrf.mxu0
        %v1168 = vadd.f32 %v898, %v1167
        %1169 = vmatmul.f32.gmra.mxu0 %v1007
        %v1170 = vpop.f32.mrf.mxu0
        %v1171 = vadd.f32 %v901, %v1170
        %1172 = vmatmul.f32.gmra.mxu0 %v1010
        %v1173 = vpop.f32.mrf.mxu0
        %v1174 = vadd.f32 %v904, %v1173
        %1175 = vmatmul.f32.gmra.mxu0 %v1013
        %v1176 = vpop.f32.mrf.mxu0
        %v1177 = vadd.f32 %v907, %v1176
        %1178 = vdwg.mxu0
        %1179 = vmatpush.msra.mxu0 0.0
        %1180 = vmatpush.msra.mxu0 0.0
        %1181 = vmatpush.msra.mxu0 0.0
        %1182 = vmatpush.msra.mxu0 0.0
        %1183 = vmatpush.msra.mxu0 0.0
        %1184 = vmatpush.msra.mxu0 0.0
        %1185 = vmatpush.msra.mxu0 0.0
        %1186 = vmatpush.msra.mxu0 0.0
        %1187 = vmatpush.msra.mxu0 %v525
        %1188 = vmatpush.msra.mxu0 %v524
        %1189 = vmatpush.msra.mxu0 %v523
        %1190 = vmatpush.msra.mxu0 %v522
        %1191 = vmatpush.msra.mxu0 %v521
        %1192 = vmatpush.msra.mxu0 %v520
        %1193 = vmatpush.msra.mxu0 %v519
        %1194 = vmatpush.msra.mxu0 %v518
        %1195 = vmatmul.f32.gmra.mxu0 %v992
        %v1196 = vpop.f32.mrf.mxu0
        %v1197 = vadd.f32 %v927, %v1196
        %1198 = vmatmul.f32.gmra.mxu0 %v995
        %v1199 = vpop.f32.mrf.mxu0
        %v1200 = vadd.f32 %v930, %v1199
        %1201 = vmatmul.f32.gmra.mxu0 %v998
        %v1202 = vpop.f32.mrf.mxu0
        %v1203 = vadd.f32 %v933, %v1202
        %1204 = vmatmul.f32.gmra.mxu0 %v1001
        %v1205 = vpop.f32.mrf.mxu0
        %v1206 = vadd.f32 %v936, %v1205
        %1207 = vmatmul.f32.gmra.mxu0 %v1004
        %v1208 = vpop.f32.mrf.mxu0
        %v1209 = vadd.f32 %v939, %v1208
        %1210 = vmatmul.f32.gmra.mxu0 %v1007
        %v1211 = vpop.f32.mrf.mxu0
        %v1212 = vadd.f32 %v942, %v1211
        %1213 = vmatmul.f32.gmra.mxu0 %v1010
        %v1214 = vpop.f32.mrf.mxu0
        %v1215 = vadd.f32 %v945, %v1214
        %1216 = vmatmul.f32.gmra.mxu0 %v1013
        %v1217 = vpop.f32.mrf.mxu0
        %v1218 = vadd.f32 %v948, %v1217
        %1219 = vdwg.mxu0
        %1220 = vmatpush.msra.mxu0 0.0
        %1221 = vmatpush.msra.mxu0 0.0
        %1222 = vmatpush.msra.mxu0 0.0
        %1223 = vmatpush.msra.mxu0 0.0
        %1224 = vmatpush.msra.mxu0 0.0
        %1225 = vmatpush.msra.mxu0 0.0
        %1226 = vmatpush.msra.mxu0 0.0
        %1227 = vmatpush.msra.mxu0 0.0
        %1228 = vmatpush.msra.mxu0 %v517
        %1229 = vmatpush.msra.mxu0 %v516
        %1230 = vmatpush.msra.mxu0 %v515
        %1231 = vmatpush.msra.mxu0 %v514
        %1232 = vmatpush.msra.mxu0 %v513
        %1233 = vmatpush.msra.mxu0 %v512
        %1234 = vmatpush.msra.mxu0 %v511
        %1235 = vmatpush.msra.mxu0 %v510
        %1236 = vmatmul.f32.gmra.mxu0 %v992
        %v1237 = vpop.f32.mrf.mxu0
        %v1238 = vadd.f32 %v968, %v1237
        %1239 = vmatmul.f32.gmra.mxu0 %v995
        %v1240 = vpop.f32.mrf.mxu0
        %v1241 = vadd.f32 %v971, %v1240
        %1242 = vmatmul.f32.gmra.mxu0 %v998
        %v1243 = vpop.f32.mrf.mxu0
        %v1244 = vadd.f32 %v974, %v1243
        %1245 = vmatmul.f32.gmra.mxu0 %v1001
        %v1246 = vpop.f32.mrf.mxu0
        %v1247 = vadd.f32 %v977, %v1246
        %1248 = vmatmul.f32.gmra.mxu0 %v1004
        %v1249 = vpop.f32.mrf.mxu0
        %v1250 = vadd.f32 %v980, %v1249
        %1251 = vmatmul.f32.gmra.mxu0 %v1007
        %v1252 = vpop.f32.mrf.mxu0
        %v1253 = vadd.f32 %v983, %v1252
        %1254 = vmatmul.f32.gmra.mxu0 %v1010
        %v1255 = vpop.f32.mrf.mxu0
        %v1256 = vadd.f32 %v986, %v1255
        %1257 = vmatmul.f32.gmra.mxu0 %v1013
        %v1258 = vpop.f32.mrf.mxu0
        %v1259 = vadd.f32 %v989, %v1258
        %1260 = vdwg.mxu0
        %1261 = vrot.lane.b32.xlu0 %v362, 17
        %v1262 = vpop.permute.xlu0 %1261
        %1263 = vrot.lane.b32.xlu0 %v368, 17
        %v1264 = vpop.permute.xlu0 %1263
        %1265 = vrot.lane.b32.xlu0 %v374, 17
        %v1266 = vpop.permute.xlu0 %1265
        %1267 = vrot.lane.b32.xlu0 %v380, 17
        %v1268 = vpop.permute.xlu0 %1267
        %1269 = vrot.lane.b32.xlu0 %v386, 17
        %v1270 = vpop.permute.xlu0 %1269
        %1271 = vrot.lane.b32.xlu0 %v392, 17
        %v1272 = vpop.permute.xlu0 %1271
        %1273 = vrot.lane.b32.xlu0 %v398, 17
        %v1274 = vpop.permute.xlu0 %1273
        %1275 = vrot.lane.b32.xlu0 %v404, 17
        %v1276 = vpop.permute.xlu0 %1275
        %1277 = vrot.lane.b32.xlu0 %v363, 17
        %v1278 = vpop.permute.xlu0 %1277
        %1279 = vrot.lane.b32.xlu0 %v369, 17
        %v1280 = vpop.permute.xlu0 %1279
        %1281 = vrot.lane.b32.xlu0 %v375, 17
        %v1282 = vpop.permute.xlu0 %1281
        %1283 = vrot.lane.b32.xlu0 %v381, 17
        %v1284 = vpop.permute.xlu0 %1283
        %1285 = vrot.lane.b32.xlu0 %v387, 17
        %v1286 = vpop.permute.xlu0 %1285
        %1287 = vrot.lane.b32.xlu0 %v393, 17
        %v1288 = vpop.permute.xlu0 %1287
        %1289 = vrot.lane.b32.xlu0 %v399, 17
        %v1290 = vpop.permute.xlu0 %1289
        %1291 = vrot.lane.b32.xlu0 %v405, 17
        %v1292 = vpop.permute.xlu0 %1291
        %1293 = vrot.lane.b32.xlu0 %v364, 17
        %v1294 = vpop.permute.xlu0 %1293
        %1295 = vrot.lane.b32.xlu0 %v370, 17
        %v1296 = vpop.permute.xlu0 %1295
        %1297 = vrot.lane.b32.xlu0 %v376, 17
        %v1298 = vpop.permute.xlu0 %1297
        %1299 = vrot.lane.b32.xlu0 %v382, 17
        %v1300 = vpop.permute.xlu0 %1299
        %1301 = vrot.lane.b32.xlu0 %v388, 17
        %v1302 = vpop.permute.xlu0 %1301
        %1303 = vrot.lane.b32.xlu0 %v394, 17
        %v1304 = vpop.permute.xlu0 %1303
        %1305 = vrot.lane.b32.xlu0 %v400, 17
        %v1306 = vpop.permute.xlu0 %1305
        %1307 = vrot.lane.b32.xlu0 %v406, 17
        %v1308 = vpop.permute.xlu0 %1307
        %1309 = vrot.lane.b32.xlu0 %v365, 17
        %v1310 = vpop.permute.xlu0 %1309
        %1311 = vrot.lane.b32.xlu0 %v371, 17
        %v1312 = vpop.permute.xlu0 %1311
        %1313 = vrot.lane.b32.xlu0 %v377, 17
        %v1314 = vpop.permute.xlu0 %1313
        %1315 = vrot.lane.b32.xlu0 %v383, 17
        %v1316 = vpop.permute.xlu0 %1315
        %1317 = vrot.lane.b32.xlu0 %v389, 17
        %v1318 = vpop.permute.xlu0 %1317
        %1319 = vrot.lane.b32.xlu0 %v395, 17
        %v1320 = vpop.permute.xlu0 %1319
        %1321 = vrot.lane.b32.xlu0 %v401, 17
        %v1322 = vpop.permute.xlu0 %1321
        %1323 = vrot.lane.b32.xlu0 %v407, 17
        %v1324 = vpop.permute.xlu0 %1323
        %1325 = vrot.lane.b32.xlu0 %v366, 17
        %v1326 = vpop.permute.xlu0 %1325
        %1327 = vrot.lane.b32.xlu0 %v372, 17
        %v1328 = vpop.permute.xlu0 %1327
        %1329 = vrot.lane.b32.xlu0 %v378, 17
        %v1330 = vpop.permute.xlu0 %1329
        %1331 = vrot.lane.b32.xlu0 %v384, 17
        %v1332 = vpop.permute.xlu0 %1331
        %1333 = vrot.lane.b32.xlu0 %v390, 17
        %v1334 = vpop.permute.xlu0 %1333
        %1335 = vrot.lane.b32.xlu0 %v396, 17
        %v1336 = vpop.permute.xlu0 %1335
        %1337 = vrot.lane.b32.xlu0 %v402, 17
        %v1338 = vpop.permute.xlu0 %1337
        %1339 = vrot.lane.b32.xlu0 %v408, 17
        %v1340 = vpop.permute.xlu0 %1339
        %1341 = vrot.lane.b32.xlu0 %v367, 17
        %v1342 = vpop.permute.xlu0 %1341
        %1343 = vrot.lane.b32.xlu0 %v373, 17
        %v1344 = vpop.permute.xlu0 %1343
        %1345 = vrot.lane.b32.xlu0 %v379, 17
        %v1346 = vpop.permute.xlu0 %1345
        %1347 = vrot.lane.b32.xlu0 %v385, 17
        %v1348 = vpop.permute.xlu0 %1347
        %1349 = vrot.lane.b32.xlu0 %v391, 17
        %v1350 = vpop.permute.xlu0 %1349
        %1351 = vrot.lane.b32.xlu0 %v397, 17
        %v1352 = vpop.permute.xlu0 %1351
        %1353 = vrot.lane.b32.xlu0 %v403, 17
        %v1354 = vpop.permute.xlu0 %1353
        %1355 = vrot.lane.b32.xlu0 %v409, 17
        %v1356 = vpop.permute.xlu0 %1355
        %vm1357 = vcmp.lt.s32.totalorder %v508, 17
        %v1358 = vsel %vm1357, %v1326, %v1342
        %v1359 = vsel %vm1357, %v1328, %v1344
        %v1360 = vsel %vm1357, %v1330, %v1346
        %v1361 = vsel %vm1357, %v1332, %v1348
        %v1362 = vsel %vm1357, %v1334, %v1350
        %v1363 = vsel %vm1357, %v1336, %v1352
        %v1364 = vsel %vm1357, %v1338, %v1354
        %v1365 = vsel %vm1357, %v1340, %v1356
        %v1366 = vsel %vm1357, %v1310, %v1326
        %v1367 = vsel %vm1357, %v1312, %v1328
        %v1368 = vsel %vm1357, %v1314, %v1330
        %v1369 = vsel %vm1357, %v1316, %v1332
        %v1370 = vsel %vm1357, %v1318, %v1334
        %v1371 = vsel %vm1357, %v1320, %v1336
        %v1372 = vsel %vm1357, %v1322, %v1338
        %v1373 = vsel %vm1357, %v1324, %v1340
        %v1374 = vsel %vm1357, %v1294, %v1310
        %v1375 = vsel %vm1357, %v1296, %v1312
        %v1376 = vsel %vm1357, %v1298, %v1314
        %v1377 = vsel %vm1357, %v1300, %v1316
        %v1378 = vsel %vm1357, %v1302, %v1318
        %v1379 = vsel %vm1357, %v1304, %v1320
        %v1380 = vsel %vm1357, %v1306, %v1322
        %v1381 = vsel %vm1357, %v1308, %v1324
        %v1382 = vsel %vm1357, %v1278, %v1294
        %v1383 = vsel %vm1357, %v1280, %v1296
        %v1384 = vsel %vm1357, %v1282, %v1298
        %v1385 = vsel %vm1357, %v1284, %v1300
        %v1386 = vsel %vm1357, %v1286, %v1302
        %v1387 = vsel %vm1357, %v1288, %v1304
        %v1388 = vsel %vm1357, %v1290, %v1306
        %v1389 = vsel %vm1357, %v1292, %v1308
        %v1390 = vsel %vm1357, %v1262, %v1278
        %v1391 = vsel %vm1357, %v1264, %v1280
        %v1392 = vsel %vm1357, %v1266, %v1282
        %v1393 = vsel %vm1357, %v1268, %v1284
        %v1394 = vsel %vm1357, %v1270, %v1286
        %v1395 = vsel %vm1357, %v1272, %v1288
        %v1396 = vsel %vm1357, %v1274, %v1290
        %v1397 = vsel %vm1357, %v1276, %v1292
        %v1398 = vsel %vm1357, %v1342, %v1262
        %v1399 = vsel %vm1357, %v1344, %v1264
        %v1400 = vsel %vm1357, %v1346, %v1266
        %v1401 = vsel %vm1357, %v1348, %v1268
        %v1402 = vsel %vm1357, %v1350, %v1270
        %v1403 = vsel %vm1357, %v1352, %v1272
        %v1404 = vsel %vm1357, %v1354, %v1274
        %v1405 = vsel %vm1357, %v1356, %v1276
        %s1406 = scalar_lea.vmem %s2, 128
        %v1407 = vld [vmem:[%s1406] sm:$0xff]
        %v1408 = vld [vmem:[%s1406 + $0x8] sm:$0xff]
        %v1409 = vld [vmem:[%s1406 + $0x10] sm:$0xff]
        %v1410 = vld [vmem:[%s1406 + $0x18] sm:$0xff]
        %v1411 = vld [vmem:[%s1406 + $0x20] sm:$0xff]
        %v1412 = vld [vmem:[%s1406 + $0x28] sm:$0xff]
        %v1413 = vld [vmem:[%s1406 + $0x30] sm:$0xff]
        %v1414 = vld [vmem:[%s1406 + $0x38] sm:$0xff]
        %v1416 = vsel %vm720, %v1407, 0
        %v1419 = vsel %vm720, %v1408, 0
        %v1422 = vsel %vm720, %v1409, 0
        %v1425 = vsel %vm720, %v1410, 0
        %v1428 = vsel %vm720, %v1411, 0
        %v1431 = vsel %vm720, %v1412, 0
        %v1434 = vsel %vm720, %v1413, 0
        %v1437 = vsel %vm720, %v1414, 0
        %1439 = vmatpush.msra.mxu0 0.0
        %1440 = vmatpush.msra.mxu0 0.0
        %1441 = vmatpush.msra.mxu0 0.0
        %1442 = vmatpush.msra.mxu0 0.0
        %1443 = vmatpush.msra.mxu0 0.0
        %1444 = vmatpush.msra.mxu0 0.0
        %1445 = vmatpush.msra.mxu0 0.0
        %1446 = vmatpush.msra.mxu0 0.0
        %1447 = vmatpush.msra.mxu0 %v1405
        %1448 = vmatpush.msra.mxu0 %v1404
        %1449 = vmatpush.msra.mxu0 %v1403
        %1450 = vmatpush.msra.mxu0 %v1402
        %1451 = vmatpush.msra.mxu0 %v1401
        %1452 = vmatpush.msra.mxu0 %v1400
        %1453 = vmatpush.msra.mxu0 %v1399
        %1454 = vmatpush.msra.mxu0 %v1398
        %1455 = vmatmul.f32.gmra.mxu0 %v1416
        %v1456 = vpop.f32.mrf.mxu0
        %v1457 = vadd.f32 0.0, %v1456
        %1458 = vmatmul.f32.gmra.mxu0 %v1419
        %v1459 = vpop.f32.mrf.mxu0
        %v1460 = vadd.f32 0.0, %v1459
        %1461 = vmatmul.f32.gmra.mxu0 %v1422
        %v1462 = vpop.f32.mrf.mxu0
        %v1463 = vadd.f32 0.0, %v1462
        %1464 = vmatmul.f32.gmra.mxu0 %v1425
        %v1465 = vpop.f32.mrf.mxu0
        %v1466 = vadd.f32 0.0, %v1465
        %1467 = vmatmul.f32.gmra.mxu0 %v1428
        %v1468 = vpop.f32.mrf.mxu0
        %v1469 = vadd.f32 0.0, %v1468
        %1470 = vmatmul.f32.gmra.mxu0 %v1431
        %v1471 = vpop.f32.mrf.mxu0
        %v1472 = vadd.f32 0.0, %v1471
        %1473 = vmatmul.f32.gmra.mxu0 %v1434
        %v1474 = vpop.f32.mrf.mxu0
        %v1475 = vadd.f32 0.0, %v1474
        %1476 = vmatmul.f32.gmra.mxu0 %v1437
        %v1477 = vpop.f32.mrf.mxu0
        %v1478 = vadd.f32 0.0, %v1477
        %1479 = vdwg.mxu0
        %1480 = vmatpush.msra.mxu0 0.0
        %1481 = vmatpush.msra.mxu0 0.0
        %1482 = vmatpush.msra.mxu0 0.0
        %1483 = vmatpush.msra.mxu0 0.0
        %1484 = vmatpush.msra.mxu0 0.0
        %1485 = vmatpush.msra.mxu0 0.0
        %1486 = vmatpush.msra.mxu0 0.0
        %1487 = vmatpush.msra.mxu0 0.0
        %1488 = vmatpush.msra.mxu0 %v1397
        %1489 = vmatpush.msra.mxu0 %v1396
        %1490 = vmatpush.msra.mxu0 %v1395
        %1491 = vmatpush.msra.mxu0 %v1394
        %1492 = vmatpush.msra.mxu0 %v1393
        %1493 = vmatpush.msra.mxu0 %v1392
        %1494 = vmatpush.msra.mxu0 %v1391
        %1495 = vmatpush.msra.mxu0 %v1390
        %1496 = vmatmul.f32.gmra.mxu0 %v1416
        %v1497 = vpop.f32.mrf.mxu0
        %v1498 = vadd.f32 0.0, %v1497
        %1499 = vmatmul.f32.gmra.mxu0 %v1419
        %v1500 = vpop.f32.mrf.mxu0
        %v1501 = vadd.f32 0.0, %v1500
        %1502 = vmatmul.f32.gmra.mxu0 %v1422
        %v1503 = vpop.f32.mrf.mxu0
        %v1504 = vadd.f32 0.0, %v1503
        %1505 = vmatmul.f32.gmra.mxu0 %v1425
        %v1506 = vpop.f32.mrf.mxu0
        %v1507 = vadd.f32 0.0, %v1506
        %1508 = vmatmul.f32.gmra.mxu0 %v1428
        %v1509 = vpop.f32.mrf.mxu0
        %v1510 = vadd.f32 0.0, %v1509
        %1511 = vmatmul.f32.gmra.mxu0 %v1431
        %v1512 = vpop.f32.mrf.mxu0
        %v1513 = vadd.f32 0.0, %v1512
        %1514 = vmatmul.f32.gmra.mxu0 %v1434
        %v1515 = vpop.f32.mrf.mxu0
        %v1516 = vadd.f32 0.0, %v1515
        %1517 = vmatmul.f32.gmra.mxu0 %v1437
        %v1518 = vpop.f32.mrf.mxu0
        %v1519 = vadd.f32 0.0, %v1518
        %1520 = vdwg.mxu0
        %1521 = vmatpush.msra.mxu0 0.0
        %1522 = vmatpush.msra.mxu0 0.0
        %1523 = vmatpush.msra.mxu0 0.0
        %1524 = vmatpush.msra.mxu0 0.0
        %1525 = vmatpush.msra.mxu0 0.0
        %1526 = vmatpush.msra.mxu0 0.0
        %1527 = vmatpush.msra.mxu0 0.0
        %1528 = vmatpush.msra.mxu0 0.0
        %1529 = vmatpush.msra.mxu0 %v1389
        %1530 = vmatpush.msra.mxu0 %v1388
        %1531 = vmatpush.msra.mxu0 %v1387
        %1532 = vmatpush.msra.mxu0 %v1386
        %1533 = vmatpush.msra.mxu0 %v1385
        %1534 = vmatpush.msra.mxu0 %v1384
        %1535 = vmatpush.msra.mxu0 %v1383
        %1536 = vmatpush.msra.mxu0 %v1382
        %1537 = vmatmul.f32.gmra.mxu0 %v1416
        %v1538 = vpop.f32.mrf.mxu0
        %v1539 = vadd.f32 0.0, %v1538
        %1540 = vmatmul.f32.gmra.mxu0 %v1419
        %v1541 = vpop.f32.mrf.mxu0
        %v1542 = vadd.f32 0.0, %v1541
        %1543 = vmatmul.f32.gmra.mxu0 %v1422
        %v1544 = vpop.f32.mrf.mxu0
        %v1545 = vadd.f32 0.0, %v1544
        %1546 = vmatmul.f32.gmra.mxu0 %v1425
        %v1547 = vpop.f32.mrf.mxu0
        %v1548 = vadd.f32 0.0, %v1547
        %1549 = vmatmul.f32.gmra.mxu0 %v1428
        %v1550 = vpop.f32.mrf.mxu0
        %v1551 = vadd.f32 0.0, %v1550
        %1552 = vmatmul.f32.gmra.mxu0 %v1431
        %v1553 = vpop.f32.mrf.mxu0
        %v1554 = vadd.f32 0.0, %v1553
        %1555 = vmatmul.f32.gmra.mxu0 %v1434
        %v1556 = vpop.f32.mrf.mxu0
        %v1557 = vadd.f32 0.0, %v1556
        %1558 = vmatmul.f32.gmra.mxu0 %v1437
        %v1559 = vpop.f32.mrf.mxu0
        %v1560 = vadd.f32 0.0, %v1559
        %1561 = vdwg.mxu0
        %1562 = vmatpush.msra.mxu0 0.0
        %1563 = vmatpush.msra.mxu0 0.0
        %1564 = vmatpush.msra.mxu0 0.0
        %1565 = vmatpush.msra.mxu0 0.0
        %1566 = vmatpush.msra.mxu0 0.0
        %1567 = vmatpush.msra.mxu0 0.0
        %1568 = vmatpush.msra.mxu0 0.0
        %1569 = vmatpush.msra.mxu0 0.0
        %1570 = vmatpush.msra.mxu0 %v1381
        %1571 = vmatpush.msra.mxu0 %v1380
        %1572 = vmatpush.msra.mxu0 %v1379
        %1573 = vmatpush.msra.mxu0 %v1378
        %1574 = vmatpush.msra.mxu0 %v1377
        %1575 = vmatpush.msra.mxu0 %v1376
        %1576 = vmatpush.msra.mxu0 %v1375
        %1577 = vmatpush.msra.mxu0 %v1374
        %1578 = vmatmul.f32.gmra.mxu0 %v1416
        %v1579 = vpop.f32.mrf.mxu0
        %v1580 = vadd.f32 0.0, %v1579
        %1581 = vmatmul.f32.gmra.mxu0 %v1419
        %v1582 = vpop.f32.mrf.mxu0
        %v1583 = vadd.f32 0.0, %v1582
        %1584 = vmatmul.f32.gmra.mxu0 %v1422
        %v1585 = vpop.f32.mrf.mxu0
        %v1586 = vadd.f32 0.0, %v1585
        %1587 = vmatmul.f32.gmra.mxu0 %v1425
        %v1588 = vpop.f32.mrf.mxu0
        %v1589 = vadd.f32 0.0, %v1588
        %1590 = vmatmul.f32.gmra.mxu0 %v1428
        %v1591 = vpop.f32.mrf.mxu0
        %v1592 = vadd.f32 0.0, %v1591
        %1593 = vmatmul.f32.gmra.mxu0 %v1431
        %v1594 = vpop.f32.mrf.mxu0
        %v1595 = vadd.f32 0.0, %v1594
        %1596 = vmatmul.f32.gmra.mxu0 %v1434
        %v1597 = vpop.f32.mrf.mxu0
        %v1598 = vadd.f32 0.0, %v1597
        %1599 = vmatmul.f32.gmra.mxu0 %v1437
        %v1600 = vpop.f32.mrf.mxu0
        %v1601 = vadd.f32 0.0, %v1600
        %1602 = vdwg.mxu0
        %1603 = vmatpush.msra.mxu0 0.0
        %1604 = vmatpush.msra.mxu0 0.0
        %1605 = vmatpush.msra.mxu0 0.0
        %1606 = vmatpush.msra.mxu0 0.0
        %1607 = vmatpush.msra.mxu0 0.0
        %1608 = vmatpush.msra.mxu0 0.0
        %1609 = vmatpush.msra.mxu0 0.0
        %1610 = vmatpush.msra.mxu0 0.0
        %1611 = vmatpush.msra.mxu0 %v1373
        %1612 = vmatpush.msra.mxu0 %v1372
        %1613 = vmatpush.msra.mxu0 %v1371
        %1614 = vmatpush.msra.mxu0 %v1370
        %1615 = vmatpush.msra.mxu0 %v1369
        %1616 = vmatpush.msra.mxu0 %v1368
        %1617 = vmatpush.msra.mxu0 %v1367
        %1618 = vmatpush.msra.mxu0 %v1366
        %1619 = vmatmul.f32.gmra.mxu0 %v1416
        %v1620 = vpop.f32.mrf.mxu0
        %v1621 = vadd.f32 0.0, %v1620
        %1622 = vmatmul.f32.gmra.mxu0 %v1419
        %v1623 = vpop.f32.mrf.mxu0
        %v1624 = vadd.f32 0.0, %v1623
        %1625 = vmatmul.f32.gmra.mxu0 %v1422
        %v1626 = vpop.f32.mrf.mxu0
        %v1627 = vadd.f32 0.0, %v1626
        %1628 = vmatmul.f32.gmra.mxu0 %v1425
        %v1629 = vpop.f32.mrf.mxu0
        %v1630 = vadd.f32 0.0, %v1629
        %1631 = vmatmul.f32.gmra.mxu0 %v1428
        %v1632 = vpop.f32.mrf.mxu0
        %v1633 = vadd.f32 0.0, %v1632
        %1634 = vmatmul.f32.gmra.mxu0 %v1431
        %v1635 = vpop.f32.mrf.mxu0
        %v1636 = vadd.f32 0.0, %v1635
        %1637 = vmatmul.f32.gmra.mxu0 %v1434
        %v1638 = vpop.f32.mrf.mxu0
        %v1639 = vadd.f32 0.0, %v1638
        %1640 = vmatmul.f32.gmra.mxu0 %v1437
        %v1641 = vpop.f32.mrf.mxu0
        %v1642 = vadd.f32 0.0, %v1641
        %1643 = vdwg.mxu0
        %1644 = vmatpush.msra.mxu0 0.0
        %1645 = vmatpush.msra.mxu0 0.0
        %1646 = vmatpush.msra.mxu0 0.0
        %1647 = vmatpush.msra.mxu0 0.0
        %1648 = vmatpush.msra.mxu0 0.0
        %1649 = vmatpush.msra.mxu0 0.0
        %1650 = vmatpush.msra.mxu0 0.0
        %1651 = vmatpush.msra.mxu0 0.0
        %1652 = vmatpush.msra.mxu0 %v1365
        %1653 = vmatpush.msra.mxu0 %v1364
        %1654 = vmatpush.msra.mxu0 %v1363
        %1655 = vmatpush.msra.mxu0 %v1362
        %1656 = vmatpush.msra.mxu0 %v1361
        %1657 = vmatpush.msra.mxu0 %v1360
        %1658 = vmatpush.msra.mxu0 %v1359
        %1659 = vmatpush.msra.mxu0 %v1358
        %1660 = vmatmul.f32.gmra.mxu0 %v1416
        %v1661 = vpop.f32.mrf.mxu0
        %v1662 = vadd.f32 0.0, %v1661
        %1663 = vmatmul.f32.gmra.mxu0 %v1419
        %v1664 = vpop.f32.mrf.mxu0
        %v1665 = vadd.f32 0.0, %v1664
        %1666 = vmatmul.f32.gmra.mxu0 %v1422
        %v1667 = vpop.f32.mrf.mxu0
        %v1668 = vadd.f32 0.0, %v1667
        %1669 = vmatmul.f32.gmra.mxu0 %v1425
        %v1670 = vpop.f32.mrf.mxu0
        %v1671 = vadd.f32 0.0, %v1670
        %1672 = vmatmul.f32.gmra.mxu0 %v1428
        %v1673 = vpop.f32.mrf.mxu0
        %v1674 = vadd.f32 0.0, %v1673
        %1675 = vmatmul.f32.gmra.mxu0 %v1431
        %v1676 = vpop.f32.mrf.mxu0
        %v1677 = vadd.f32 0.0, %v1676
        %1678 = vmatmul.f32.gmra.mxu0 %v1434
        %v1679 = vpop.f32.mrf.mxu0
        %v1680 = vadd.f32 0.0, %v1679
        %1681 = vmatmul.f32.gmra.mxu0 %v1437
        %v1682 = vpop.f32.mrf.mxu0
        %v1683 = vadd.f32 0.0, %v1682
        %1684 = vdwg.mxu0
        %v1685 = vadd.f32 %v1033, %v1457
        %v1686 = vadd.f32 %v1074, %v1498
        %v1687 = vadd.f32 %v1115, %v1539
        %v1688 = vadd.f32 %v1156, %v1580
        %v1689 = vadd.f32 %v1197, %v1621
        %v1690 = vadd.f32 %v1238, %v1662
        %v1691 = vadd.f32 %v1036, %v1460
        %v1692 = vadd.f32 %v1077, %v1501
        %v1693 = vadd.f32 %v1118, %v1542
        %v1694 = vadd.f32 %v1159, %v1583
        %v1695 = vadd.f32 %v1200, %v1624
        %v1696 = vadd.f32 %v1241, %v1665
        %v1697 = vadd.f32 %v1039, %v1463
        %v1698 = vadd.f32 %v1080, %v1504
        %v1699 = vadd.f32 %v1121, %v1545
        %v1700 = vadd.f32 %v1162, %v1586
        %v1701 = vadd.f32 %v1203, %v1627
        %v1702 = vadd.f32 %v1244, %v1668
        %v1703 = vadd.f32 %v1042, %v1466
        %v1704 = vadd.f32 %v1083, %v1507
        %v1705 = vadd.f32 %v1124, %v1548
        %v1706 = vadd.f32 %v1165, %v1589
        %v1707 = vadd.f32 %v1206, %v1630
        %v1708 = vadd.f32 %v1247, %v1671
        %v1709 = vadd.f32 %v1045, %v1469
        %v1710 = vadd.f32 %v1086, %v1510
        %v1711 = vadd.f32 %v1127, %v1551
        %v1712 = vadd.f32 %v1168, %v1592
        %v1713 = vadd.f32 %v1209, %v1633
        %v1714 = vadd.f32 %v1250, %v1674
        %v1715 = vadd.f32 %v1048, %v1472
        %v1716 = vadd.f32 %v1089, %v1513
        %v1717 = vadd.f32 %v1130, %v1554
        %v1718 = vadd.f32 %v1171, %v1595
        %v1719 = vadd.f32 %v1212, %v1636
        %v1720 = vadd.f32 %v1253, %v1677
        %v1721 = vadd.f32 %v1051, %v1475
        %v1722 = vadd.f32 %v1092, %v1516
        %v1723 = vadd.f32 %v1133, %v1557
        %v1724 = vadd.f32 %v1174, %v1598
        %v1725 = vadd.f32 %v1215, %v1639
        %v1726 = vadd.f32 %v1256, %v1680
        %v1727 = vadd.f32 %v1054, %v1478
        %v1728 = vadd.f32 %v1095, %v1519
        %v1729 = vadd.f32 %v1136, %v1560
        %v1730 = vadd.f32 %v1177, %v1601
        %v1731 = vadd.f32 %v1218, %v1642
        %v1732 = vadd.f32 %v1259, %v1683
        %1733 = vrot.lane.b32.xlu0 %v362, 1
        %v1734 = vpop.permute.xlu0 %1733
        %1735 = vrot.lane.b32.xlu0 %v368, 1
        %v1736 = vpop.permute.xlu0 %1735
        %1737 = vrot.lane.b32.xlu0 %v374, 1
        %v1738 = vpop.permute.xlu0 %1737
        %1739 = vrot.lane.b32.xlu0 %v380, 1
        %v1740 = vpop.permute.xlu0 %1739
        %1741 = vrot.lane.b32.xlu0 %v386, 1
        %v1742 = vpop.permute.xlu0 %1741
        %1743 = vrot.lane.b32.xlu0 %v392, 1
        %v1744 = vpop.permute.xlu0 %1743
        %1745 = vrot.lane.b32.xlu0 %v398, 1
        %v1746 = vpop.permute.xlu0 %1745
        %1747 = vrot.lane.b32.xlu0 %v404, 1
        %v1748 = vpop.permute.xlu0 %1747
        %1749 = vrot.lane.b32.xlu0 %v363, 1
        %v1750 = vpop.permute.xlu0 %1749
        %1751 = vrot.lane.b32.xlu0 %v369, 1
        %v1752 = vpop.permute.xlu0 %1751
        %1753 = vrot.lane.b32.xlu0 %v375, 1
        %v1754 = vpop.permute.xlu0 %1753
        %1755 = vrot.lane.b32.xlu0 %v381, 1
        %v1756 = vpop.permute.xlu0 %1755
        %1757 = vrot.lane.b32.xlu0 %v387, 1
        %v1758 = vpop.permute.xlu0 %1757
        %1759 = vrot.lane.b32.xlu0 %v393, 1
        %v1760 = vpop.permute.xlu0 %1759
        %1761 = vrot.lane.b32.xlu0 %v399, 1
        %v1762 = vpop.permute.xlu0 %1761
        %1763 = vrot.lane.b32.xlu0 %v405, 1
        %v1764 = vpop.permute.xlu0 %1763
        %1765 = vrot.lane.b32.xlu0 %v364, 1
        %v1766 = vpop.permute.xlu0 %1765
        %1767 = vrot.lane.b32.xlu0 %v370, 1
        %v1768 = vpop.permute.xlu0 %1767
        %1769 = vrot.lane.b32.xlu0 %v376, 1
        %v1770 = vpop.permute.xlu0 %1769
        %1771 = vrot.lane.b32.xlu0 %v382, 1
        %v1772 = vpop.permute.xlu0 %1771
        %1773 = vrot.lane.b32.xlu0 %v388, 1
        %v1774 = vpop.permute.xlu0 %1773
        %1775 = vrot.lane.b32.xlu0 %v394, 1
        %v1776 = vpop.permute.xlu0 %1775
        %1777 = vrot.lane.b32.xlu0 %v400, 1
        %v1778 = vpop.permute.xlu0 %1777
        %1779 = vrot.lane.b32.xlu0 %v406, 1
        %v1780 = vpop.permute.xlu0 %1779
        %1781 = vrot.lane.b32.xlu0 %v365, 1
        %v1782 = vpop.permute.xlu0 %1781
        %1783 = vrot.lane.b32.xlu0 %v371, 1
        %v1784 = vpop.permute.xlu0 %1783
        %1785 = vrot.lane.b32.xlu0 %v377, 1
        %v1786 = vpop.permute.xlu0 %1785
        %1787 = vrot.lane.b32.xlu0 %v383, 1
        %v1788 = vpop.permute.xlu0 %1787
        %1789 = vrot.lane.b32.xlu0 %v389, 1
        %v1790 = vpop.permute.xlu0 %1789
        %1791 = vrot.lane.b32.xlu0 %v395, 1
        %v1792 = vpop.permute.xlu0 %1791
        %1793 = vrot.lane.b32.xlu0 %v401, 1
        %v1794 = vpop.permute.xlu0 %1793
        %1795 = vrot.lane.b32.xlu0 %v407, 1
        %v1796 = vpop.permute.xlu0 %1795
        %1797 = vrot.lane.b32.xlu0 %v366, 1
        %v1798 = vpop.permute.xlu0 %1797
        %1799 = vrot.lane.b32.xlu0 %v372, 1
        %v1800 = vpop.permute.xlu0 %1799
        %1801 = vrot.lane.b32.xlu0 %v378, 1
        %v1802 = vpop.permute.xlu0 %1801
        %1803 = vrot.lane.b32.xlu0 %v384, 1
        %v1804 = vpop.permute.xlu0 %1803
        %1805 = vrot.lane.b32.xlu0 %v390, 1
        %v1806 = vpop.permute.xlu0 %1805
        %1807 = vrot.lane.b32.xlu0 %v396, 1
        %v1808 = vpop.permute.xlu0 %1807
        %1809 = vrot.lane.b32.xlu0 %v402, 1
        %v1810 = vpop.permute.xlu0 %1809
        %1811 = vrot.lane.b32.xlu0 %v408, 1
        %v1812 = vpop.permute.xlu0 %1811
        %1813 = vrot.lane.b32.xlu0 %v367, 1
        %v1814 = vpop.permute.xlu0 %1813
        %1815 = vrot.lane.b32.xlu0 %v373, 1
        %v1816 = vpop.permute.xlu0 %1815
        %1817 = vrot.lane.b32.xlu0 %v379, 1
        %v1818 = vpop.permute.xlu0 %1817
        %1819 = vrot.lane.b32.xlu0 %v385, 1
        %v1820 = vpop.permute.xlu0 %1819
        %1821 = vrot.lane.b32.xlu0 %v391, 1
        %v1822 = vpop.permute.xlu0 %1821
        %1823 = vrot.lane.b32.xlu0 %v397, 1
        %v1824 = vpop.permute.xlu0 %1823
        %1825 = vrot.lane.b32.xlu0 %v403, 1
        %v1826 = vpop.permute.xlu0 %1825
        %1827 = vrot.lane.b32.xlu0 %v409, 1
        %v1828 = vpop.permute.xlu0 %1827
        %vm1829 = vcmp.lt.s32.totalorder %v508, 1
        %v1830 = vsel %vm1829, %v1798, %v1814
        %v1831 = vsel %vm1829, %v1800, %v1816
        %v1832 = vsel %vm1829, %v1802, %v1818
        %v1833 = vsel %vm1829, %v1804, %v1820
        %v1834 = vsel %vm1829, %v1806, %v1822
        %v1835 = vsel %vm1829, %v1808, %v1824
        %v1836 = vsel %vm1829, %v1810, %v1826
        %v1837 = vsel %vm1829, %v1812, %v1828
        %v1838 = vsel %vm1829, %v1782, %v1798
        %v1839 = vsel %vm1829, %v1784, %v1800
        %v1840 = vsel %vm1829, %v1786, %v1802
        %v1841 = vsel %vm1829, %v1788, %v1804
        %v1842 = vsel %vm1829, %v1790, %v1806
        %v1843 = vsel %vm1829, %v1792, %v1808
        %v1844 = vsel %vm1829, %v1794, %v1810
        %v1845 = vsel %vm1829, %v1796, %v1812
        %v1846 = vsel %vm1829, %v1766, %v1782
        %v1847 = vsel %vm1829, %v1768, %v1784
        %v1848 = vsel %vm1829, %v1770, %v1786
        %v1849 = vsel %vm1829, %v1772, %v1788
        %v1850 = vsel %vm1829, %v1774, %v1790
        %v1851 = vsel %vm1829, %v1776, %v1792
        %v1852 = vsel %vm1829, %v1778, %v1794
        %v1853 = vsel %vm1829, %v1780, %v1796
        %v1854 = vsel %vm1829, %v1750, %v1766
        %v1855 = vsel %vm1829, %v1752, %v1768
        %v1856 = vsel %vm1829, %v1754, %v1770
        %v1857 = vsel %vm1829, %v1756, %v1772
        %v1858 = vsel %vm1829, %v1758, %v1774
        %v1859 = vsel %vm1829, %v1760, %v1776
        %v1860 = vsel %vm1829, %v1762, %v1778
        %v1861 = vsel %vm1829, %v1764, %v1780
        %v1862 = vsel %vm1829, %v1734, %v1750
        %v1863 = vsel %vm1829, %v1736, %v1752
        %v1864 = vsel %vm1829, %v1738, %v1754
        %v1865 = vsel %vm1829, %v1740, %v1756
        %v1866 = vsel %vm1829, %v1742, %v1758
        %v1867 = vsel %vm1829, %v1744, %v1760
        %v1868 = vsel %vm1829, %v1746, %v1762
        %v1869 = vsel %vm1829, %v1748, %v1764
        %v1870 = vsel %vm1829, %v1814, %v1734
        %v1871 = vsel %vm1829, %v1816, %v1736
        %v1872 = vsel %vm1829, %v1818, %v1738
        %v1873 = vsel %vm1829, %v1820, %v1740
        %v1874 = vsel %vm1829, %v1822, %v1742
        %v1875 = vsel %vm1829, %v1824, %v1744
        %v1876 = vsel %vm1829, %v1826, %v1746
        %v1877 = vsel %vm1829, %v1828, %v1748
        %s1878 = scalar_lea.vmem %s2, 192
        %v1879 = vld [vmem:[%s1878] sm:$0xff]
        %v1880 = vld [vmem:[%s1878 + $0x8] sm:$0xff]
        %v1881 = vld [vmem:[%s1878 + $0x10] sm:$0xff]
        %v1882 = vld [vmem:[%s1878 + $0x18] sm:$0xff]
        %v1883 = vld [vmem:[%s1878 + $0x20] sm:$0xff]
        %v1884 = vld [vmem:[%s1878 + $0x28] sm:$0xff]
        %v1885 = vld [vmem:[%s1878 + $0x30] sm:$0xff]
        %v1886 = vld [vmem:[%s1878 + $0x38] sm:$0xff]
        %v1888 = vsel %vm720, %v1879, 0
        %v1891 = vsel %vm720, %v1880, 0
        %v1894 = vsel %vm720, %v1881, 0
        %v1897 = vsel %vm720, %v1882, 0
        %v1900 = vsel %vm720, %v1883, 0
        %v1903 = vsel %vm720, %v1884, 0
        %v1906 = vsel %vm720, %v1885, 0
        %v1909 = vsel %vm720, %v1886, 0
        %1911 = vmatpush.msra.mxu0 0.0
        %1912 = vmatpush.msra.mxu0 0.0
        %1913 = vmatpush.msra.mxu0 0.0
        %1914 = vmatpush.msra.mxu0 0.0
        %1915 = vmatpush.msra.mxu0 0.0
        %1916 = vmatpush.msra.mxu0 0.0
        %1917 = vmatpush.msra.mxu0 0.0
        %1918 = vmatpush.msra.mxu0 0.0
        %1919 = vmatpush.msra.mxu0 %v1877
        %1920 = vmatpush.msra.mxu0 %v1876
        %1921 = vmatpush.msra.mxu0 %v1875
        %1922 = vmatpush.msra.mxu0 %v1874
        %1923 = vmatpush.msra.mxu0 %v1873
        %1924 = vmatpush.msra.mxu0 %v1872
        %1925 = vmatpush.msra.mxu0 %v1871
        %1926 = vmatpush.msra.mxu0 %v1870
        %1927 = vmatmul.f32.gmra.mxu0 %v1888
        %v1928 = vpop.f32.mrf.mxu0
        %v1929 = vadd.f32 0.0, %v1928
        %1930 = vmatmul.f32.gmra.mxu0 %v1891
        %v1931 = vpop.f32.mrf.mxu0
        %v1932 = vadd.f32 0.0, %v1931
        %1933 = vmatmul.f32.gmra.mxu0 %v1894
        %v1934 = vpop.f32.mrf.mxu0
        %v1935 = vadd.f32 0.0, %v1934
        %1936 = vmatmul.f32.gmra.mxu0 %v1897
        %v1937 = vpop.f32.mrf.mxu0
        %v1938 = vadd.f32 0.0, %v1937
        %1939 = vmatmul.f32.gmra.mxu0 %v1900
        %v1940 = vpop.f32.mrf.mxu0
        %v1941 = vadd.f32 0.0, %v1940
        %1942 = vmatmul.f32.gmra.mxu0 %v1903
        %v1943 = vpop.f32.mrf.mxu0
        %v1944 = vadd.f32 0.0, %v1943
        %1945 = vmatmul.f32.gmra.mxu0 %v1906
        %v1946 = vpop.f32.mrf.mxu0
        %v1947 = vadd.f32 0.0, %v1946
        %1948 = vmatmul.f32.gmra.mxu0 %v1909
        %v1949 = vpop.f32.mrf.mxu0
        %v1950 = vadd.f32 0.0, %v1949
        %1951 = vdwg.mxu0
        %1952 = vmatpush.msra.mxu0 0.0
        %1953 = vmatpush.msra.mxu0 0.0
        %1954 = vmatpush.msra.mxu0 0.0
        %1955 = vmatpush.msra.mxu0 0.0
        %1956 = vmatpush.msra.mxu0 0.0
        %1957 = vmatpush.msra.mxu0 0.0
        %1958 = vmatpush.msra.mxu0 0.0
        %1959 = vmatpush.msra.mxu0 0.0
        %1960 = vmatpush.msra.mxu0 %v1869
        %1961 = vmatpush.msra.mxu0 %v1868
        %1962 = vmatpush.msra.mxu0 %v1867
        %1963 = vmatpush.msra.mxu0 %v1866
        %1964 = vmatpush.msra.mxu0 %v1865
        %1965 = vmatpush.msra.mxu0 %v1864
        %1966 = vmatpush.msra.mxu0 %v1863
        %1967 = vmatpush.msra.mxu0 %v1862
        %1968 = vmatmul.f32.gmra.mxu0 %v1888
        %v1969 = vpop.f32.mrf.mxu0
        %v1970 = vadd.f32 0.0, %v1969
        %1971 = vmatmul.f32.gmra.mxu0 %v1891
        %v1972 = vpop.f32.mrf.mxu0
        %v1973 = vadd.f32 0.0, %v1972
        %1974 = vmatmul.f32.gmra.mxu0 %v1894
        %v1975 = vpop.f32.mrf.mxu0
        %v1976 = vadd.f32 0.0, %v1975
        %1977 = vmatmul.f32.gmra.mxu0 %v1897
        %v1978 = vpop.f32.mrf.mxu0
        %v1979 = vadd.f32 0.0, %v1978
        %1980 = vmatmul.f32.gmra.mxu0 %v1900
        %v1981 = vpop.f32.mrf.mxu0
        %v1982 = vadd.f32 0.0, %v1981
        %1983 = vmatmul.f32.gmra.mxu0 %v1903
        %v1984 = vpop.f32.mrf.mxu0
        %v1985 = vadd.f32 0.0, %v1984
        %1986 = vmatmul.f32.gmra.mxu0 %v1906
        %v1987 = vpop.f32.mrf.mxu0
        %v1988 = vadd.f32 0.0, %v1987
        %1989 = vmatmul.f32.gmra.mxu0 %v1909
        %v1990 = vpop.f32.mrf.mxu0
        %v1991 = vadd.f32 0.0, %v1990
        %1992 = vdwg.mxu0
        %1993 = vmatpush.msra.mxu0 0.0
        %1994 = vmatpush.msra.mxu0 0.0
        %1995 = vmatpush.msra.mxu0 0.0
        %1996 = vmatpush.msra.mxu0 0.0
        %1997 = vmatpush.msra.mxu0 0.0
        %1998 = vmatpush.msra.mxu0 0.0
        %1999 = vmatpush.msra.mxu0 0.0
        %2000 = vmatpush.msra.mxu0 0.0
        %2001 = vmatpush.msra.mxu0 %v1861
        %2002 = vmatpush.msra.mxu0 %v1860
        %2003 = vmatpush.msra.mxu0 %v1859
        %2004 = vmatpush.msra.mxu0 %v1858
        %2005 = vmatpush.msra.mxu0 %v1857
        %2006 = vmatpush.msra.mxu0 %v1856
        %2007 = vmatpush.msra.mxu0 %v1855
        %2008 = vmatpush.msra.mxu0 %v1854
        %2009 = vmatmul.f32.gmra.mxu0 %v1888
        %v2010 = vpop.f32.mrf.mxu0
        %v2011 = vadd.f32 0.0, %v2010
        %2012 = vmatmul.f32.gmra.mxu0 %v1891
        %v2013 = vpop.f32.mrf.mxu0
        %v2014 = vadd.f32 0.0, %v2013
        %2015 = vmatmul.f32.gmra.mxu0 %v1894
        %v2016 = vpop.f32.mrf.mxu0
        %v2017 = vadd.f32 0.0, %v2016
        %2018 = vmatmul.f32.gmra.mxu0 %v1897
        %v2019 = vpop.f32.mrf.mxu0
        %v2020 = vadd.f32 0.0, %v2019
        %2021 = vmatmul.f32.gmra.mxu0 %v1900
        %v2022 = vpop.f32.mrf.mxu0
        %v2023 = vadd.f32 0.0, %v2022
        %2024 = vmatmul.f32.gmra.mxu0 %v1903
        %v2025 = vpop.f32.mrf.mxu0
        %v2026 = vadd.f32 0.0, %v2025
        %2027 = vmatmul.f32.gmra.mxu0 %v1906
        %v2028 = vpop.f32.mrf.mxu0
        %v2029 = vadd.f32 0.0, %v2028
        %2030 = vmatmul.f32.gmra.mxu0 %v1909
        %v2031 = vpop.f32.mrf.mxu0
        %v2032 = vadd.f32 0.0, %v2031
        %2033 = vdwg.mxu0
        %2034 = vmatpush.msra.mxu0 0.0
        %2035 = vmatpush.msra.mxu0 0.0
        %2036 = vmatpush.msra.mxu0 0.0
        %2037 = vmatpush.msra.mxu0 0.0
        %2038 = vmatpush.msra.mxu0 0.0
        %2039 = vmatpush.msra.mxu0 0.0
        %2040 = vmatpush.msra.mxu0 0.0
        %2041 = vmatpush.msra.mxu0 0.0
        %2042 = vmatpush.msra.mxu0 %v1853
        %2043 = vmatpush.msra.mxu0 %v1852
        %2044 = vmatpush.msra.mxu0 %v1851
        %2045 = vmatpush.msra.mxu0 %v1850
        %2046 = vmatpush.msra.mxu0 %v1849
        %2047 = vmatpush.msra.mxu0 %v1848
        %2048 = vmatpush.msra.mxu0 %v1847
        %2049 = vmatpush.msra.mxu0 %v1846
        %2050 = vmatmul.f32.gmra.mxu0 %v1888
        %v2051 = vpop.f32.mrf.mxu0
        %v2052 = vadd.f32 0.0, %v2051
        %2053 = vmatmul.f32.gmra.mxu0 %v1891
        %v2054 = vpop.f32.mrf.mxu0
        %v2055 = vadd.f32 0.0, %v2054
        %2056 = vmatmul.f32.gmra.mxu0 %v1894
        %v2057 = vpop.f32.mrf.mxu0
        %v2058 = vadd.f32 0.0, %v2057
        %2059 = vmatmul.f32.gmra.mxu0 %v1897
        %v2060 = vpop.f32.mrf.mxu0
        %v2061 = vadd.f32 0.0, %v2060
        %2062 = vmatmul.f32.gmra.mxu0 %v1900
        %v2063 = vpop.f32.mrf.mxu0
        %v2064 = vadd.f32 0.0, %v2063
        %2065 = vmatmul.f32.gmra.mxu0 %v1903
        %v2066 = vpop.f32.mrf.mxu0
        %v2067 = vadd.f32 0.0, %v2066
        %2068 = vmatmul.f32.gmra.mxu0 %v1906
        %v2069 = vpop.f32.mrf.mxu0
        %v2070 = vadd.f32 0.0, %v2069
        %2071 = vmatmul.f32.gmra.mxu0 %v1909
        %v2072 = vpop.f32.mrf.mxu0
        %v2073 = vadd.f32 0.0, %v2072
        %2074 = vdwg.mxu0
        %2075 = vmatpush.msra.mxu0 0.0
        %2076 = vmatpush.msra.mxu0 0.0
        %2077 = vmatpush.msra.mxu0 0.0
        %2078 = vmatpush.msra.mxu0 0.0
        %2079 = vmatpush.msra.mxu0 0.0
        %2080 = vmatpush.msra.mxu0 0.0
        %2081 = vmatpush.msra.mxu0 0.0
        %2082 = vmatpush.msra.mxu0 0.0
        %2083 = vmatpush.msra.mxu0 %v1845
        %2084 = vmatpush.msra.mxu0 %v1844
        %2085 = vmatpush.msra.mxu0 %v1843
        %2086 = vmatpush.msra.mxu0 %v1842
        %2087 = vmatpush.msra.mxu0 %v1841
        %2088 = vmatpush.msra.mxu0 %v1840
        %2089 = vmatpush.msra.mxu0 %v1839
        %2090 = vmatpush.msra.mxu0 %v1838
        %2091 = vmatmul.f32.gmra.mxu0 %v1888
        %v2092 = vpop.f32.mrf.mxu0
        %v2093 = vadd.f32 0.0, %v2092
        %2094 = vmatmul.f32.gmra.mxu0 %v1891
        %v2095 = vpop.f32.mrf.mxu0
        %v2096 = vadd.f32 0.0, %v2095
        %2097 = vmatmul.f32.gmra.mxu0 %v1894
        %v2098 = vpop.f32.mrf.mxu0
        %v2099 = vadd.f32 0.0, %v2098
        %2100 = vmatmul.f32.gmra.mxu0 %v1897
        %v2101 = vpop.f32.mrf.mxu0
        %v2102 = vadd.f32 0.0, %v2101
        %2103 = vmatmul.f32.gmra.mxu0 %v1900
        %v2104 = vpop.f32.mrf.mxu0
        %v2105 = vadd.f32 0.0, %v2104
        %2106 = vmatmul.f32.gmra.mxu0 %v1903
        %v2107 = vpop.f32.mrf.mxu0
        %v2108 = vadd.f32 0.0, %v2107
        %2109 = vmatmul.f32.gmra.mxu0 %v1906
        %v2110 = vpop.f32.mrf.mxu0
        %v2111 = vadd.f32 0.0, %v2110
        %2112 = vmatmul.f32.gmra.mxu0 %v1909
        %v2113 = vpop.f32.mrf.mxu0
        %v2114 = vadd.f32 0.0, %v2113
        %2115 = vdwg.mxu0
        %2116 = vmatpush.msra.mxu0 0.0
        %2117 = vmatpush.msra.mxu0 0.0
        %2118 = vmatpush.msra.mxu0 0.0
        %2119 = vmatpush.msra.mxu0 0.0
        %2120 = vmatpush.msra.mxu0 0.0
        %2121 = vmatpush.msra.mxu0 0.0
        %2122 = vmatpush.msra.mxu0 0.0
        %2123 = vmatpush.msra.mxu0 0.0
        %2124 = vmatpush.msra.mxu0 %v1837
        %2125 = vmatpush.msra.mxu0 %v1836
        %2126 = vmatpush.msra.mxu0 %v1835
        %2127 = vmatpush.msra.mxu0 %v1834
        %2128 = vmatpush.msra.mxu0 %v1833
        %2129 = vmatpush.msra.mxu0 %v1832
        %2130 = vmatpush.msra.mxu0 %v1831
        %2131 = vmatpush.msra.mxu0 %v1830
        %2132 = vmatmul.f32.gmra.mxu0 %v1888
        %v2133 = vpop.f32.mrf.mxu0
        %v2134 = vadd.f32 0.0, %v2133
        %2135 = vmatmul.f32.gmra.mxu0 %v1891
        %v2136 = vpop.f32.mrf.mxu0
        %v2137 = vadd.f32 0.0, %v2136
        %2138 = vmatmul.f32.gmra.mxu0 %v1894
        %v2139 = vpop.f32.mrf.mxu0
        %v2140 = vadd.f32 0.0, %v2139
        %2141 = vmatmul.f32.gmra.mxu0 %v1897
        %v2142 = vpop.f32.mrf.mxu0
        %v2143 = vadd.f32 0.0, %v2142
        %2144 = vmatmul.f32.gmra.mxu0 %v1900
        %v2145 = vpop.f32.mrf.mxu0
        %v2146 = vadd.f32 0.0, %v2145
        %2147 = vmatmul.f32.gmra.mxu0 %v1903
        %v2148 = vpop.f32.mrf.mxu0
        %v2149 = vadd.f32 0.0, %v2148
        %2150 = vmatmul.f32.gmra.mxu0 %v1906
        %v2151 = vpop.f32.mrf.mxu0
        %v2152 = vadd.f32 0.0, %v2151
        %2153 = vmatmul.f32.gmra.mxu0 %v1909
        %v2154 = vpop.f32.mrf.mxu0
        %v2155 = vadd.f32 0.0, %v2154
        %2156 = vdwg.mxu0
        %v2157 = vadd.f32 %v1685, %v1929
        %v2158 = vadd.f32 %v1686, %v1970
        %v2159 = vadd.f32 %v1687, %v2011
        %v2160 = vadd.f32 %v1688, %v2052
        %v2161 = vadd.f32 %v1689, %v2093
        %v2162 = vadd.f32 %v1690, %v2134
        %v2163 = vadd.f32 %v1691, %v1932
        %v2164 = vadd.f32 %v1692, %v1973
        %v2165 = vadd.f32 %v1693, %v2014
        %v2166 = vadd.f32 %v1694, %v2055
        %v2167 = vadd.f32 %v1695, %v2096
        %v2168 = vadd.f32 %v1696, %v2137
        %v2169 = vadd.f32 %v1697, %v1935
        %v2170 = vadd.f32 %v1698, %v1976
        %v2171 = vadd.f32 %v1699, %v2017
        %v2172 = vadd.f32 %v1700, %v2058
        %v2173 = vadd.f32 %v1701, %v2099
        %v2174 = vadd.f32 %v1702, %v2140
        %v2175 = vadd.f32 %v1703, %v1938
        %v2176 = vadd.f32 %v1704, %v1979
        %v2177 = vadd.f32 %v1705, %v2020
        %v2178 = vadd.f32 %v1706, %v2061
        %v2179 = vadd.f32 %v1707, %v2102
        %v2180 = vadd.f32 %v1708, %v2143
        %v2181 = vadd.f32 %v1709, %v1941
        %v2182 = vadd.f32 %v1710, %v1982
        %v2183 = vadd.f32 %v1711, %v2023
        %v2184 = vadd.f32 %v1712, %v2064
        %v2185 = vadd.f32 %v1713, %v2105
        %v2186 = vadd.f32 %v1714, %v2146
        %v2187 = vadd.f32 %v1715, %v1944
        %v2188 = vadd.f32 %v1716, %v1985
        %v2189 = vadd.f32 %v1717, %v2026
        %v2190 = vadd.f32 %v1718, %v2067
        %v2191 = vadd.f32 %v1719, %v2108
        %v2192 = vadd.f32 %v1720, %v2149
        %v2193 = vadd.f32 %v1721, %v1947
        %v2194 = vadd.f32 %v1722, %v1988
        %v2195 = vadd.f32 %v1723, %v2029
        %v2196 = vadd.f32 %v1724, %v2070
        %v2197 = vadd.f32 %v1725, %v2111
        %v2198 = vadd.f32 %v1726, %v2152
        %v2199 = vadd.f32 %v1727, %v1950
        %v2200 = vadd.f32 %v1728, %v1991
        %v2201 = vadd.f32 %v1729, %v2032
        %v2202 = vadd.f32 %v1730, %v2073
        %v2203 = vadd.f32 %v1731, %v2114
        %v2204 = vadd.f32 %v1732, %v2155
        %s2205 = scalar_lea.vmem %s2, 256
        %v2206 = vld [vmem:[%s2205] sm:$0xff]
        %v2207 = vld [vmem:[%s2205 + $0x8] sm:$0xff]
        %v2208 = vld [vmem:[%s2205 + $0x10] sm:$0xff]
        %v2209 = vld [vmem:[%s2205 + $0x18] sm:$0xff]
        %v2210 = vld [vmem:[%s2205 + $0x20] sm:$0xff]
        %v2211 = vld [vmem:[%s2205 + $0x28] sm:$0xff]
        %v2212 = vld [vmem:[%s2205 + $0x30] sm:$0xff]
        %v2213 = vld [vmem:[%s2205 + $0x38] sm:$0xff]
        %v2215 = vsel %vm720, %v2206, 0
        %v2218 = vsel %vm720, %v2207, 0
        %v2221 = vsel %vm720, %v2208, 0
        %v2224 = vsel %vm720, %v2209, 0
        %v2227 = vsel %vm720, %v2210, 0
        %v2230 = vsel %vm720, %v2211, 0
        %v2233 = vsel %vm720, %v2212, 0
        %v2236 = vsel %vm720, %v2213, 0
        %2238 = vmatpush.msra.mxu0 0.0
        %2239 = vmatpush.msra.mxu0 0.0
        %2240 = vmatpush.msra.mxu0 0.0
        %2241 = vmatpush.msra.mxu0 0.0
        %2242 = vmatpush.msra.mxu0 0.0
        %2243 = vmatpush.msra.mxu0 0.0
        %2244 = vmatpush.msra.mxu0 0.0
        %2245 = vmatpush.msra.mxu0 0.0
        %2246 = vmatpush.msra.mxu0 %v404
        %2247 = vmatpush.msra.mxu0 %v398
        %2248 = vmatpush.msra.mxu0 %v392
        %2249 = vmatpush.msra.mxu0 %v386
        %2250 = vmatpush.msra.mxu0 %v380
        %2251 = vmatpush.msra.mxu0 %v374
        %2252 = vmatpush.msra.mxu0 %v368
        %2253 = vmatpush.msra.mxu0 %v362
        %2254 = vmatmul.f32.gmra.mxu0 %v2215
        %v2255 = vpop.f32.mrf.mxu0
        %v2256 = vadd.f32 0.0, %v2255
        %2257 = vmatmul.f32.gmra.mxu0 %v2218
        %v2258 = vpop.f32.mrf.mxu0
        %v2259 = vadd.f32 0.0, %v2258
        %2260 = vmatmul.f32.gmra.mxu0 %v2221
        %v2261 = vpop.f32.mrf.mxu0
        %v2262 = vadd.f32 0.0, %v2261
        %2263 = vmatmul.f32.gmra.mxu0 %v2224
        %v2264 = vpop.f32.mrf.mxu0
        %v2265 = vadd.f32 0.0, %v2264
        %2266 = vmatmul.f32.gmra.mxu0 %v2227
        %v2267 = vpop.f32.mrf.mxu0
        %v2268 = vadd.f32 0.0, %v2267
        %2269 = vmatmul.f32.gmra.mxu0 %v2230
        %v2270 = vpop.f32.mrf.mxu0
        %v2271 = vadd.f32 0.0, %v2270
        %2272 = vmatmul.f32.gmra.mxu0 %v2233
        %v2273 = vpop.f32.mrf.mxu0
        %v2274 = vadd.f32 0.0, %v2273
        %2275 = vmatmul.f32.gmra.mxu0 %v2236
        %v2276 = vpop.f32.mrf.mxu0
        %v2277 = vadd.f32 0.0, %v2276
        %2278 = vdwg.mxu0
        %2279 = vmatpush.msra.mxu0 0.0
        %2280 = vmatpush.msra.mxu0 0.0
        %2281 = vmatpush.msra.mxu0 0.0
        %2282 = vmatpush.msra.mxu0 0.0
        %2283 = vmatpush.msra.mxu0 0.0
        %2284 = vmatpush.msra.mxu0 0.0
        %2285 = vmatpush.msra.mxu0 0.0
        %2286 = vmatpush.msra.mxu0 0.0
        %2287 = vmatpush.msra.mxu0 %v405
        %2288 = vmatpush.msra.mxu0 %v399
        %2289 = vmatpush.msra.mxu0 %v393
        %2290 = vmatpush.msra.mxu0 %v387
        %2291 = vmatpush.msra.mxu0 %v381
        %2292 = vmatpush.msra.mxu0 %v375
        %2293 = vmatpush.msra.mxu0 %v369
        %2294 = vmatpush.msra.mxu0 %v363
        %2295 = vmatmul.f32.gmra.mxu0 %v2215
        %v2296 = vpop.f32.mrf.mxu0
        %v2297 = vadd.f32 0.0, %v2296
        %2298 = vmatmul.f32.gmra.mxu0 %v2218
        %v2299 = vpop.f32.mrf.mxu0
        %v2300 = vadd.f32 0.0, %v2299
        %2301 = vmatmul.f32.gmra.mxu0 %v2221
        %v2302 = vpop.f32.mrf.mxu0
        %v2303 = vadd.f32 0.0, %v2302
        %2304 = vmatmul.f32.gmra.mxu0 %v2224
        %v2305 = vpop.f32.mrf.mxu0
        %v2306 = vadd.f32 0.0, %v2305
        %2307 = vmatmul.f32.gmra.mxu0 %v2227
        %v2308 = vpop.f32.mrf.mxu0
        %v2309 = vadd.f32 0.0, %v2308
        %2310 = vmatmul.f32.gmra.mxu0 %v2230
        %v2311 = vpop.f32.mrf.mxu0
        %v2312 = vadd.f32 0.0, %v2311
        %2313 = vmatmul.f32.gmra.mxu0 %v2233
        %v2314 = vpop.f32.mrf.mxu0
        %v2315 = vadd.f32 0.0, %v2314
        %2316 = vmatmul.f32.gmra.mxu0 %v2236
        %v2317 = vpop.f32.mrf.mxu0
        %v2318 = vadd.f32 0.0, %v2317
        %2319 = vdwg.mxu0
        %2320 = vmatpush.msra.mxu0 0.0
        %2321 = vmatpush.msra.mxu0 0.0
        %2322 = vmatpush.msra.mxu0 0.0
        %2323 = vmatpush.msra.mxu0 0.0
        %2324 = vmatpush.msra.mxu0 0.0
        %2325 = vmatpush.msra.mxu0 0.0
        %2326 = vmatpush.msra.mxu0 0.0
        %2327 = vmatpush.msra.mxu0 0.0
        %2328 = vmatpush.msra.mxu0 %v406
        %2329 = vmatpush.msra.mxu0 %v400
        %2330 = vmatpush.msra.mxu0 %v394
        %2331 = vmatpush.msra.mxu0 %v388
        %2332 = vmatpush.msra.mxu0 %v382
        %2333 = vmatpush.msra.mxu0 %v376
        %2334 = vmatpush.msra.mxu0 %v370
        %2335 = vmatpush.msra.mxu0 %v364
        %2336 = vmatmul.f32.gmra.mxu0 %v2215
        %v2337 = vpop.f32.mrf.mxu0
        %v2338 = vadd.f32 0.0, %v2337
        %2339 = vmatmul.f32.gmra.mxu0 %v2218
        %v2340 = vpop.f32.mrf.mxu0
        %v2341 = vadd.f32 0.0, %v2340
        %2342 = vmatmul.f32.gmra.mxu0 %v2221
        %v2343 = vpop.f32.mrf.mxu0
        %v2344 = vadd.f32 0.0, %v2343
        %2345 = vmatmul.f32.gmra.mxu0 %v2224
        %v2346 = vpop.f32.mrf.mxu0
        %v2347 = vadd.f32 0.0, %v2346
        %2348 = vmatmul.f32.gmra.mxu0 %v2227
        %v2349 = vpop.f32.mrf.mxu0
        %v2350 = vadd.f32 0.0, %v2349
        %2351 = vmatmul.f32.gmra.mxu0 %v2230
        %v2352 = vpop.f32.mrf.mxu0
        %v2353 = vadd.f32 0.0, %v2352
        %2354 = vmatmul.f32.gmra.mxu0 %v2233
        %v2355 = vpop.f32.mrf.mxu0
        %v2356 = vadd.f32 0.0, %v2355
        %2357 = vmatmul.f32.gmra.mxu0 %v2236
        %v2358 = vpop.f32.mrf.mxu0
        %v2359 = vadd.f32 0.0, %v2358
        %2360 = vdwg.mxu0
        %2361 = vmatpush.msra.mxu0 0.0
        %2362 = vmatpush.msra.mxu0 0.0
        %2363 = vmatpush.msra.mxu0 0.0
        %2364 = vmatpush.msra.mxu0 0.0
        %2365 = vmatpush.msra.mxu0 0.0
        %2366 = vmatpush.msra.mxu0 0.0
        %2367 = vmatpush.msra.mxu0 0.0
        %2368 = vmatpush.msra.mxu0 0.0
        %2369 = vmatpush.msra.mxu0 %v407
        %2370 = vmatpush.msra.mxu0 %v401
        %2371 = vmatpush.msra.mxu0 %v395
        %2372 = vmatpush.msra.mxu0 %v389
        %2373 = vmatpush.msra.mxu0 %v383
        %2374 = vmatpush.msra.mxu0 %v377
        %2375 = vmatpush.msra.mxu0 %v371
        %2376 = vmatpush.msra.mxu0 %v365
        %2377 = vmatmul.f32.gmra.mxu0 %v2215
        %v2378 = vpop.f32.mrf.mxu0
        %v2379 = vadd.f32 0.0, %v2378
        %2380 = vmatmul.f32.gmra.mxu0 %v2218
        %v2381 = vpop.f32.mrf.mxu0
        %v2382 = vadd.f32 0.0, %v2381
        %2383 = vmatmul.f32.gmra.mxu0 %v2221
        %v2384 = vpop.f32.mrf.mxu0
        %v2385 = vadd.f32 0.0, %v2384
        %2386 = vmatmul.f32.gmra.mxu0 %v2224
        %v2387 = vpop.f32.mrf.mxu0
        %v2388 = vadd.f32 0.0, %v2387
        %2389 = vmatmul.f32.gmra.mxu0 %v2227
        %v2390 = vpop.f32.mrf.mxu0
        %v2391 = vadd.f32 0.0, %v2390
        %2392 = vmatmul.f32.gmra.mxu0 %v2230
        %v2393 = vpop.f32.mrf.mxu0
        %v2394 = vadd.f32 0.0, %v2393
        %2395 = vmatmul.f32.gmra.mxu0 %v2233
        %v2396 = vpop.f32.mrf.mxu0
        %v2397 = vadd.f32 0.0, %v2396
        %2398 = vmatmul.f32.gmra.mxu0 %v2236
        %v2399 = vpop.f32.mrf.mxu0
        %v2400 = vadd.f32 0.0, %v2399
        %2401 = vdwg.mxu0
        %2402 = vmatpush.msra.mxu0 0.0
        %2403 = vmatpush.msra.mxu0 0.0
        %2404 = vmatpush.msra.mxu0 0.0
        %2405 = vmatpush.msra.mxu0 0.0
        %2406 = vmatpush.msra.mxu0 0.0
        %2407 = vmatpush.msra.mxu0 0.0
        %2408 = vmatpush.msra.mxu0 0.0
        %2409 = vmatpush.msra.mxu0 0.0
        %2410 = vmatpush.msra.mxu0 %v408
        %2411 = vmatpush.msra.mxu0 %v402
        %2412 = vmatpush.msra.mxu0 %v396
        %2413 = vmatpush.msra.mxu0 %v390
        %2414 = vmatpush.msra.mxu0 %v384
        %2415 = vmatpush.msra.mxu0 %v378
        %2416 = vmatpush.msra.mxu0 %v372
        %2417 = vmatpush.msra.mxu0 %v366
        %2418 = vmatmul.f32.gmra.mxu0 %v2215
        %v2419 = vpop.f32.mrf.mxu0
        %v2420 = vadd.f32 0.0, %v2419
        %2421 = vmatmul.f32.gmra.mxu0 %v2218
        %v2422 = vpop.f32.mrf.mxu0
        %v2423 = vadd.f32 0.0, %v2422
        %2424 = vmatmul.f32.gmra.mxu0 %v2221
        %v2425 = vpop.f32.mrf.mxu0
        %v2426 = vadd.f32 0.0, %v2425
        %2427 = vmatmul.f32.gmra.mxu0 %v2224
        %v2428 = vpop.f32.mrf.mxu0
        %v2429 = vadd.f32 0.0, %v2428
        %2430 = vmatmul.f32.gmra.mxu0 %v2227
        %v2431 = vpop.f32.mrf.mxu0
        %v2432 = vadd.f32 0.0, %v2431
        %2433 = vmatmul.f32.gmra.mxu0 %v2230
        %v2434 = vpop.f32.mrf.mxu0
        %v2435 = vadd.f32 0.0, %v2434
        %2436 = vmatmul.f32.gmra.mxu0 %v2233
        %v2437 = vpop.f32.mrf.mxu0
        %v2438 = vadd.f32 0.0, %v2437
        %2439 = vmatmul.f32.gmra.mxu0 %v2236
        %v2440 = vpop.f32.mrf.mxu0
        %v2441 = vadd.f32 0.0, %v2440
        %2442 = vdwg.mxu0
        %2443 = vmatpush.msra.mxu0 0.0
        %2444 = vmatpush.msra.mxu0 0.0
        %2445 = vmatpush.msra.mxu0 0.0
        %2446 = vmatpush.msra.mxu0 0.0
        %2447 = vmatpush.msra.mxu0 0.0
        %2448 = vmatpush.msra.mxu0 0.0
        %2449 = vmatpush.msra.mxu0 0.0
        %2450 = vmatpush.msra.mxu0 0.0
        %2451 = vmatpush.msra.mxu0 %v409
        %2452 = vmatpush.msra.mxu0 %v403
        %2453 = vmatpush.msra.mxu0 %v397
        %2454 = vmatpush.msra.mxu0 %v391
        %2455 = vmatpush.msra.mxu0 %v385
        %2456 = vmatpush.msra.mxu0 %v379
        %2457 = vmatpush.msra.mxu0 %v373
        %2458 = vmatpush.msra.mxu0 %v367
        %2459 = vmatmul.f32.gmra.mxu0 %v2215
        %v2460 = vpop.f32.mrf.mxu0
        %v2461 = vadd.f32 0.0, %v2460
        %2462 = vmatmul.f32.gmra.mxu0 %v2218
        %v2463 = vpop.f32.mrf.mxu0
        %v2464 = vadd.f32 0.0, %v2463
        %2465 = vmatmul.f32.gmra.mxu0 %v2221
        %v2466 = vpop.f32.mrf.mxu0
        %v2467 = vadd.f32 0.0, %v2466
        %2468 = vmatmul.f32.gmra.mxu0 %v2224
        %v2469 = vpop.f32.mrf.mxu0
        %v2470 = vadd.f32 0.0, %v2469
        %2471 = vmatmul.f32.gmra.mxu0 %v2227
        %v2472 = vpop.f32.mrf.mxu0
        %v2473 = vadd.f32 0.0, %v2472
        %2474 = vmatmul.f32.gmra.mxu0 %v2230
        %v2475 = vpop.f32.mrf.mxu0
        %v2476 = vadd.f32 0.0, %v2475
        %2477 = vmatmul.f32.gmra.mxu0 %v2233
        %v2478 = vpop.f32.mrf.mxu0
        %v2479 = vadd.f32 0.0, %v2478
        %2480 = vmatmul.f32.gmra.mxu0 %v2236
        %v2481 = vpop.f32.mrf.mxu0
        %v2482 = vadd.f32 0.0, %v2481
        %2483 = vdwg.mxu0
        %v2484 = vadd.f32 %v2157, %v2256
        %v2485 = vadd.f32 %v2158, %v2297
        %v2486 = vadd.f32 %v2159, %v2338
        %v2487 = vadd.f32 %v2160, %v2379
        %v2488 = vadd.f32 %v2161, %v2420
        %v2489 = vadd.f32 %v2162, %v2461
        %v2490 = vadd.f32 %v2163, %v2259
        %v2491 = vadd.f32 %v2164, %v2300
        %v2492 = vadd.f32 %v2165, %v2341
        %v2493 = vadd.f32 %v2166, %v2382
        %v2494 = vadd.f32 %v2167, %v2423
        %v2495 = vadd.f32 %v2168, %v2464
        %v2496 = vadd.f32 %v2169, %v2262
        %v2497 = vadd.f32 %v2170, %v2303
        %v2498 = vadd.f32 %v2171, %v2344
        %v2499 = vadd.f32 %v2172, %v2385
        %v2500 = vadd.f32 %v2173, %v2426
        %v2501 = vadd.f32 %v2174, %v2467
        %v2502 = vadd.f32 %v2175, %v2265
        %v2503 = vadd.f32 %v2176, %v2306
        %v2504 = vadd.f32 %v2177, %v2347
        %v2505 = vadd.f32 %v2178, %v2388
        %v2506 = vadd.f32 %v2179, %v2429
        %v2507 = vadd.f32 %v2180, %v2470
        %v2508 = vadd.f32 %v2181, %v2268
        %v2509 = vadd.f32 %v2182, %v2309
        %v2510 = vadd.f32 %v2183, %v2350
        %v2511 = vadd.f32 %v2184, %v2391
        %v2512 = vadd.f32 %v2185, %v2432
        %v2513 = vadd.f32 %v2186, %v2473
        %v2514 = vadd.f32 %v2187, %v2271
        %v2515 = vadd.f32 %v2188, %v2312
        %v2516 = vadd.f32 %v2189, %v2353
        %v2517 = vadd.f32 %v2190, %v2394
        %v2518 = vadd.f32 %v2191, %v2435
        %v2519 = vadd.f32 %v2192, %v2476
        %v2520 = vadd.f32 %v2193, %v2274
        %v2521 = vadd.f32 %v2194, %v2315
        %v2522 = vadd.f32 %v2195, %v2356
        %v2523 = vadd.f32 %v2196, %v2397
        %v2524 = vadd.f32 %v2197, %v2438
        %v2525 = vadd.f32 %v2198, %v2479
        %v2526 = vadd.f32 %v2199, %v2277
        %v2527 = vadd.f32 %v2200, %v2318
        %v2528 = vadd.f32 %v2201, %v2359
        %v2529 = vadd.f32 %v2202, %v2400
        %v2530 = vadd.f32 %v2203, %v2441
        %v2531 = vadd.f32 %v2204, %v2482
        %2532 = vrot.lane.b32.xlu0 %v362, 127
        %v2533 = vpop.permute.xlu0 %2532
        %2534 = vrot.lane.b32.xlu0 %v368, 127
        %v2535 = vpop.permute.xlu0 %2534
        %2536 = vrot.lane.b32.xlu0 %v374, 127
        %v2537 = vpop.permute.xlu0 %2536
        %2538 = vrot.lane.b32.xlu0 %v380, 127
        %v2539 = vpop.permute.xlu0 %2538
        %2540 = vrot.lane.b32.xlu0 %v386, 127
        %v2541 = vpop.permute.xlu0 %2540
        %2542 = vrot.lane.b32.xlu0 %v392, 127
        %v2543 = vpop.permute.xlu0 %2542
        %2544 = vrot.lane.b32.xlu0 %v398, 127
        %v2545 = vpop.permute.xlu0 %2544
        %2546 = vrot.lane.b32.xlu0 %v404, 127
        %v2547 = vpop.permute.xlu0 %2546
        %2548 = vrot.lane.b32.xlu0 %v363, 127
        %v2549 = vpop.permute.xlu0 %2548
        %2550 = vrot.lane.b32.xlu0 %v369, 127
        %v2551 = vpop.permute.xlu0 %2550
        %2552 = vrot.lane.b32.xlu0 %v375, 127
        %v2553 = vpop.permute.xlu0 %2552
        %2554 = vrot.lane.b32.xlu0 %v381, 127
        %v2555 = vpop.permute.xlu0 %2554
        %2556 = vrot.lane.b32.xlu0 %v387, 127
        %v2557 = vpop.permute.xlu0 %2556
        %2558 = vrot.lane.b32.xlu0 %v393, 127
        %v2559 = vpop.permute.xlu0 %2558
        %2560 = vrot.lane.b32.xlu0 %v399, 127
        %v2561 = vpop.permute.xlu0 %2560
        %2562 = vrot.lane.b32.xlu0 %v405, 127
        %v2563 = vpop.permute.xlu0 %2562
        %2564 = vrot.lane.b32.xlu0 %v364, 127
        %v2565 = vpop.permute.xlu0 %2564
        %2566 = vrot.lane.b32.xlu0 %v370, 127
        %v2567 = vpop.permute.xlu0 %2566
        %2568 = vrot.lane.b32.xlu0 %v376, 127
        %v2569 = vpop.permute.xlu0 %2568
        %2570 = vrot.lane.b32.xlu0 %v382, 127
        %v2571 = vpop.permute.xlu0 %2570
        %2572 = vrot.lane.b32.xlu0 %v388, 127
        %v2573 = vpop.permute.xlu0 %2572
        %2574 = vrot.lane.b32.xlu0 %v394, 127
        %v2575 = vpop.permute.xlu0 %2574
        %2576 = vrot.lane.b32.xlu0 %v400, 127
        %v2577 = vpop.permute.xlu0 %2576
        %2578 = vrot.lane.b32.xlu0 %v406, 127
        %v2579 = vpop.permute.xlu0 %2578
        %2580 = vrot.lane.b32.xlu0 %v365, 127
        %v2581 = vpop.permute.xlu0 %2580
        %2582 = vrot.lane.b32.xlu0 %v371, 127
        %v2583 = vpop.permute.xlu0 %2582
        %2584 = vrot.lane.b32.xlu0 %v377, 127
        %v2585 = vpop.permute.xlu0 %2584
        %2586 = vrot.lane.b32.xlu0 %v383, 127
        %v2587 = vpop.permute.xlu0 %2586
        %2588 = vrot.lane.b32.xlu0 %v389, 127
        %v2589 = vpop.permute.xlu0 %2588
        %2590 = vrot.lane.b32.xlu0 %v395, 127
        %v2591 = vpop.permute.xlu0 %2590
        %2592 = vrot.lane.b32.xlu0 %v401, 127
        %v2593 = vpop.permute.xlu0 %2592
        %2594 = vrot.lane.b32.xlu0 %v407, 127
        %v2595 = vpop.permute.xlu0 %2594
        %2596 = vrot.lane.b32.xlu0 %v366, 127
        %v2597 = vpop.permute.xlu0 %2596
        %2598 = vrot.lane.b32.xlu0 %v372, 127
        %v2599 = vpop.permute.xlu0 %2598
        %2600 = vrot.lane.b32.xlu0 %v378, 127
        %v2601 = vpop.permute.xlu0 %2600
        %2602 = vrot.lane.b32.xlu0 %v384, 127
        %v2603 = vpop.permute.xlu0 %2602
        %2604 = vrot.lane.b32.xlu0 %v390, 127
        %v2605 = vpop.permute.xlu0 %2604
        %2606 = vrot.lane.b32.xlu0 %v396, 127
        %v2607 = vpop.permute.xlu0 %2606
        %2608 = vrot.lane.b32.xlu0 %v402, 127
        %v2609 = vpop.permute.xlu0 %2608
        %2610 = vrot.lane.b32.xlu0 %v408, 127
        %v2611 = vpop.permute.xlu0 %2610
        %2612 = vrot.lane.b32.xlu0 %v367, 127
        %v2613 = vpop.permute.xlu0 %2612
        %2614 = vrot.lane.b32.xlu0 %v373, 127
        %v2615 = vpop.permute.xlu0 %2614
        %2616 = vrot.lane.b32.xlu0 %v379, 127
        %v2617 = vpop.permute.xlu0 %2616
        %2618 = vrot.lane.b32.xlu0 %v385, 127
        %v2619 = vpop.permute.xlu0 %2618
        %2620 = vrot.lane.b32.xlu0 %v391, 127
        %v2621 = vpop.permute.xlu0 %2620
        %2622 = vrot.lane.b32.xlu0 %v397, 127
        %v2623 = vpop.permute.xlu0 %2622
        %2624 = vrot.lane.b32.xlu0 %v403, 127
        %v2625 = vpop.permute.xlu0 %2624
        %2626 = vrot.lane.b32.xlu0 %v409, 127
        %v2627 = vpop.permute.xlu0 %2626
        %vm2628 = vcmp.lt.s32.totalorder %v508, 127
        %v2629 = vsel %vm2628, %v2597, %v2613
        %v2630 = vsel %vm2628, %v2599, %v2615
        %v2631 = vsel %vm2628, %v2601, %v2617
        %v2632 = vsel %vm2628, %v2603, %v2619
        %v2633 = vsel %vm2628, %v2605, %v2621
        %v2634 = vsel %vm2628, %v2607, %v2623
        %v2635 = vsel %vm2628, %v2609, %v2625
        %v2636 = vsel %vm2628, %v2611, %v2627
        %v2637 = vsel %vm2628, %v2581, %v2597
        %v2638 = vsel %vm2628, %v2583, %v2599
        %v2639 = vsel %vm2628, %v2585, %v2601
        %v2640 = vsel %vm2628, %v2587, %v2603
        %v2641 = vsel %vm2628, %v2589, %v2605
        %v2642 = vsel %vm2628, %v2591, %v2607
        %v2643 = vsel %vm2628, %v2593, %v2609
        %v2644 = vsel %vm2628, %v2595, %v2611
        %v2645 = vsel %vm2628, %v2565, %v2581
        %v2646 = vsel %vm2628, %v2567, %v2583
        %v2647 = vsel %vm2628, %v2569, %v2585
        %v2648 = vsel %vm2628, %v2571, %v2587
        %v2649 = vsel %vm2628, %v2573, %v2589
        %v2650 = vsel %vm2628, %v2575, %v2591
        %v2651 = vsel %vm2628, %v2577, %v2593
        %v2652 = vsel %vm2628, %v2579, %v2595
        %v2653 = vsel %vm2628, %v2549, %v2565
        %v2654 = vsel %vm2628, %v2551, %v2567
        %v2655 = vsel %vm2628, %v2553, %v2569
        %v2656 = vsel %vm2628, %v2555, %v2571
        %v2657 = vsel %vm2628, %v2557, %v2573
        %v2658 = vsel %vm2628, %v2559, %v2575
        %v2659 = vsel %vm2628, %v2561, %v2577
        %v2660 = vsel %vm2628, %v2563, %v2579
        %v2661 = vsel %vm2628, %v2533, %v2549
        %v2662 = vsel %vm2628, %v2535, %v2551
        %v2663 = vsel %vm2628, %v2537, %v2553
        %v2664 = vsel %vm2628, %v2539, %v2555
        %v2665 = vsel %vm2628, %v2541, %v2557
        %v2666 = vsel %vm2628, %v2543, %v2559
        %v2667 = vsel %vm2628, %v2545, %v2561
        %v2668 = vsel %vm2628, %v2547, %v2563
        %v2669 = vsel %vm2628, %v2613, %v2533
        %v2670 = vsel %vm2628, %v2615, %v2535
        %v2671 = vsel %vm2628, %v2617, %v2537
        %v2672 = vsel %vm2628, %v2619, %v2539
        %v2673 = vsel %vm2628, %v2621, %v2541
        %v2674 = vsel %vm2628, %v2623, %v2543
        %v2675 = vsel %vm2628, %v2625, %v2545
        %v2676 = vsel %vm2628, %v2627, %v2547
        %s2677 = scalar_lea.vmem %s2, 320
        %v2678 = vld [vmem:[%s2677] sm:$0xff]
        %v2679 = vld [vmem:[%s2677 + $0x8] sm:$0xff]
        %v2680 = vld [vmem:[%s2677 + $0x10] sm:$0xff]
        %v2681 = vld [vmem:[%s2677 + $0x18] sm:$0xff]
        %v2682 = vld [vmem:[%s2677 + $0x20] sm:$0xff]
        %v2683 = vld [vmem:[%s2677 + $0x28] sm:$0xff]
        %v2684 = vld [vmem:[%s2677 + $0x30] sm:$0xff]
        %v2685 = vld [vmem:[%s2677 + $0x38] sm:$0xff]
        %v2687 = vsel %vm720, %v2678, 0
        %v2690 = vsel %vm720, %v2679, 0
        %v2693 = vsel %vm720, %v2680, 0
        %v2696 = vsel %vm720, %v2681, 0
        %v2699 = vsel %vm720, %v2682, 0
        %v2702 = vsel %vm720, %v2683, 0
        %v2705 = vsel %vm720, %v2684, 0
        %v2708 = vsel %vm720, %v2685, 0
        %2710 = vmatpush.msra.mxu0 0.0
        %2711 = vmatpush.msra.mxu0 0.0
        %2712 = vmatpush.msra.mxu0 0.0
        %2713 = vmatpush.msra.mxu0 0.0
        %2714 = vmatpush.msra.mxu0 0.0
        %2715 = vmatpush.msra.mxu0 0.0
        %2716 = vmatpush.msra.mxu0 0.0
        %2717 = vmatpush.msra.mxu0 0.0
        %2718 = vmatpush.msra.mxu0 %v2668
        %2719 = vmatpush.msra.mxu0 %v2667
        %2720 = vmatpush.msra.mxu0 %v2666
        %2721 = vmatpush.msra.mxu0 %v2665
        %2722 = vmatpush.msra.mxu0 %v2664
        %2723 = vmatpush.msra.mxu0 %v2663
        %2724 = vmatpush.msra.mxu0 %v2662
        %2725 = vmatpush.msra.mxu0 %v2661
        %2726 = vmatmul.f32.gmra.mxu0 %v2687
        %v2727 = vpop.f32.mrf.mxu0
        %v2728 = vadd.f32 0.0, %v2727
        %2729 = vmatmul.f32.gmra.mxu0 %v2690
        %v2730 = vpop.f32.mrf.mxu0
        %v2731 = vadd.f32 0.0, %v2730
        %2732 = vmatmul.f32.gmra.mxu0 %v2693
        %v2733 = vpop.f32.mrf.mxu0
        %v2734 = vadd.f32 0.0, %v2733
        %2735 = vmatmul.f32.gmra.mxu0 %v2696
        %v2736 = vpop.f32.mrf.mxu0
        %v2737 = vadd.f32 0.0, %v2736
        %2738 = vmatmul.f32.gmra.mxu0 %v2699
        %v2739 = vpop.f32.mrf.mxu0
        %v2740 = vadd.f32 0.0, %v2739
        %2741 = vmatmul.f32.gmra.mxu0 %v2702
        %v2742 = vpop.f32.mrf.mxu0
        %v2743 = vadd.f32 0.0, %v2742
        %2744 = vmatmul.f32.gmra.mxu0 %v2705
        %v2745 = vpop.f32.mrf.mxu0
        %v2746 = vadd.f32 0.0, %v2745
        %2747 = vmatmul.f32.gmra.mxu0 %v2708
        %v2748 = vpop.f32.mrf.mxu0
        %v2749 = vadd.f32 0.0, %v2748
        %2750 = vdwg.mxu0
        %2751 = vmatpush.msra.mxu0 0.0
        %2752 = vmatpush.msra.mxu0 0.0
        %2753 = vmatpush.msra.mxu0 0.0
        %2754 = vmatpush.msra.mxu0 0.0
        %2755 = vmatpush.msra.mxu0 0.0
        %2756 = vmatpush.msra.mxu0 0.0
        %2757 = vmatpush.msra.mxu0 0.0
        %2758 = vmatpush.msra.mxu0 0.0
        %2759 = vmatpush.msra.mxu0 %v2660
        %2760 = vmatpush.msra.mxu0 %v2659
        %2761 = vmatpush.msra.mxu0 %v2658
        %2762 = vmatpush.msra.mxu0 %v2657
        %2763 = vmatpush.msra.mxu0 %v2656
        %2764 = vmatpush.msra.mxu0 %v2655
        %2765 = vmatpush.msra.mxu0 %v2654
        %2766 = vmatpush.msra.mxu0 %v2653
        %2767 = vmatmul.f32.gmra.mxu0 %v2687
        %v2768 = vpop.f32.mrf.mxu0
        %v2769 = vadd.f32 0.0, %v2768
        %2770 = vmatmul.f32.gmra.mxu0 %v2690
        %v2771 = vpop.f32.mrf.mxu0
        %v2772 = vadd.f32 0.0, %v2771
        %2773 = vmatmul.f32.gmra.mxu0 %v2693
        %v2774 = vpop.f32.mrf.mxu0
        %v2775 = vadd.f32 0.0, %v2774
        %2776 = vmatmul.f32.gmra.mxu0 %v2696
        %v2777 = vpop.f32.mrf.mxu0
        %v2778 = vadd.f32 0.0, %v2777
        %2779 = vmatmul.f32.gmra.mxu0 %v2699
        %v2780 = vpop.f32.mrf.mxu0
        %v2781 = vadd.f32 0.0, %v2780
        %2782 = vmatmul.f32.gmra.mxu0 %v2702
        %v2783 = vpop.f32.mrf.mxu0
        %v2784 = vadd.f32 0.0, %v2783
        %2785 = vmatmul.f32.gmra.mxu0 %v2705
        %v2786 = vpop.f32.mrf.mxu0
        %v2787 = vadd.f32 0.0, %v2786
        %2788 = vmatmul.f32.gmra.mxu0 %v2708
        %v2789 = vpop.f32.mrf.mxu0
        %v2790 = vadd.f32 0.0, %v2789
        %2791 = vdwg.mxu0
        %2792 = vmatpush.msra.mxu0 0.0
        %2793 = vmatpush.msra.mxu0 0.0
        %2794 = vmatpush.msra.mxu0 0.0
        %2795 = vmatpush.msra.mxu0 0.0
        %2796 = vmatpush.msra.mxu0 0.0
        %2797 = vmatpush.msra.mxu0 0.0
        %2798 = vmatpush.msra.mxu0 0.0
        %2799 = vmatpush.msra.mxu0 0.0
        %2800 = vmatpush.msra.mxu0 %v2652
        %2801 = vmatpush.msra.mxu0 %v2651
        %2802 = vmatpush.msra.mxu0 %v2650
        %2803 = vmatpush.msra.mxu0 %v2649
        %2804 = vmatpush.msra.mxu0 %v2648
        %2805 = vmatpush.msra.mxu0 %v2647
        %2806 = vmatpush.msra.mxu0 %v2646
        %2807 = vmatpush.msra.mxu0 %v2645
        %2808 = vmatmul.f32.gmra.mxu0 %v2687
        %v2809 = vpop.f32.mrf.mxu0
        %v2810 = vadd.f32 0.0, %v2809
        %2811 = vmatmul.f32.gmra.mxu0 %v2690
        %v2812 = vpop.f32.mrf.mxu0
        %v2813 = vadd.f32 0.0, %v2812
        %2814 = vmatmul.f32.gmra.mxu0 %v2693
        %v2815 = vpop.f32.mrf.mxu0
        %v2816 = vadd.f32 0.0, %v2815
        %2817 = vmatmul.f32.gmra.mxu0 %v2696
        %v2818 = vpop.f32.mrf.mxu0
        %v2819 = vadd.f32 0.0, %v2818
        %2820 = vmatmul.f32.gmra.mxu0 %v2699
        %v2821 = vpop.f32.mrf.mxu0
        %v2822 = vadd.f32 0.0, %v2821
        %2823 = vmatmul.f32.gmra.mxu0 %v2702
        %v2824 = vpop.f32.mrf.mxu0
        %v2825 = vadd.f32 0.0, %v2824
        %2826 = vmatmul.f32.gmra.mxu0 %v2705
        %v2827 = vpop.f32.mrf.mxu0
        %v2828 = vadd.f32 0.0, %v2827
        %2829 = vmatmul.f32.gmra.mxu0 %v2708
        %v2830 = vpop.f32.mrf.mxu0
        %v2831 = vadd.f32 0.0, %v2830
        %2832 = vdwg.mxu0
        %2833 = vmatpush.msra.mxu0 0.0
        %2834 = vmatpush.msra.mxu0 0.0
        %2835 = vmatpush.msra.mxu0 0.0
        %2836 = vmatpush.msra.mxu0 0.0
        %2837 = vmatpush.msra.mxu0 0.0
        %2838 = vmatpush.msra.mxu0 0.0
        %2839 = vmatpush.msra.mxu0 0.0
        %2840 = vmatpush.msra.mxu0 0.0
        %2841 = vmatpush.msra.mxu0 %v2644
        %2842 = vmatpush.msra.mxu0 %v2643
        %2843 = vmatpush.msra.mxu0 %v2642
        %2844 = vmatpush.msra.mxu0 %v2641
        %2845 = vmatpush.msra.mxu0 %v2640
        %2846 = vmatpush.msra.mxu0 %v2639
        %2847 = vmatpush.msra.mxu0 %v2638
        %2848 = vmatpush.msra.mxu0 %v2637
        %2849 = vmatmul.f32.gmra.mxu0 %v2687
        %v2850 = vpop.f32.mrf.mxu0
        %v2851 = vadd.f32 0.0, %v2850
        %2852 = vmatmul.f32.gmra.mxu0 %v2690
        %v2853 = vpop.f32.mrf.mxu0
        %v2854 = vadd.f32 0.0, %v2853
        %2855 = vmatmul.f32.gmra.mxu0 %v2693
        %v2856 = vpop.f32.mrf.mxu0
        %v2857 = vadd.f32 0.0, %v2856
        %2858 = vmatmul.f32.gmra.mxu0 %v2696
        %v2859 = vpop.f32.mrf.mxu0
        %v2860 = vadd.f32 0.0, %v2859
        %2861 = vmatmul.f32.gmra.mxu0 %v2699
        %v2862 = vpop.f32.mrf.mxu0
        %v2863 = vadd.f32 0.0, %v2862
        %2864 = vmatmul.f32.gmra.mxu0 %v2702
        %v2865 = vpop.f32.mrf.mxu0
        %v2866 = vadd.f32 0.0, %v2865
        %2867 = vmatmul.f32.gmra.mxu0 %v2705
        %v2868 = vpop.f32.mrf.mxu0
        %v2869 = vadd.f32 0.0, %v2868
        %2870 = vmatmul.f32.gmra.mxu0 %v2708
        %v2871 = vpop.f32.mrf.mxu0
        %v2872 = vadd.f32 0.0, %v2871
        %2873 = vdwg.mxu0
        %2874 = vmatpush.msra.mxu0 0.0
        %2875 = vmatpush.msra.mxu0 0.0
        %2876 = vmatpush.msra.mxu0 0.0
        %2877 = vmatpush.msra.mxu0 0.0
        %2878 = vmatpush.msra.mxu0 0.0
        %2879 = vmatpush.msra.mxu0 0.0
        %2880 = vmatpush.msra.mxu0 0.0
        %2881 = vmatpush.msra.mxu0 0.0
        %2882 = vmatpush.msra.mxu0 %v2636
        %2883 = vmatpush.msra.mxu0 %v2635
        %2884 = vmatpush.msra.mxu0 %v2634
        %2885 = vmatpush.msra.mxu0 %v2633
        %2886 = vmatpush.msra.mxu0 %v2632
        %2887 = vmatpush.msra.mxu0 %v2631
        %2888 = vmatpush.msra.mxu0 %v2630
        %2889 = vmatpush.msra.mxu0 %v2629
        %2890 = vmatmul.f32.gmra.mxu0 %v2687
        %v2891 = vpop.f32.mrf.mxu0
        %v2892 = vadd.f32 0.0, %v2891
        %2893 = vmatmul.f32.gmra.mxu0 %v2690
        %v2894 = vpop.f32.mrf.mxu0
        %v2895 = vadd.f32 0.0, %v2894
        %2896 = vmatmul.f32.gmra.mxu0 %v2693
        %v2897 = vpop.f32.mrf.mxu0
        %v2898 = vadd.f32 0.0, %v2897
        %2899 = vmatmul.f32.gmra.mxu0 %v2696
        %v2900 = vpop.f32.mrf.mxu0
        %v2901 = vadd.f32 0.0, %v2900
        %2902 = vmatmul.f32.gmra.mxu0 %v2699
        %v2903 = vpop.f32.mrf.mxu0
        %v2904 = vadd.f32 0.0, %v2903
        %2905 = vmatmul.f32.gmra.mxu0 %v2702
        %v2906 = vpop.f32.mrf.mxu0
        %v2907 = vadd.f32 0.0, %v2906
        %2908 = vmatmul.f32.gmra.mxu0 %v2705
        %v2909 = vpop.f32.mrf.mxu0
        %v2910 = vadd.f32 0.0, %v2909
        %2911 = vmatmul.f32.gmra.mxu0 %v2708
        %v2912 = vpop.f32.mrf.mxu0
        %v2913 = vadd.f32 0.0, %v2912
        %2914 = vdwg.mxu0
        %2915 = vmatpush.msra.mxu0 0.0
        %2916 = vmatpush.msra.mxu0 0.0
        %2917 = vmatpush.msra.mxu0 0.0
        %2918 = vmatpush.msra.mxu0 0.0
        %2919 = vmatpush.msra.mxu0 0.0
        %2920 = vmatpush.msra.mxu0 0.0
        %2921 = vmatpush.msra.mxu0 0.0
        %2922 = vmatpush.msra.mxu0 0.0
        %2923 = vmatpush.msra.mxu0 %v2676
        %2924 = vmatpush.msra.mxu0 %v2675
        %2925 = vmatpush.msra.mxu0 %v2674
        %2926 = vmatpush.msra.mxu0 %v2673
        %2927 = vmatpush.msra.mxu0 %v2672
        %2928 = vmatpush.msra.mxu0 %v2671
        %2929 = vmatpush.msra.mxu0 %v2670
        %2930 = vmatpush.msra.mxu0 %v2669
        %2931 = vmatmul.f32.gmra.mxu0 %v2687
        %v2932 = vpop.f32.mrf.mxu0
        %v2933 = vadd.f32 0.0, %v2932
        %2934 = vmatmul.f32.gmra.mxu0 %v2690
        %v2935 = vpop.f32.mrf.mxu0
        %v2936 = vadd.f32 0.0, %v2935
        %2937 = vmatmul.f32.gmra.mxu0 %v2693
        %v2938 = vpop.f32.mrf.mxu0
        %v2939 = vadd.f32 0.0, %v2938
        %2940 = vmatmul.f32.gmra.mxu0 %v2696
        %v2941 = vpop.f32.mrf.mxu0
        %v2942 = vadd.f32 0.0, %v2941
        %2943 = vmatmul.f32.gmra.mxu0 %v2699
        %v2944 = vpop.f32.mrf.mxu0
        %v2945 = vadd.f32 0.0, %v2944
        %2946 = vmatmul.f32.gmra.mxu0 %v2702
        %v2947 = vpop.f32.mrf.mxu0
        %v2948 = vadd.f32 0.0, %v2947
        %2949 = vmatmul.f32.gmra.mxu0 %v2705
        %v2950 = vpop.f32.mrf.mxu0
        %v2951 = vadd.f32 0.0, %v2950
        %2952 = vmatmul.f32.gmra.mxu0 %v2708
        %v2953 = vpop.f32.mrf.mxu0
        %v2954 = vadd.f32 0.0, %v2953
        %2955 = vdwg.mxu0
        %v2956 = vadd.f32 %v2484, %v2728
        %v2957 = vadd.f32 %v2485, %v2769
        %v2958 = vadd.f32 %v2486, %v2810
        %v2959 = vadd.f32 %v2487, %v2851
        %v2960 = vadd.f32 %v2488, %v2892
        %v2961 = vadd.f32 %v2489, %v2933
        %v2962 = vadd.f32 %v2490, %v2731
        %v2963 = vadd.f32 %v2491, %v2772
        %v2964 = vadd.f32 %v2492, %v2813
        %v2965 = vadd.f32 %v2493, %v2854
        %v2966 = vadd.f32 %v2494, %v2895
        %v2967 = vadd.f32 %v2495, %v2936
        %v2968 = vadd.f32 %v2496, %v2734
        %v2969 = vadd.f32 %v2497, %v2775
        %v2970 = vadd.f32 %v2498, %v2816
        %v2971 = vadd.f32 %v2499, %v2857
        %v2972 = vadd.f32 %v2500, %v2898
        %v2973 = vadd.f32 %v2501, %v2939
        %v2974 = vadd.f32 %v2502, %v2737
        %v2975 = vadd.f32 %v2503, %v2778
        %v2976 = vadd.f32 %v2504, %v2819
        %v2977 = vadd.f32 %v2505, %v2860
        %v2978 = vadd.f32 %v2506, %v2901
        %v2979 = vadd.f32 %v2507, %v2942
        %v2980 = vadd.f32 %v2508, %v2740
        %v2981 = vadd.f32 %v2509, %v2781
        %v2982 = vadd.f32 %v2510, %v2822
        %v2983 = vadd.f32 %v2511, %v2863
        %v2984 = vadd.f32 %v2512, %v2904
        %v2985 = vadd.f32 %v2513, %v2945
        %v2986 = vadd.f32 %v2514, %v2743
        %v2987 = vadd.f32 %v2515, %v2784
        %v2988 = vadd.f32 %v2516, %v2825
        %v2989 = vadd.f32 %v2517, %v2866
        %v2990 = vadd.f32 %v2518, %v2907
        %v2991 = vadd.f32 %v2519, %v2948
        %v2992 = vadd.f32 %v2520, %v2746
        %v2993 = vadd.f32 %v2521, %v2787
        %v2994 = vadd.f32 %v2522, %v2828
        %v2995 = vadd.f32 %v2523, %v2869
        %v2996 = vadd.f32 %v2524, %v2910
        %v2997 = vadd.f32 %v2525, %v2951
        %v2998 = vadd.f32 %v2526, %v2749
        %v2999 = vadd.f32 %v2527, %v2790
        %v3000 = vadd.f32 %v2528, %v2831
        %v3001 = vadd.f32 %v2529, %v2872
        %v3002 = vadd.f32 %v2530, %v2913
        %v3003 = vadd.f32 %v2531, %v2954
        %3004 = vrot.lane.b32.xlu0 %v362, 111
        %v3005 = vpop.permute.xlu0 %3004
        %3006 = vrot.lane.b32.xlu0 %v368, 111
        %v3007 = vpop.permute.xlu0 %3006
        %3008 = vrot.lane.b32.xlu0 %v374, 111
        %v3009 = vpop.permute.xlu0 %3008
        %3010 = vrot.lane.b32.xlu0 %v380, 111
        %v3011 = vpop.permute.xlu0 %3010
        %3012 = vrot.lane.b32.xlu0 %v386, 111
        %v3013 = vpop.permute.xlu0 %3012
        %3014 = vrot.lane.b32.xlu0 %v392, 111
        %v3015 = vpop.permute.xlu0 %3014
        %3016 = vrot.lane.b32.xlu0 %v398, 111
        %v3017 = vpop.permute.xlu0 %3016
        %3018 = vrot.lane.b32.xlu0 %v404, 111
        %v3019 = vpop.permute.xlu0 %3018
        %3020 = vrot.lane.b32.xlu0 %v363, 111
        %v3021 = vpop.permute.xlu0 %3020
        %3022 = vrot.lane.b32.xlu0 %v369, 111
        %v3023 = vpop.permute.xlu0 %3022
        %3024 = vrot.lane.b32.xlu0 %v375, 111
        %v3025 = vpop.permute.xlu0 %3024
        %3026 = vrot.lane.b32.xlu0 %v381, 111
        %v3027 = vpop.permute.xlu0 %3026
        %3028 = vrot.lane.b32.xlu0 %v387, 111
        %v3029 = vpop.permute.xlu0 %3028
        %3030 = vrot.lane.b32.xlu0 %v393, 111
        %v3031 = vpop.permute.xlu0 %3030
        %3032 = vrot.lane.b32.xlu0 %v399, 111
        %v3033 = vpop.permute.xlu0 %3032
        %3034 = vrot.lane.b32.xlu0 %v405, 111
        %v3035 = vpop.permute.xlu0 %3034
        %3036 = vrot.lane.b32.xlu0 %v364, 111
        %v3037 = vpop.permute.xlu0 %3036
        %3038 = vrot.lane.b32.xlu0 %v370, 111
        %v3039 = vpop.permute.xlu0 %3038
        %3040 = vrot.lane.b32.xlu0 %v376, 111
        %v3041 = vpop.permute.xlu0 %3040
        %3042 = vrot.lane.b32.xlu0 %v382, 111
        %v3043 = vpop.permute.xlu0 %3042
        %3044 = vrot.lane.b32.xlu0 %v388, 111
        %v3045 = vpop.permute.xlu0 %3044
        %3046 = vrot.lane.b32.xlu0 %v394, 111
        %v3047 = vpop.permute.xlu0 %3046
        %3048 = vrot.lane.b32.xlu0 %v400, 111
        %v3049 = vpop.permute.xlu0 %3048
        %3050 = vrot.lane.b32.xlu0 %v406, 111
        %v3051 = vpop.permute.xlu0 %3050
        %3052 = vrot.lane.b32.xlu0 %v365, 111
        %v3053 = vpop.permute.xlu0 %3052
        %3054 = vrot.lane.b32.xlu0 %v371, 111
        %v3055 = vpop.permute.xlu0 %3054
        %3056 = vrot.lane.b32.xlu0 %v377, 111
        %v3057 = vpop.permute.xlu0 %3056
        %3058 = vrot.lane.b32.xlu0 %v383, 111
        %v3059 = vpop.permute.xlu0 %3058
        %3060 = vrot.lane.b32.xlu0 %v389, 111
        %v3061 = vpop.permute.xlu0 %3060
        %3062 = vrot.lane.b32.xlu0 %v395, 111
        %v3063 = vpop.permute.xlu0 %3062
        %3064 = vrot.lane.b32.xlu0 %v401, 111
        %v3065 = vpop.permute.xlu0 %3064
        %3066 = vrot.lane.b32.xlu0 %v407, 111
        %v3067 = vpop.permute.xlu0 %3066
        %3068 = vrot.lane.b32.xlu0 %v366, 111
        %v3069 = vpop.permute.xlu0 %3068
        %3070 = vrot.lane.b32.xlu0 %v372, 111
        %v3071 = vpop.permute.xlu0 %3070
        %3072 = vrot.lane.b32.xlu0 %v378, 111
        %v3073 = vpop.permute.xlu0 %3072
        %3074 = vrot.lane.b32.xlu0 %v384, 111
        %v3075 = vpop.permute.xlu0 %3074
        %3076 = vrot.lane.b32.xlu0 %v390, 111
        %v3077 = vpop.permute.xlu0 %3076
        %3078 = vrot.lane.b32.xlu0 %v396, 111
        %v3079 = vpop.permute.xlu0 %3078
        %3080 = vrot.lane.b32.xlu0 %v402, 111
        %v3081 = vpop.permute.xlu0 %3080
        %3082 = vrot.lane.b32.xlu0 %v408, 111
        %v3083 = vpop.permute.xlu0 %3082
        %3084 = vrot.lane.b32.xlu0 %v367, 111
        %v3085 = vpop.permute.xlu0 %3084
        %3086 = vrot.lane.b32.xlu0 %v373, 111
        %v3087 = vpop.permute.xlu0 %3086
        %3088 = vrot.lane.b32.xlu0 %v379, 111
        %v3089 = vpop.permute.xlu0 %3088
        %3090 = vrot.lane.b32.xlu0 %v385, 111
        %v3091 = vpop.permute.xlu0 %3090
        %3092 = vrot.lane.b32.xlu0 %v391, 111
        %v3093 = vpop.permute.xlu0 %3092
        %3094 = vrot.lane.b32.xlu0 %v397, 111
        %v3095 = vpop.permute.xlu0 %3094
        %3096 = vrot.lane.b32.xlu0 %v403, 111
        %v3097 = vpop.permute.xlu0 %3096
        %3098 = vrot.lane.b32.xlu0 %v409, 111
        %v3099 = vpop.permute.xlu0 %3098
        %vm3100 = vcmp.lt.s32.totalorder %v508, 111
        %v3101 = vsel %vm3100, %v3069, %v3085
        %v3102 = vsel %vm3100, %v3071, %v3087
        %v3103 = vsel %vm3100, %v3073, %v3089
        %v3104 = vsel %vm3100, %v3075, %v3091
        %v3105 = vsel %vm3100, %v3077, %v3093
        %v3106 = vsel %vm3100, %v3079, %v3095
        %v3107 = vsel %vm3100, %v3081, %v3097
        %v3108 = vsel %vm3100, %v3083, %v3099
        %v3109 = vsel %vm3100, %v3053, %v3069
        %v3110 = vsel %vm3100, %v3055, %v3071
        %v3111 = vsel %vm3100, %v3057, %v3073
        %v3112 = vsel %vm3100, %v3059, %v3075
        %v3113 = vsel %vm3100, %v3061, %v3077
        %v3114 = vsel %vm3100, %v3063, %v3079
        %v3115 = vsel %vm3100, %v3065, %v3081
        %v3116 = vsel %vm3100, %v3067, %v3083
        %v3117 = vsel %vm3100, %v3037, %v3053
        %v3118 = vsel %vm3100, %v3039, %v3055
        %v3119 = vsel %vm3100, %v3041, %v3057
        %v3120 = vsel %vm3100, %v3043, %v3059
        %v3121 = vsel %vm3100, %v3045, %v3061
        %v3122 = vsel %vm3100, %v3047, %v3063
        %v3123 = vsel %vm3100, %v3049, %v3065
        %v3124 = vsel %vm3100, %v3051, %v3067
        %v3125 = vsel %vm3100, %v3021, %v3037
        %v3126 = vsel %vm3100, %v3023, %v3039
        %v3127 = vsel %vm3100, %v3025, %v3041
        %v3128 = vsel %vm3100, %v3027, %v3043
        %v3129 = vsel %vm3100, %v3029, %v3045
        %v3130 = vsel %vm3100, %v3031, %v3047
        %v3131 = vsel %vm3100, %v3033, %v3049
        %v3132 = vsel %vm3100, %v3035, %v3051
        %v3133 = vsel %vm3100, %v3005, %v3021
        %v3134 = vsel %vm3100, %v3007, %v3023
        %v3135 = vsel %vm3100, %v3009, %v3025
        %v3136 = vsel %vm3100, %v3011, %v3027
        %v3137 = vsel %vm3100, %v3013, %v3029
        %v3138 = vsel %vm3100, %v3015, %v3031
        %v3139 = vsel %vm3100, %v3017, %v3033
        %v3140 = vsel %vm3100, %v3019, %v3035
        %v3141 = vsel %vm3100, %v3085, %v3005
        %v3142 = vsel %vm3100, %v3087, %v3007
        %v3143 = vsel %vm3100, %v3089, %v3009
        %v3144 = vsel %vm3100, %v3091, %v3011
        %v3145 = vsel %vm3100, %v3093, %v3013
        %v3146 = vsel %vm3100, %v3095, %v3015
        %v3147 = vsel %vm3100, %v3097, %v3017
        %v3148 = vsel %vm3100, %v3099, %v3019
        %s3149 = scalar_lea.vmem %s2, 384
        %v3150 = vld [vmem:[%s3149] sm:$0xff]
        %v3151 = vld [vmem:[%s3149 + $0x8] sm:$0xff]
        %v3152 = vld [vmem:[%s3149 + $0x10] sm:$0xff]
        %v3153 = vld [vmem:[%s3149 + $0x18] sm:$0xff]
        %v3154 = vld [vmem:[%s3149 + $0x20] sm:$0xff]
        %v3155 = vld [vmem:[%s3149 + $0x28] sm:$0xff]
        %v3156 = vld [vmem:[%s3149 + $0x30] sm:$0xff]
        %v3157 = vld [vmem:[%s3149 + $0x38] sm:$0xff]
        %v3159 = vsel %vm720, %v3150, 0
        %v3162 = vsel %vm720, %v3151, 0
        %v3165 = vsel %vm720, %v3152, 0
        %v3168 = vsel %vm720, %v3153, 0
        %v3171 = vsel %vm720, %v3154, 0
        %v3174 = vsel %vm720, %v3155, 0
        %v3177 = vsel %vm720, %v3156, 0
        %v3180 = vsel %vm720, %v3157, 0
        %3182 = vmatpush.msra.mxu0 0.0
        %3183 = vmatpush.msra.mxu0 0.0
        %3184 = vmatpush.msra.mxu0 0.0
        %3185 = vmatpush.msra.mxu0 0.0
        %3186 = vmatpush.msra.mxu0 0.0
        %3187 = vmatpush.msra.mxu0 0.0
        %3188 = vmatpush.msra.mxu0 0.0
        %3189 = vmatpush.msra.mxu0 0.0
        %3190 = vmatpush.msra.mxu0 %v3140
        %3191 = vmatpush.msra.mxu0 %v3139
        %3192 = vmatpush.msra.mxu0 %v3138
        %3193 = vmatpush.msra.mxu0 %v3137
        %3194 = vmatpush.msra.mxu0 %v3136
        %3195 = vmatpush.msra.mxu0 %v3135
        %3196 = vmatpush.msra.mxu0 %v3134
        %3197 = vmatpush.msra.mxu0 %v3133
        %3198 = vmatmul.f32.gmra.mxu0 %v3159
        %v3199 = vpop.f32.mrf.mxu0
        %v3200 = vadd.f32 0.0, %v3199
        %3201 = vmatmul.f32.gmra.mxu0 %v3162
        %v3202 = vpop.f32.mrf.mxu0
        %v3203 = vadd.f32 0.0, %v3202
        %3204 = vmatmul.f32.gmra.mxu0 %v3165
        %v3205 = vpop.f32.mrf.mxu0
        %v3206 = vadd.f32 0.0, %v3205
        %3207 = vmatmul.f32.gmra.mxu0 %v3168
        %v3208 = vpop.f32.mrf.mxu0
        %v3209 = vadd.f32 0.0, %v3208
        %3210 = vmatmul.f32.gmra.mxu0 %v3171
        %v3211 = vpop.f32.mrf.mxu0
        %v3212 = vadd.f32 0.0, %v3211
        %3213 = vmatmul.f32.gmra.mxu0 %v3174
        %v3214 = vpop.f32.mrf.mxu0
        %v3215 = vadd.f32 0.0, %v3214
        %3216 = vmatmul.f32.gmra.mxu0 %v3177
        %v3217 = vpop.f32.mrf.mxu0
        %v3218 = vadd.f32 0.0, %v3217
        %3219 = vmatmul.f32.gmra.mxu0 %v3180
        %v3220 = vpop.f32.mrf.mxu0
        %v3221 = vadd.f32 0.0, %v3220
        %3222 = vdwg.mxu0
        %3223 = vmatpush.msra.mxu0 0.0
        %3224 = vmatpush.msra.mxu0 0.0
        %3225 = vmatpush.msra.mxu0 0.0
        %3226 = vmatpush.msra.mxu0 0.0
        %3227 = vmatpush.msra.mxu0 0.0
        %3228 = vmatpush.msra.mxu0 0.0
        %3229 = vmatpush.msra.mxu0 0.0
        %3230 = vmatpush.msra.mxu0 0.0
        %3231 = vmatpush.msra.mxu0 %v3132
        %3232 = vmatpush.msra.mxu0 %v3131
        %3233 = vmatpush.msra.mxu0 %v3130
        %3234 = vmatpush.msra.mxu0 %v3129
        %3235 = vmatpush.msra.mxu0 %v3128
        %3236 = vmatpush.msra.mxu0 %v3127
        %3237 = vmatpush.msra.mxu0 %v3126
        %3238 = vmatpush.msra.mxu0 %v3125
        %3239 = vmatmul.f32.gmra.mxu0 %v3159
        %v3240 = vpop.f32.mrf.mxu0
        %v3241 = vadd.f32 0.0, %v3240
        %3242 = vmatmul.f32.gmra.mxu0 %v3162
        %v3243 = vpop.f32.mrf.mxu0
        %v3244 = vadd.f32 0.0, %v3243
        %3245 = vmatmul.f32.gmra.mxu0 %v3165
        %v3246 = vpop.f32.mrf.mxu0
        %v3247 = vadd.f32 0.0, %v3246
        %3248 = vmatmul.f32.gmra.mxu0 %v3168
        %v3249 = vpop.f32.mrf.mxu0
        %v3250 = vadd.f32 0.0, %v3249
        %3251 = vmatmul.f32.gmra.mxu0 %v3171
        %v3252 = vpop.f32.mrf.mxu0
        %v3253 = vadd.f32 0.0, %v3252
        %3254 = vmatmul.f32.gmra.mxu0 %v3174
        %v3255 = vpop.f32.mrf.mxu0
        %v3256 = vadd.f32 0.0, %v3255
        %3257 = vmatmul.f32.gmra.mxu0 %v3177
        %v3258 = vpop.f32.mrf.mxu0
        %v3259 = vadd.f32 0.0, %v3258
        %3260 = vmatmul.f32.gmra.mxu0 %v3180
        %v3261 = vpop.f32.mrf.mxu0
        %v3262 = vadd.f32 0.0, %v3261
        %3263 = vdwg.mxu0
        %3264 = vmatpush.msra.mxu0 0.0
        %3265 = vmatpush.msra.mxu0 0.0
        %3266 = vmatpush.msra.mxu0 0.0
        %3267 = vmatpush.msra.mxu0 0.0
        %3268 = vmatpush.msra.mxu0 0.0
        %3269 = vmatpush.msra.mxu0 0.0
        %3270 = vmatpush.msra.mxu0 0.0
        %3271 = vmatpush.msra.mxu0 0.0
        %3272 = vmatpush.msra.mxu0 %v3124
        %3273 = vmatpush.msra.mxu0 %v3123
        %3274 = vmatpush.msra.mxu0 %v3122
        %3275 = vmatpush.msra.mxu0 %v3121
        %3276 = vmatpush.msra.mxu0 %v3120
        %3277 = vmatpush.msra.mxu0 %v3119
        %3278 = vmatpush.msra.mxu0 %v3118
        %3279 = vmatpush.msra.mxu0 %v3117
        %3280 = vmatmul.f32.gmra.mxu0 %v3159
        %v3281 = vpop.f32.mrf.mxu0
        %v3282 = vadd.f32 0.0, %v3281
        %3283 = vmatmul.f32.gmra.mxu0 %v3162
        %v3284 = vpop.f32.mrf.mxu0
        %v3285 = vadd.f32 0.0, %v3284
        %3286 = vmatmul.f32.gmra.mxu0 %v3165
        %v3287 = vpop.f32.mrf.mxu0
        %v3288 = vadd.f32 0.0, %v3287
        %3289 = vmatmul.f32.gmra.mxu0 %v3168
        %v3290 = vpop.f32.mrf.mxu0
        %v3291 = vadd.f32 0.0, %v3290
        %3292 = vmatmul.f32.gmra.mxu0 %v3171
        %v3293 = vpop.f32.mrf.mxu0
        %v3294 = vadd.f32 0.0, %v3293
        %3295 = vmatmul.f32.gmra.mxu0 %v3174
        %v3296 = vpop.f32.mrf.mxu0
        %v3297 = vadd.f32 0.0, %v3296
        %3298 = vmatmul.f32.gmra.mxu0 %v3177
        %v3299 = vpop.f32.mrf.mxu0
        %v3300 = vadd.f32 0.0, %v3299
        %3301 = vmatmul.f32.gmra.mxu0 %v3180
        %v3302 = vpop.f32.mrf.mxu0
        %v3303 = vadd.f32 0.0, %v3302
        %3304 = vdwg.mxu0
        %3305 = vmatpush.msra.mxu0 0.0
        %3306 = vmatpush.msra.mxu0 0.0
        %3307 = vmatpush.msra.mxu0 0.0
        %3308 = vmatpush.msra.mxu0 0.0
        %3309 = vmatpush.msra.mxu0 0.0
        %3310 = vmatpush.msra.mxu0 0.0
        %3311 = vmatpush.msra.mxu0 0.0
        %3312 = vmatpush.msra.mxu0 0.0
        %3313 = vmatpush.msra.mxu0 %v3116
        %3314 = vmatpush.msra.mxu0 %v3115
        %3315 = vmatpush.msra.mxu0 %v3114
        %3316 = vmatpush.msra.mxu0 %v3113
        %3317 = vmatpush.msra.mxu0 %v3112
        %3318 = vmatpush.msra.mxu0 %v3111
        %3319 = vmatpush.msra.mxu0 %v3110
        %3320 = vmatpush.msra.mxu0 %v3109
        %3321 = vmatmul.f32.gmra.mxu0 %v3159
        %v3322 = vpop.f32.mrf.mxu0
        %v3323 = vadd.f32 0.0, %v3322
        %3324 = vmatmul.f32.gmra.mxu0 %v3162
        %v3325 = vpop.f32.mrf.mxu0
        %v3326 = vadd.f32 0.0, %v3325
        %3327 = vmatmul.f32.gmra.mxu0 %v3165
        %v3328 = vpop.f32.mrf.mxu0
        %v3329 = vadd.f32 0.0, %v3328
        %3330 = vmatmul.f32.gmra.mxu0 %v3168
        %v3331 = vpop.f32.mrf.mxu0
        %v3332 = vadd.f32 0.0, %v3331
        %3333 = vmatmul.f32.gmra.mxu0 %v3171
        %v3334 = vpop.f32.mrf.mxu0
        %v3335 = vadd.f32 0.0, %v3334
        %3336 = vmatmul.f32.gmra.mxu0 %v3174
        %v3337 = vpop.f32.mrf.mxu0
        %v3338 = vadd.f32 0.0, %v3337
        %3339 = vmatmul.f32.gmra.mxu0 %v3177
        %v3340 = vpop.f32.mrf.mxu0
        %v3341 = vadd.f32 0.0, %v3340
        %3342 = vmatmul.f32.gmra.mxu0 %v3180
        %v3343 = vpop.f32.mrf.mxu0
        %v3344 = vadd.f32 0.0, %v3343
        %3345 = vdwg.mxu0
        %3346 = vmatpush.msra.mxu0 0.0
        %3347 = vmatpush.msra.mxu0 0.0
        %3348 = vmatpush.msra.mxu0 0.0
        %3349 = vmatpush.msra.mxu0 0.0
        %3350 = vmatpush.msra.mxu0 0.0
        %3351 = vmatpush.msra.mxu0 0.0
        %3352 = vmatpush.msra.mxu0 0.0
        %3353 = vmatpush.msra.mxu0 0.0
        %3354 = vmatpush.msra.mxu0 %v3108
        %3355 = vmatpush.msra.mxu0 %v3107
        %3356 = vmatpush.msra.mxu0 %v3106
        %3357 = vmatpush.msra.mxu0 %v3105
        %3358 = vmatpush.msra.mxu0 %v3104
        %3359 = vmatpush.msra.mxu0 %v3103
        %3360 = vmatpush.msra.mxu0 %v3102
        %3361 = vmatpush.msra.mxu0 %v3101
        %3362 = vmatmul.f32.gmra.mxu0 %v3159
        %v3363 = vpop.f32.mrf.mxu0
        %v3364 = vadd.f32 0.0, %v3363
        %3365 = vmatmul.f32.gmra.mxu0 %v3162
        %v3366 = vpop.f32.mrf.mxu0
        %v3367 = vadd.f32 0.0, %v3366
        %3368 = vmatmul.f32.gmra.mxu0 %v3165
        %v3369 = vpop.f32.mrf.mxu0
        %v3370 = vadd.f32 0.0, %v3369
        %3371 = vmatmul.f32.gmra.mxu0 %v3168
        %v3372 = vpop.f32.mrf.mxu0
        %v3373 = vadd.f32 0.0, %v3372
        %3374 = vmatmul.f32.gmra.mxu0 %v3171
        %v3375 = vpop.f32.mrf.mxu0
        %v3376 = vadd.f32 0.0, %v3375
        %3377 = vmatmul.f32.gmra.mxu0 %v3174
        %v3378 = vpop.f32.mrf.mxu0
        %v3379 = vadd.f32 0.0, %v3378
        %3380 = vmatmul.f32.gmra.mxu0 %v3177
        %v3381 = vpop.f32.mrf.mxu0
        %v3382 = vadd.f32 0.0, %v3381
        %3383 = vmatmul.f32.gmra.mxu0 %v3180
        %v3384 = vpop.f32.mrf.mxu0
        %v3385 = vadd.f32 0.0, %v3384
        %3386 = vdwg.mxu0
        %3387 = vmatpush.msra.mxu0 0.0
        %3388 = vmatpush.msra.mxu0 0.0
        %3389 = vmatpush.msra.mxu0 0.0
        %3390 = vmatpush.msra.mxu0 0.0
        %3391 = vmatpush.msra.mxu0 0.0
        %3392 = vmatpush.msra.mxu0 0.0
        %3393 = vmatpush.msra.mxu0 0.0
        %3394 = vmatpush.msra.mxu0 0.0
        %3395 = vmatpush.msra.mxu0 %v3148
        %3396 = vmatpush.msra.mxu0 %v3147
        %3397 = vmatpush.msra.mxu0 %v3146
        %3398 = vmatpush.msra.mxu0 %v3145
        %3399 = vmatpush.msra.mxu0 %v3144
        %3400 = vmatpush.msra.mxu0 %v3143
        %3401 = vmatpush.msra.mxu0 %v3142
        %3402 = vmatpush.msra.mxu0 %v3141
        %3403 = vmatmul.f32.gmra.mxu0 %v3159
        %v3404 = vpop.f32.mrf.mxu0
        %v3405 = vadd.f32 0.0, %v3404
        %3406 = vmatmul.f32.gmra.mxu0 %v3162
        %v3407 = vpop.f32.mrf.mxu0
        %v3408 = vadd.f32 0.0, %v3407
        %3409 = vmatmul.f32.gmra.mxu0 %v3165
        %v3410 = vpop.f32.mrf.mxu0
        %v3411 = vadd.f32 0.0, %v3410
        %3412 = vmatmul.f32.gmra.mxu0 %v3168
        %v3413 = vpop.f32.mrf.mxu0
        %v3414 = vadd.f32 0.0, %v3413
        %3415 = vmatmul.f32.gmra.mxu0 %v3171
        %v3416 = vpop.f32.mrf.mxu0
        %v3417 = vadd.f32 0.0, %v3416
        %3418 = vmatmul.f32.gmra.mxu0 %v3174
        %v3419 = vpop.f32.mrf.mxu0
        %v3420 = vadd.f32 0.0, %v3419
        %3421 = vmatmul.f32.gmra.mxu0 %v3177
        %v3422 = vpop.f32.mrf.mxu0
        %v3423 = vadd.f32 0.0, %v3422
        %3424 = vmatmul.f32.gmra.mxu0 %v3180
        %v3425 = vpop.f32.mrf.mxu0
        %v3426 = vadd.f32 0.0, %v3425
        %3427 = vdwg.mxu0
        %v3428 = vadd.f32 %v2956, %v3200
        %v3429 = vadd.f32 %v2957, %v3241
        %v3430 = vadd.f32 %v2958, %v3282
        %v3431 = vadd.f32 %v2959, %v3323
        %v3432 = vadd.f32 %v2960, %v3364
        %v3433 = vadd.f32 %v2961, %v3405
        %v3434 = vadd.f32 %v2962, %v3203
        %v3435 = vadd.f32 %v2963, %v3244
        %v3436 = vadd.f32 %v2964, %v3285
        %v3437 = vadd.f32 %v2965, %v3326
        %v3438 = vadd.f32 %v2966, %v3367
        %v3439 = vadd.f32 %v2967, %v3408
        %v3440 = vadd.f32 %v2968, %v3206
        %v3441 = vadd.f32 %v2969, %v3247
        %v3442 = vadd.f32 %v2970, %v3288
        %v3443 = vadd.f32 %v2971, %v3329
        %v3444 = vadd.f32 %v2972, %v3370
        %v3445 = vadd.f32 %v2973, %v3411
        %v3446 = vadd.f32 %v2974, %v3209
        %v3447 = vadd.f32 %v2975, %v3250
        %v3448 = vadd.f32 %v2976, %v3291
        %v3449 = vadd.f32 %v2977, %v3332
        %v3450 = vadd.f32 %v2978, %v3373
        %v3451 = vadd.f32 %v2979, %v3414
        %v3452 = vadd.f32 %v2980, %v3212
        %v3453 = vadd.f32 %v2981, %v3253
        %v3454 = vadd.f32 %v2982, %v3294
        %v3455 = vadd.f32 %v2983, %v3335
        %v3456 = vadd.f32 %v2984, %v3376
        %v3457 = vadd.f32 %v2985, %v3417
        %v3458 = vadd.f32 %v2986, %v3215
        %v3459 = vadd.f32 %v2987, %v3256
        %v3460 = vadd.f32 %v2988, %v3297
        %v3461 = vadd.f32 %v2989, %v3338
        %v3462 = vadd.f32 %v2990, %v3379
        %v3463 = vadd.f32 %v2991, %v3420
        %v3464 = vadd.f32 %v2992, %v3218
        %v3465 = vadd.f32 %v2993, %v3259
        %v3466 = vadd.f32 %v2994, %v3300
        %v3467 = vadd.f32 %v2995, %v3341
        %v3468 = vadd.f32 %v2996, %v3382
        %v3469 = vadd.f32 %v2997, %v3423
        %v3470 = vadd.f32 %v2998, %v3221
        %v3471 = vadd.f32 %v2999, %v3262
        %v3472 = vadd.f32 %v3000, %v3303
        %v3473 = vadd.f32 %v3001, %v3344
        %v3474 = vadd.f32 %v3002, %v3385
        %v3475 = vadd.f32 %v3003, %v3426
        %3476 = vrot.lane.b32.xlu0 %v362, 110
        %v3477 = vpop.permute.xlu0 %3476
        %3478 = vrot.lane.b32.xlu0 %v368, 110
        %v3479 = vpop.permute.xlu0 %3478
        %3480 = vrot.lane.b32.xlu0 %v374, 110
        %v3481 = vpop.permute.xlu0 %3480
        %3482 = vrot.lane.b32.xlu0 %v380, 110
        %v3483 = vpop.permute.xlu0 %3482
        %3484 = vrot.lane.b32.xlu0 %v386, 110
        %v3485 = vpop.permute.xlu0 %3484
        %3486 = vrot.lane.b32.xlu0 %v392, 110
        %v3487 = vpop.permute.xlu0 %3486
        %3488 = vrot.lane.b32.xlu0 %v398, 110
        %v3489 = vpop.permute.xlu0 %3488
        %3490 = vrot.lane.b32.xlu0 %v404, 110
        %v3491 = vpop.permute.xlu0 %3490
        %3492 = vrot.lane.b32.xlu0 %v363, 110
        %v3493 = vpop.permute.xlu0 %3492
        %3494 = vrot.lane.b32.xlu0 %v369, 110
        %v3495 = vpop.permute.xlu0 %3494
        %3496 = vrot.lane.b32.xlu0 %v375, 110
        %v3497 = vpop.permute.xlu0 %3496
        %3498 = vrot.lane.b32.xlu0 %v381, 110
        %v3499 = vpop.permute.xlu0 %3498
        %3500 = vrot.lane.b32.xlu0 %v387, 110
        %v3501 = vpop.permute.xlu0 %3500
        %3502 = vrot.lane.b32.xlu0 %v393, 110
        %v3503 = vpop.permute.xlu0 %3502
        %3504 = vrot.lane.b32.xlu0 %v399, 110
        %v3505 = vpop.permute.xlu0 %3504
        %3506 = vrot.lane.b32.xlu0 %v405, 110
        %v3507 = vpop.permute.xlu0 %3506
        %3508 = vrot.lane.b32.xlu0 %v364, 110
        %v3509 = vpop.permute.xlu0 %3508
        %3510 = vrot.lane.b32.xlu0 %v370, 110
        %v3511 = vpop.permute.xlu0 %3510
        %3512 = vrot.lane.b32.xlu0 %v376, 110
        %v3513 = vpop.permute.xlu0 %3512
        %3514 = vrot.lane.b32.xlu0 %v382, 110
        %v3515 = vpop.permute.xlu0 %3514
        %3516 = vrot.lane.b32.xlu0 %v388, 110
        %v3517 = vpop.permute.xlu0 %3516
        %3518 = vrot.lane.b32.xlu0 %v394, 110
        %v3519 = vpop.permute.xlu0 %3518
        %3520 = vrot.lane.b32.xlu0 %v400, 110
        %v3521 = vpop.permute.xlu0 %3520
        %3522 = vrot.lane.b32.xlu0 %v406, 110
        %v3523 = vpop.permute.xlu0 %3522
        %3524 = vrot.lane.b32.xlu0 %v365, 110
        %v3525 = vpop.permute.xlu0 %3524
        %3526 = vrot.lane.b32.xlu0 %v371, 110
        %v3527 = vpop.permute.xlu0 %3526
        %3528 = vrot.lane.b32.xlu0 %v377, 110
        %v3529 = vpop.permute.xlu0 %3528
        %3530 = vrot.lane.b32.xlu0 %v383, 110
        %v3531 = vpop.permute.xlu0 %3530
        %3532 = vrot.lane.b32.xlu0 %v389, 110
        %v3533 = vpop.permute.xlu0 %3532
        %3534 = vrot.lane.b32.xlu0 %v395, 110
        %v3535 = vpop.permute.xlu0 %3534
        %3536 = vrot.lane.b32.xlu0 %v401, 110
        %v3537 = vpop.permute.xlu0 %3536
        %3538 = vrot.lane.b32.xlu0 %v407, 110
        %v3539 = vpop.permute.xlu0 %3538
        %3540 = vrot.lane.b32.xlu0 %v366, 110
        %v3541 = vpop.permute.xlu0 %3540
        %3542 = vrot.lane.b32.xlu0 %v372, 110
        %v3543 = vpop.permute.xlu0 %3542
        %3544 = vrot.lane.b32.xlu0 %v378, 110
        %v3545 = vpop.permute.xlu0 %3544
        %3546 = vrot.lane.b32.xlu0 %v384, 110
        %v3547 = vpop.permute.xlu0 %3546
        %3548 = vrot.lane.b32.xlu0 %v390, 110
        %v3549 = vpop.permute.xlu0 %3548
        %3550 = vrot.lane.b32.xlu0 %v396, 110
        %v3551 = vpop.permute.xlu0 %3550
        %3552 = vrot.lane.b32.xlu0 %v402, 110
        %v3553 = vpop.permute.xlu0 %3552
        %3554 = vrot.lane.b32.xlu0 %v408, 110
        %v3555 = vpop.permute.xlu0 %3554
        %3556 = vrot.lane.b32.xlu0 %v367, 110
        %v3557 = vpop.permute.xlu0 %3556
        %3558 = vrot.lane.b32.xlu0 %v373, 110
        %v3559 = vpop.permute.xlu0 %3558
        %3560 = vrot.lane.b32.xlu0 %v379, 110
        %v3561 = vpop.permute.xlu0 %3560
        %3562 = vrot.lane.b32.xlu0 %v385, 110
        %v3563 = vpop.permute.xlu0 %3562
        %3564 = vrot.lane.b32.xlu0 %v391, 110
        %v3565 = vpop.permute.xlu0 %3564
        %3566 = vrot.lane.b32.xlu0 %v397, 110
        %v3567 = vpop.permute.xlu0 %3566
        %3568 = vrot.lane.b32.xlu0 %v403, 110
        %v3569 = vpop.permute.xlu0 %3568
        %3570 = vrot.lane.b32.xlu0 %v409, 110
        %v3571 = vpop.permute.xlu0 %3570
        %vm3572 = vcmp.lt.s32.totalorder %v508, 110
        %v3573 = vsel %vm3572, %v3541, %v3557
        %v3574 = vsel %vm3572, %v3543, %v3559
        %v3575 = vsel %vm3572, %v3545, %v3561
        %v3576 = vsel %vm3572, %v3547, %v3563
        %v3577 = vsel %vm3572, %v3549, %v3565
        %v3578 = vsel %vm3572, %v3551, %v3567
        %v3579 = vsel %vm3572, %v3553, %v3569
        %v3580 = vsel %vm3572, %v3555, %v3571
        %v3581 = vsel %vm3572, %v3525, %v3541
        %v3582 = vsel %vm3572, %v3527, %v3543
        %v3583 = vsel %vm3572, %v3529, %v3545
        %v3584 = vsel %vm3572, %v3531, %v3547
        %v3585 = vsel %vm3572, %v3533, %v3549
        %v3586 = vsel %vm3572, %v3535, %v3551
        %v3587 = vsel %vm3572, %v3537, %v3553
        %v3588 = vsel %vm3572, %v3539, %v3555
        %v3589 = vsel %vm3572, %v3509, %v3525
        %v3590 = vsel %vm3572, %v3511, %v3527
        %v3591 = vsel %vm3572, %v3513, %v3529
        %v3592 = vsel %vm3572, %v3515, %v3531
        %v3593 = vsel %vm3572, %v3517, %v3533
        %v3594 = vsel %vm3572, %v3519, %v3535
        %v3595 = vsel %vm3572, %v3521, %v3537
        %v3596 = vsel %vm3572, %v3523, %v3539
        %v3597 = vsel %vm3572, %v3493, %v3509
        %v3598 = vsel %vm3572, %v3495, %v3511
        %v3599 = vsel %vm3572, %v3497, %v3513
        %v3600 = vsel %vm3572, %v3499, %v3515
        %v3601 = vsel %vm3572, %v3501, %v3517
        %v3602 = vsel %vm3572, %v3503, %v3519
        %v3603 = vsel %vm3572, %v3505, %v3521
        %v3604 = vsel %vm3572, %v3507, %v3523
        %v3605 = vsel %vm3572, %v3477, %v3493
        %v3606 = vsel %vm3572, %v3479, %v3495
        %v3607 = vsel %vm3572, %v3481, %v3497
        %v3608 = vsel %vm3572, %v3483, %v3499
        %v3609 = vsel %vm3572, %v3485, %v3501
        %v3610 = vsel %vm3572, %v3487, %v3503
        %v3611 = vsel %vm3572, %v3489, %v3505
        %v3612 = vsel %vm3572, %v3491, %v3507
        %v3613 = vsel %vm3572, %v3557, %v3477
        %v3614 = vsel %vm3572, %v3559, %v3479
        %v3615 = vsel %vm3572, %v3561, %v3481
        %v3616 = vsel %vm3572, %v3563, %v3483
        %v3617 = vsel %vm3572, %v3565, %v3485
        %v3618 = vsel %vm3572, %v3567, %v3487
        %v3619 = vsel %vm3572, %v3569, %v3489
        %v3620 = vsel %vm3572, %v3571, %v3491
        %s3621 = scalar_lea.vmem %s2, 448
        %v3622 = vld [vmem:[%s3621] sm:$0xff]
        %v3623 = vld [vmem:[%s3621 + $0x8] sm:$0xff]
        %v3624 = vld [vmem:[%s3621 + $0x10] sm:$0xff]
        %v3625 = vld [vmem:[%s3621 + $0x18] sm:$0xff]
        %v3626 = vld [vmem:[%s3621 + $0x20] sm:$0xff]
        %v3627 = vld [vmem:[%s3621 + $0x28] sm:$0xff]
        %v3628 = vld [vmem:[%s3621 + $0x30] sm:$0xff]
        %v3629 = vld [vmem:[%s3621 + $0x38] sm:$0xff]
        %v3631 = vsel %vm720, %v3622, 0
        %v3634 = vsel %vm720, %v3623, 0
        %v3637 = vsel %vm720, %v3624, 0
        %v3640 = vsel %vm720, %v3625, 0
        %v3643 = vsel %vm720, %v3626, 0
        %v3646 = vsel %vm720, %v3627, 0
        %v3649 = vsel %vm720, %v3628, 0
        %v3652 = vsel %vm720, %v3629, 0
        %3654 = vmatpush.msra.mxu0 0.0
        %3655 = vmatpush.msra.mxu0 0.0
        %3656 = vmatpush.msra.mxu0 0.0
        %3657 = vmatpush.msra.mxu0 0.0
        %3658 = vmatpush.msra.mxu0 0.0
        %3659 = vmatpush.msra.mxu0 0.0
        %3660 = vmatpush.msra.mxu0 0.0
        %3661 = vmatpush.msra.mxu0 0.0
        %3662 = vmatpush.msra.mxu0 %v3612
        %3663 = vmatpush.msra.mxu0 %v3611
        %3664 = vmatpush.msra.mxu0 %v3610
        %3665 = vmatpush.msra.mxu0 %v3609
        %3666 = vmatpush.msra.mxu0 %v3608
        %3667 = vmatpush.msra.mxu0 %v3607
        %3668 = vmatpush.msra.mxu0 %v3606
        %3669 = vmatpush.msra.mxu0 %v3605
        %3670 = vmatmul.f32.gmra.mxu0 %v3631
        %v3671 = vpop.f32.mrf.mxu0
        %v3672 = vadd.f32 0.0, %v3671
        %3673 = vmatmul.f32.gmra.mxu0 %v3634
        %v3674 = vpop.f32.mrf.mxu0
        %v3675 = vadd.f32 0.0, %v3674
        %3676 = vmatmul.f32.gmra.mxu0 %v3637
        %v3677 = vpop.f32.mrf.mxu0
        %v3678 = vadd.f32 0.0, %v3677
        %3679 = vmatmul.f32.gmra.mxu0 %v3640
        %v3680 = vpop.f32.mrf.mxu0
        %v3681 = vadd.f32 0.0, %v3680
        %3682 = vmatmul.f32.gmra.mxu0 %v3643
        %v3683 = vpop.f32.mrf.mxu0
        %v3684 = vadd.f32 0.0, %v3683
        %3685 = vmatmul.f32.gmra.mxu0 %v3646
        %v3686 = vpop.f32.mrf.mxu0
        %v3687 = vadd.f32 0.0, %v3686
        %3688 = vmatmul.f32.gmra.mxu0 %v3649
        %v3689 = vpop.f32.mrf.mxu0
        %v3690 = vadd.f32 0.0, %v3689
        %3691 = vmatmul.f32.gmra.mxu0 %v3652
        %v3692 = vpop.f32.mrf.mxu0
        %v3693 = vadd.f32 0.0, %v3692
        %3694 = vdwg.mxu0
        %3695 = vmatpush.msra.mxu0 0.0
        %3696 = vmatpush.msra.mxu0 0.0
        %3697 = vmatpush.msra.mxu0 0.0
        %3698 = vmatpush.msra.mxu0 0.0
        %3699 = vmatpush.msra.mxu0 0.0
        %3700 = vmatpush.msra.mxu0 0.0
        %3701 = vmatpush.msra.mxu0 0.0
        %3702 = vmatpush.msra.mxu0 0.0
        %3703 = vmatpush.msra.mxu0 %v3604
        %3704 = vmatpush.msra.mxu0 %v3603
        %3705 = vmatpush.msra.mxu0 %v3602
        %3706 = vmatpush.msra.mxu0 %v3601
        %3707 = vmatpush.msra.mxu0 %v3600
        %3708 = vmatpush.msra.mxu0 %v3599
        %3709 = vmatpush.msra.mxu0 %v3598
        %3710 = vmatpush.msra.mxu0 %v3597
        %3711 = vmatmul.f32.gmra.mxu0 %v3631
        %v3712 = vpop.f32.mrf.mxu0
        %v3713 = vadd.f32 0.0, %v3712
        %3714 = vmatmul.f32.gmra.mxu0 %v3634
        %v3715 = vpop.f32.mrf.mxu0
        %v3716 = vadd.f32 0.0, %v3715
        %3717 = vmatmul.f32.gmra.mxu0 %v3637
        %v3718 = vpop.f32.mrf.mxu0
        %v3719 = vadd.f32 0.0, %v3718
        %3720 = vmatmul.f32.gmra.mxu0 %v3640
        %v3721 = vpop.f32.mrf.mxu0
        %v3722 = vadd.f32 0.0, %v3721
        %3723 = vmatmul.f32.gmra.mxu0 %v3643
        %v3724 = vpop.f32.mrf.mxu0
        %v3725 = vadd.f32 0.0, %v3724
        %3726 = vmatmul.f32.gmra.mxu0 %v3646
        %v3727 = vpop.f32.mrf.mxu0
        %v3728 = vadd.f32 0.0, %v3727
        %3729 = vmatmul.f32.gmra.mxu0 %v3649
        %v3730 = vpop.f32.mrf.mxu0
        %v3731 = vadd.f32 0.0, %v3730
        %3732 = vmatmul.f32.gmra.mxu0 %v3652
        %v3733 = vpop.f32.mrf.mxu0
        %v3734 = vadd.f32 0.0, %v3733
        %3735 = vdwg.mxu0
        %3736 = vmatpush.msra.mxu0 0.0
        %3737 = vmatpush.msra.mxu0 0.0
        %3738 = vmatpush.msra.mxu0 0.0
        %3739 = vmatpush.msra.mxu0 0.0
        %3740 = vmatpush.msra.mxu0 0.0
        %3741 = vmatpush.msra.mxu0 0.0
        %3742 = vmatpush.msra.mxu0 0.0
        %3743 = vmatpush.msra.mxu0 0.0
        %3744 = vmatpush.msra.mxu0 %v3596
        %3745 = vmatpush.msra.mxu0 %v3595
        %3746 = vmatpush.msra.mxu0 %v3594
        %3747 = vmatpush.msra.mxu0 %v3593
        %3748 = vmatpush.msra.mxu0 %v3592
        %3749 = vmatpush.msra.mxu0 %v3591
        %3750 = vmatpush.msra.mxu0 %v3590
        %3751 = vmatpush.msra.mxu0 %v3589
        %3752 = vmatmul.f32.gmra.mxu0 %v3631
        %v3753 = vpop.f32.mrf.mxu0
        %v3754 = vadd.f32 0.0, %v3753
        %3755 = vmatmul.f32.gmra.mxu0 %v3634
        %v3756 = vpop.f32.mrf.mxu0
        %v3757 = vadd.f32 0.0, %v3756
        %3758 = vmatmul.f32.gmra.mxu0 %v3637
        %v3759 = vpop.f32.mrf.mxu0
        %v3760 = vadd.f32 0.0, %v3759
        %3761 = vmatmul.f32.gmra.mxu0 %v3640
        %v3762 = vpop.f32.mrf.mxu0
        %v3763 = vadd.f32 0.0, %v3762
        %3764 = vmatmul.f32.gmra.mxu0 %v3643
        %v3765 = vpop.f32.mrf.mxu0
        %v3766 = vadd.f32 0.0, %v3765
        %3767 = vmatmul.f32.gmra.mxu0 %v3646
        %v3768 = vpop.f32.mrf.mxu0
        %v3769 = vadd.f32 0.0, %v3768
        %3770 = vmatmul.f32.gmra.mxu0 %v3649
        %v3771 = vpop.f32.mrf.mxu0
        %v3772 = vadd.f32 0.0, %v3771
        %3773 = vmatmul.f32.gmra.mxu0 %v3652
        %v3774 = vpop.f32.mrf.mxu0
        %v3775 = vadd.f32 0.0, %v3774
        %3776 = vdwg.mxu0
        %3777 = vmatpush.msra.mxu0 0.0
        %3778 = vmatpush.msra.mxu0 0.0
        %3779 = vmatpush.msra.mxu0 0.0
        %3780 = vmatpush.msra.mxu0 0.0
        %3781 = vmatpush.msra.mxu0 0.0
        %3782 = vmatpush.msra.mxu0 0.0
        %3783 = vmatpush.msra.mxu0 0.0
        %3784 = vmatpush.msra.mxu0 0.0
        %3785 = vmatpush.msra.mxu0 %v3588
        %3786 = vmatpush.msra.mxu0 %v3587
        %3787 = vmatpush.msra.mxu0 %v3586
        %3788 = vmatpush.msra.mxu0 %v3585
        %3789 = vmatpush.msra.mxu0 %v3584
        %3790 = vmatpush.msra.mxu0 %v3583
        %3791 = vmatpush.msra.mxu0 %v3582
        %3792 = vmatpush.msra.mxu0 %v3581
        %3793 = vmatmul.f32.gmra.mxu0 %v3631
        %v3794 = vpop.f32.mrf.mxu0
        %v3795 = vadd.f32 0.0, %v3794
        %3796 = vmatmul.f32.gmra.mxu0 %v3634
        %v3797 = vpop.f32.mrf.mxu0
        %v3798 = vadd.f32 0.0, %v3797
        %3799 = vmatmul.f32.gmra.mxu0 %v3637
        %v3800 = vpop.f32.mrf.mxu0
        %v3801 = vadd.f32 0.0, %v3800
        %3802 = vmatmul.f32.gmra.mxu0 %v3640
        %v3803 = vpop.f32.mrf.mxu0
        %v3804 = vadd.f32 0.0, %v3803
        %3805 = vmatmul.f32.gmra.mxu0 %v3643
        %v3806 = vpop.f32.mrf.mxu0
        %v3807 = vadd.f32 0.0, %v3806
        %3808 = vmatmul.f32.gmra.mxu0 %v3646
        %v3809 = vpop.f32.mrf.mxu0
        %v3810 = vadd.f32 0.0, %v3809
        %3811 = vmatmul.f32.gmra.mxu0 %v3649
        %v3812 = vpop.f32.mrf.mxu0
        %v3813 = vadd.f32 0.0, %v3812
        %3814 = vmatmul.f32.gmra.mxu0 %v3652
        %v3815 = vpop.f32.mrf.mxu0
        %v3816 = vadd.f32 0.0, %v3815
        %3817 = vdwg.mxu0
        %3818 = vmatpush.msra.mxu0 0.0
        %3819 = vmatpush.msra.mxu0 0.0
        %3820 = vmatpush.msra.mxu0 0.0
        %3821 = vmatpush.msra.mxu0 0.0
        %3822 = vmatpush.msra.mxu0 0.0
        %3823 = vmatpush.msra.mxu0 0.0
        %3824 = vmatpush.msra.mxu0 0.0
        %3825 = vmatpush.msra.mxu0 0.0
        %3826 = vmatpush.msra.mxu0 %v3580
        %3827 = vmatpush.msra.mxu0 %v3579
        %3828 = vmatpush.msra.mxu0 %v3578
        %3829 = vmatpush.msra.mxu0 %v3577
        %3830 = vmatpush.msra.mxu0 %v3576
        %3831 = vmatpush.msra.mxu0 %v3575
        %3832 = vmatpush.msra.mxu0 %v3574
        %3833 = vmatpush.msra.mxu0 %v3573
        %3834 = vmatmul.f32.gmra.mxu0 %v3631
        %v3835 = vpop.f32.mrf.mxu0
        %v3836 = vadd.f32 0.0, %v3835
        %3837 = vmatmul.f32.gmra.mxu0 %v3634
        %v3838 = vpop.f32.mrf.mxu0
        %v3839 = vadd.f32 0.0, %v3838
        %3840 = vmatmul.f32.gmra.mxu0 %v3637
        %v3841 = vpop.f32.mrf.mxu0
        %v3842 = vadd.f32 0.0, %v3841
        %3843 = vmatmul.f32.gmra.mxu0 %v3640
        %v3844 = vpop.f32.mrf.mxu0
        %v3845 = vadd.f32 0.0, %v3844
        %3846 = vmatmul.f32.gmra.mxu0 %v3643
        %v3847 = vpop.f32.mrf.mxu0
        %v3848 = vadd.f32 0.0, %v3847
        %3849 = vmatmul.f32.gmra.mxu0 %v3646
        %v3850 = vpop.f32.mrf.mxu0
        %v3851 = vadd.f32 0.0, %v3850
        %3852 = vmatmul.f32.gmra.mxu0 %v3649
        %v3853 = vpop.f32.mrf.mxu0
        %v3854 = vadd.f32 0.0, %v3853
        %3855 = vmatmul.f32.gmra.mxu0 %v3652
        %v3856 = vpop.f32.mrf.mxu0
        %v3857 = vadd.f32 0.0, %v3856
        %3858 = vdwg.mxu0
        %3859 = vmatpush.msra.mxu0 0.0
        %3860 = vmatpush.msra.mxu0 0.0
        %3861 = vmatpush.msra.mxu0 0.0
        %3862 = vmatpush.msra.mxu0 0.0
        %3863 = vmatpush.msra.mxu0 0.0
        %3864 = vmatpush.msra.mxu0 0.0
        %3865 = vmatpush.msra.mxu0 0.0
        %3866 = vmatpush.msra.mxu0 0.0
        %3867 = vmatpush.msra.mxu0 %v3620
        %3868 = vmatpush.msra.mxu0 %v3619
        %3869 = vmatpush.msra.mxu0 %v3618
        %3870 = vmatpush.msra.mxu0 %v3617
        %3871 = vmatpush.msra.mxu0 %v3616
        %3872 = vmatpush.msra.mxu0 %v3615
        %3873 = vmatpush.msra.mxu0 %v3614
        %3874 = vmatpush.msra.mxu0 %v3613
        %3875 = vmatmul.f32.gmra.mxu0 %v3631
        %v3876 = vpop.f32.mrf.mxu0
        %v3877 = vadd.f32 0.0, %v3876
        %3878 = vmatmul.f32.gmra.mxu0 %v3634
        %v3879 = vpop.f32.mrf.mxu0
        %v3880 = vadd.f32 0.0, %v3879
        %3881 = vmatmul.f32.gmra.mxu0 %v3637
        %v3882 = vpop.f32.mrf.mxu0
        %v3883 = vadd.f32 0.0, %v3882
        %3884 = vmatmul.f32.gmra.mxu0 %v3640
        %v3885 = vpop.f32.mrf.mxu0
        %v3886 = vadd.f32 0.0, %v3885
        %3887 = vmatmul.f32.gmra.mxu0 %v3643
        %v3888 = vpop.f32.mrf.mxu0
        %v3889 = vadd.f32 0.0, %v3888
        %3890 = vmatmul.f32.gmra.mxu0 %v3646
        %v3891 = vpop.f32.mrf.mxu0
        %v3892 = vadd.f32 0.0, %v3891
        %3893 = vmatmul.f32.gmra.mxu0 %v3649
        %v3894 = vpop.f32.mrf.mxu0
        %v3895 = vadd.f32 0.0, %v3894
        %3896 = vmatmul.f32.gmra.mxu0 %v3652
        %v3897 = vpop.f32.mrf.mxu0
        %v3898 = vadd.f32 0.0, %v3897
        %3899 = vdwg.mxu0
        %v3900 = vadd.f32 %v3428, %v3672
        %v3901 = vadd.f32 %v3429, %v3713
        %v3902 = vadd.f32 %v3430, %v3754
        %v3903 = vadd.f32 %v3431, %v3795
        %v3904 = vadd.f32 %v3432, %v3836
        %v3905 = vadd.f32 %v3433, %v3877
        %v3906 = vadd.f32 %v3434, %v3675
        %v3907 = vadd.f32 %v3435, %v3716
        %v3908 = vadd.f32 %v3436, %v3757
        %v3909 = vadd.f32 %v3437, %v3798
        %v3910 = vadd.f32 %v3438, %v3839
        %v3911 = vadd.f32 %v3439, %v3880
        %v3912 = vadd.f32 %v3440, %v3678
        %v3913 = vadd.f32 %v3441, %v3719
        %v3914 = vadd.f32 %v3442, %v3760
        %v3915 = vadd.f32 %v3443, %v3801
        %v3916 = vadd.f32 %v3444, %v3842
        %v3917 = vadd.f32 %v3445, %v3883
        %v3918 = vadd.f32 %v3446, %v3681
        %v3919 = vadd.f32 %v3447, %v3722
        %v3920 = vadd.f32 %v3448, %v3763
        %v3921 = vadd.f32 %v3449, %v3804
        %v3922 = vadd.f32 %v3450, %v3845
        %v3923 = vadd.f32 %v3451, %v3886
        %v3924 = vadd.f32 %v3452, %v3684
        %v3925 = vadd.f32 %v3453, %v3725
        %v3926 = vadd.f32 %v3454, %v3766
        %v3927 = vadd.f32 %v3455, %v3807
        %v3928 = vadd.f32 %v3456, %v3848
        %v3929 = vadd.f32 %v3457, %v3889
        %v3930 = vadd.f32 %v3458, %v3687
        %v3931 = vadd.f32 %v3459, %v3728
        %v3932 = vadd.f32 %v3460, %v3769
        %v3933 = vadd.f32 %v3461, %v3810
        %v3934 = vadd.f32 %v3462, %v3851
        %v3935 = vadd.f32 %v3463, %v3892
        %v3936 = vadd.f32 %v3464, %v3690
        %v3937 = vadd.f32 %v3465, %v3731
        %v3938 = vadd.f32 %v3466, %v3772
        %v3939 = vadd.f32 %v3467, %v3813
        %v3940 = vadd.f32 %v3468, %v3854
        %v3941 = vadd.f32 %v3469, %v3895
        %v3942 = vadd.f32 %v3470, %v3693
        %v3943 = vadd.f32 %v3471, %v3734
        %v3944 = vadd.f32 %v3472, %v3775
        %v3945 = vadd.f32 %v3473, %v3816
        %v3946 = vadd.f32 %v3474, %v3857
        %v3947 = vadd.f32 %v3475, %v3898
        %3948 = vrot.lane.b32.xlu0 %v362, 109
        %v3949 = vpop.permute.xlu0 %3948
        %3950 = vrot.lane.b32.xlu0 %v368, 109
        %v3951 = vpop.permute.xlu0 %3950
        %3952 = vrot.lane.b32.xlu0 %v374, 109
        %v3953 = vpop.permute.xlu0 %3952
        %3954 = vrot.lane.b32.xlu0 %v380, 109
        %v3955 = vpop.permute.xlu0 %3954
        %3956 = vrot.lane.b32.xlu0 %v386, 109
        %v3957 = vpop.permute.xlu0 %3956
        %3958 = vrot.lane.b32.xlu0 %v392, 109
        %v3959 = vpop.permute.xlu0 %3958
        %3960 = vrot.lane.b32.xlu0 %v398, 109
        %v3961 = vpop.permute.xlu0 %3960
        %3962 = vrot.lane.b32.xlu0 %v404, 109
        %v3963 = vpop.permute.xlu0 %3962
        %3964 = vrot.lane.b32.xlu0 %v363, 109
        %v3965 = vpop.permute.xlu0 %3964
        %3966 = vrot.lane.b32.xlu0 %v369, 109
        %v3967 = vpop.permute.xlu0 %3966
        %3968 = vrot.lane.b32.xlu0 %v375, 109
        %v3969 = vpop.permute.xlu0 %3968
        %3970 = vrot.lane.b32.xlu0 %v381, 109
        %v3971 = vpop.permute.xlu0 %3970
        %3972 = vrot.lane.b32.xlu0 %v387, 109
        %v3973 = vpop.permute.xlu0 %3972
        %3974 = vrot.lane.b32.xlu0 %v393, 109
        %v3975 = vpop.permute.xlu0 %3974
        %3976 = vrot.lane.b32.xlu0 %v399, 109
        %v3977 = vpop.permute.xlu0 %3976
        %3978 = vrot.lane.b32.xlu0 %v405, 109
        %v3979 = vpop.permute.xlu0 %3978
        %3980 = vrot.lane.b32.xlu0 %v364, 109
        %v3981 = vpop.permute.xlu0 %3980
        %3982 = vrot.lane.b32.xlu0 %v370, 109
        %v3983 = vpop.permute.xlu0 %3982
        %3984 = vrot.lane.b32.xlu0 %v376, 109
        %v3985 = vpop.permute.xlu0 %3984
        %3986 = vrot.lane.b32.xlu0 %v382, 109
        %v3987 = vpop.permute.xlu0 %3986
        %3988 = vrot.lane.b32.xlu0 %v388, 109
        %v3989 = vpop.permute.xlu0 %3988
        %3990 = vrot.lane.b32.xlu0 %v394, 109
        %v3991 = vpop.permute.xlu0 %3990
        %3992 = vrot.lane.b32.xlu0 %v400, 109
        %v3993 = vpop.permute.xlu0 %3992
        %3994 = vrot.lane.b32.xlu0 %v406, 109
        %v3995 = vpop.permute.xlu0 %3994
        %3996 = vrot.lane.b32.xlu0 %v365, 109
        %v3997 = vpop.permute.xlu0 %3996
        %3998 = vrot.lane.b32.xlu0 %v371, 109
        %v3999 = vpop.permute.xlu0 %3998
        %4000 = vrot.lane.b32.xlu0 %v377, 109
        %v4001 = vpop.permute.xlu0 %4000
        %4002 = vrot.lane.b32.xlu0 %v383, 109
        %v4003 = vpop.permute.xlu0 %4002
        %4004 = vrot.lane.b32.xlu0 %v389, 109
        %v4005 = vpop.permute.xlu0 %4004
        %4006 = vrot.lane.b32.xlu0 %v395, 109
        %v4007 = vpop.permute.xlu0 %4006
        %4008 = vrot.lane.b32.xlu0 %v401, 109
        %v4009 = vpop.permute.xlu0 %4008
        %4010 = vrot.lane.b32.xlu0 %v407, 109
        %v4011 = vpop.permute.xlu0 %4010
        %4012 = vrot.lane.b32.xlu0 %v366, 109
        %v4013 = vpop.permute.xlu0 %4012
        %4014 = vrot.lane.b32.xlu0 %v372, 109
        %v4015 = vpop.permute.xlu0 %4014
        %4016 = vrot.lane.b32.xlu0 %v378, 109
        %v4017 = vpop.permute.xlu0 %4016
        %4018 = vrot.lane.b32.xlu0 %v384, 109
        %v4019 = vpop.permute.xlu0 %4018
        %4020 = vrot.lane.b32.xlu0 %v390, 109
        %v4021 = vpop.permute.xlu0 %4020
        %4022 = vrot.lane.b32.xlu0 %v396, 109
        %v4023 = vpop.permute.xlu0 %4022
        %4024 = vrot.lane.b32.xlu0 %v402, 109
        %v4025 = vpop.permute.xlu0 %4024
        %4026 = vrot.lane.b32.xlu0 %v408, 109
        %v4027 = vpop.permute.xlu0 %4026
        %4028 = vrot.lane.b32.xlu0 %v367, 109
        %v4029 = vpop.permute.xlu0 %4028
        %4030 = vrot.lane.b32.xlu0 %v373, 109
        %v4031 = vpop.permute.xlu0 %4030
        %4032 = vrot.lane.b32.xlu0 %v379, 109
        %v4033 = vpop.permute.xlu0 %4032
        %4034 = vrot.lane.b32.xlu0 %v385, 109
        %v4035 = vpop.permute.xlu0 %4034
        %4036 = vrot.lane.b32.xlu0 %v391, 109
        %v4037 = vpop.permute.xlu0 %4036
        %4038 = vrot.lane.b32.xlu0 %v397, 109
        %v4039 = vpop.permute.xlu0 %4038
        %4040 = vrot.lane.b32.xlu0 %v403, 109
        %v4041 = vpop.permute.xlu0 %4040
        %4042 = vrot.lane.b32.xlu0 %v409, 109
        %v4043 = vpop.permute.xlu0 %4042
        %vm4044 = vcmp.lt.s32.totalorder %v508, 109
        %v4045 = vsel %vm4044, %v4013, %v4029
        %v4046 = vsel %vm4044, %v4015, %v4031
        %v4047 = vsel %vm4044, %v4017, %v4033
        %v4048 = vsel %vm4044, %v4019, %v4035
        %v4049 = vsel %vm4044, %v4021, %v4037
        %v4050 = vsel %vm4044, %v4023, %v4039
        %v4051 = vsel %vm4044, %v4025, %v4041
        %v4052 = vsel %vm4044, %v4027, %v4043
        %v4053 = vsel %vm4044, %v3997, %v4013
        %v4054 = vsel %vm4044, %v3999, %v4015
        %v4055 = vsel %vm4044, %v4001, %v4017
        %v4056 = vsel %vm4044, %v4003, %v4019
        %v4057 = vsel %vm4044, %v4005, %v4021
        %v4058 = vsel %vm4044, %v4007, %v4023
        %v4059 = vsel %vm4044, %v4009, %v4025
        %v4060 = vsel %vm4044, %v4011, %v4027
        %v4061 = vsel %vm4044, %v3981, %v3997
        %v4062 = vsel %vm4044, %v3983, %v3999
        %v4063 = vsel %vm4044, %v3985, %v4001
        %v4064 = vsel %vm4044, %v3987, %v4003
        %v4065 = vsel %vm4044, %v3989, %v4005
        %v4066 = vsel %vm4044, %v3991, %v4007
        %v4067 = vsel %vm4044, %v3993, %v4009
        %v4068 = vsel %vm4044, %v3995, %v4011
        %v4069 = vsel %vm4044, %v3965, %v3981
        %v4070 = vsel %vm4044, %v3967, %v3983
        %v4071 = vsel %vm4044, %v3969, %v3985
        %v4072 = vsel %vm4044, %v3971, %v3987
        %v4073 = vsel %vm4044, %v3973, %v3989
        %v4074 = vsel %vm4044, %v3975, %v3991
        %v4075 = vsel %vm4044, %v3977, %v3993
        %v4076 = vsel %vm4044, %v3979, %v3995
        %v4077 = vsel %vm4044, %v3949, %v3965
        %v4078 = vsel %vm4044, %v3951, %v3967
        %v4079 = vsel %vm4044, %v3953, %v3969
        %v4080 = vsel %vm4044, %v3955, %v3971
        %v4081 = vsel %vm4044, %v3957, %v3973
        %v4082 = vsel %vm4044, %v3959, %v3975
        %v4083 = vsel %vm4044, %v3961, %v3977
        %v4084 = vsel %vm4044, %v3963, %v3979
        %v4085 = vsel %vm4044, %v4029, %v3949
        %v4086 = vsel %vm4044, %v4031, %v3951
        %v4087 = vsel %vm4044, %v4033, %v3953
        %v4088 = vsel %vm4044, %v4035, %v3955
        %v4089 = vsel %vm4044, %v4037, %v3957
        %v4090 = vsel %vm4044, %v4039, %v3959
        %v4091 = vsel %vm4044, %v4041, %v3961
        %v4092 = vsel %vm4044, %v4043, %v3963
        %s4093 = scalar_lea.vmem %s2, 512
        %v4094 = vld [vmem:[%s4093] sm:$0xff]
        %v4095 = vld [vmem:[%s4093 + $0x8] sm:$0xff]
        %v4096 = vld [vmem:[%s4093 + $0x10] sm:$0xff]
        %v4097 = vld [vmem:[%s4093 + $0x18] sm:$0xff]
        %v4098 = vld [vmem:[%s4093 + $0x20] sm:$0xff]
        %v4099 = vld [vmem:[%s4093 + $0x28] sm:$0xff]
        %v4100 = vld [vmem:[%s4093 + $0x30] sm:$0xff]
        %v4101 = vld [vmem:[%s4093 + $0x38] sm:$0xff]
        %v4103 = vsel %vm720, %v4094, 0
        %v4106 = vsel %vm720, %v4095, 0
        %v4109 = vsel %vm720, %v4096, 0
        %v4112 = vsel %vm720, %v4097, 0
        %v4115 = vsel %vm720, %v4098, 0
        %v4118 = vsel %vm720, %v4099, 0
        %v4121 = vsel %vm720, %v4100, 0
        %v4124 = vsel %vm720, %v4101, 0
        %4126 = vmatpush.msra.mxu0 0.0
        %4127 = vmatpush.msra.mxu0 0.0
        %4128 = vmatpush.msra.mxu0 0.0
        %4129 = vmatpush.msra.mxu0 0.0
        %4130 = vmatpush.msra.mxu0 0.0
        %4131 = vmatpush.msra.mxu0 0.0
        %4132 = vmatpush.msra.mxu0 0.0
        %4133 = vmatpush.msra.mxu0 0.0
        %4134 = vmatpush.msra.mxu0 %v4084
        %4135 = vmatpush.msra.mxu0 %v4083
        %4136 = vmatpush.msra.mxu0 %v4082
        %4137 = vmatpush.msra.mxu0 %v4081
        %4138 = vmatpush.msra.mxu0 %v4080
        %4139 = vmatpush.msra.mxu0 %v4079
        %4140 = vmatpush.msra.mxu0 %v4078
        %4141 = vmatpush.msra.mxu0 %v4077
        %4142 = vmatmul.f32.gmra.mxu0 %v4103
        %v4143 = vpop.f32.mrf.mxu0
        %v4144 = vadd.f32 0.0, %v4143
        %4145 = vmatmul.f32.gmra.mxu0 %v4106
        %v4146 = vpop.f32.mrf.mxu0
        %v4147 = vadd.f32 0.0, %v4146
        %4148 = vmatmul.f32.gmra.mxu0 %v4109
        %v4149 = vpop.f32.mrf.mxu0
        %v4150 = vadd.f32 0.0, %v4149
        %4151 = vmatmul.f32.gmra.mxu0 %v4112
        %v4152 = vpop.f32.mrf.mxu0
        %v4153 = vadd.f32 0.0, %v4152
        %4154 = vmatmul.f32.gmra.mxu0 %v4115
        %v4155 = vpop.f32.mrf.mxu0
        %v4156 = vadd.f32 0.0, %v4155
        %4157 = vmatmul.f32.gmra.mxu0 %v4118
        %v4158 = vpop.f32.mrf.mxu0
        %v4159 = vadd.f32 0.0, %v4158
        %4160 = vmatmul.f32.gmra.mxu0 %v4121
        %v4161 = vpop.f32.mrf.mxu0
        %v4162 = vadd.f32 0.0, %v4161
        %4163 = vmatmul.f32.gmra.mxu0 %v4124
        %v4164 = vpop.f32.mrf.mxu0
        %v4165 = vadd.f32 0.0, %v4164
        %4166 = vdwg.mxu0
        %4167 = vmatpush.msra.mxu0 0.0
        %4168 = vmatpush.msra.mxu0 0.0
        %4169 = vmatpush.msra.mxu0 0.0
        %4170 = vmatpush.msra.mxu0 0.0
        %4171 = vmatpush.msra.mxu0 0.0
        %4172 = vmatpush.msra.mxu0 0.0
        %4173 = vmatpush.msra.mxu0 0.0
        %4174 = vmatpush.msra.mxu0 0.0
        %4175 = vmatpush.msra.mxu0 %v4076
        %4176 = vmatpush.msra.mxu0 %v4075
        %4177 = vmatpush.msra.mxu0 %v4074
        %4178 = vmatpush.msra.mxu0 %v4073
        %4179 = vmatpush.msra.mxu0 %v4072
        %4180 = vmatpush.msra.mxu0 %v4071
        %4181 = vmatpush.msra.mxu0 %v4070
        %4182 = vmatpush.msra.mxu0 %v4069
        %4183 = vmatmul.f32.gmra.mxu0 %v4103
        %v4184 = vpop.f32.mrf.mxu0
        %v4185 = vadd.f32 0.0, %v4184
        %4186 = vmatmul.f32.gmra.mxu0 %v4106
        %v4187 = vpop.f32.mrf.mxu0
        %v4188 = vadd.f32 0.0, %v4187
        %4189 = vmatmul.f32.gmra.mxu0 %v4109
        %v4190 = vpop.f32.mrf.mxu0
        %v4191 = vadd.f32 0.0, %v4190
        %4192 = vmatmul.f32.gmra.mxu0 %v4112
        %v4193 = vpop.f32.mrf.mxu0
        %v4194 = vadd.f32 0.0, %v4193
        %4195 = vmatmul.f32.gmra.mxu0 %v4115
        %v4196 = vpop.f32.mrf.mxu0
        %v4197 = vadd.f32 0.0, %v4196
        %4198 = vmatmul.f32.gmra.mxu0 %v4118
        %v4199 = vpop.f32.mrf.mxu0
        %v4200 = vadd.f32 0.0, %v4199
        %4201 = vmatmul.f32.gmra.mxu0 %v4121
        %v4202 = vpop.f32.mrf.mxu0
        %v4203 = vadd.f32 0.0, %v4202
        %4204 = vmatmul.f32.gmra.mxu0 %v4124
        %v4205 = vpop.f32.mrf.mxu0
        %v4206 = vadd.f32 0.0, %v4205
        %4207 = vdwg.mxu0
        %4208 = vmatpush.msra.mxu0 0.0
        %4209 = vmatpush.msra.mxu0 0.0
        %4210 = vmatpush.msra.mxu0 0.0
        %4211 = vmatpush.msra.mxu0 0.0
        %4212 = vmatpush.msra.mxu0 0.0
        %4213 = vmatpush.msra.mxu0 0.0
        %4214 = vmatpush.msra.mxu0 0.0
        %4215 = vmatpush.msra.mxu0 0.0
        %4216 = vmatpush.msra.mxu0 %v4068
        %4217 = vmatpush.msra.mxu0 %v4067
        %4218 = vmatpush.msra.mxu0 %v4066
        %4219 = vmatpush.msra.mxu0 %v4065
        %4220 = vmatpush.msra.mxu0 %v4064
        %4221 = vmatpush.msra.mxu0 %v4063
        %4222 = vmatpush.msra.mxu0 %v4062
        %4223 = vmatpush.msra.mxu0 %v4061
        %4224 = vmatmul.f32.gmra.mxu0 %v4103
        %v4225 = vpop.f32.mrf.mxu0
        %v4226 = vadd.f32 0.0, %v4225
        %4227 = vmatmul.f32.gmra.mxu0 %v4106
        %v4228 = vpop.f32.mrf.mxu0
        %v4229 = vadd.f32 0.0, %v4228
        %4230 = vmatmul.f32.gmra.mxu0 %v4109
        %v4231 = vpop.f32.mrf.mxu0
        %v4232 = vadd.f32 0.0, %v4231
        %4233 = vmatmul.f32.gmra.mxu0 %v4112
        %v4234 = vpop.f32.mrf.mxu0
        %v4235 = vadd.f32 0.0, %v4234
        %4236 = vmatmul.f32.gmra.mxu0 %v4115
        %v4237 = vpop.f32.mrf.mxu0
        %v4238 = vadd.f32 0.0, %v4237
        %4239 = vmatmul.f32.gmra.mxu0 %v4118
        %v4240 = vpop.f32.mrf.mxu0
        %v4241 = vadd.f32 0.0, %v4240
        %4242 = vmatmul.f32.gmra.mxu0 %v4121
        %v4243 = vpop.f32.mrf.mxu0
        %v4244 = vadd.f32 0.0, %v4243
        %4245 = vmatmul.f32.gmra.mxu0 %v4124
        %v4246 = vpop.f32.mrf.mxu0
        %v4247 = vadd.f32 0.0, %v4246
        %4248 = vdwg.mxu0
        %4249 = vmatpush.msra.mxu0 0.0
        %4250 = vmatpush.msra.mxu0 0.0
        %4251 = vmatpush.msra.mxu0 0.0
        %4252 = vmatpush.msra.mxu0 0.0
        %4253 = vmatpush.msra.mxu0 0.0
        %4254 = vmatpush.msra.mxu0 0.0
        %4255 = vmatpush.msra.mxu0 0.0
        %4256 = vmatpush.msra.mxu0 0.0
        %4257 = vmatpush.msra.mxu0 %v4060
        %4258 = vmatpush.msra.mxu0 %v4059
        %4259 = vmatpush.msra.mxu0 %v4058
        %4260 = vmatpush.msra.mxu0 %v4057
        %4261 = vmatpush.msra.mxu0 %v4056
        %4262 = vmatpush.msra.mxu0 %v4055
        %4263 = vmatpush.msra.mxu0 %v4054
        %4264 = vmatpush.msra.mxu0 %v4053
        %4265 = vmatmul.f32.gmra.mxu0 %v4103
        %v4266 = vpop.f32.mrf.mxu0
        %v4267 = vadd.f32 0.0, %v4266
        %4268 = vmatmul.f32.gmra.mxu0 %v4106
        %v4269 = vpop.f32.mrf.mxu0
        %v4270 = vadd.f32 0.0, %v4269
        %4271 = vmatmul.f32.gmra.mxu0 %v4109
        %v4272 = vpop.f32.mrf.mxu0
        %v4273 = vadd.f32 0.0, %v4272
        %4274 = vmatmul.f32.gmra.mxu0 %v4112
        %v4275 = vpop.f32.mrf.mxu0
        %v4276 = vadd.f32 0.0, %v4275
        %4277 = vmatmul.f32.gmra.mxu0 %v4115
        %v4278 = vpop.f32.mrf.mxu0
        %v4279 = vadd.f32 0.0, %v4278
        %4280 = vmatmul.f32.gmra.mxu0 %v4118
        %v4281 = vpop.f32.mrf.mxu0
        %v4282 = vadd.f32 0.0, %v4281
        %4283 = vmatmul.f32.gmra.mxu0 %v4121
        %v4284 = vpop.f32.mrf.mxu0
        %v4285 = vadd.f32 0.0, %v4284
        %4286 = vmatmul.f32.gmra.mxu0 %v4124
        %v4287 = vpop.f32.mrf.mxu0
        %v4288 = vadd.f32 0.0, %v4287
        %4289 = vdwg.mxu0
        %4290 = vmatpush.msra.mxu0 0.0
        %4291 = vmatpush.msra.mxu0 0.0
        %4292 = vmatpush.msra.mxu0 0.0
        %4293 = vmatpush.msra.mxu0 0.0
        %4294 = vmatpush.msra.mxu0 0.0
        %4295 = vmatpush.msra.mxu0 0.0
        %4296 = vmatpush.msra.mxu0 0.0
        %4297 = vmatpush.msra.mxu0 0.0
        %4298 = vmatpush.msra.mxu0 %v4052
        %4299 = vmatpush.msra.mxu0 %v4051
        %4300 = vmatpush.msra.mxu0 %v4050
        %4301 = vmatpush.msra.mxu0 %v4049
        %4302 = vmatpush.msra.mxu0 %v4048
        %4303 = vmatpush.msra.mxu0 %v4047
        %4304 = vmatpush.msra.mxu0 %v4046
        %4305 = vmatpush.msra.mxu0 %v4045
        %4306 = vmatmul.f32.gmra.mxu0 %v4103
        %v4307 = vpop.f32.mrf.mxu0
        %v4308 = vadd.f32 0.0, %v4307
        %4309 = vmatmul.f32.gmra.mxu0 %v4106
        %v4310 = vpop.f32.mrf.mxu0
        %v4311 = vadd.f32 0.0, %v4310
        %4312 = vmatmul.f32.gmra.mxu0 %v4109
        %v4313 = vpop.f32.mrf.mxu0
        %v4314 = vadd.f32 0.0, %v4313
        %4315 = vmatmul.f32.gmra.mxu0 %v4112
        %v4316 = vpop.f32.mrf.mxu0
        %v4317 = vadd.f32 0.0, %v4316
        %4318 = vmatmul.f32.gmra.mxu0 %v4115
        %v4319 = vpop.f32.mrf.mxu0
        %v4320 = vadd.f32 0.0, %v4319
        %4321 = vmatmul.f32.gmra.mxu0 %v4118
        %v4322 = vpop.f32.mrf.mxu0
        %v4323 = vadd.f32 0.0, %v4322
        %4324 = vmatmul.f32.gmra.mxu0 %v4121
        %v4325 = vpop.f32.mrf.mxu0
        %v4326 = vadd.f32 0.0, %v4325
        %4327 = vmatmul.f32.gmra.mxu0 %v4124
        %v4328 = vpop.f32.mrf.mxu0
        %v4329 = vadd.f32 0.0, %v4328
        %4330 = vdwg.mxu0
        %4331 = vmatpush.msra.mxu0 0.0
        %4332 = vmatpush.msra.mxu0 0.0
        %4333 = vmatpush.msra.mxu0 0.0
        %4334 = vmatpush.msra.mxu0 0.0
        %4335 = vmatpush.msra.mxu0 0.0
        %4336 = vmatpush.msra.mxu0 0.0
        %4337 = vmatpush.msra.mxu0 0.0
        %4338 = vmatpush.msra.mxu0 0.0
        %4339 = vmatpush.msra.mxu0 %v4092
        %4340 = vmatpush.msra.mxu0 %v4091
        %4341 = vmatpush.msra.mxu0 %v4090
        %4342 = vmatpush.msra.mxu0 %v4089
        %4343 = vmatpush.msra.mxu0 %v4088
        %4344 = vmatpush.msra.mxu0 %v4087
        %4345 = vmatpush.msra.mxu0 %v4086
        %4346 = vmatpush.msra.mxu0 %v4085
        %4347 = vmatmul.f32.gmra.mxu0 %v4103
        %v4348 = vpop.f32.mrf.mxu0
        %v4349 = vadd.f32 0.0, %v4348
        %4350 = vmatmul.f32.gmra.mxu0 %v4106
        %v4351 = vpop.f32.mrf.mxu0
        %v4352 = vadd.f32 0.0, %v4351
        %4353 = vmatmul.f32.gmra.mxu0 %v4109
        %v4354 = vpop.f32.mrf.mxu0
        %v4355 = vadd.f32 0.0, %v4354
        %4356 = vmatmul.f32.gmra.mxu0 %v4112
        %v4357 = vpop.f32.mrf.mxu0
        %v4358 = vadd.f32 0.0, %v4357
        %4359 = vmatmul.f32.gmra.mxu0 %v4115
        %v4360 = vpop.f32.mrf.mxu0
        %v4361 = vadd.f32 0.0, %v4360
        %4362 = vmatmul.f32.gmra.mxu0 %v4118
        %v4363 = vpop.f32.mrf.mxu0
        %v4364 = vadd.f32 0.0, %v4363
        %4365 = vmatmul.f32.gmra.mxu0 %v4121
        %v4366 = vpop.f32.mrf.mxu0
        %v4367 = vadd.f32 0.0, %v4366
        %4368 = vmatmul.f32.gmra.mxu0 %v4124
        %v4369 = vpop.f32.mrf.mxu0
        %v4370 = vadd.f32 0.0, %v4369
        %4371 = vdwg.mxu0
        %v4372 = vadd.f32 %v3900, %v4144
        %v4373 = vadd.f32 %v3901, %v4185
        %v4374 = vadd.f32 %v3902, %v4226
        %v4375 = vadd.f32 %v3903, %v4267
        %v4376 = vadd.f32 %v3904, %v4308
        %v4377 = vadd.f32 %v3905, %v4349
        %v4378 = vadd.f32 %v3906, %v4147
        %v4379 = vadd.f32 %v3907, %v4188
        %v4380 = vadd.f32 %v3908, %v4229
        %v4381 = vadd.f32 %v3909, %v4270
        %v4382 = vadd.f32 %v3910, %v4311
        %v4383 = vadd.f32 %v3911, %v4352
        %v4384 = vadd.f32 %v3912, %v4150
        %v4385 = vadd.f32 %v3913, %v4191
        %v4386 = vadd.f32 %v3914, %v4232
        %v4387 = vadd.f32 %v3915, %v4273
        %v4388 = vadd.f32 %v3916, %v4314
        %v4389 = vadd.f32 %v3917, %v4355
        %v4390 = vadd.f32 %v3918, %v4153
        %v4391 = vadd.f32 %v3919, %v4194
        %v4392 = vadd.f32 %v3920, %v4235
        %v4393 = vadd.f32 %v3921, %v4276
        %v4394 = vadd.f32 %v3922, %v4317
        %v4395 = vadd.f32 %v3923, %v4358
        %v4396 = vadd.f32 %v3924, %v4156
        %v4397 = vadd.f32 %v3925, %v4197
        %v4398 = vadd.f32 %v3926, %v4238
        %v4399 = vadd.f32 %v3927, %v4279
        %v4400 = vadd.f32 %v3928, %v4320
        %v4401 = vadd.f32 %v3929, %v4361
        %v4402 = vadd.f32 %v3930, %v4159
        %v4403 = vadd.f32 %v3931, %v4200
        %v4404 = vadd.f32 %v3932, %v4241
        %v4405 = vadd.f32 %v3933, %v4282
        %v4406 = vadd.f32 %v3934, %v4323
        %v4407 = vadd.f32 %v3935, %v4364
        %v4408 = vadd.f32 %v3936, %v4162
        %v4409 = vadd.f32 %v3937, %v4203
        %v4410 = vadd.f32 %v3938, %v4244
        %v4411 = vadd.f32 %v3939, %v4285
        %v4412 = vadd.f32 %v3940, %v4326
        %v4413 = vadd.f32 %v3941, %v4367
        %v4414 = vadd.f32 %v3942, %v4165
        %v4415 = vadd.f32 %v3943, %v4206
        %v4416 = vadd.f32 %v3944, %v4247
        %v4417 = vadd.f32 %v3945, %v4288
        %v4418 = vadd.f32 %v3946, %v4329
        %v4419 = vadd.f32 %v3947, %v4370
        %v4420 = vld [vmem:[%s3] sm:$0xff]
        %v4421 = vld [vmem:[%s3 + $0x8] sm:$0xff]
        %v4422 = vld [vmem:[%s3 + $0x10] sm:$0xff]
        %v4423 = vld [vmem:[%s3 + $0x18] sm:$0xff]
        %v4424 = vld [vmem:[%s3 + $0x20] sm:$0xff]
        %v4425 = vld [vmem:[%s3 + $0x28] sm:$0xff]
        %v4426 = vld [vmem:[%s3 + $0x30] sm:$0xff]
        %v4427 = vld [vmem:[%s3 + $0x38] sm:$0xff]
        %4429 = vset.pattern.permute.xlu0 0
        %4430 = vperm.xlu0 %4429, %v4420
        %v4431 = vpop.permute.xlu0 %4430
        %4434 = vset.pattern.permute.xlu0 0
        %4435 = vperm.xlu0 %4434, %v4421
        %v4436 = vpop.permute.xlu0 %4435
        %4439 = vset.pattern.permute.xlu0 0
        %4440 = vperm.xlu0 %4439, %v4422
        %v4441 = vpop.permute.xlu0 %4440
        %4444 = vset.pattern.permute.xlu0 0
        %4445 = vperm.xlu0 %4444, %v4423
        %v4446 = vpop.permute.xlu0 %4445
        %4449 = vset.pattern.permute.xlu0 0
        %4450 = vperm.xlu0 %4449, %v4424
        %v4451 = vpop.permute.xlu0 %4450
        %4454 = vset.pattern.permute.xlu0 0
        %4455 = vperm.xlu0 %4454, %v4425
        %v4456 = vpop.permute.xlu0 %4455
        %4459 = vset.pattern.permute.xlu0 0
        %4460 = vperm.xlu0 %4459, %v4426
        %v4461 = vpop.permute.xlu0 %4460
        %4464 = vset.pattern.permute.xlu0 0
        %4465 = vperm.xlu0 %4464, %v4427
        %v4466 = vpop.permute.xlu0 %4465
        %v4468 = vadd.f32 %v4372, %v4431
        %v4469 = vadd.f32 %v4373, %v4431
        %v4470 = vadd.f32 %v4374, %v4431
        %v4471 = vadd.f32 %v4375, %v4431
        %v4472 = vadd.f32 %v4376, %v4431
        %v4473 = vadd.f32 %v4377, %v4431
        %v4474 = vadd.f32 %v4378, %v4436
        %v4475 = vadd.f32 %v4379, %v4436
        %v4476 = vadd.f32 %v4380, %v4436
        %v4477 = vadd.f32 %v4381, %v4436
        %v4478 = vadd.f32 %v4382, %v4436
        %v4479 = vadd.f32 %v4383, %v4436
        %v4480 = vadd.f32 %v4384, %v4441
        %v4481 = vadd.f32 %v4385, %v4441
        %v4482 = vadd.f32 %v4386, %v4441
        %v4483 = vadd.f32 %v4387, %v4441
        %v4484 = vadd.f32 %v4388, %v4441
        %v4485 = vadd.f32 %v4389, %v4441
        %v4486 = vadd.f32 %v4390, %v4446
        %v4487 = vadd.f32 %v4391, %v4446
        %v4488 = vadd.f32 %v4392, %v4446
        %v4489 = vadd.f32 %v4393, %v4446
        %v4490 = vadd.f32 %v4394, %v4446
        %v4491 = vadd.f32 %v4395, %v4446
        %v4492 = vadd.f32 %v4396, %v4451
        %v4493 = vadd.f32 %v4397, %v4451
        %v4494 = vadd.f32 %v4398, %v4451
        %v4495 = vadd.f32 %v4399, %v4451
        %v4496 = vadd.f32 %v4400, %v4451
        %v4497 = vadd.f32 %v4401, %v4451
        %v4498 = vadd.f32 %v4402, %v4456
        %v4499 = vadd.f32 %v4403, %v4456
        %v4500 = vadd.f32 %v4404, %v4456
        %v4501 = vadd.f32 %v4405, %v4456
        %v4502 = vadd.f32 %v4406, %v4456
        %v4503 = vadd.f32 %v4407, %v4456
        %v4504 = vadd.f32 %v4408, %v4461
        %v4505 = vadd.f32 %v4409, %v4461
        %v4506 = vadd.f32 %v4410, %v4461
        %v4507 = vadd.f32 %v4411, %v4461
        %v4508 = vadd.f32 %v4412, %v4461
        %v4509 = vadd.f32 %v4413, %v4461
        %v4510 = vadd.f32 %v4414, %v4466
        %v4511 = vadd.f32 %v4415, %v4466
        %v4512 = vadd.f32 %v4416, %v4466
        %v4513 = vadd.f32 %v4417, %v4466
        %v4514 = vadd.f32 %v4418, %v4466
        %v4515 = vadd.f32 %v4419, %v4466
        %v4516 = vmax.f32 %v4468, 0.0
        %v4517 = vmax.f32 %v4469, 0.0
        %v4518 = vmax.f32 %v4470, 0.0
        %v4519 = vmax.f32 %v4471, 0.0
        %v4520 = vmax.f32 %v4472, 0.0
        %v4521 = vmax.f32 %v4473, 0.0
        %v4522 = vmax.f32 %v4474, 0.0
        %v4523 = vmax.f32 %v4475, 0.0
        %v4524 = vmax.f32 %v4476, 0.0
        %v4525 = vmax.f32 %v4477, 0.0
        %v4526 = vmax.f32 %v4478, 0.0
        %v4527 = vmax.f32 %v4479, 0.0
        %v4528 = vmax.f32 %v4480, 0.0
        %v4529 = vmax.f32 %v4481, 0.0
        %v4530 = vmax.f32 %v4482, 0.0
        %v4531 = vmax.f32 %v4483, 0.0
        %v4532 = vmax.f32 %v4484, 0.0
        %v4533 = vmax.f32 %v4485, 0.0
        %v4534 = vmax.f32 %v4486, 0.0
        %v4535 = vmax.f32 %v4487, 0.0
        %v4536 = vmax.f32 %v4488, 0.0
        %v4537 = vmax.f32 %v4489, 0.0
        %v4538 = vmax.f32 %v4490, 0.0
        %v4539 = vmax.f32 %v4491, 0.0
        %v4540 = vmax.f32 %v4492, 0.0
        %v4541 = vmax.f32 %v4493, 0.0
        %v4542 = vmax.f32 %v4494, 0.0
        %v4543 = vmax.f32 %v4495, 0.0
        %v4544 = vmax.f32 %v4496, 0.0
        %v4545 = vmax.f32 %v4497, 0.0
        %v4546 = vmax.f32 %v4498, 0.0
        %v4547 = vmax.f32 %v4499, 0.0
        %v4548 = vmax.f32 %v4500, 0.0
        %v4549 = vmax.f32 %v4501, 0.0
        %v4550 = vmax.f32 %v4502, 0.0
        %v4551 = vmax.f32 %v4503, 0.0
        %v4552 = vmax.f32 %v4504, 0.0
        %v4553 = vmax.f32 %v4505, 0.0
        %v4554 = vmax.f32 %v4506, 0.0
        %v4555 = vmax.f32 %v4507, 0.0
        %v4556 = vmax.f32 %v4508, 0.0
        %v4557 = vmax.f32 %v4509, 0.0
        %v4558 = vmax.f32 %v4510, 0.0
        %v4559 = vmax.f32 %v4511, 0.0
        %v4560 = vmax.f32 %v4512, 0.0
        %v4561 = vmax.f32 %v4513, 0.0
        %v4562 = vmax.f32 %v4514, 0.0
        %v4563 = vmax.f32 %v4515, 0.0
        %v4565 = vperm.slane %v410, 0
        %v4566 = vperm.slane %v410, 1
        %v4567 = vperm.slane %v410, 2
        %v4568 = vperm.slane %v410, 3
        %v4569 = vperm.slane %v410, 4
        %v4570 = vperm.slane %v410, 5
        %v4577 = vmul.f32 %v4516, %v4565
        %v4578 = vmul.f32 %v4517, %v4566
        %v4579 = vmul.f32 %v4518, %v4567
        %v4580 = vmul.f32 %v4519, %v4568
        %v4581 = vmul.f32 %v4520, %v4569
        %v4582 = vmul.f32 %v4521, %v4570
        %v4583 = vmul.f32 %v4522, %v4565
        %v4584 = vmul.f32 %v4523, %v4566
        %v4585 = vmul.f32 %v4524, %v4567
        %v4586 = vmul.f32 %v4525, %v4568
        %v4587 = vmul.f32 %v4526, %v4569
        %v4588 = vmul.f32 %v4527, %v4570
        %v4589 = vmul.f32 %v4528, %v4565
        %v4590 = vmul.f32 %v4529, %v4566
        %v4591 = vmul.f32 %v4530, %v4567
        %v4592 = vmul.f32 %v4531, %v4568
        %v4593 = vmul.f32 %v4532, %v4569
        %v4594 = vmul.f32 %v4533, %v4570
        %v4595 = vmul.f32 %v4534, %v4565
        %v4596 = vmul.f32 %v4535, %v4566
        %v4597 = vmul.f32 %v4536, %v4567
        %v4598 = vmul.f32 %v4537, %v4568
        %v4599 = vmul.f32 %v4538, %v4569
        %v4600 = vmul.f32 %v4539, %v4570
        %v4601 = vmul.f32 %v4540, %v4565
        %v4602 = vmul.f32 %v4541, %v4566
        %v4603 = vmul.f32 %v4542, %v4567
        %v4604 = vmul.f32 %v4543, %v4568
        %v4605 = vmul.f32 %v4544, %v4569
        %v4606 = vmul.f32 %v4545, %v4570
        %v4607 = vmul.f32 %v4546, %v4565
        %v4608 = vmul.f32 %v4547, %v4566
        %v4609 = vmul.f32 %v4548, %v4567
        %v4610 = vmul.f32 %v4549, %v4568
        %v4611 = vmul.f32 %v4550, %v4569
        %v4612 = vmul.f32 %v4551, %v4570
        %v4613 = vmul.f32 %v4552, %v4565
        %v4614 = vmul.f32 %v4553, %v4566
        %v4615 = vmul.f32 %v4554, %v4567
        %v4616 = vmul.f32 %v4555, %v4568
        %v4617 = vmul.f32 %v4556, %v4569
        %v4618 = vmul.f32 %v4557, %v4570
        %v4619 = vmul.f32 %v4558, %v4565
        %v4620 = vmul.f32 %v4559, %v4566
        %v4621 = vmul.f32 %v4560, %v4567
        %v4622 = vmul.f32 %v4561, %v4568
        %v4623 = vmul.f32 %v4562, %v4569
        %v4624 = vmul.f32 %v4563, %v4570
        %4625 = vrot.lane.b32.xlu0 %v4577, 19
        %v4626 = vpop.permute.xlu0 %4625
        %4627 = vrot.lane.b32.xlu0 %v4583, 19
        %v4628 = vpop.permute.xlu0 %4627
        %4629 = vrot.lane.b32.xlu0 %v4589, 19
        %v4630 = vpop.permute.xlu0 %4629
        %4631 = vrot.lane.b32.xlu0 %v4595, 19
        %v4632 = vpop.permute.xlu0 %4631
        %4633 = vrot.lane.b32.xlu0 %v4601, 19
        %v4634 = vpop.permute.xlu0 %4633
        %4635 = vrot.lane.b32.xlu0 %v4607, 19
        %v4636 = vpop.permute.xlu0 %4635
        %4637 = vrot.lane.b32.xlu0 %v4613, 19
        %v4638 = vpop.permute.xlu0 %4637
        %4639 = vrot.lane.b32.xlu0 %v4619, 19
        %v4640 = vpop.permute.xlu0 %4639
        %4641 = vrot.lane.b32.xlu0 %v4578, 19
        %v4642 = vpop.permute.xlu0 %4641
        %4643 = vrot.lane.b32.xlu0 %v4584, 19
        %v4644 = vpop.permute.xlu0 %4643
        %4645 = vrot.lane.b32.xlu0 %v4590, 19
        %v4646 = vpop.permute.xlu0 %4645
        %4647 = vrot.lane.b32.xlu0 %v4596, 19
        %v4648 = vpop.permute.xlu0 %4647
        %4649 = vrot.lane.b32.xlu0 %v4602, 19
        %v4650 = vpop.permute.xlu0 %4649
        %4651 = vrot.lane.b32.xlu0 %v4608, 19
        %v4652 = vpop.permute.xlu0 %4651
        %4653 = vrot.lane.b32.xlu0 %v4614, 19
        %v4654 = vpop.permute.xlu0 %4653
        %4655 = vrot.lane.b32.xlu0 %v4620, 19
        %v4656 = vpop.permute.xlu0 %4655
        %4657 = vrot.lane.b32.xlu0 %v4579, 19
        %v4658 = vpop.permute.xlu0 %4657
        %4659 = vrot.lane.b32.xlu0 %v4585, 19
        %v4660 = vpop.permute.xlu0 %4659
        %4661 = vrot.lane.b32.xlu0 %v4591, 19
        %v4662 = vpop.permute.xlu0 %4661
        %4663 = vrot.lane.b32.xlu0 %v4597, 19
        %v4664 = vpop.permute.xlu0 %4663
        %4665 = vrot.lane.b32.xlu0 %v4603, 19
        %v4666 = vpop.permute.xlu0 %4665
        %4667 = vrot.lane.b32.xlu0 %v4609, 19
        %v4668 = vpop.permute.xlu0 %4667
        %4669 = vrot.lane.b32.xlu0 %v4615, 19
        %v4670 = vpop.permute.xlu0 %4669
        %4671 = vrot.lane.b32.xlu0 %v4621, 19
        %v4672 = vpop.permute.xlu0 %4671
        %4673 = vrot.lane.b32.xlu0 %v4580, 19
        %v4674 = vpop.permute.xlu0 %4673
        %4675 = vrot.lane.b32.xlu0 %v4586, 19
        %v4676 = vpop.permute.xlu0 %4675
        %4677 = vrot.lane.b32.xlu0 %v4592, 19
        %v4678 = vpop.permute.xlu0 %4677
        %4679 = vrot.lane.b32.xlu0 %v4598, 19
        %v4680 = vpop.permute.xlu0 %4679
        %4681 = vrot.lane.b32.xlu0 %v4604, 19
        %v4682 = vpop.permute.xlu0 %4681
        %4683 = vrot.lane.b32.xlu0 %v4610, 19
        %v4684 = vpop.permute.xlu0 %4683
        %4685 = vrot.lane.b32.xlu0 %v4616, 19
        %v4686 = vpop.permute.xlu0 %4685
        %4687 = vrot.lane.b32.xlu0 %v4622, 19
        %v4688 = vpop.permute.xlu0 %4687
        %4689 = vrot.lane.b32.xlu0 %v4581, 19
        %v4690 = vpop.permute.xlu0 %4689
        %4691 = vrot.lane.b32.xlu0 %v4587, 19
        %v4692 = vpop.permute.xlu0 %4691
        %4693 = vrot.lane.b32.xlu0 %v4593, 19
        %v4694 = vpop.permute.xlu0 %4693
        %4695 = vrot.lane.b32.xlu0 %v4599, 19
        %v4696 = vpop.permute.xlu0 %4695
        %4697 = vrot.lane.b32.xlu0 %v4605, 19
        %v4698 = vpop.permute.xlu0 %4697
        %4699 = vrot.lane.b32.xlu0 %v4611, 19
        %v4700 = vpop.permute.xlu0 %4699
        %4701 = vrot.lane.b32.xlu0 %v4617, 19
        %v4702 = vpop.permute.xlu0 %4701
        %4703 = vrot.lane.b32.xlu0 %v4623, 19
        %v4704 = vpop.permute.xlu0 %4703
        %4705 = vrot.lane.b32.xlu0 %v4582, 19
        %v4706 = vpop.permute.xlu0 %4705
        %4707 = vrot.lane.b32.xlu0 %v4588, 19
        %v4708 = vpop.permute.xlu0 %4707
        %4709 = vrot.lane.b32.xlu0 %v4594, 19
        %v4710 = vpop.permute.xlu0 %4709
        %4711 = vrot.lane.b32.xlu0 %v4600, 19
        %v4712 = vpop.permute.xlu0 %4711
        %4713 = vrot.lane.b32.xlu0 %v4606, 19
        %v4714 = vpop.permute.xlu0 %4713
        %4715 = vrot.lane.b32.xlu0 %v4612, 19
        %v4716 = vpop.permute.xlu0 %4715
        %4717 = vrot.lane.b32.xlu0 %v4618, 19
        %v4718 = vpop.permute.xlu0 %4717
        %4719 = vrot.lane.b32.xlu0 %v4624, 19
        %v4720 = vpop.permute.xlu0 %4719
        %v4721 = vsel %vm509, %v4690, %v4706
        %v4722 = vsel %vm509, %v4692, %v4708
        %v4723 = vsel %vm509, %v4694, %v4710
        %v4724 = vsel %vm509, %v4696, %v4712
        %v4725 = vsel %vm509, %v4698, %v4714
        %v4726 = vsel %vm509, %v4700, %v4716
        %v4727 = vsel %vm509, %v4702, %v4718
        %v4728 = vsel %vm509, %v4704, %v4720
        %v4729 = vsel %vm509, %v4674, %v4690
        %v4730 = vsel %vm509, %v4676, %v4692
        %v4731 = vsel %vm509, %v4678, %v4694
        %v4732 = vsel %vm509, %v4680, %v4696
        %v4733 = vsel %vm509, %v4682, %v4698
        %v4734 = vsel %vm509, %v4684, %v4700
        %v4735 = vsel %vm509, %v4686, %v4702
        %v4736 = vsel %vm509, %v4688, %v4704
        %v4737 = vsel %vm509, %v4658, %v4674
        %v4738 = vsel %vm509, %v4660, %v4676
        %v4739 = vsel %vm509, %v4662, %v4678
        %v4740 = vsel %vm509, %v4664, %v4680
        %v4741 = vsel %vm509, %v4666, %v4682
        %v4742 = vsel %vm509, %v4668, %v4684
        %v4743 = vsel %vm509, %v4670, %v4686
        %v4744 = vsel %vm509, %v4672, %v4688
        %v4745 = vsel %vm509, %v4642, %v4658
        %v4746 = vsel %vm509, %v4644, %v4660
        %v4747 = vsel %vm509, %v4646, %v4662
        %v4748 = vsel %vm509, %v4648, %v4664
        %v4749 = vsel %vm509, %v4650, %v4666
        %v4750 = vsel %vm509, %v4652, %v4668
        %v4751 = vsel %vm509, %v4654, %v4670
        %v4752 = vsel %vm509, %v4656, %v4672
        %v4753 = vsel %vm509, %v4626, %v4642
        %v4754 = vsel %vm509, %v4628, %v4644
        %v4755 = vsel %vm509, %v4630, %v4646
        %v4756 = vsel %vm509, %v4632, %v4648
        %v4757 = vsel %vm509, %v4634, %v4650
        %v4758 = vsel %vm509, %v4636, %v4652
        %v4759 = vsel %vm509, %v4638, %v4654
        %v4760 = vsel %vm509, %v4640, %v4656
        %v4761 = vsel %vm509, %v4706, %v4626
        %v4762 = vsel %vm509, %v4708, %v4628
        %v4763 = vsel %vm509, %v4710, %v4630
        %v4764 = vsel %vm509, %v4712, %v4632
        %v4765 = vsel %vm509, %v4714, %v4634
        %v4766 = vsel %vm509, %v4716, %v4636
        %v4767 = vsel %vm509, %v4718, %v4638
        %v4768 = vsel %vm509, %v4720, %v4640
        %v4769 = vld [vmem:[%s4] sm:$0xff]
        %v4770 = vld [vmem:[%s4 + $0x8] sm:$0xff]
        %v4771 = vld [vmem:[%s4 + $0x10] sm:$0xff]
        %v4772 = vld [vmem:[%s4 + $0x18] sm:$0xff]
        %v4773 = vld [vmem:[%s4 + $0x20] sm:$0xff]
        %v4774 = vld [vmem:[%s4 + $0x28] sm:$0xff]
        %v4775 = vld [vmem:[%s4 + $0x30] sm:$0xff]
        %v4776 = vld [vmem:[%s4 + $0x38] sm:$0xff]
        %4777 = vrot.lane.b32.xlu0 %v4577, 18
        %v4778 = vpop.permute.xlu0 %4777
        %4779 = vrot.lane.b32.xlu0 %v4583, 18
        %v4780 = vpop.permute.xlu0 %4779
        %4781 = vrot.lane.b32.xlu0 %v4589, 18
        %v4782 = vpop.permute.xlu0 %4781
        %4783 = vrot.lane.b32.xlu0 %v4595, 18
        %v4784 = vpop.permute.xlu0 %4783
        %4785 = vrot.lane.b32.xlu0 %v4601, 18
        %v4786 = vpop.permute.xlu0 %4785
        %4787 = vrot.lane.b32.xlu0 %v4607, 18
        %v4788 = vpop.permute.xlu0 %4787
        %4789 = vrot.lane.b32.xlu0 %v4613, 18
        %v4790 = vpop.permute.xlu0 %4789
        %4791 = vrot.lane.b32.xlu0 %v4619, 18
        %v4792 = vpop.permute.xlu0 %4791
        %4793 = vrot.lane.b32.xlu0 %v4578, 18
        %v4794 = vpop.permute.xlu0 %4793
        %4795 = vrot.lane.b32.xlu0 %v4584, 18
        %v4796 = vpop.permute.xlu0 %4795
        %4797 = vrot.lane.b32.xlu0 %v4590, 18
        %v4798 = vpop.permute.xlu0 %4797
        %4799 = vrot.lane.b32.xlu0 %v4596, 18
        %v4800 = vpop.permute.xlu0 %4799
        %4801 = vrot.lane.b32.xlu0 %v4602, 18
        %v4802 = vpop.permute.xlu0 %4801
        %4803 = vrot.lane.b32.xlu0 %v4608, 18
        %v4804 = vpop.permute.xlu0 %4803
        %4805 = vrot.lane.b32.xlu0 %v4614, 18
        %v4806 = vpop.permute.xlu0 %4805
        %4807 = vrot.lane.b32.xlu0 %v4620, 18
        %v4808 = vpop.permute.xlu0 %4807
        %4809 = vrot.lane.b32.xlu0 %v4579, 18
        %v4810 = vpop.permute.xlu0 %4809
        %4811 = vrot.lane.b32.xlu0 %v4585, 18
        %v4812 = vpop.permute.xlu0 %4811
        %4813 = vrot.lane.b32.xlu0 %v4591, 18
        %v4814 = vpop.permute.xlu0 %4813
        %4815 = vrot.lane.b32.xlu0 %v4597, 18
        %v4816 = vpop.permute.xlu0 %4815
        %4817 = vrot.lane.b32.xlu0 %v4603, 18
        %v4818 = vpop.permute.xlu0 %4817
        %4819 = vrot.lane.b32.xlu0 %v4609, 18
        %v4820 = vpop.permute.xlu0 %4819
        %4821 = vrot.lane.b32.xlu0 %v4615, 18
        %v4822 = vpop.permute.xlu0 %4821
        %4823 = vrot.lane.b32.xlu0 %v4621, 18
        %v4824 = vpop.permute.xlu0 %4823
        %4825 = vrot.lane.b32.xlu0 %v4580, 18
        %v4826 = vpop.permute.xlu0 %4825
        %4827 = vrot.lane.b32.xlu0 %v4586, 18
        %v4828 = vpop.permute.xlu0 %4827
        %4829 = vrot.lane.b32.xlu0 %v4592, 18
        %v4830 = vpop.permute.xlu0 %4829
        %4831 = vrot.lane.b32.xlu0 %v4598, 18
        %v4832 = vpop.permute.xlu0 %4831
        %4833 = vrot.lane.b32.xlu0 %v4604, 18
        %v4834 = vpop.permute.xlu0 %4833
        %4835 = vrot.lane.b32.xlu0 %v4610, 18
        %v4836 = vpop.permute.xlu0 %4835
        %4837 = vrot.lane.b32.xlu0 %v4616, 18
        %v4838 = vpop.permute.xlu0 %4837
        %4839 = vrot.lane.b32.xlu0 %v4622, 18
        %v4840 = vpop.permute.xlu0 %4839
        %4841 = vrot.lane.b32.xlu0 %v4581, 18
        %v4842 = vpop.permute.xlu0 %4841
        %4843 = vrot.lane.b32.xlu0 %v4587, 18
        %v4844 = vpop.permute.xlu0 %4843
        %4845 = vrot.lane.b32.xlu0 %v4593, 18
        %v4846 = vpop.permute.xlu0 %4845
        %4847 = vrot.lane.b32.xlu0 %v4599, 18
        %v4848 = vpop.permute.xlu0 %4847
        %4849 = vrot.lane.b32.xlu0 %v4605, 18
        %v4850 = vpop.permute.xlu0 %4849
        %4851 = vrot.lane.b32.xlu0 %v4611, 18
        %v4852 = vpop.permute.xlu0 %4851
        %4853 = vrot.lane.b32.xlu0 %v4617, 18
        %v4854 = vpop.permute.xlu0 %4853
        %4855 = vrot.lane.b32.xlu0 %v4623, 18
        %v4856 = vpop.permute.xlu0 %4855
        %4857 = vrot.lane.b32.xlu0 %v4582, 18
        %v4858 = vpop.permute.xlu0 %4857
        %4859 = vrot.lane.b32.xlu0 %v4588, 18
        %v4860 = vpop.permute.xlu0 %4859
        %4861 = vrot.lane.b32.xlu0 %v4594, 18
        %v4862 = vpop.permute.xlu0 %4861
        %4863 = vrot.lane.b32.xlu0 %v4600, 18
        %v4864 = vpop.permute.xlu0 %4863
        %4865 = vrot.lane.b32.xlu0 %v4606, 18
        %v4866 = vpop.permute.xlu0 %4865
        %4867 = vrot.lane.b32.xlu0 %v4612, 18
        %v4868 = vpop.permute.xlu0 %4867
        %4869 = vrot.lane.b32.xlu0 %v4618, 18
        %v4870 = vpop.permute.xlu0 %4869
        %4871 = vrot.lane.b32.xlu0 %v4624, 18
        %v4872 = vpop.permute.xlu0 %4871
        %v4873 = vsel %vm662, %v4842, %v4858
        %v4874 = vsel %vm662, %v4844, %v4860
        %v4875 = vsel %vm662, %v4846, %v4862
        %v4876 = vsel %vm662, %v4848, %v4864
        %v4877 = vsel %vm662, %v4850, %v4866
        %v4878 = vsel %vm662, %v4852, %v4868
        %v4879 = vsel %vm662, %v4854, %v4870
        %v4880 = vsel %vm662, %v4856, %v4872
        %v4881 = vsel %vm662, %v4826, %v4842
        %v4882 = vsel %vm662, %v4828, %v4844
        %v4883 = vsel %vm662, %v4830, %v4846
        %v4884 = vsel %vm662, %v4832, %v4848
        %v4885 = vsel %vm662, %v4834, %v4850
        %v4886 = vsel %vm662, %v4836, %v4852
        %v4887 = vsel %vm662, %v4838, %v4854
        %v4888 = vsel %vm662, %v4840, %v4856
        %v4889 = vsel %vm662, %v4810, %v4826
        %v4890 = vsel %vm662, %v4812, %v4828
        %v4891 = vsel %vm662, %v4814, %v4830
        %v4892 = vsel %vm662, %v4816, %v4832
        %v4893 = vsel %vm662, %v4818, %v4834
        %v4894 = vsel %vm662, %v4820, %v4836
        %v4895 = vsel %vm662, %v4822, %v4838
        %v4896 = vsel %vm662, %v4824, %v4840
        %v4897 = vsel %vm662, %v4794, %v4810
        %v4898 = vsel %vm662, %v4796, %v4812
        %v4899 = vsel %vm662, %v4798, %v4814
        %v4900 = vsel %vm662, %v4800, %v4816
        %v4901 = vsel %vm662, %v4802, %v4818
        %v4902 = vsel %vm662, %v4804, %v4820
        %v4903 = vsel %vm662, %v4806, %v4822
        %v4904 = vsel %vm662, %v4808, %v4824
        %v4905 = vsel %vm662, %v4778, %v4794
        %v4906 = vsel %vm662, %v4780, %v4796
        %v4907 = vsel %vm662, %v4782, %v4798
        %v4908 = vsel %vm662, %v4784, %v4800
        %v4909 = vsel %vm662, %v4786, %v4802
        %v4910 = vsel %vm662, %v4788, %v4804
        %v4911 = vsel %vm662, %v4790, %v4806
        %v4912 = vsel %vm662, %v4792, %v4808
        %v4913 = vsel %vm662, %v4858, %v4778
        %v4914 = vsel %vm662, %v4860, %v4780
        %v4915 = vsel %vm662, %v4862, %v4782
        %v4916 = vsel %vm662, %v4864, %v4784
        %v4917 = vsel %vm662, %v4866, %v4786
        %v4918 = vsel %vm662, %v4868, %v4788
        %v4919 = vsel %vm662, %v4870, %v4790
        %v4920 = vsel %vm662, %v4872, %v4792
        %s4921 = scalar_lea.vmem %s4, 64
        %v4922 = vld [vmem:[%s4921] sm:$0xff]
        %v4923 = vld [vmem:[%s4921 + $0x8] sm:$0xff]
        %v4924 = vld [vmem:[%s4921 + $0x10] sm:$0xff]
        %v4925 = vld [vmem:[%s4921 + $0x18] sm:$0xff]
        %v4926 = vld [vmem:[%s4921 + $0x20] sm:$0xff]
        %v4927 = vld [vmem:[%s4921 + $0x28] sm:$0xff]
        %v4928 = vld [vmem:[%s4921 + $0x30] sm:$0xff]
        %v4929 = vld [vmem:[%s4921 + $0x38] sm:$0xff]
        %v4931 = vsel %vm720, %v4922, 0
        %v4934 = vsel %vm720, %v4923, 0
        %v4937 = vsel %vm720, %v4924, 0
        %v4940 = vsel %vm720, %v4925, 0
        %v4943 = vsel %vm720, %v4926, 0
        %v4946 = vsel %vm720, %v4927, 0
        %v4949 = vsel %vm720, %v4928, 0
        %v4952 = vsel %vm720, %v4929, 0
        %4954 = vmatpush.msra.mxu0 0.0
        %4955 = vmatpush.msra.mxu0 0.0
        %4956 = vmatpush.msra.mxu0 0.0
        %4957 = vmatpush.msra.mxu0 0.0
        %4958 = vmatpush.msra.mxu0 0.0
        %4959 = vmatpush.msra.mxu0 0.0
        %4960 = vmatpush.msra.mxu0 0.0
        %4961 = vmatpush.msra.mxu0 0.0
        %4962 = vmatpush.msra.mxu0 %v4920
        %4963 = vmatpush.msra.mxu0 %v4919
        %4964 = vmatpush.msra.mxu0 %v4918
        %4965 = vmatpush.msra.mxu0 %v4917
        %4966 = vmatpush.msra.mxu0 %v4916
        %4967 = vmatpush.msra.mxu0 %v4915
        %4968 = vmatpush.msra.mxu0 %v4914
        %4969 = vmatpush.msra.mxu0 %v4913
        %4970 = vmatmul.f32.gmra.mxu0 %v4931
        %v4971 = vpop.f32.mrf.mxu0
        %v4972 = vadd.f32 0.0, %v4971
        %4973 = vmatmul.f32.gmra.mxu0 %v4934
        %v4974 = vpop.f32.mrf.mxu0
        %v4975 = vadd.f32 0.0, %v4974
        %4976 = vmatmul.f32.gmra.mxu0 %v4937
        %v4977 = vpop.f32.mrf.mxu0
        %v4978 = vadd.f32 0.0, %v4977
        %4979 = vmatmul.f32.gmra.mxu0 %v4940
        %v4980 = vpop.f32.mrf.mxu0
        %v4981 = vadd.f32 0.0, %v4980
        %4982 = vmatmul.f32.gmra.mxu0 %v4943
        %v4983 = vpop.f32.mrf.mxu0
        %v4984 = vadd.f32 0.0, %v4983
        %4985 = vmatmul.f32.gmra.mxu0 %v4946
        %v4986 = vpop.f32.mrf.mxu0
        %v4987 = vadd.f32 0.0, %v4986
        %4988 = vmatmul.f32.gmra.mxu0 %v4949
        %v4989 = vpop.f32.mrf.mxu0
        %v4990 = vadd.f32 0.0, %v4989
        %4991 = vmatmul.f32.gmra.mxu0 %v4952
        %v4992 = vpop.f32.mrf.mxu0
        %v4993 = vadd.f32 0.0, %v4992
        %4994 = vdwg.mxu0
        %4995 = vmatpush.msra.mxu0 0.0
        %4996 = vmatpush.msra.mxu0 0.0
        %4997 = vmatpush.msra.mxu0 0.0
        %4998 = vmatpush.msra.mxu0 0.0
        %4999 = vmatpush.msra.mxu0 0.0
        %5000 = vmatpush.msra.mxu0 0.0
        %5001 = vmatpush.msra.mxu0 0.0
        %5002 = vmatpush.msra.mxu0 0.0
        %5003 = vmatpush.msra.mxu0 %v4912
        %5004 = vmatpush.msra.mxu0 %v4911
        %5005 = vmatpush.msra.mxu0 %v4910
        %5006 = vmatpush.msra.mxu0 %v4909
        %5007 = vmatpush.msra.mxu0 %v4908
        %5008 = vmatpush.msra.mxu0 %v4907
        %5009 = vmatpush.msra.mxu0 %v4906
        %5010 = vmatpush.msra.mxu0 %v4905
        %5011 = vmatmul.f32.gmra.mxu0 %v4931
        %v5012 = vpop.f32.mrf.mxu0
        %v5013 = vadd.f32 0.0, %v5012
        %5014 = vmatmul.f32.gmra.mxu0 %v4934
        %v5015 = vpop.f32.mrf.mxu0
        %v5016 = vadd.f32 0.0, %v5015
        %5017 = vmatmul.f32.gmra.mxu0 %v4937
        %v5018 = vpop.f32.mrf.mxu0
        %v5019 = vadd.f32 0.0, %v5018
        %5020 = vmatmul.f32.gmra.mxu0 %v4940
        %v5021 = vpop.f32.mrf.mxu0
        %v5022 = vadd.f32 0.0, %v5021
        %5023 = vmatmul.f32.gmra.mxu0 %v4943
        %v5024 = vpop.f32.mrf.mxu0
        %v5025 = vadd.f32 0.0, %v5024
        %5026 = vmatmul.f32.gmra.mxu0 %v4946
        %v5027 = vpop.f32.mrf.mxu0
        %v5028 = vadd.f32 0.0, %v5027
        %5029 = vmatmul.f32.gmra.mxu0 %v4949
        %v5030 = vpop.f32.mrf.mxu0
        %v5031 = vadd.f32 0.0, %v5030
        %5032 = vmatmul.f32.gmra.mxu0 %v4952
        %v5033 = vpop.f32.mrf.mxu0
        %v5034 = vadd.f32 0.0, %v5033
        %5035 = vdwg.mxu0
        %5036 = vmatpush.msra.mxu0 0.0
        %5037 = vmatpush.msra.mxu0 0.0
        %5038 = vmatpush.msra.mxu0 0.0
        %5039 = vmatpush.msra.mxu0 0.0
        %5040 = vmatpush.msra.mxu0 0.0
        %5041 = vmatpush.msra.mxu0 0.0
        %5042 = vmatpush.msra.mxu0 0.0
        %5043 = vmatpush.msra.mxu0 0.0
        %5044 = vmatpush.msra.mxu0 %v4904
        %5045 = vmatpush.msra.mxu0 %v4903
        %5046 = vmatpush.msra.mxu0 %v4902
        %5047 = vmatpush.msra.mxu0 %v4901
        %5048 = vmatpush.msra.mxu0 %v4900
        %5049 = vmatpush.msra.mxu0 %v4899
        %5050 = vmatpush.msra.mxu0 %v4898
        %5051 = vmatpush.msra.mxu0 %v4897
        %5052 = vmatmul.f32.gmra.mxu0 %v4931
        %v5053 = vpop.f32.mrf.mxu0
        %v5054 = vadd.f32 0.0, %v5053
        %5055 = vmatmul.f32.gmra.mxu0 %v4934
        %v5056 = vpop.f32.mrf.mxu0
        %v5057 = vadd.f32 0.0, %v5056
        %5058 = vmatmul.f32.gmra.mxu0 %v4937
        %v5059 = vpop.f32.mrf.mxu0
        %v5060 = vadd.f32 0.0, %v5059
        %5061 = vmatmul.f32.gmra.mxu0 %v4940
        %v5062 = vpop.f32.mrf.mxu0
        %v5063 = vadd.f32 0.0, %v5062
        %5064 = vmatmul.f32.gmra.mxu0 %v4943
        %v5065 = vpop.f32.mrf.mxu0
        %v5066 = vadd.f32 0.0, %v5065
        %5067 = vmatmul.f32.gmra.mxu0 %v4946
        %v5068 = vpop.f32.mrf.mxu0
        %v5069 = vadd.f32 0.0, %v5068
        %5070 = vmatmul.f32.gmra.mxu0 %v4949
        %v5071 = vpop.f32.mrf.mxu0
        %v5072 = vadd.f32 0.0, %v5071
        %5073 = vmatmul.f32.gmra.mxu0 %v4952
        %v5074 = vpop.f32.mrf.mxu0
        %v5075 = vadd.f32 0.0, %v5074
        %5076 = vdwg.mxu0
        %5077 = vmatpush.msra.mxu0 0.0
        %5078 = vmatpush.msra.mxu0 0.0
        %5079 = vmatpush.msra.mxu0 0.0
        %5080 = vmatpush.msra.mxu0 0.0
        %5081 = vmatpush.msra.mxu0 0.0
        %5082 = vmatpush.msra.mxu0 0.0
        %5083 = vmatpush.msra.mxu0 0.0
        %5084 = vmatpush.msra.mxu0 0.0
        %5085 = vmatpush.msra.mxu0 %v4896
        %5086 = vmatpush.msra.mxu0 %v4895
        %5087 = vmatpush.msra.mxu0 %v4894
        %5088 = vmatpush.msra.mxu0 %v4893
        %5089 = vmatpush.msra.mxu0 %v4892
        %5090 = vmatpush.msra.mxu0 %v4891
        %5091 = vmatpush.msra.mxu0 %v4890
        %5092 = vmatpush.msra.mxu0 %v4889
        %5093 = vmatmul.f32.gmra.mxu0 %v4931
        %v5094 = vpop.f32.mrf.mxu0
        %v5095 = vadd.f32 0.0, %v5094
        %5096 = vmatmul.f32.gmra.mxu0 %v4934
        %v5097 = vpop.f32.mrf.mxu0
        %v5098 = vadd.f32 0.0, %v5097
        %5099 = vmatmul.f32.gmra.mxu0 %v4937
        %v5100 = vpop.f32.mrf.mxu0
        %v5101 = vadd.f32 0.0, %v5100
        %5102 = vmatmul.f32.gmra.mxu0 %v4940
        %v5103 = vpop.f32.mrf.mxu0
        %v5104 = vadd.f32 0.0, %v5103
        %5105 = vmatmul.f32.gmra.mxu0 %v4943
        %v5106 = vpop.f32.mrf.mxu0
        %v5107 = vadd.f32 0.0, %v5106
        %5108 = vmatmul.f32.gmra.mxu0 %v4946
        %v5109 = vpop.f32.mrf.mxu0
        %v5110 = vadd.f32 0.0, %v5109
        %5111 = vmatmul.f32.gmra.mxu0 %v4949
        %v5112 = vpop.f32.mrf.mxu0
        %v5113 = vadd.f32 0.0, %v5112
        %5114 = vmatmul.f32.gmra.mxu0 %v4952
        %v5115 = vpop.f32.mrf.mxu0
        %v5116 = vadd.f32 0.0, %v5115
        %5117 = vdwg.mxu0
        %5118 = vmatpush.msra.mxu0 0.0
        %5119 = vmatpush.msra.mxu0 0.0
        %5120 = vmatpush.msra.mxu0 0.0
        %5121 = vmatpush.msra.mxu0 0.0
        %5122 = vmatpush.msra.mxu0 0.0
        %5123 = vmatpush.msra.mxu0 0.0
        %5124 = vmatpush.msra.mxu0 0.0
        %5125 = vmatpush.msra.mxu0 0.0
        %5126 = vmatpush.msra.mxu0 %v4888
        %5127 = vmatpush.msra.mxu0 %v4887
        %5128 = vmatpush.msra.mxu0 %v4886
        %5129 = vmatpush.msra.mxu0 %v4885
        %5130 = vmatpush.msra.mxu0 %v4884
        %5131 = vmatpush.msra.mxu0 %v4883
        %5132 = vmatpush.msra.mxu0 %v4882
        %5133 = vmatpush.msra.mxu0 %v4881
        %5134 = vmatmul.f32.gmra.mxu0 %v4931
        %v5135 = vpop.f32.mrf.mxu0
        %v5136 = vadd.f32 0.0, %v5135
        %5137 = vmatmul.f32.gmra.mxu0 %v4934
        %v5138 = vpop.f32.mrf.mxu0
        %v5139 = vadd.f32 0.0, %v5138
        %5140 = vmatmul.f32.gmra.mxu0 %v4937
        %v5141 = vpop.f32.mrf.mxu0
        %v5142 = vadd.f32 0.0, %v5141
        %5143 = vmatmul.f32.gmra.mxu0 %v4940
        %v5144 = vpop.f32.mrf.mxu0
        %v5145 = vadd.f32 0.0, %v5144
        %5146 = vmatmul.f32.gmra.mxu0 %v4943
        %v5147 = vpop.f32.mrf.mxu0
        %v5148 = vadd.f32 0.0, %v5147
        %5149 = vmatmul.f32.gmra.mxu0 %v4946
        %v5150 = vpop.f32.mrf.mxu0
        %v5151 = vadd.f32 0.0, %v5150
        %5152 = vmatmul.f32.gmra.mxu0 %v4949
        %v5153 = vpop.f32.mrf.mxu0
        %v5154 = vadd.f32 0.0, %v5153
        %5155 = vmatmul.f32.gmra.mxu0 %v4952
        %v5156 = vpop.f32.mrf.mxu0
        %v5157 = vadd.f32 0.0, %v5156
        %5158 = vdwg.mxu0
        %5159 = vmatpush.msra.mxu0 0.0
        %5160 = vmatpush.msra.mxu0 0.0
        %5161 = vmatpush.msra.mxu0 0.0
        %5162 = vmatpush.msra.mxu0 0.0
        %5163 = vmatpush.msra.mxu0 0.0
        %5164 = vmatpush.msra.mxu0 0.0
        %5165 = vmatpush.msra.mxu0 0.0
        %5166 = vmatpush.msra.mxu0 0.0
        %5167 = vmatpush.msra.mxu0 %v4880
        %5168 = vmatpush.msra.mxu0 %v4879
        %5169 = vmatpush.msra.mxu0 %v4878
        %5170 = vmatpush.msra.mxu0 %v4877
        %5171 = vmatpush.msra.mxu0 %v4876
        %5172 = vmatpush.msra.mxu0 %v4875
        %5173 = vmatpush.msra.mxu0 %v4874
        %5174 = vmatpush.msra.mxu0 %v4873
        %5175 = vmatmul.f32.gmra.mxu0 %v4931
        %v5176 = vpop.f32.mrf.mxu0
        %v5177 = vadd.f32 0.0, %v5176
        %5178 = vmatmul.f32.gmra.mxu0 %v4934
        %v5179 = vpop.f32.mrf.mxu0
        %v5180 = vadd.f32 0.0, %v5179
        %5181 = vmatmul.f32.gmra.mxu0 %v4937
        %v5182 = vpop.f32.mrf.mxu0
        %v5183 = vadd.f32 0.0, %v5182
        %5184 = vmatmul.f32.gmra.mxu0 %v4940
        %v5185 = vpop.f32.mrf.mxu0
        %v5186 = vadd.f32 0.0, %v5185
        %5187 = vmatmul.f32.gmra.mxu0 %v4943
        %v5188 = vpop.f32.mrf.mxu0
        %v5189 = vadd.f32 0.0, %v5188
        %5190 = vmatmul.f32.gmra.mxu0 %v4946
        %v5191 = vpop.f32.mrf.mxu0
        %v5192 = vadd.f32 0.0, %v5191
        %5193 = vmatmul.f32.gmra.mxu0 %v4949
        %v5194 = vpop.f32.mrf.mxu0
        %v5195 = vadd.f32 0.0, %v5194
        %5196 = vmatmul.f32.gmra.mxu0 %v4952
        %v5197 = vpop.f32.mrf.mxu0
        %v5198 = vadd.f32 0.0, %v5197
        %5199 = vdwg.mxu0
        %v5201 = vsel %vm720, %v4769, 0
        %v5204 = vsel %vm720, %v4770, 0
        %v5207 = vsel %vm720, %v4771, 0
        %v5210 = vsel %vm720, %v4772, 0
        %v5213 = vsel %vm720, %v4773, 0
        %v5216 = vsel %vm720, %v4774, 0
        %v5219 = vsel %vm720, %v4775, 0
        %v5222 = vsel %vm720, %v4776, 0
        %5224 = vmatpush.msra.mxu0 0.0
        %5225 = vmatpush.msra.mxu0 0.0
        %5226 = vmatpush.msra.mxu0 0.0
        %5227 = vmatpush.msra.mxu0 0.0
        %5228 = vmatpush.msra.mxu0 0.0
        %5229 = vmatpush.msra.mxu0 0.0
        %5230 = vmatpush.msra.mxu0 0.0
        %5231 = vmatpush.msra.mxu0 0.0
        %5232 = vmatpush.msra.mxu0 %v4768
        %5233 = vmatpush.msra.mxu0 %v4767
        %5234 = vmatpush.msra.mxu0 %v4766
        %5235 = vmatpush.msra.mxu0 %v4765
        %5236 = vmatpush.msra.mxu0 %v4764
        %5237 = vmatpush.msra.mxu0 %v4763
        %5238 = vmatpush.msra.mxu0 %v4762
        %5239 = vmatpush.msra.mxu0 %v4761
        %5240 = vmatmul.f32.gmra.mxu0 %v5201
        %v5241 = vpop.f32.mrf.mxu0
        %v5242 = vadd.f32 %v4972, %v5241
        %5243 = vmatmul.f32.gmra.mxu0 %v5204
        %v5244 = vpop.f32.mrf.mxu0
        %v5245 = vadd.f32 %v4975, %v5244
        %5246 = vmatmul.f32.gmra.mxu0 %v5207
        %v5247 = vpop.f32.mrf.mxu0
        %v5248 = vadd.f32 %v4978, %v5247
        %5249 = vmatmul.f32.gmra.mxu0 %v5210
        %v5250 = vpop.f32.mrf.mxu0
        %v5251 = vadd.f32 %v4981, %v5250
        %5252 = vmatmul.f32.gmra.mxu0 %v5213
        %v5253 = vpop.f32.mrf.mxu0
        %v5254 = vadd.f32 %v4984, %v5253
        %5255 = vmatmul.f32.gmra.mxu0 %v5216
        %v5256 = vpop.f32.mrf.mxu0
        %v5257 = vadd.f32 %v4987, %v5256
        %5258 = vmatmul.f32.gmra.mxu0 %v5219
        %v5259 = vpop.f32.mrf.mxu0
        %v5260 = vadd.f32 %v4990, %v5259
        %5261 = vmatmul.f32.gmra.mxu0 %v5222
        %v5262 = vpop.f32.mrf.mxu0
        %v5263 = vadd.f32 %v4993, %v5262
        %5264 = vdwg.mxu0
        %5265 = vmatpush.msra.mxu0 0.0
        %5266 = vmatpush.msra.mxu0 0.0
        %5267 = vmatpush.msra.mxu0 0.0
        %5268 = vmatpush.msra.mxu0 0.0
        %5269 = vmatpush.msra.mxu0 0.0
        %5270 = vmatpush.msra.mxu0 0.0
        %5271 = vmatpush.msra.mxu0 0.0
        %5272 = vmatpush.msra.mxu0 0.0
        %5273 = vmatpush.msra.mxu0 %v4760
        %5274 = vmatpush.msra.mxu0 %v4759
        %5275 = vmatpush.msra.mxu0 %v4758
        %5276 = vmatpush.msra.mxu0 %v4757
        %5277 = vmatpush.msra.mxu0 %v4756
        %5278 = vmatpush.msra.mxu0 %v4755
        %5279 = vmatpush.msra.mxu0 %v4754
        %5280 = vmatpush.msra.mxu0 %v4753
        %5281 = vmatmul.f32.gmra.mxu0 %v5201
        %v5282 = vpop.f32.mrf.mxu0
        %v5283 = vadd.f32 %v5013, %v5282
        %5284 = vmatmul.f32.gmra.mxu0 %v5204
        %v5285 = vpop.f32.mrf.mxu0
        %v5286 = vadd.f32 %v5016, %v5285
        %5287 = vmatmul.f32.gmra.mxu0 %v5207
        %v5288 = vpop.f32.mrf.mxu0
        %v5289 = vadd.f32 %v5019, %v5288
        %5290 = vmatmul.f32.gmra.mxu0 %v5210
        %v5291 = vpop.f32.mrf.mxu0
        %v5292 = vadd.f32 %v5022, %v5291
        %5293 = vmatmul.f32.gmra.mxu0 %v5213
        %v5294 = vpop.f32.mrf.mxu0
        %v5295 = vadd.f32 %v5025, %v5294
        %5296 = vmatmul.f32.gmra.mxu0 %v5216
        %v5297 = vpop.f32.mrf.mxu0
        %v5298 = vadd.f32 %v5028, %v5297
        %5299 = vmatmul.f32.gmra.mxu0 %v5219
        %v5300 = vpop.f32.mrf.mxu0
        %v5301 = vadd.f32 %v5031, %v5300
        %5302 = vmatmul.f32.gmra.mxu0 %v5222
        %v5303 = vpop.f32.mrf.mxu0
        %v5304 = vadd.f32 %v5034, %v5303
        %5305 = vdwg.mxu0
        %5306 = vmatpush.msra.mxu0 0.0
        %5307 = vmatpush.msra.mxu0 0.0
        %5308 = vmatpush.msra.mxu0 0.0
        %5309 = vmatpush.msra.mxu0 0.0
        %5310 = vmatpush.msra.mxu0 0.0
        %5311 = vmatpush.msra.mxu0 0.0
        %5312 = vmatpush.msra.mxu0 0.0
        %5313 = vmatpush.msra.mxu0 0.0
        %5314 = vmatpush.msra.mxu0 %v4752
        %5315 = vmatpush.msra.mxu0 %v4751
        %5316 = vmatpush.msra.mxu0 %v4750
        %5317 = vmatpush.msra.mxu0 %v4749
        %5318 = vmatpush.msra.mxu0 %v4748
        %5319 = vmatpush.msra.mxu0 %v4747
        %5320 = vmatpush.msra.mxu0 %v4746
        %5321 = vmatpush.msra.mxu0 %v4745
        %5322 = vmatmul.f32.gmra.mxu0 %v5201
        %v5323 = vpop.f32.mrf.mxu0
        %v5324 = vadd.f32 %v5054, %v5323
        %5325 = vmatmul.f32.gmra.mxu0 %v5204
        %v5326 = vpop.f32.mrf.mxu0
        %v5327 = vadd.f32 %v5057, %v5326
        %5328 = vmatmul.f32.gmra.mxu0 %v5207
        %v5329 = vpop.f32.mrf.mxu0
        %v5330 = vadd.f32 %v5060, %v5329
        %5331 = vmatmul.f32.gmra.mxu0 %v5210
        %v5332 = vpop.f32.mrf.mxu0
        %v5333 = vadd.f32 %v5063, %v5332
        %5334 = vmatmul.f32.gmra.mxu0 %v5213
        %v5335 = vpop.f32.mrf.mxu0
        %v5336 = vadd.f32 %v5066, %v5335
        %5337 = vmatmul.f32.gmra.mxu0 %v5216
        %v5338 = vpop.f32.mrf.mxu0
        %v5339 = vadd.f32 %v5069, %v5338
        %5340 = vmatmul.f32.gmra.mxu0 %v5219
        %v5341 = vpop.f32.mrf.mxu0
        %v5342 = vadd.f32 %v5072, %v5341
        %5343 = vmatmul.f32.gmra.mxu0 %v5222
        %v5344 = vpop.f32.mrf.mxu0
        %v5345 = vadd.f32 %v5075, %v5344
        %5346 = vdwg.mxu0
        %5347 = vmatpush.msra.mxu0 0.0
        %5348 = vmatpush.msra.mxu0 0.0
        %5349 = vmatpush.msra.mxu0 0.0
        %5350 = vmatpush.msra.mxu0 0.0
        %5351 = vmatpush.msra.mxu0 0.0
        %5352 = vmatpush.msra.mxu0 0.0
        %5353 = vmatpush.msra.mxu0 0.0
        %5354 = vmatpush.msra.mxu0 0.0
        %5355 = vmatpush.msra.mxu0 %v4744
        %5356 = vmatpush.msra.mxu0 %v4743
        %5357 = vmatpush.msra.mxu0 %v4742
        %5358 = vmatpush.msra.mxu0 %v4741
        %5359 = vmatpush.msra.mxu0 %v4740
        %5360 = vmatpush.msra.mxu0 %v4739
        %5361 = vmatpush.msra.mxu0 %v4738
        %5362 = vmatpush.msra.mxu0 %v4737
        %5363 = vmatmul.f32.gmra.mxu0 %v5201
        %v5364 = vpop.f32.mrf.mxu0
        %v5365 = vadd.f32 %v5095, %v5364
        %5366 = vmatmul.f32.gmra.mxu0 %v5204
        %v5367 = vpop.f32.mrf.mxu0
        %v5368 = vadd.f32 %v5098, %v5367
        %5369 = vmatmul.f32.gmra.mxu0 %v5207
        %v5370 = vpop.f32.mrf.mxu0
        %v5371 = vadd.f32 %v5101, %v5370
        %5372 = vmatmul.f32.gmra.mxu0 %v5210
        %v5373 = vpop.f32.mrf.mxu0
        %v5374 = vadd.f32 %v5104, %v5373
        %5375 = vmatmul.f32.gmra.mxu0 %v5213
        %v5376 = vpop.f32.mrf.mxu0
        %v5377 = vadd.f32 %v5107, %v5376
        %5378 = vmatmul.f32.gmra.mxu0 %v5216
        %v5379 = vpop.f32.mrf.mxu0
        %v5380 = vadd.f32 %v5110, %v5379
        %5381 = vmatmul.f32.gmra.mxu0 %v5219
        %v5382 = vpop.f32.mrf.mxu0
        %v5383 = vadd.f32 %v5113, %v5382
        %5384 = vmatmul.f32.gmra.mxu0 %v5222
        %v5385 = vpop.f32.mrf.mxu0
        %v5386 = vadd.f32 %v5116, %v5385
        %5387 = vdwg.mxu0
        %5388 = vmatpush.msra.mxu0 0.0
        %5389 = vmatpush.msra.mxu0 0.0
        %5390 = vmatpush.msra.mxu0 0.0
        %5391 = vmatpush.msra.mxu0 0.0
        %5392 = vmatpush.msra.mxu0 0.0
        %5393 = vmatpush.msra.mxu0 0.0
        %5394 = vmatpush.msra.mxu0 0.0
        %5395 = vmatpush.msra.mxu0 0.0
        %5396 = vmatpush.msra.mxu0 %v4736
        %5397 = vmatpush.msra.mxu0 %v4735
        %5398 = vmatpush.msra.mxu0 %v4734
        %5399 = vmatpush.msra.mxu0 %v4733
        %5400 = vmatpush.msra.mxu0 %v4732
        %5401 = vmatpush.msra.mxu0 %v4731
        %5402 = vmatpush.msra.mxu0 %v4730
        %5403 = vmatpush.msra.mxu0 %v4729
        %5404 = vmatmul.f32.gmra.mxu0 %v5201
        %v5405 = vpop.f32.mrf.mxu0
        %v5406 = vadd.f32 %v5136, %v5405
        %5407 = vmatmul.f32.gmra.mxu0 %v5204
        %v5408 = vpop.f32.mrf.mxu0
        %v5409 = vadd.f32 %v5139, %v5408
        %5410 = vmatmul.f32.gmra.mxu0 %v5207
        %v5411 = vpop.f32.mrf.mxu0
        %v5412 = vadd.f32 %v5142, %v5411
        %5413 = vmatmul.f32.gmra.mxu0 %v5210
        %v5414 = vpop.f32.mrf.mxu0
        %v5415 = vadd.f32 %v5145, %v5414
        %5416 = vmatmul.f32.gmra.mxu0 %v5213
        %v5417 = vpop.f32.mrf.mxu0
        %v5418 = vadd.f32 %v5148, %v5417
        %5419 = vmatmul.f32.gmra.mxu0 %v5216
        %v5420 = vpop.f32.mrf.mxu0
        %v5421 = vadd.f32 %v5151, %v5420
        %5422 = vmatmul.f32.gmra.mxu0 %v5219
        %v5423 = vpop.f32.mrf.mxu0
        %v5424 = vadd.f32 %v5154, %v5423
        %5425 = vmatmul.f32.gmra.mxu0 %v5222
        %v5426 = vpop.f32.mrf.mxu0
        %v5427 = vadd.f32 %v5157, %v5426
        %5428 = vdwg.mxu0
        %5429 = vmatpush.msra.mxu0 0.0
        %5430 = vmatpush.msra.mxu0 0.0
        %5431 = vmatpush.msra.mxu0 0.0
        %5432 = vmatpush.msra.mxu0 0.0
        %5433 = vmatpush.msra.mxu0 0.0
        %5434 = vmatpush.msra.mxu0 0.0
        %5435 = vmatpush.msra.mxu0 0.0
        %5436 = vmatpush.msra.mxu0 0.0
        %5437 = vmatpush.msra.mxu0 %v4728
        %5438 = vmatpush.msra.mxu0 %v4727
        %5439 = vmatpush.msra.mxu0 %v4726
        %5440 = vmatpush.msra.mxu0 %v4725
        %5441 = vmatpush.msra.mxu0 %v4724
        %5442 = vmatpush.msra.mxu0 %v4723
        %5443 = vmatpush.msra.mxu0 %v4722
        %5444 = vmatpush.msra.mxu0 %v4721
        %5445 = vmatmul.f32.gmra.mxu0 %v5201
        %v5446 = vpop.f32.mrf.mxu0
        %v5447 = vadd.f32 %v5177, %v5446
        %5448 = vmatmul.f32.gmra.mxu0 %v5204
        %v5449 = vpop.f32.mrf.mxu0
        %v5450 = vadd.f32 %v5180, %v5449
        %5451 = vmatmul.f32.gmra.mxu0 %v5207
        %v5452 = vpop.f32.mrf.mxu0
        %v5453 = vadd.f32 %v5183, %v5452
        %5454 = vmatmul.f32.gmra.mxu0 %v5210
        %v5455 = vpop.f32.mrf.mxu0
        %v5456 = vadd.f32 %v5186, %v5455
        %5457 = vmatmul.f32.gmra.mxu0 %v5213
        %v5458 = vpop.f32.mrf.mxu0
        %v5459 = vadd.f32 %v5189, %v5458
        %5460 = vmatmul.f32.gmra.mxu0 %v5216
        %v5461 = vpop.f32.mrf.mxu0
        %v5462 = vadd.f32 %v5192, %v5461
        %5463 = vmatmul.f32.gmra.mxu0 %v5219
        %v5464 = vpop.f32.mrf.mxu0
        %v5465 = vadd.f32 %v5195, %v5464
        %5466 = vmatmul.f32.gmra.mxu0 %v5222
        %v5467 = vpop.f32.mrf.mxu0
        %v5468 = vadd.f32 %v5198, %v5467
        %5469 = vdwg.mxu0
        %5470 = vrot.lane.b32.xlu0 %v4577, 17
        %v5471 = vpop.permute.xlu0 %5470
        %5472 = vrot.lane.b32.xlu0 %v4583, 17
        %v5473 = vpop.permute.xlu0 %5472
        %5474 = vrot.lane.b32.xlu0 %v4589, 17
        %v5475 = vpop.permute.xlu0 %5474
        %5476 = vrot.lane.b32.xlu0 %v4595, 17
        %v5477 = vpop.permute.xlu0 %5476
        %5478 = vrot.lane.b32.xlu0 %v4601, 17
        %v5479 = vpop.permute.xlu0 %5478
        %5480 = vrot.lane.b32.xlu0 %v4607, 17
        %v5481 = vpop.permute.xlu0 %5480
        %5482 = vrot.lane.b32.xlu0 %v4613, 17
        %v5483 = vpop.permute.xlu0 %5482
        %5484 = vrot.lane.b32.xlu0 %v4619, 17
        %v5485 = vpop.permute.xlu0 %5484
        %5486 = vrot.lane.b32.xlu0 %v4578, 17
        %v5487 = vpop.permute.xlu0 %5486
        %5488 = vrot.lane.b32.xlu0 %v4584, 17
        %v5489 = vpop.permute.xlu0 %5488
        %5490 = vrot.lane.b32.xlu0 %v4590, 17
        %v5491 = vpop.permute.xlu0 %5490
        %5492 = vrot.lane.b32.xlu0 %v4596, 17
        %v5493 = vpop.permute.xlu0 %5492
        %5494 = vrot.lane.b32.xlu0 %v4602, 17
        %v5495 = vpop.permute.xlu0 %5494
        %5496 = vrot.lane.b32.xlu0 %v4608, 17
        %v5497 = vpop.permute.xlu0 %5496
        %5498 = vrot.lane.b32.xlu0 %v4614, 17
        %v5499 = vpop.permute.xlu0 %5498
        %5500 = vrot.lane.b32.xlu0 %v4620, 17
        %v5501 = vpop.permute.xlu0 %5500
        %5502 = vrot.lane.b32.xlu0 %v4579, 17
        %v5503 = vpop.permute.xlu0 %5502
        %5504 = vrot.lane.b32.xlu0 %v4585, 17
        %v5505 = vpop.permute.xlu0 %5504
        %5506 = vrot.lane.b32.xlu0 %v4591, 17
        %v5507 = vpop.permute.xlu0 %5506
        %5508 = vrot.lane.b32.xlu0 %v4597, 17
        %v5509 = vpop.permute.xlu0 %5508
        %5510 = vrot.lane.b32.xlu0 %v4603, 17
        %v5511 = vpop.permute.xlu0 %5510
        %5512 = vrot.lane.b32.xlu0 %v4609, 17
        %v5513 = vpop.permute.xlu0 %5512
        %5514 = vrot.lane.b32.xlu0 %v4615, 17
        %v5515 = vpop.permute.xlu0 %5514
        %5516 = vrot.lane.b32.xlu0 %v4621, 17
        %v5517 = vpop.permute.xlu0 %5516
        %5518 = vrot.lane.b32.xlu0 %v4580, 17
        %v5519 = vpop.permute.xlu0 %5518
        %5520 = vrot.lane.b32.xlu0 %v4586, 17
        %v5521 = vpop.permute.xlu0 %5520
        %5522 = vrot.lane.b32.xlu0 %v4592, 17
        %v5523 = vpop.permute.xlu0 %5522
        %5524 = vrot.lane.b32.xlu0 %v4598, 17
        %v5525 = vpop.permute.xlu0 %5524
        %5526 = vrot.lane.b32.xlu0 %v4604, 17
        %v5527 = vpop.permute.xlu0 %5526
        %5528 = vrot.lane.b32.xlu0 %v4610, 17
        %v5529 = vpop.permute.xlu0 %5528
        %5530 = vrot.lane.b32.xlu0 %v4616, 17
        %v5531 = vpop.permute.xlu0 %5530
        %5532 = vrot.lane.b32.xlu0 %v4622, 17
        %v5533 = vpop.permute.xlu0 %5532
        %5534 = vrot.lane.b32.xlu0 %v4581, 17
        %v5535 = vpop.permute.xlu0 %5534
        %5536 = vrot.lane.b32.xlu0 %v4587, 17
        %v5537 = vpop.permute.xlu0 %5536
        %5538 = vrot.lane.b32.xlu0 %v4593, 17
        %v5539 = vpop.permute.xlu0 %5538
        %5540 = vrot.lane.b32.xlu0 %v4599, 17
        %v5541 = vpop.permute.xlu0 %5540
        %5542 = vrot.lane.b32.xlu0 %v4605, 17
        %v5543 = vpop.permute.xlu0 %5542
        %5544 = vrot.lane.b32.xlu0 %v4611, 17
        %v5545 = vpop.permute.xlu0 %5544
        %5546 = vrot.lane.b32.xlu0 %v4617, 17
        %v5547 = vpop.permute.xlu0 %5546
        %5548 = vrot.lane.b32.xlu0 %v4623, 17
        %v5549 = vpop.permute.xlu0 %5548
        %5550 = vrot.lane.b32.xlu0 %v4582, 17
        %v5551 = vpop.permute.xlu0 %5550
        %5552 = vrot.lane.b32.xlu0 %v4588, 17
        %v5553 = vpop.permute.xlu0 %5552
        %5554 = vrot.lane.b32.xlu0 %v4594, 17
        %v5555 = vpop.permute.xlu0 %5554
        %5556 = vrot.lane.b32.xlu0 %v4600, 17
        %v5557 = vpop.permute.xlu0 %5556
        %5558 = vrot.lane.b32.xlu0 %v4606, 17
        %v5559 = vpop.permute.xlu0 %5558
        %5560 = vrot.lane.b32.xlu0 %v4612, 17
        %v5561 = vpop.permute.xlu0 %5560
        %5562 = vrot.lane.b32.xlu0 %v4618, 17
        %v5563 = vpop.permute.xlu0 %5562
        %5564 = vrot.lane.b32.xlu0 %v4624, 17
        %v5565 = vpop.permute.xlu0 %5564
        %v5566 = vsel %vm1357, %v5535, %v5551
        %v5567 = vsel %vm1357, %v5537, %v5553
        %v5568 = vsel %vm1357, %v5539, %v5555
        %v5569 = vsel %vm1357, %v5541, %v5557
        %v5570 = vsel %vm1357, %v5543, %v5559
        %v5571 = vsel %vm1357, %v5545, %v5561
        %v5572 = vsel %vm1357, %v5547, %v5563
        %v5573 = vsel %vm1357, %v5549, %v5565
        %v5574 = vsel %vm1357, %v5519, %v5535
        %v5575 = vsel %vm1357, %v5521, %v5537
        %v5576 = vsel %vm1357, %v5523, %v5539
        %v5577 = vsel %vm1357, %v5525, %v5541
        %v5578 = vsel %vm1357, %v5527, %v5543
        %v5579 = vsel %vm1357, %v5529, %v5545
        %v5580 = vsel %vm1357, %v5531, %v5547
        %v5581 = vsel %vm1357, %v5533, %v5549
        %v5582 = vsel %vm1357, %v5503, %v5519
        %v5583 = vsel %vm1357, %v5505, %v5521
        %v5584 = vsel %vm1357, %v5507, %v5523
        %v5585 = vsel %vm1357, %v5509, %v5525
        %v5586 = vsel %vm1357, %v5511, %v5527
        %v5587 = vsel %vm1357, %v5513, %v5529
        %v5588 = vsel %vm1357, %v5515, %v5531
        %v5589 = vsel %vm1357, %v5517, %v5533
        %v5590 = vsel %vm1357, %v5487, %v5503
        %v5591 = vsel %vm1357, %v5489, %v5505
        %v5592 = vsel %vm1357, %v5491, %v5507
        %v5593 = vsel %vm1357, %v5493, %v5509
        %v5594 = vsel %vm1357, %v5495, %v5511
        %v5595 = vsel %vm1357, %v5497, %v5513
        %v5596 = vsel %vm1357, %v5499, %v5515
        %v5597 = vsel %vm1357, %v5501, %v5517
        %v5598 = vsel %vm1357, %v5471, %v5487
        %v5599 = vsel %vm1357, %v5473, %v5489
        %v5600 = vsel %vm1357, %v5475, %v5491
        %v5601 = vsel %vm1357, %v5477, %v5493
        %v5602 = vsel %vm1357, %v5479, %v5495
        %v5603 = vsel %vm1357, %v5481, %v5497
        %v5604 = vsel %vm1357, %v5483, %v5499
        %v5605 = vsel %vm1357, %v5485, %v5501
        %v5606 = vsel %vm1357, %v5551, %v5471
        %v5607 = vsel %vm1357, %v5553, %v5473
        %v5608 = vsel %vm1357, %v5555, %v5475
        %v5609 = vsel %vm1357, %v5557, %v5477
        %v5610 = vsel %vm1357, %v5559, %v5479
        %v5611 = vsel %vm1357, %v5561, %v5481
        %v5612 = vsel %vm1357, %v5563, %v5483
        %v5613 = vsel %vm1357, %v5565, %v5485
        %s5614 = scalar_lea.vmem %s4, 128
        %v5615 = vld [vmem:[%s5614] sm:$0xff]
        %v5616 = vld [vmem:[%s5614 + $0x8] sm:$0xff]
        %v5617 = vld [vmem:[%s5614 + $0x10] sm:$0xff]
        %v5618 = vld [vmem:[%s5614 + $0x18] sm:$0xff]
        %v5619 = vld [vmem:[%s5614 + $0x20] sm:$0xff]
        %v5620 = vld [vmem:[%s5614 + $0x28] sm:$0xff]
        %v5621 = vld [vmem:[%s5614 + $0x30] sm:$0xff]
        %v5622 = vld [vmem:[%s5614 + $0x38] sm:$0xff]
        %v5624 = vsel %vm720, %v5615, 0
        %v5627 = vsel %vm720, %v5616, 0
        %v5630 = vsel %vm720, %v5617, 0
        %v5633 = vsel %vm720, %v5618, 0
        %v5636 = vsel %vm720, %v5619, 0
        %v5639 = vsel %vm720, %v5620, 0
        %v5642 = vsel %vm720, %v5621, 0
        %v5645 = vsel %vm720, %v5622, 0
        %5647 = vmatpush.msra.mxu0 0.0
        %5648 = vmatpush.msra.mxu0 0.0
        %5649 = vmatpush.msra.mxu0 0.0
        %5650 = vmatpush.msra.mxu0 0.0
        %5651 = vmatpush.msra.mxu0 0.0
        %5652 = vmatpush.msra.mxu0 0.0
        %5653 = vmatpush.msra.mxu0 0.0
        %5654 = vmatpush.msra.mxu0 0.0
        %5655 = vmatpush.msra.mxu0 %v5613
        %5656 = vmatpush.msra.mxu0 %v5612
        %5657 = vmatpush.msra.mxu0 %v5611
        %5658 = vmatpush.msra.mxu0 %v5610
        %5659 = vmatpush.msra.mxu0 %v5609
        %5660 = vmatpush.msra.mxu0 %v5608
        %5661 = vmatpush.msra.mxu0 %v5607
        %5662 = vmatpush.msra.mxu0 %v5606
        %5663 = vmatmul.f32.gmra.mxu0 %v5624
        %v5664 = vpop.f32.mrf.mxu0
        %v5665 = vadd.f32 0.0, %v5664
        %5666 = vmatmul.f32.gmra.mxu0 %v5627
        %v5667 = vpop.f32.mrf.mxu0
        %v5668 = vadd.f32 0.0, %v5667
        %5669 = vmatmul.f32.gmra.mxu0 %v5630
        %v5670 = vpop.f32.mrf.mxu0
        %v5671 = vadd.f32 0.0, %v5670
        %5672 = vmatmul.f32.gmra.mxu0 %v5633
        %v5673 = vpop.f32.mrf.mxu0
        %v5674 = vadd.f32 0.0, %v5673
        %5675 = vmatmul.f32.gmra.mxu0 %v5636
        %v5676 = vpop.f32.mrf.mxu0
        %v5677 = vadd.f32 0.0, %v5676
        %5678 = vmatmul.f32.gmra.mxu0 %v5639
        %v5679 = vpop.f32.mrf.mxu0
        %v5680 = vadd.f32 0.0, %v5679
        %5681 = vmatmul.f32.gmra.mxu0 %v5642
        %v5682 = vpop.f32.mrf.mxu0
        %v5683 = vadd.f32 0.0, %v5682
        %5684 = vmatmul.f32.gmra.mxu0 %v5645
        %v5685 = vpop.f32.mrf.mxu0
        %v5686 = vadd.f32 0.0, %v5685
        %5687 = vdwg.mxu0
        %5688 = vmatpush.msra.mxu0 0.0
        %5689 = vmatpush.msra.mxu0 0.0
        %5690 = vmatpush.msra.mxu0 0.0
        %5691 = vmatpush.msra.mxu0 0.0
        %5692 = vmatpush.msra.mxu0 0.0
        %5693 = vmatpush.msra.mxu0 0.0
        %5694 = vmatpush.msra.mxu0 0.0
        %5695 = vmatpush.msra.mxu0 0.0
        %5696 = vmatpush.msra.mxu0 %v5605
        %5697 = vmatpush.msra.mxu0 %v5604
        %5698 = vmatpush.msra.mxu0 %v5603
        %5699 = vmatpush.msra.mxu0 %v5602
        %5700 = vmatpush.msra.mxu0 %v5601
        %5701 = vmatpush.msra.mxu0 %v5600
        %5702 = vmatpush.msra.mxu0 %v5599
        %5703 = vmatpush.msra.mxu0 %v5598
        %5704 = vmatmul.f32.gmra.mxu0 %v5624
        %v5705 = vpop.f32.mrf.mxu0
        %v5706 = vadd.f32 0.0, %v5705
        %5707 = vmatmul.f32.gmra.mxu0 %v5627
        %v5708 = vpop.f32.mrf.mxu0
        %v5709 = vadd.f32 0.0, %v5708
        %5710 = vmatmul.f32.gmra.mxu0 %v5630
        %v5711 = vpop.f32.mrf.mxu0
        %v5712 = vadd.f32 0.0, %v5711
        %5713 = vmatmul.f32.gmra.mxu0 %v5633
        %v5714 = vpop.f32.mrf.mxu0
        %v5715 = vadd.f32 0.0, %v5714
        %5716 = vmatmul.f32.gmra.mxu0 %v5636
        %v5717 = vpop.f32.mrf.mxu0
        %v5718 = vadd.f32 0.0, %v5717
        %5719 = vmatmul.f32.gmra.mxu0 %v5639
        %v5720 = vpop.f32.mrf.mxu0
        %v5721 = vadd.f32 0.0, %v5720
        %5722 = vmatmul.f32.gmra.mxu0 %v5642
        %v5723 = vpop.f32.mrf.mxu0
        %v5724 = vadd.f32 0.0, %v5723
        %5725 = vmatmul.f32.gmra.mxu0 %v5645
        %v5726 = vpop.f32.mrf.mxu0
        %v5727 = vadd.f32 0.0, %v5726
        %5728 = vdwg.mxu0
        %5729 = vmatpush.msra.mxu0 0.0
        %5730 = vmatpush.msra.mxu0 0.0
        %5731 = vmatpush.msra.mxu0 0.0
        %5732 = vmatpush.msra.mxu0 0.0
        %5733 = vmatpush.msra.mxu0 0.0
        %5734 = vmatpush.msra.mxu0 0.0
        %5735 = vmatpush.msra.mxu0 0.0
        %5736 = vmatpush.msra.mxu0 0.0
        %5737 = vmatpush.msra.mxu0 %v5597
        %5738 = vmatpush.msra.mxu0 %v5596
        %5739 = vmatpush.msra.mxu0 %v5595
        %5740 = vmatpush.msra.mxu0 %v5594
        %5741 = vmatpush.msra.mxu0 %v5593
        %5742 = vmatpush.msra.mxu0 %v5592
        %5743 = vmatpush.msra.mxu0 %v5591
        %5744 = vmatpush.msra.mxu0 %v5590
        %5745 = vmatmul.f32.gmra.mxu0 %v5624
        %v5746 = vpop.f32.mrf.mxu0
        %v5747 = vadd.f32 0.0, %v5746
        %5748 = vmatmul.f32.gmra.mxu0 %v5627
        %v5749 = vpop.f32.mrf.mxu0
        %v5750 = vadd.f32 0.0, %v5749
        %5751 = vmatmul.f32.gmra.mxu0 %v5630
        %v5752 = vpop.f32.mrf.mxu0
        %v5753 = vadd.f32 0.0, %v5752
        %5754 = vmatmul.f32.gmra.mxu0 %v5633
        %v5755 = vpop.f32.mrf.mxu0
        %v5756 = vadd.f32 0.0, %v5755
        %5757 = vmatmul.f32.gmra.mxu0 %v5636
        %v5758 = vpop.f32.mrf.mxu0
        %v5759 = vadd.f32 0.0, %v5758
        %5760 = vmatmul.f32.gmra.mxu0 %v5639
        %v5761 = vpop.f32.mrf.mxu0
        %v5762 = vadd.f32 0.0, %v5761
        %5763 = vmatmul.f32.gmra.mxu0 %v5642
        %v5764 = vpop.f32.mrf.mxu0
        %v5765 = vadd.f32 0.0, %v5764
        %5766 = vmatmul.f32.gmra.mxu0 %v5645
        %v5767 = vpop.f32.mrf.mxu0
        %v5768 = vadd.f32 0.0, %v5767
        %5769 = vdwg.mxu0
        %5770 = vmatpush.msra.mxu0 0.0
        %5771 = vmatpush.msra.mxu0 0.0
        %5772 = vmatpush.msra.mxu0 0.0
        %5773 = vmatpush.msra.mxu0 0.0
        %5774 = vmatpush.msra.mxu0 0.0
        %5775 = vmatpush.msra.mxu0 0.0
        %5776 = vmatpush.msra.mxu0 0.0
        %5777 = vmatpush.msra.mxu0 0.0
        %5778 = vmatpush.msra.mxu0 %v5589
        %5779 = vmatpush.msra.mxu0 %v5588
        %5780 = vmatpush.msra.mxu0 %v5587
        %5781 = vmatpush.msra.mxu0 %v5586
        %5782 = vmatpush.msra.mxu0 %v5585
        %5783 = vmatpush.msra.mxu0 %v5584
        %5784 = vmatpush.msra.mxu0 %v5583
        %5785 = vmatpush.msra.mxu0 %v5582
        %5786 = vmatmul.f32.gmra.mxu0 %v5624
        %v5787 = vpop.f32.mrf.mxu0
        %v5788 = vadd.f32 0.0, %v5787
        %5789 = vmatmul.f32.gmra.mxu0 %v5627
        %v5790 = vpop.f32.mrf.mxu0
        %v5791 = vadd.f32 0.0, %v5790
        %5792 = vmatmul.f32.gmra.mxu0 %v5630
        %v5793 = vpop.f32.mrf.mxu0
        %v5794 = vadd.f32 0.0, %v5793
        %5795 = vmatmul.f32.gmra.mxu0 %v5633
        %v5796 = vpop.f32.mrf.mxu0
        %v5797 = vadd.f32 0.0, %v5796
        %5798 = vmatmul.f32.gmra.mxu0 %v5636
        %v5799 = vpop.f32.mrf.mxu0
        %v5800 = vadd.f32 0.0, %v5799
        %5801 = vmatmul.f32.gmra.mxu0 %v5639
        %v5802 = vpop.f32.mrf.mxu0
        %v5803 = vadd.f32 0.0, %v5802
        %5804 = vmatmul.f32.gmra.mxu0 %v5642
        %v5805 = vpop.f32.mrf.mxu0
        %v5806 = vadd.f32 0.0, %v5805
        %5807 = vmatmul.f32.gmra.mxu0 %v5645
        %v5808 = vpop.f32.mrf.mxu0
        %v5809 = vadd.f32 0.0, %v5808
        %5810 = vdwg.mxu0
        %5811 = vmatpush.msra.mxu0 0.0
        %5812 = vmatpush.msra.mxu0 0.0
        %5813 = vmatpush.msra.mxu0 0.0
        %5814 = vmatpush.msra.mxu0 0.0
        %5815 = vmatpush.msra.mxu0 0.0
        %5816 = vmatpush.msra.mxu0 0.0
        %5817 = vmatpush.msra.mxu0 0.0
        %5818 = vmatpush.msra.mxu0 0.0
        %5819 = vmatpush.msra.mxu0 %v5581
        %5820 = vmatpush.msra.mxu0 %v5580
        %5821 = vmatpush.msra.mxu0 %v5579
        %5822 = vmatpush.msra.mxu0 %v5578
        %5823 = vmatpush.msra.mxu0 %v5577
        %5824 = vmatpush.msra.mxu0 %v5576
        %5825 = vmatpush.msra.mxu0 %v5575
        %5826 = vmatpush.msra.mxu0 %v5574
        %5827 = vmatmul.f32.gmra.mxu0 %v5624
        %v5828 = vpop.f32.mrf.mxu0
        %v5829 = vadd.f32 0.0, %v5828
        %5830 = vmatmul.f32.gmra.mxu0 %v5627
        %v5831 = vpop.f32.mrf.mxu0
        %v5832 = vadd.f32 0.0, %v5831
        %5833 = vmatmul.f32.gmra.mxu0 %v5630
        %v5834 = vpop.f32.mrf.mxu0
        %v5835 = vadd.f32 0.0, %v5834
        %5836 = vmatmul.f32.gmra.mxu0 %v5633
        %v5837 = vpop.f32.mrf.mxu0
        %v5838 = vadd.f32 0.0, %v5837
        %5839 = vmatmul.f32.gmra.mxu0 %v5636
        %v5840 = vpop.f32.mrf.mxu0
        %v5841 = vadd.f32 0.0, %v5840
        %5842 = vmatmul.f32.gmra.mxu0 %v5639
        %v5843 = vpop.f32.mrf.mxu0
        %v5844 = vadd.f32 0.0, %v5843
        %5845 = vmatmul.f32.gmra.mxu0 %v5642
        %v5846 = vpop.f32.mrf.mxu0
        %v5847 = vadd.f32 0.0, %v5846
        %5848 = vmatmul.f32.gmra.mxu0 %v5645
        %v5849 = vpop.f32.mrf.mxu0
        %v5850 = vadd.f32 0.0, %v5849
        %5851 = vdwg.mxu0
        %5852 = vmatpush.msra.mxu0 0.0
        %5853 = vmatpush.msra.mxu0 0.0
        %5854 = vmatpush.msra.mxu0 0.0
        %5855 = vmatpush.msra.mxu0 0.0
        %5856 = vmatpush.msra.mxu0 0.0
        %5857 = vmatpush.msra.mxu0 0.0
        %5858 = vmatpush.msra.mxu0 0.0
        %5859 = vmatpush.msra.mxu0 0.0
        %5860 = vmatpush.msra.mxu0 %v5573
        %5861 = vmatpush.msra.mxu0 %v5572
        %5862 = vmatpush.msra.mxu0 %v5571
        %5863 = vmatpush.msra.mxu0 %v5570
        %5864 = vmatpush.msra.mxu0 %v5569
        %5865 = vmatpush.msra.mxu0 %v5568
        %5866 = vmatpush.msra.mxu0 %v5567
        %5867 = vmatpush.msra.mxu0 %v5566
        %5868 = vmatmul.f32.gmra.mxu0 %v5624
        %v5869 = vpop.f32.mrf.mxu0
        %v5870 = vadd.f32 0.0, %v5869
        %5871 = vmatmul.f32.gmra.mxu0 %v5627
        %v5872 = vpop.f32.mrf.mxu0
        %v5873 = vadd.f32 0.0, %v5872
        %5874 = vmatmul.f32.gmra.mxu0 %v5630
        %v5875 = vpop.f32.mrf.mxu0
        %v5876 = vadd.f32 0.0, %v5875
        %5877 = vmatmul.f32.gmra.mxu0 %v5633
        %v5878 = vpop.f32.mrf.mxu0
        %v5879 = vadd.f32 0.0, %v5878
        %5880 = vmatmul.f32.gmra.mxu0 %v5636
        %v5881 = vpop.f32.mrf.mxu0
        %v5882 = vadd.f32 0.0, %v5881
        %5883 = vmatmul.f32.gmra.mxu0 %v5639
        %v5884 = vpop.f32.mrf.mxu0
        %v5885 = vadd.f32 0.0, %v5884
        %5886 = vmatmul.f32.gmra.mxu0 %v5642
        %v5887 = vpop.f32.mrf.mxu0
        %v5888 = vadd.f32 0.0, %v5887
        %5889 = vmatmul.f32.gmra.mxu0 %v5645
        %v5890 = vpop.f32.mrf.mxu0
        %v5891 = vadd.f32 0.0, %v5890
        %5892 = vdwg.mxu0
        %v5893 = vadd.f32 %v5242, %v5665
        %v5894 = vadd.f32 %v5283, %v5706
        %v5895 = vadd.f32 %v5324, %v5747
        %v5896 = vadd.f32 %v5365, %v5788
        %v5897 = vadd.f32 %v5406, %v5829
        %v5898 = vadd.f32 %v5447, %v5870
        %v5899 = vadd.f32 %v5245, %v5668
        %v5900 = vadd.f32 %v5286, %v5709
        %v5901 = vadd.f32 %v5327, %v5750
        %v5902 = vadd.f32 %v5368, %v5791
        %v5903 = vadd.f32 %v5409, %v5832
        %v5904 = vadd.f32 %v5450, %v5873
        %v5905 = vadd.f32 %v5248, %v5671
        %v5906 = vadd.f32 %v5289, %v5712
        %v5907 = vadd.f32 %v5330, %v5753
        %v5908 = vadd.f32 %v5371, %v5794
        %v5909 = vadd.f32 %v5412, %v5835
        %v5910 = vadd.f32 %v5453, %v5876
        %v5911 = vadd.f32 %v5251, %v5674
        %v5912 = vadd.f32 %v5292, %v5715
        %v5913 = vadd.f32 %v5333, %v5756
        %v5914 = vadd.f32 %v5374, %v5797
        %v5915 = vadd.f32 %v5415, %v5838
        %v5916 = vadd.f32 %v5456, %v5879
        %v5917 = vadd.f32 %v5254, %v5677
        %v5918 = vadd.f32 %v5295, %v5718
        %v5919 = vadd.f32 %v5336, %v5759
        %v5920 = vadd.f32 %v5377, %v5800
        %v5921 = vadd.f32 %v5418, %v5841
        %v5922 = vadd.f32 %v5459, %v5882
        %v5923 = vadd.f32 %v5257, %v5680
        %v5924 = vadd.f32 %v5298, %v5721
        %v5925 = vadd.f32 %v5339, %v5762
        %v5926 = vadd.f32 %v5380, %v5803
        %v5927 = vadd.f32 %v5421, %v5844
        %v5928 = vadd.f32 %v5462, %v5885
        %v5929 = vadd.f32 %v5260, %v5683
        %v5930 = vadd.f32 %v5301, %v5724
        %v5931 = vadd.f32 %v5342, %v5765
        %v5932 = vadd.f32 %v5383, %v5806
        %v5933 = vadd.f32 %v5424, %v5847
        %v5934 = vadd.f32 %v5465, %v5888
        %v5935 = vadd.f32 %v5263, %v5686
        %v5936 = vadd.f32 %v5304, %v5727
        %v5937 = vadd.f32 %v5345, %v5768
        %v5938 = vadd.f32 %v5386, %v5809
        %v5939 = vadd.f32 %v5427, %v5850
        %v5940 = vadd.f32 %v5468, %v5891
        %5941 = vrot.lane.b32.xlu0 %v4577, 1
        %v5942 = vpop.permute.xlu0 %5941
        %5943 = vrot.lane.b32.xlu0 %v4583, 1
        %v5944 = vpop.permute.xlu0 %5943
        %5945 = vrot.lane.b32.xlu0 %v4589, 1
        %v5946 = vpop.permute.xlu0 %5945
        %5947 = vrot.lane.b32.xlu0 %v4595, 1
        %v5948 = vpop.permute.xlu0 %5947
        %5949 = vrot.lane.b32.xlu0 %v4601, 1
        %v5950 = vpop.permute.xlu0 %5949
        %5951 = vrot.lane.b32.xlu0 %v4607, 1
        %v5952 = vpop.permute.xlu0 %5951
        %5953 = vrot.lane.b32.xlu0 %v4613, 1
        %v5954 = vpop.permute.xlu0 %5953
        %5955 = vrot.lane.b32.xlu0 %v4619, 1
        %v5956 = vpop.permute.xlu0 %5955
        %5957 = vrot.lane.b32.xlu0 %v4578, 1
        %v5958 = vpop.permute.xlu0 %5957
        %5959 = vrot.lane.b32.xlu0 %v4584, 1
        %v5960 = vpop.permute.xlu0 %5959
        %5961 = vrot.lane.b32.xlu0 %v4590, 1
        %v5962 = vpop.permute.xlu0 %5961
        %5963 = vrot.lane.b32.xlu0 %v4596, 1
        %v5964 = vpop.permute.xlu0 %5963
        %5965 = vrot.lane.b32.xlu0 %v4602, 1
        %v5966 = vpop.permute.xlu0 %5965
        %5967 = vrot.lane.b32.xlu0 %v4608, 1
        %v5968 = vpop.permute.xlu0 %5967
        %5969 = vrot.lane.b32.xlu0 %v4614, 1
        %v5970 = vpop.permute.xlu0 %5969
        %5971 = vrot.lane.b32.xlu0 %v4620, 1
        %v5972 = vpop.permute.xlu0 %5971
        %5973 = vrot.lane.b32.xlu0 %v4579, 1
        %v5974 = vpop.permute.xlu0 %5973
        %5975 = vrot.lane.b32.xlu0 %v4585, 1
        %v5976 = vpop.permute.xlu0 %5975
        %5977 = vrot.lane.b32.xlu0 %v4591, 1
        %v5978 = vpop.permute.xlu0 %5977
        %5979 = vrot.lane.b32.xlu0 %v4597, 1
        %v5980 = vpop.permute.xlu0 %5979
        %5981 = vrot.lane.b32.xlu0 %v4603, 1
        %v5982 = vpop.permute.xlu0 %5981
        %5983 = vrot.lane.b32.xlu0 %v4609, 1
        %v5984 = vpop.permute.xlu0 %5983
        %5985 = vrot.lane.b32.xlu0 %v4615, 1
        %v5986 = vpop.permute.xlu0 %5985
        %5987 = vrot.lane.b32.xlu0 %v4621, 1
        %v5988 = vpop.permute.xlu0 %5987
        %5989 = vrot.lane.b32.xlu0 %v4580, 1
        %v5990 = vpop.permute.xlu0 %5989
        %5991 = vrot.lane.b32.xlu0 %v4586, 1
        %v5992 = vpop.permute.xlu0 %5991
        %5993 = vrot.lane.b32.xlu0 %v4592, 1
        %v5994 = vpop.permute.xlu0 %5993
        %5995 = vrot.lane.b32.xlu0 %v4598, 1
        %v5996 = vpop.permute.xlu0 %5995
        %5997 = vrot.lane.b32.xlu0 %v4604, 1
        %v5998 = vpop.permute.xlu0 %5997
        %5999 = vrot.lane.b32.xlu0 %v4610, 1
        %v6000 = vpop.permute.xlu0 %5999
        %6001 = vrot.lane.b32.xlu0 %v4616, 1
        %v6002 = vpop.permute.xlu0 %6001
        %6003 = vrot.lane.b32.xlu0 %v4622, 1
        %v6004 = vpop.permute.xlu0 %6003
        %6005 = vrot.lane.b32.xlu0 %v4581, 1
        %v6006 = vpop.permute.xlu0 %6005
        %6007 = vrot.lane.b32.xlu0 %v4587, 1
        %v6008 = vpop.permute.xlu0 %6007
        %6009 = vrot.lane.b32.xlu0 %v4593, 1
        %v6010 = vpop.permute.xlu0 %6009
        %6011 = vrot.lane.b32.xlu0 %v4599, 1
        %v6012 = vpop.permute.xlu0 %6011
        %6013 = vrot.lane.b32.xlu0 %v4605, 1
        %v6014 = vpop.permute.xlu0 %6013
        %6015 = vrot.lane.b32.xlu0 %v4611, 1
        %v6016 = vpop.permute.xlu0 %6015
        %6017 = vrot.lane.b32.xlu0 %v4617, 1
        %v6018 = vpop.permute.xlu0 %6017
        %6019 = vrot.lane.b32.xlu0 %v4623, 1
        %v6020 = vpop.permute.xlu0 %6019
        %6021 = vrot.lane.b32.xlu0 %v4582, 1
        %v6022 = vpop.permute.xlu0 %6021
        %6023 = vrot.lane.b32.xlu0 %v4588, 1
        %v6024 = vpop.permute.xlu0 %6023
        %6025 = vrot.lane.b32.xlu0 %v4594, 1
        %v6026 = vpop.permute.xlu0 %6025
        %6027 = vrot.lane.b32.xlu0 %v4600, 1
        %v6028 = vpop.permute.xlu0 %6027
        %6029 = vrot.lane.b32.xlu0 %v4606, 1
        %v6030 = vpop.permute.xlu0 %6029
        %6031 = vrot.lane.b32.xlu0 %v4612, 1
        %v6032 = vpop.permute.xlu0 %6031
        %6033 = vrot.lane.b32.xlu0 %v4618, 1
        %v6034 = vpop.permute.xlu0 %6033
        %6035 = vrot.lane.b32.xlu0 %v4624, 1
        %v6036 = vpop.permute.xlu0 %6035
        %v6037 = vsel %vm1829, %v6006, %v6022
        %v6038 = vsel %vm1829, %v6008, %v6024
        %v6039 = vsel %vm1829, %v6010, %v6026
        %v6040 = vsel %vm1829, %v6012, %v6028
        %v6041 = vsel %vm1829, %v6014, %v6030
        %v6042 = vsel %vm1829, %v6016, %v6032
        %v6043 = vsel %vm1829, %v6018, %v6034
        %v6044 = vsel %vm1829, %v6020, %v6036
        %v6045 = vsel %vm1829, %v5990, %v6006
        %v6046 = vsel %vm1829, %v5992, %v6008
        %v6047 = vsel %vm1829, %v5994, %v6010
        %v6048 = vsel %vm1829, %v5996, %v6012
        %v6049 = vsel %vm1829, %v5998, %v6014
        %v6050 = vsel %vm1829, %v6000, %v6016
        %v6051 = vsel %vm1829, %v6002, %v6018
        %v6052 = vsel %vm1829, %v6004, %v6020
        %v6053 = vsel %vm1829, %v5974, %v5990
        %v6054 = vsel %vm1829, %v5976, %v5992
        %v6055 = vsel %vm1829, %v5978, %v5994
        %v6056 = vsel %vm1829, %v5980, %v5996
        %v6057 = vsel %vm1829, %v5982, %v5998
        %v6058 = vsel %vm1829, %v5984, %v6000
        %v6059 = vsel %vm1829, %v5986, %v6002
        %v6060 = vsel %vm1829, %v5988, %v6004
        %v6061 = vsel %vm1829, %v5958, %v5974
        %v6062 = vsel %vm1829, %v5960, %v5976
        %v6063 = vsel %vm1829, %v5962, %v5978
        %v6064 = vsel %vm1829, %v5964, %v5980
        %v6065 = vsel %vm1829, %v5966, %v5982
        %v6066 = vsel %vm1829, %v5968, %v5984
        %v6067 = vsel %vm1829, %v5970, %v5986
        %v6068 = vsel %vm1829, %v5972, %v5988
        %v6069 = vsel %vm1829, %v5942, %v5958
        %v6070 = vsel %vm1829, %v5944, %v5960
        %v6071 = vsel %vm1829, %v5946, %v5962
        %v6072 = vsel %vm1829, %v5948, %v5964
        %v6073 = vsel %vm1829, %v5950, %v5966
        %v6074 = vsel %vm1829, %v5952, %v5968
        %v6075 = vsel %vm1829, %v5954, %v5970
        %v6076 = vsel %vm1829, %v5956, %v5972
        %v6077 = vsel %vm1829, %v6022, %v5942
        %v6078 = vsel %vm1829, %v6024, %v5944
        %v6079 = vsel %vm1829, %v6026, %v5946
        %v6080 = vsel %vm1829, %v6028, %v5948
        %v6081 = vsel %vm1829, %v6030, %v5950
        %v6082 = vsel %vm1829, %v6032, %v5952
        %v6083 = vsel %vm1829, %v6034, %v5954
        %v6084 = vsel %vm1829, %v6036, %v5956
        %s6085 = scalar_lea.vmem %s4, 192
        %v6086 = vld [vmem:[%s6085] sm:$0xff]
        %v6087 = vld [vmem:[%s6085 + $0x8] sm:$0xff]
        %v6088 = vld [vmem:[%s6085 + $0x10] sm:$0xff]
        %v6089 = vld [vmem:[%s6085 + $0x18] sm:$0xff]
        %v6090 = vld [vmem:[%s6085 + $0x20] sm:$0xff]
        %v6091 = vld [vmem:[%s6085 + $0x28] sm:$0xff]
        %v6092 = vld [vmem:[%s6085 + $0x30] sm:$0xff]
        %v6093 = vld [vmem:[%s6085 + $0x38] sm:$0xff]
        %v6095 = vsel %vm720, %v6086, 0
        %v6098 = vsel %vm720, %v6087, 0
        %v6101 = vsel %vm720, %v6088, 0
        %v6104 = vsel %vm720, %v6089, 0
        %v6107 = vsel %vm720, %v6090, 0
        %v6110 = vsel %vm720, %v6091, 0
        %v6113 = vsel %vm720, %v6092, 0
        %v6116 = vsel %vm720, %v6093, 0
        %6118 = vmatpush.msra.mxu0 0.0
        %6119 = vmatpush.msra.mxu0 0.0
        %6120 = vmatpush.msra.mxu0 0.0
        %6121 = vmatpush.msra.mxu0 0.0
        %6122 = vmatpush.msra.mxu0 0.0
        %6123 = vmatpush.msra.mxu0 0.0
        %6124 = vmatpush.msra.mxu0 0.0
        %6125 = vmatpush.msra.mxu0 0.0
        %6126 = vmatpush.msra.mxu0 %v6084
        %6127 = vmatpush.msra.mxu0 %v6083
        %6128 = vmatpush.msra.mxu0 %v6082
        %6129 = vmatpush.msra.mxu0 %v6081
        %6130 = vmatpush.msra.mxu0 %v6080
        %6131 = vmatpush.msra.mxu0 %v6079
        %6132 = vmatpush.msra.mxu0 %v6078
        %6133 = vmatpush.msra.mxu0 %v6077
        %6134 = vmatmul.f32.gmra.mxu0 %v6095
        %v6135 = vpop.f32.mrf.mxu0
        %v6136 = vadd.f32 0.0, %v6135
        %6137 = vmatmul.f32.gmra.mxu0 %v6098
        %v6138 = vpop.f32.mrf.mxu0
        %v6139 = vadd.f32 0.0, %v6138
        %6140 = vmatmul.f32.gmra.mxu0 %v6101
        %v6141 = vpop.f32.mrf.mxu0
        %v6142 = vadd.f32 0.0, %v6141
        %6143 = vmatmul.f32.gmra.mxu0 %v6104
        %v6144 = vpop.f32.mrf.mxu0
        %v6145 = vadd.f32 0.0, %v6144
        %6146 = vmatmul.f32.gmra.mxu0 %v6107
        %v6147 = vpop.f32.mrf.mxu0
        %v6148 = vadd.f32 0.0, %v6147
        %6149 = vmatmul.f32.gmra.mxu0 %v6110
        %v6150 = vpop.f32.mrf.mxu0
        %v6151 = vadd.f32 0.0, %v6150
        %6152 = vmatmul.f32.gmra.mxu0 %v6113
        %v6153 = vpop.f32.mrf.mxu0
        %v6154 = vadd.f32 0.0, %v6153
        %6155 = vmatmul.f32.gmra.mxu0 %v6116
        %v6156 = vpop.f32.mrf.mxu0
        %v6157 = vadd.f32 0.0, %v6156
        %6158 = vdwg.mxu0
        %6159 = vmatpush.msra.mxu0 0.0
        %6160 = vmatpush.msra.mxu0 0.0
        %6161 = vmatpush.msra.mxu0 0.0
        %6162 = vmatpush.msra.mxu0 0.0
        %6163 = vmatpush.msra.mxu0 0.0
        %6164 = vmatpush.msra.mxu0 0.0
        %6165 = vmatpush.msra.mxu0 0.0
        %6166 = vmatpush.msra.mxu0 0.0
        %6167 = vmatpush.msra.mxu0 %v6076
        %6168 = vmatpush.msra.mxu0 %v6075
        %6169 = vmatpush.msra.mxu0 %v6074
        %6170 = vmatpush.msra.mxu0 %v6073
        %6171 = vmatpush.msra.mxu0 %v6072
        %6172 = vmatpush.msra.mxu0 %v6071
        %6173 = vmatpush.msra.mxu0 %v6070
        %6174 = vmatpush.msra.mxu0 %v6069
        %6175 = vmatmul.f32.gmra.mxu0 %v6095
        %v6176 = vpop.f32.mrf.mxu0
        %v6177 = vadd.f32 0.0, %v6176
        %6178 = vmatmul.f32.gmra.mxu0 %v6098
        %v6179 = vpop.f32.mrf.mxu0
        %v6180 = vadd.f32 0.0, %v6179
        %6181 = vmatmul.f32.gmra.mxu0 %v6101
        %v6182 = vpop.f32.mrf.mxu0
        %v6183 = vadd.f32 0.0, %v6182
        %6184 = vmatmul.f32.gmra.mxu0 %v6104
        %v6185 = vpop.f32.mrf.mxu0
        %v6186 = vadd.f32 0.0, %v6185
        %6187 = vmatmul.f32.gmra.mxu0 %v6107
        %v6188 = vpop.f32.mrf.mxu0
        %v6189 = vadd.f32 0.0, %v6188
        %6190 = vmatmul.f32.gmra.mxu0 %v6110
        %v6191 = vpop.f32.mrf.mxu0
        %v6192 = vadd.f32 0.0, %v6191
        %6193 = vmatmul.f32.gmra.mxu0 %v6113
        %v6194 = vpop.f32.mrf.mxu0
        %v6195 = vadd.f32 0.0, %v6194
        %6196 = vmatmul.f32.gmra.mxu0 %v6116
        %v6197 = vpop.f32.mrf.mxu0
        %v6198 = vadd.f32 0.0, %v6197
        %6199 = vdwg.mxu0
        %6200 = vmatpush.msra.mxu0 0.0
        %6201 = vmatpush.msra.mxu0 0.0
        %6202 = vmatpush.msra.mxu0 0.0
        %6203 = vmatpush.msra.mxu0 0.0
        %6204 = vmatpush.msra.mxu0 0.0
        %6205 = vmatpush.msra.mxu0 0.0
        %6206 = vmatpush.msra.mxu0 0.0
        %6207 = vmatpush.msra.mxu0 0.0
        %6208 = vmatpush.msra.mxu0 %v6068
        %6209 = vmatpush.msra.mxu0 %v6067
        %6210 = vmatpush.msra.mxu0 %v6066
        %6211 = vmatpush.msra.mxu0 %v6065
        %6212 = vmatpush.msra.mxu0 %v6064
        %6213 = vmatpush.msra.mxu0 %v6063
        %6214 = vmatpush.msra.mxu0 %v6062
        %6215 = vmatpush.msra.mxu0 %v6061
        %6216 = vmatmul.f32.gmra.mxu0 %v6095
        %v6217 = vpop.f32.mrf.mxu0
        %v6218 = vadd.f32 0.0, %v6217
        %6219 = vmatmul.f32.gmra.mxu0 %v6098
        %v6220 = vpop.f32.mrf.mxu0
        %v6221 = vadd.f32 0.0, %v6220
        %6222 = vmatmul.f32.gmra.mxu0 %v6101
        %v6223 = vpop.f32.mrf.mxu0
        %v6224 = vadd.f32 0.0, %v6223
        %6225 = vmatmul.f32.gmra.mxu0 %v6104
        %v6226 = vpop.f32.mrf.mxu0
        %v6227 = vadd.f32 0.0, %v6226
        %6228 = vmatmul.f32.gmra.mxu0 %v6107
        %v6229 = vpop.f32.mrf.mxu0
        %v6230 = vadd.f32 0.0, %v6229
        %6231 = vmatmul.f32.gmra.mxu0 %v6110
        %v6232 = vpop.f32.mrf.mxu0
        %v6233 = vadd.f32 0.0, %v6232
        %6234 = vmatmul.f32.gmra.mxu0 %v6113
        %v6235 = vpop.f32.mrf.mxu0
        %v6236 = vadd.f32 0.0, %v6235
        %6237 = vmatmul.f32.gmra.mxu0 %v6116
        %v6238 = vpop.f32.mrf.mxu0
        %v6239 = vadd.f32 0.0, %v6238
        %6240 = vdwg.mxu0
        %6241 = vmatpush.msra.mxu0 0.0
        %6242 = vmatpush.msra.mxu0 0.0
        %6243 = vmatpush.msra.mxu0 0.0
        %6244 = vmatpush.msra.mxu0 0.0
        %6245 = vmatpush.msra.mxu0 0.0
        %6246 = vmatpush.msra.mxu0 0.0
        %6247 = vmatpush.msra.mxu0 0.0
        %6248 = vmatpush.msra.mxu0 0.0
        %6249 = vmatpush.msra.mxu0 %v6060
        %6250 = vmatpush.msra.mxu0 %v6059
        %6251 = vmatpush.msra.mxu0 %v6058
        %6252 = vmatpush.msra.mxu0 %v6057
        %6253 = vmatpush.msra.mxu0 %v6056
        %6254 = vmatpush.msra.mxu0 %v6055
        %6255 = vmatpush.msra.mxu0 %v6054
        %6256 = vmatpush.msra.mxu0 %v6053
        %6257 = vmatmul.f32.gmra.mxu0 %v6095
        %v6258 = vpop.f32.mrf.mxu0
        %v6259 = vadd.f32 0.0, %v6258
        %6260 = vmatmul.f32.gmra.mxu0 %v6098
        %v6261 = vpop.f32.mrf.mxu0
        %v6262 = vadd.f32 0.0, %v6261
        %6263 = vmatmul.f32.gmra.mxu0 %v6101
        %v6264 = vpop.f32.mrf.mxu0
        %v6265 = vadd.f32 0.0, %v6264
        %6266 = vmatmul.f32.gmra.mxu0 %v6104
        %v6267 = vpop.f32.mrf.mxu0
        %v6268 = vadd.f32 0.0, %v6267
        %6269 = vmatmul.f32.gmra.mxu0 %v6107
        %v6270 = vpop.f32.mrf.mxu0
        %v6271 = vadd.f32 0.0, %v6270
        %6272 = vmatmul.f32.gmra.mxu0 %v6110
        %v6273 = vpop.f32.mrf.mxu0
        %v6274 = vadd.f32 0.0, %v6273
        %6275 = vmatmul.f32.gmra.mxu0 %v6113
        %v6276 = vpop.f32.mrf.mxu0
        %v6277 = vadd.f32 0.0, %v6276
        %6278 = vmatmul.f32.gmra.mxu0 %v6116
        %v6279 = vpop.f32.mrf.mxu0
        %v6280 = vadd.f32 0.0, %v6279
        %6281 = vdwg.mxu0
        %6282 = vmatpush.msra.mxu0 0.0
        %6283 = vmatpush.msra.mxu0 0.0
        %6284 = vmatpush.msra.mxu0 0.0
        %6285 = vmatpush.msra.mxu0 0.0
        %6286 = vmatpush.msra.mxu0 0.0
        %6287 = vmatpush.msra.mxu0 0.0
        %6288 = vmatpush.msra.mxu0 0.0
        %6289 = vmatpush.msra.mxu0 0.0
        %6290 = vmatpush.msra.mxu0 %v6052
        %6291 = vmatpush.msra.mxu0 %v6051
        %6292 = vmatpush.msra.mxu0 %v6050
        %6293 = vmatpush.msra.mxu0 %v6049
        %6294 = vmatpush.msra.mxu0 %v6048
        %6295 = vmatpush.msra.mxu0 %v6047
        %6296 = vmatpush.msra.mxu0 %v6046
        %6297 = vmatpush.msra.mxu0 %v6045
        %6298 = vmatmul.f32.gmra.mxu0 %v6095
        %v6299 = vpop.f32.mrf.mxu0
        %v6300 = vadd.f32 0.0, %v6299
        %6301 = vmatmul.f32.gmra.mxu0 %v6098
        %v6302 = vpop.f32.mrf.mxu0
        %v6303 = vadd.f32 0.0, %v6302
        %6304 = vmatmul.f32.gmra.mxu0 %v6101
        %v6305 = vpop.f32.mrf.mxu0
        %v6306 = vadd.f32 0.0, %v6305
        %6307 = vmatmul.f32.gmra.mxu0 %v6104
        %v6308 = vpop.f32.mrf.mxu0
        %v6309 = vadd.f32 0.0, %v6308
        %6310 = vmatmul.f32.gmra.mxu0 %v6107
        %v6311 = vpop.f32.mrf.mxu0
        %v6312 = vadd.f32 0.0, %v6311
        %6313 = vmatmul.f32.gmra.mxu0 %v6110
        %v6314 = vpop.f32.mrf.mxu0
        %v6315 = vadd.f32 0.0, %v6314
        %6316 = vmatmul.f32.gmra.mxu0 %v6113
        %v6317 = vpop.f32.mrf.mxu0
        %v6318 = vadd.f32 0.0, %v6317
        %6319 = vmatmul.f32.gmra.mxu0 %v6116
        %v6320 = vpop.f32.mrf.mxu0
        %v6321 = vadd.f32 0.0, %v6320
        %6322 = vdwg.mxu0
        %6323 = vmatpush.msra.mxu0 0.0
        %6324 = vmatpush.msra.mxu0 0.0
        %6325 = vmatpush.msra.mxu0 0.0
        %6326 = vmatpush.msra.mxu0 0.0
        %6327 = vmatpush.msra.mxu0 0.0
        %6328 = vmatpush.msra.mxu0 0.0
        %6329 = vmatpush.msra.mxu0 0.0
        %6330 = vmatpush.msra.mxu0 0.0
        %6331 = vmatpush.msra.mxu0 %v6044
        %6332 = vmatpush.msra.mxu0 %v6043
        %6333 = vmatpush.msra.mxu0 %v6042
        %6334 = vmatpush.msra.mxu0 %v6041
        %6335 = vmatpush.msra.mxu0 %v6040
        %6336 = vmatpush.msra.mxu0 %v6039
        %6337 = vmatpush.msra.mxu0 %v6038
        %6338 = vmatpush.msra.mxu0 %v6037
        %6339 = vmatmul.f32.gmra.mxu0 %v6095
        %v6340 = vpop.f32.mrf.mxu0
        %v6341 = vadd.f32 0.0, %v6340
        %6342 = vmatmul.f32.gmra.mxu0 %v6098
        %v6343 = vpop.f32.mrf.mxu0
        %v6344 = vadd.f32 0.0, %v6343
        %6345 = vmatmul.f32.gmra.mxu0 %v6101
        %v6346 = vpop.f32.mrf.mxu0
        %v6347 = vadd.f32 0.0, %v6346
        %6348 = vmatmul.f32.gmra.mxu0 %v6104
        %v6349 = vpop.f32.mrf.mxu0
        %v6350 = vadd.f32 0.0, %v6349
        %6351 = vmatmul.f32.gmra.mxu0 %v6107
        %v6352 = vpop.f32.mrf.mxu0
        %v6353 = vadd.f32 0.0, %v6352
        %6354 = vmatmul.f32.gmra.mxu0 %v6110
        %v6355 = vpop.f32.mrf.mxu0
        %v6356 = vadd.f32 0.0, %v6355
        %6357 = vmatmul.f32.gmra.mxu0 %v6113
        %v6358 = vpop.f32.mrf.mxu0
        %v6359 = vadd.f32 0.0, %v6358
        %6360 = vmatmul.f32.gmra.mxu0 %v6116
        %v6361 = vpop.f32.mrf.mxu0
        %v6362 = vadd.f32 0.0, %v6361
        %6363 = vdwg.mxu0
        %v6364 = vadd.f32 %v5893, %v6136
        %v6365 = vadd.f32 %v5894, %v6177
        %v6366 = vadd.f32 %v5895, %v6218
        %v6367 = vadd.f32 %v5896, %v6259
        %v6368 = vadd.f32 %v5897, %v6300
        %v6369 = vadd.f32 %v5898, %v6341
        %v6370 = vadd.f32 %v5899, %v6139
        %v6371 = vadd.f32 %v5900, %v6180
        %v6372 = vadd.f32 %v5901, %v6221
        %v6373 = vadd.f32 %v5902, %v6262
        %v6374 = vadd.f32 %v5903, %v6303
        %v6375 = vadd.f32 %v5904, %v6344
        %v6376 = vadd.f32 %v5905, %v6142
        %v6377 = vadd.f32 %v5906, %v6183
        %v6378 = vadd.f32 %v5907, %v6224
        %v6379 = vadd.f32 %v5908, %v6265
        %v6380 = vadd.f32 %v5909, %v6306
        %v6381 = vadd.f32 %v5910, %v6347
        %v6382 = vadd.f32 %v5911, %v6145
        %v6383 = vadd.f32 %v5912, %v6186
        %v6384 = vadd.f32 %v5913, %v6227
        %v6385 = vadd.f32 %v5914, %v6268
        %v6386 = vadd.f32 %v5915, %v6309
        %v6387 = vadd.f32 %v5916, %v6350
        %v6388 = vadd.f32 %v5917, %v6148
        %v6389 = vadd.f32 %v5918, %v6189
        %v6390 = vadd.f32 %v5919, %v6230
        %v6391 = vadd.f32 %v5920, %v6271
        %v6392 = vadd.f32 %v5921, %v6312
        %v6393 = vadd.f32 %v5922, %v6353
        %v6394 = vadd.f32 %v5923, %v6151
        %v6395 = vadd.f32 %v5924, %v6192
        %v6396 = vadd.f32 %v5925, %v6233
        %v6397 = vadd.f32 %v5926, %v6274
        %v6398 = vadd.f32 %v5927, %v6315
        %v6399 = vadd.f32 %v5928, %v6356
        %v6400 = vadd.f32 %v5929, %v6154
        %v6401 = vadd.f32 %v5930, %v6195
        %v6402 = vadd.f32 %v5931, %v6236
        %v6403 = vadd.f32 %v5932, %v6277
        %v6404 = vadd.f32 %v5933, %v6318
        %v6405 = vadd.f32 %v5934, %v6359
        %v6406 = vadd.f32 %v5935, %v6157
        %v6407 = vadd.f32 %v5936, %v6198
        %v6408 = vadd.f32 %v5937, %v6239
        %v6409 = vadd.f32 %v5938, %v6280
        %v6410 = vadd.f32 %v5939, %v6321
        %v6411 = vadd.f32 %v5940, %v6362
        %s6412 = scalar_lea.vmem %s4, 256
        %v6413 = vld [vmem:[%s6412] sm:$0xff]
        %v6414 = vld [vmem:[%s6412 + $0x8] sm:$0xff]
        %v6415 = vld [vmem:[%s6412 + $0x10] sm:$0xff]
        %v6416 = vld [vmem:[%s6412 + $0x18] sm:$0xff]
        %v6417 = vld [vmem:[%s6412 + $0x20] sm:$0xff]
        %v6418 = vld [vmem:[%s6412 + $0x28] sm:$0xff]
        %v6419 = vld [vmem:[%s6412 + $0x30] sm:$0xff]
        %v6420 = vld [vmem:[%s6412 + $0x38] sm:$0xff]
        %v6422 = vsel %vm720, %v6413, 0
        %v6425 = vsel %vm720, %v6414, 0
        %v6428 = vsel %vm720, %v6415, 0
        %v6431 = vsel %vm720, %v6416, 0
        %v6434 = vsel %vm720, %v6417, 0
        %v6437 = vsel %vm720, %v6418, 0
        %v6440 = vsel %vm720, %v6419, 0
        %v6443 = vsel %vm720, %v6420, 0
        %6445 = vmatpush.msra.mxu0 0.0
        %6446 = vmatpush.msra.mxu0 0.0
        %6447 = vmatpush.msra.mxu0 0.0
        %6448 = vmatpush.msra.mxu0 0.0
        %6449 = vmatpush.msra.mxu0 0.0
        %6450 = vmatpush.msra.mxu0 0.0
        %6451 = vmatpush.msra.mxu0 0.0
        %6452 = vmatpush.msra.mxu0 0.0
        %6453 = vmatpush.msra.mxu0 %v4619
        %6454 = vmatpush.msra.mxu0 %v4613
        %6455 = vmatpush.msra.mxu0 %v4607
        %6456 = vmatpush.msra.mxu0 %v4601
        %6457 = vmatpush.msra.mxu0 %v4595
        %6458 = vmatpush.msra.mxu0 %v4589
        %6459 = vmatpush.msra.mxu0 %v4583
        %6460 = vmatpush.msra.mxu0 %v4577
        %6461 = vmatmul.f32.gmra.mxu0 %v6422
        %v6462 = vpop.f32.mrf.mxu0
        %v6463 = vadd.f32 0.0, %v6462
        %6464 = vmatmul.f32.gmra.mxu0 %v6425
        %v6465 = vpop.f32.mrf.mxu0
        %v6466 = vadd.f32 0.0, %v6465
        %6467 = vmatmul.f32.gmra.mxu0 %v6428
        %v6468 = vpop.f32.mrf.mxu0
        %v6469 = vadd.f32 0.0, %v6468
        %6470 = vmatmul.f32.gmra.mxu0 %v6431
        %v6471 = vpop.f32.mrf.mxu0
        %v6472 = vadd.f32 0.0, %v6471
        %6473 = vmatmul.f32.gmra.mxu0 %v6434
        %v6474 = vpop.f32.mrf.mxu0
        %v6475 = vadd.f32 0.0, %v6474
        %6476 = vmatmul.f32.gmra.mxu0 %v6437
        %v6477 = vpop.f32.mrf.mxu0
        %v6478 = vadd.f32 0.0, %v6477
        %6479 = vmatmul.f32.gmra.mxu0 %v6440
        %v6480 = vpop.f32.mrf.mxu0
        %v6481 = vadd.f32 0.0, %v6480
        %6482 = vmatmul.f32.gmra.mxu0 %v6443
        %v6483 = vpop.f32.mrf.mxu0
        %v6484 = vadd.f32 0.0, %v6483
        %6485 = vdwg.mxu0
        %6486 = vmatpush.msra.mxu0 0.0
        %6487 = vmatpush.msra.mxu0 0.0
        %6488 = vmatpush.msra.mxu0 0.0
        %6489 = vmatpush.msra.mxu0 0.0
        %6490 = vmatpush.msra.mxu0 0.0
        %6491 = vmatpush.msra.mxu0 0.0
        %6492 = vmatpush.msra.mxu0 0.0
        %6493 = vmatpush.msra.mxu0 0.0
        %6494 = vmatpush.msra.mxu0 %v4620
        %6495 = vmatpush.msra.mxu0 %v4614
        %6496 = vmatpush.msra.mxu0 %v4608
        %6497 = vmatpush.msra.mxu0 %v4602
        %6498 = vmatpush.msra.mxu0 %v4596
        %6499 = vmatpush.msra.mxu0 %v4590
        %6500 = vmatpush.msra.mxu0 %v4584
        %6501 = vmatpush.msra.mxu0 %v4578
        %6502 = vmatmul.f32.gmra.mxu0 %v6422
        %v6503 = vpop.f32.mrf.mxu0
        %v6504 = vadd.f32 0.0, %v6503
        %6505 = vmatmul.f32.gmra.mxu0 %v6425
        %v6506 = vpop.f32.mrf.mxu0
        %v6507 = vadd.f32 0.0, %v6506
        %6508 = vmatmul.f32.gmra.mxu0 %v6428
        %v6509 = vpop.f32.mrf.mxu0
        %v6510 = vadd.f32 0.0, %v6509
        %6511 = vmatmul.f32.gmra.mxu0 %v6431
        %v6512 = vpop.f32.mrf.mxu0
        %v6513 = vadd.f32 0.0, %v6512
        %6514 = vmatmul.f32.gmra.mxu0 %v6434
        %v6515 = vpop.f32.mrf.mxu0
        %v6516 = vadd.f32 0.0, %v6515
        %6517 = vmatmul.f32.gmra.mxu0 %v6437
        %v6518 = vpop.f32.mrf.mxu0
        %v6519 = vadd.f32 0.0, %v6518
        %6520 = vmatmul.f32.gmra.mxu0 %v6440
        %v6521 = vpop.f32.mrf.mxu0
        %v6522 = vadd.f32 0.0, %v6521
        %6523 = vmatmul.f32.gmra.mxu0 %v6443
        %v6524 = vpop.f32.mrf.mxu0
        %v6525 = vadd.f32 0.0, %v6524
        %6526 = vdwg.mxu0
        %6527 = vmatpush.msra.mxu0 0.0
        %6528 = vmatpush.msra.mxu0 0.0
        %6529 = vmatpush.msra.mxu0 0.0
        %6530 = vmatpush.msra.mxu0 0.0
        %6531 = vmatpush.msra.mxu0 0.0
        %6532 = vmatpush.msra.mxu0 0.0
        %6533 = vmatpush.msra.mxu0 0.0
        %6534 = vmatpush.msra.mxu0 0.0
        %6535 = vmatpush.msra.mxu0 %v4621
        %6536 = vmatpush.msra.mxu0 %v4615
        %6537 = vmatpush.msra.mxu0 %v4609
        %6538 = vmatpush.msra.mxu0 %v4603
        %6539 = vmatpush.msra.mxu0 %v4597
        %6540 = vmatpush.msra.mxu0 %v4591
        %6541 = vmatpush.msra.mxu0 %v4585
        %6542 = vmatpush.msra.mxu0 %v4579
        %6543 = vmatmul.f32.gmra.mxu0 %v6422
        %v6544 = vpop.f32.mrf.mxu0
        %v6545 = vadd.f32 0.0, %v6544
        %6546 = vmatmul.f32.gmra.mxu0 %v6425
        %v6547 = vpop.f32.mrf.mxu0
        %v6548 = vadd.f32 0.0, %v6547
        %6549 = vmatmul.f32.gmra.mxu0 %v6428
        %v6550 = vpop.f32.mrf.mxu0
        %v6551 = vadd.f32 0.0, %v6550
        %6552 = vmatmul.f32.gmra.mxu0 %v6431
        %v6553 = vpop.f32.mrf.mxu0
        %v6554 = vadd.f32 0.0, %v6553
        %6555 = vmatmul.f32.gmra.mxu0 %v6434
        %v6556 = vpop.f32.mrf.mxu0
        %v6557 = vadd.f32 0.0, %v6556
        %6558 = vmatmul.f32.gmra.mxu0 %v6437
        %v6559 = vpop.f32.mrf.mxu0
        %v6560 = vadd.f32 0.0, %v6559
        %6561 = vmatmul.f32.gmra.mxu0 %v6440
        %v6562 = vpop.f32.mrf.mxu0
        %v6563 = vadd.f32 0.0, %v6562
        %6564 = vmatmul.f32.gmra.mxu0 %v6443
        %v6565 = vpop.f32.mrf.mxu0
        %v6566 = vadd.f32 0.0, %v6565
        %6567 = vdwg.mxu0
        %6568 = vmatpush.msra.mxu0 0.0
        %6569 = vmatpush.msra.mxu0 0.0
        %6570 = vmatpush.msra.mxu0 0.0
        %6571 = vmatpush.msra.mxu0 0.0
        %6572 = vmatpush.msra.mxu0 0.0
        %6573 = vmatpush.msra.mxu0 0.0
        %6574 = vmatpush.msra.mxu0 0.0
        %6575 = vmatpush.msra.mxu0 0.0
        %6576 = vmatpush.msra.mxu0 %v4622
        %6577 = vmatpush.msra.mxu0 %v4616
        %6578 = vmatpush.msra.mxu0 %v4610
        %6579 = vmatpush.msra.mxu0 %v4604
        %6580 = vmatpush.msra.mxu0 %v4598
        %6581 = vmatpush.msra.mxu0 %v4592
        %6582 = vmatpush.msra.mxu0 %v4586
        %6583 = vmatpush.msra.mxu0 %v4580
        %6584 = vmatmul.f32.gmra.mxu0 %v6422
        %v6585 = vpop.f32.mrf.mxu0
        %v6586 = vadd.f32 0.0, %v6585
        %6587 = vmatmul.f32.gmra.mxu0 %v6425
        %v6588 = vpop.f32.mrf.mxu0
        %v6589 = vadd.f32 0.0, %v6588
        %6590 = vmatmul.f32.gmra.mxu0 %v6428
        %v6591 = vpop.f32.mrf.mxu0
        %v6592 = vadd.f32 0.0, %v6591
        %6593 = vmatmul.f32.gmra.mxu0 %v6431
        %v6594 = vpop.f32.mrf.mxu0
        %v6595 = vadd.f32 0.0, %v6594
        %6596 = vmatmul.f32.gmra.mxu0 %v6434
        %v6597 = vpop.f32.mrf.mxu0
        %v6598 = vadd.f32 0.0, %v6597
        %6599 = vmatmul.f32.gmra.mxu0 %v6437
        %v6600 = vpop.f32.mrf.mxu0
        %v6601 = vadd.f32 0.0, %v6600
        %6602 = vmatmul.f32.gmra.mxu0 %v6440
        %v6603 = vpop.f32.mrf.mxu0
        %v6604 = vadd.f32 0.0, %v6603
        %6605 = vmatmul.f32.gmra.mxu0 %v6443
        %v6606 = vpop.f32.mrf.mxu0
        %v6607 = vadd.f32 0.0, %v6606
        %6608 = vdwg.mxu0
        %6609 = vmatpush.msra.mxu0 0.0
        %6610 = vmatpush.msra.mxu0 0.0
        %6611 = vmatpush.msra.mxu0 0.0
        %6612 = vmatpush.msra.mxu0 0.0
        %6613 = vmatpush.msra.mxu0 0.0
        %6614 = vmatpush.msra.mxu0 0.0
        %6615 = vmatpush.msra.mxu0 0.0
        %6616 = vmatpush.msra.mxu0 0.0
        %6617 = vmatpush.msra.mxu0 %v4623
        %6618 = vmatpush.msra.mxu0 %v4617
        %6619 = vmatpush.msra.mxu0 %v4611
        %6620 = vmatpush.msra.mxu0 %v4605
        %6621 = vmatpush.msra.mxu0 %v4599
        %6622 = vmatpush.msra.mxu0 %v4593
        %6623 = vmatpush.msra.mxu0 %v4587
        %6624 = vmatpush.msra.mxu0 %v4581
        %6625 = vmatmul.f32.gmra.mxu0 %v6422
        %v6626 = vpop.f32.mrf.mxu0
        %v6627 = vadd.f32 0.0, %v6626
        %6628 = vmatmul.f32.gmra.mxu0 %v6425
        %v6629 = vpop.f32.mrf.mxu0
        %v6630 = vadd.f32 0.0, %v6629
        %6631 = vmatmul.f32.gmra.mxu0 %v6428
        %v6632 = vpop.f32.mrf.mxu0
        %v6633 = vadd.f32 0.0, %v6632
        %6634 = vmatmul.f32.gmra.mxu0 %v6431
        %v6635 = vpop.f32.mrf.mxu0
        %v6636 = vadd.f32 0.0, %v6635
        %6637 = vmatmul.f32.gmra.mxu0 %v6434
        %v6638 = vpop.f32.mrf.mxu0
        %v6639 = vadd.f32 0.0, %v6638
        %6640 = vmatmul.f32.gmra.mxu0 %v6437
        %v6641 = vpop.f32.mrf.mxu0
        %v6642 = vadd.f32 0.0, %v6641
        %6643 = vmatmul.f32.gmra.mxu0 %v6440
        %v6644 = vpop.f32.mrf.mxu0
        %v6645 = vadd.f32 0.0, %v6644
        %6646 = vmatmul.f32.gmra.mxu0 %v6443
        %v6647 = vpop.f32.mrf.mxu0
        %v6648 = vadd.f32 0.0, %v6647
        %6649 = vdwg.mxu0
        %6650 = vmatpush.msra.mxu0 0.0
        %6651 = vmatpush.msra.mxu0 0.0
        %6652 = vmatpush.msra.mxu0 0.0
        %6653 = vmatpush.msra.mxu0 0.0
        %6654 = vmatpush.msra.mxu0 0.0
        %6655 = vmatpush.msra.mxu0 0.0
        %6656 = vmatpush.msra.mxu0 0.0
        %6657 = vmatpush.msra.mxu0 0.0
        %6658 = vmatpush.msra.mxu0 %v4624
        %6659 = vmatpush.msra.mxu0 %v4618
        %6660 = vmatpush.msra.mxu0 %v4612
        %6661 = vmatpush.msra.mxu0 %v4606
        %6662 = vmatpush.msra.mxu0 %v4600
        %6663 = vmatpush.msra.mxu0 %v4594
        %6664 = vmatpush.msra.mxu0 %v4588
        %6665 = vmatpush.msra.mxu0 %v4582
        %6666 = vmatmul.f32.gmra.mxu0 %v6422
        %v6667 = vpop.f32.mrf.mxu0
        %v6668 = vadd.f32 0.0, %v6667
        %6669 = vmatmul.f32.gmra.mxu0 %v6425
        %v6670 = vpop.f32.mrf.mxu0
        %v6671 = vadd.f32 0.0, %v6670
        %6672 = vmatmul.f32.gmra.mxu0 %v6428
        %v6673 = vpop.f32.mrf.mxu0
        %v6674 = vadd.f32 0.0, %v6673
        %6675 = vmatmul.f32.gmra.mxu0 %v6431
        %v6676 = vpop.f32.mrf.mxu0
        %v6677 = vadd.f32 0.0, %v6676
        %6678 = vmatmul.f32.gmra.mxu0 %v6434
        %v6679 = vpop.f32.mrf.mxu0
        %v6680 = vadd.f32 0.0, %v6679
        %6681 = vmatmul.f32.gmra.mxu0 %v6437
        %v6682 = vpop.f32.mrf.mxu0
        %v6683 = vadd.f32 0.0, %v6682
        %6684 = vmatmul.f32.gmra.mxu0 %v6440
        %v6685 = vpop.f32.mrf.mxu0
        %v6686 = vadd.f32 0.0, %v6685
        %6687 = vmatmul.f32.gmra.mxu0 %v6443
        %v6688 = vpop.f32.mrf.mxu0
        %v6689 = vadd.f32 0.0, %v6688
        %6690 = vdwg.mxu0
        %v6691 = vadd.f32 %v6364, %v6463
        %v6692 = vadd.f32 %v6365, %v6504
        %v6693 = vadd.f32 %v6366, %v6545
        %v6694 = vadd.f32 %v6367, %v6586
        %v6695 = vadd.f32 %v6368, %v6627
        %v6696 = vadd.f32 %v6369, %v6668
        %v6697 = vadd.f32 %v6370, %v6466
        %v6698 = vadd.f32 %v6371, %v6507
        %v6699 = vadd.f32 %v6372, %v6548
        %v6700 = vadd.f32 %v6373, %v6589
        %v6701 = vadd.f32 %v6374, %v6630
        %v6702 = vadd.f32 %v6375, %v6671
        %v6703 = vadd.f32 %v6376, %v6469
        %v6704 = vadd.f32 %v6377, %v6510
        %v6705 = vadd.f32 %v6378, %v6551
        %v6706 = vadd.f32 %v6379, %v6592
        %v6707 = vadd.f32 %v6380, %v6633
        %v6708 = vadd.f32 %v6381, %v6674
        %v6709 = vadd.f32 %v6382, %v6472
        %v6710 = vadd.f32 %v6383, %v6513
        %v6711 = vadd.f32 %v6384, %v6554
        %v6712 = vadd.f32 %v6385, %v6595
        %v6713 = vadd.f32 %v6386, %v6636
        %v6714 = vadd.f32 %v6387, %v6677
        %v6715 = vadd.f32 %v6388, %v6475
        %v6716 = vadd.f32 %v6389, %v6516
        %v6717 = vadd.f32 %v6390, %v6557
        %v6718 = vadd.f32 %v6391, %v6598
        %v6719 = vadd.f32 %v6392, %v6639
        %v6720 = vadd.f32 %v6393, %v6680
        %v6721 = vadd.f32 %v6394, %v6478
        %v6722 = vadd.f32 %v6395, %v6519
        %v6723 = vadd.f32 %v6396, %v6560
        %v6724 = vadd.f32 %v6397, %v6601
        %v6725 = vadd.f32 %v6398, %v6642
        %v6726 = vadd.f32 %v6399, %v6683
        %v6727 = vadd.f32 %v6400, %v6481
        %v6728 = vadd.f32 %v6401, %v6522
        %v6729 = vadd.f32 %v6402, %v6563
        %v6730 = vadd.f32 %v6403, %v6604
        %v6731 = vadd.f32 %v6404, %v6645
        %v6732 = vadd.f32 %v6405, %v6686
        %v6733 = vadd.f32 %v6406, %v6484
        %v6734 = vadd.f32 %v6407, %v6525
        %v6735 = vadd.f32 %v6408, %v6566
        %v6736 = vadd.f32 %v6409, %v6607
        %v6737 = vadd.f32 %v6410, %v6648
        %v6738 = vadd.f32 %v6411, %v6689
        %6739 = vrot.lane.b32.xlu0 %v4577, 127
        %v6740 = vpop.permute.xlu0 %6739
        %6741 = vrot.lane.b32.xlu0 %v4583, 127
        %v6742 = vpop.permute.xlu0 %6741
        %6743 = vrot.lane.b32.xlu0 %v4589, 127
        %v6744 = vpop.permute.xlu0 %6743
        %6745 = vrot.lane.b32.xlu0 %v4595, 127
        %v6746 = vpop.permute.xlu0 %6745
        %6747 = vrot.lane.b32.xlu0 %v4601, 127
        %v6748 = vpop.permute.xlu0 %6747
        %6749 = vrot.lane.b32.xlu0 %v4607, 127
        %v6750 = vpop.permute.xlu0 %6749
        %6751 = vrot.lane.b32.xlu0 %v4613, 127
        %v6752 = vpop.permute.xlu0 %6751
        %6753 = vrot.lane.b32.xlu0 %v4619, 127
        %v6754 = vpop.permute.xlu0 %6753
        %6755 = vrot.lane.b32.xlu0 %v4578, 127
        %v6756 = vpop.permute.xlu0 %6755
        %6757 = vrot.lane.b32.xlu0 %v4584, 127
        %v6758 = vpop.permute.xlu0 %6757
        %6759 = vrot.lane.b32.xlu0 %v4590, 127
        %v6760 = vpop.permute.xlu0 %6759
        %6761 = vrot.lane.b32.xlu0 %v4596, 127
        %v6762 = vpop.permute.xlu0 %6761
        %6763 = vrot.lane.b32.xlu0 %v4602, 127
        %v6764 = vpop.permute.xlu0 %6763
        %6765 = vrot.lane.b32.xlu0 %v4608, 127
        %v6766 = vpop.permute.xlu0 %6765
        %6767 = vrot.lane.b32.xlu0 %v4614, 127
        %v6768 = vpop.permute.xlu0 %6767
        %6769 = vrot.lane.b32.xlu0 %v4620, 127
        %v6770 = vpop.permute.xlu0 %6769
        %6771 = vrot.lane.b32.xlu0 %v4579, 127
        %v6772 = vpop.permute.xlu0 %6771
        %6773 = vrot.lane.b32.xlu0 %v4585, 127
        %v6774 = vpop.permute.xlu0 %6773
        %6775 = vrot.lane.b32.xlu0 %v4591, 127
        %v6776 = vpop.permute.xlu0 %6775
        %6777 = vrot.lane.b32.xlu0 %v4597, 127
        %v6778 = vpop.permute.xlu0 %6777
        %6779 = vrot.lane.b32.xlu0 %v4603, 127
        %v6780 = vpop.permute.xlu0 %6779
        %6781 = vrot.lane.b32.xlu0 %v4609, 127
        %v6782 = vpop.permute.xlu0 %6781
        %6783 = vrot.lane.b32.xlu0 %v4615, 127
        %v6784 = vpop.permute.xlu0 %6783
        %6785 = vrot.lane.b32.xlu0 %v4621, 127
        %v6786 = vpop.permute.xlu0 %6785
        %6787 = vrot.lane.b32.xlu0 %v4580, 127
        %v6788 = vpop.permute.xlu0 %6787
        %6789 = vrot.lane.b32.xlu0 %v4586, 127
        %v6790 = vpop.permute.xlu0 %6789
        %6791 = vrot.lane.b32.xlu0 %v4592, 127
        %v6792 = vpop.permute.xlu0 %6791
        %6793 = vrot.lane.b32.xlu0 %v4598, 127
        %v6794 = vpop.permute.xlu0 %6793
        %6795 = vrot.lane.b32.xlu0 %v4604, 127
        %v6796 = vpop.permute.xlu0 %6795
        %6797 = vrot.lane.b32.xlu0 %v4610, 127
        %v6798 = vpop.permute.xlu0 %6797
        %6799 = vrot.lane.b32.xlu0 %v4616, 127
        %v6800 = vpop.permute.xlu0 %6799
        %6801 = vrot.lane.b32.xlu0 %v4622, 127
        %v6802 = vpop.permute.xlu0 %6801
        %6803 = vrot.lane.b32.xlu0 %v4581, 127
        %v6804 = vpop.permute.xlu0 %6803
        %6805 = vrot.lane.b32.xlu0 %v4587, 127
        %v6806 = vpop.permute.xlu0 %6805
        %6807 = vrot.lane.b32.xlu0 %v4593, 127
        %v6808 = vpop.permute.xlu0 %6807
        %6809 = vrot.lane.b32.xlu0 %v4599, 127
        %v6810 = vpop.permute.xlu0 %6809
        %6811 = vrot.lane.b32.xlu0 %v4605, 127
        %v6812 = vpop.permute.xlu0 %6811
        %6813 = vrot.lane.b32.xlu0 %v4611, 127
        %v6814 = vpop.permute.xlu0 %6813
        %6815 = vrot.lane.b32.xlu0 %v4617, 127
        %v6816 = vpop.permute.xlu0 %6815
        %6817 = vrot.lane.b32.xlu0 %v4623, 127
        %v6818 = vpop.permute.xlu0 %6817
        %6819 = vrot.lane.b32.xlu0 %v4582, 127
        %v6820 = vpop.permute.xlu0 %6819
        %6821 = vrot.lane.b32.xlu0 %v4588, 127
        %v6822 = vpop.permute.xlu0 %6821
        %6823 = vrot.lane.b32.xlu0 %v4594, 127
        %v6824 = vpop.permute.xlu0 %6823
        %6825 = vrot.lane.b32.xlu0 %v4600, 127
        %v6826 = vpop.permute.xlu0 %6825
        %6827 = vrot.lane.b32.xlu0 %v4606, 127
        %v6828 = vpop.permute.xlu0 %6827
        %6829 = vrot.lane.b32.xlu0 %v4612, 127
        %v6830 = vpop.permute.xlu0 %6829
        %6831 = vrot.lane.b32.xlu0 %v4618, 127
        %v6832 = vpop.permute.xlu0 %6831
        %6833 = vrot.lane.b32.xlu0 %v4624, 127
        %v6834 = vpop.permute.xlu0 %6833
        %v6835 = vsel %vm2628, %v6804, %v6820
        %v6836 = vsel %vm2628, %v6806, %v6822
        %v6837 = vsel %vm2628, %v6808, %v6824
        %v6838 = vsel %vm2628, %v6810, %v6826
        %v6839 = vsel %vm2628, %v6812, %v6828
        %v6840 = vsel %vm2628, %v6814, %v6830
        %v6841 = vsel %vm2628, %v6816, %v6832
        %v6842 = vsel %vm2628, %v6818, %v6834
        %v6843 = vsel %vm2628, %v6788, %v6804
        %v6844 = vsel %vm2628, %v6790, %v6806
        %v6845 = vsel %vm2628, %v6792, %v6808
        %v6846 = vsel %vm2628, %v6794, %v6810
        %v6847 = vsel %vm2628, %v6796, %v6812
        %v6848 = vsel %vm2628, %v6798, %v6814
        %v6849 = vsel %vm2628, %v6800, %v6816
        %v6850 = vsel %vm2628, %v6802, %v6818
        %v6851 = vsel %vm2628, %v6772, %v6788
        %v6852 = vsel %vm2628, %v6774, %v6790
        %v6853 = vsel %vm2628, %v6776, %v6792
        %v6854 = vsel %vm2628, %v6778, %v6794
        %v6855 = vsel %vm2628, %v6780, %v6796
        %v6856 = vsel %vm2628, %v6782, %v6798
        %v6857 = vsel %vm2628, %v6784, %v6800
        %v6858 = vsel %vm2628, %v6786, %v6802
        %v6859 = vsel %vm2628, %v6756, %v6772
        %v6860 = vsel %vm2628, %v6758, %v6774
        %v6861 = vsel %vm2628, %v6760, %v6776
        %v6862 = vsel %vm2628, %v6762, %v6778
        %v6863 = vsel %vm2628, %v6764, %v6780
        %v6864 = vsel %vm2628, %v6766, %v6782
        %v6865 = vsel %vm2628, %v6768, %v6784
        %v6866 = vsel %vm2628, %v6770, %v6786
        %v6867 = vsel %vm2628, %v6740, %v6756
        %v6868 = vsel %vm2628, %v6742, %v6758
        %v6869 = vsel %vm2628, %v6744, %v6760
        %v6870 = vsel %vm2628, %v6746, %v6762
        %v6871 = vsel %vm2628, %v6748, %v6764
        %v6872 = vsel %vm2628, %v6750, %v6766
        %v6873 = vsel %vm2628, %v6752, %v6768
        %v6874 = vsel %vm2628, %v6754, %v6770
        %v6875 = vsel %vm2628, %v6820, %v6740
        %v6876 = vsel %vm2628, %v6822, %v6742
        %v6877 = vsel %vm2628, %v6824, %v6744
        %v6878 = vsel %vm2628, %v6826, %v6746
        %v6879 = vsel %vm2628, %v6828, %v6748
        %v6880 = vsel %vm2628, %v6830, %v6750
        %v6881 = vsel %vm2628, %v6832, %v6752
        %v6882 = vsel %vm2628, %v6834, %v6754
        %s6883 = scalar_lea.vmem %s4, 320
        %v6884 = vld [vmem:[%s6883] sm:$0xff]
        %v6885 = vld [vmem:[%s6883 + $0x8] sm:$0xff]
        %v6886 = vld [vmem:[%s6883 + $0x10] sm:$0xff]
        %v6887 = vld [vmem:[%s6883 + $0x18] sm:$0xff]
        %v6888 = vld [vmem:[%s6883 + $0x20] sm:$0xff]
        %v6889 = vld [vmem:[%s6883 + $0x28] sm:$0xff]
        %v6890 = vld [vmem:[%s6883 + $0x30] sm:$0xff]
        %v6891 = vld [vmem:[%s6883 + $0x38] sm:$0xff]
        %v6893 = vsel %vm720, %v6884, 0
        %v6896 = vsel %vm720, %v6885, 0
        %v6899 = vsel %vm720, %v6886, 0
        %v6902 = vsel %vm720, %v6887, 0
        %v6905 = vsel %vm720, %v6888, 0
        %v6908 = vsel %vm720, %v6889, 0
        %v6911 = vsel %vm720, %v6890, 0
        %v6914 = vsel %vm720, %v6891, 0
        %6916 = vmatpush.msra.mxu0 0.0
        %6917 = vmatpush.msra.mxu0 0.0
        %6918 = vmatpush.msra.mxu0 0.0
        %6919 = vmatpush.msra.mxu0 0.0
        %6920 = vmatpush.msra.mxu0 0.0
        %6921 = vmatpush.msra.mxu0 0.0
        %6922 = vmatpush.msra.mxu0 0.0
        %6923 = vmatpush.msra.mxu0 0.0
        %6924 = vmatpush.msra.mxu0 %v6874
        %6925 = vmatpush.msra.mxu0 %v6873
        %6926 = vmatpush.msra.mxu0 %v6872
        %6927 = vmatpush.msra.mxu0 %v6871
        %6928 = vmatpush.msra.mxu0 %v6870
        %6929 = vmatpush.msra.mxu0 %v6869
        %6930 = vmatpush.msra.mxu0 %v6868
        %6931 = vmatpush.msra.mxu0 %v6867
        %6932 = vmatmul.f32.gmra.mxu0 %v6893
        %v6933 = vpop.f32.mrf.mxu0
        %v6934 = vadd.f32 0.0, %v6933
        %6935 = vmatmul.f32.gmra.mxu0 %v6896
        %v6936 = vpop.f32.mrf.mxu0
        %v6937 = vadd.f32 0.0, %v6936
        %6938 = vmatmul.f32.gmra.mxu0 %v6899
        %v6939 = vpop.f32.mrf.mxu0
        %v6940 = vadd.f32 0.0, %v6939
        %6941 = vmatmul.f32.gmra.mxu0 %v6902
        %v6942 = vpop.f32.mrf.mxu0
        %v6943 = vadd.f32 0.0, %v6942
        %6944 = vmatmul.f32.gmra.mxu0 %v6905
        %v6945 = vpop.f32.mrf.mxu0
        %v6946 = vadd.f32 0.0, %v6945
        %6947 = vmatmul.f32.gmra.mxu0 %v6908
        %v6948 = vpop.f32.mrf.mxu0
        %v6949 = vadd.f32 0.0, %v6948
        %6950 = vmatmul.f32.gmra.mxu0 %v6911
        %v6951 = vpop.f32.mrf.mxu0
        %v6952 = vadd.f32 0.0, %v6951
        %6953 = vmatmul.f32.gmra.mxu0 %v6914
        %v6954 = vpop.f32.mrf.mxu0
        %v6955 = vadd.f32 0.0, %v6954
        %6956 = vdwg.mxu0
        %6957 = vmatpush.msra.mxu0 0.0
        %6958 = vmatpush.msra.mxu0 0.0
        %6959 = vmatpush.msra.mxu0 0.0
        %6960 = vmatpush.msra.mxu0 0.0
        %6961 = vmatpush.msra.mxu0 0.0
        %6962 = vmatpush.msra.mxu0 0.0
        %6963 = vmatpush.msra.mxu0 0.0
        %6964 = vmatpush.msra.mxu0 0.0
        %6965 = vmatpush.msra.mxu0 %v6866
        %6966 = vmatpush.msra.mxu0 %v6865
        %6967 = vmatpush.msra.mxu0 %v6864
        %6968 = vmatpush.msra.mxu0 %v6863
        %6969 = vmatpush.msra.mxu0 %v6862
        %6970 = vmatpush.msra.mxu0 %v6861
        %6971 = vmatpush.msra.mxu0 %v6860
        %6972 = vmatpush.msra.mxu0 %v6859
        %6973 = vmatmul.f32.gmra.mxu0 %v6893
        %v6974 = vpop.f32.mrf.mxu0
        %v6975 = vadd.f32 0.0, %v6974
        %6976 = vmatmul.f32.gmra.mxu0 %v6896
        %v6977 = vpop.f32.mrf.mxu0
        %v6978 = vadd.f32 0.0, %v6977
        %6979 = vmatmul.f32.gmra.mxu0 %v6899
        %v6980 = vpop.f32.mrf.mxu0
        %v6981 = vadd.f32 0.0, %v6980
        %6982 = vmatmul.f32.gmra.mxu0 %v6902
        %v6983 = vpop.f32.mrf.mxu0
        %v6984 = vadd.f32 0.0, %v6983
        %6985 = vmatmul.f32.gmra.mxu0 %v6905
        %v6986 = vpop.f32.mrf.mxu0
        %v6987 = vadd.f32 0.0, %v6986
        %6988 = vmatmul.f32.gmra.mxu0 %v6908
        %v6989 = vpop.f32.mrf.mxu0
        %v6990 = vadd.f32 0.0, %v6989
        %6991 = vmatmul.f32.gmra.mxu0 %v6911
        %v6992 = vpop.f32.mrf.mxu0
        %v6993 = vadd.f32 0.0, %v6992
        %6994 = vmatmul.f32.gmra.mxu0 %v6914
        %v6995 = vpop.f32.mrf.mxu0
        %v6996 = vadd.f32 0.0, %v6995
        %6997 = vdwg.mxu0
        %6998 = vmatpush.msra.mxu0 0.0
        %6999 = vmatpush.msra.mxu0 0.0
        %7000 = vmatpush.msra.mxu0 0.0
        %7001 = vmatpush.msra.mxu0 0.0
        %7002 = vmatpush.msra.mxu0 0.0
        %7003 = vmatpush.msra.mxu0 0.0
        %7004 = vmatpush.msra.mxu0 0.0
        %7005 = vmatpush.msra.mxu0 0.0
        %7006 = vmatpush.msra.mxu0 %v6858
        %7007 = vmatpush.msra.mxu0 %v6857
        %7008 = vmatpush.msra.mxu0 %v6856
        %7009 = vmatpush.msra.mxu0 %v6855
        %7010 = vmatpush.msra.mxu0 %v6854
        %7011 = vmatpush.msra.mxu0 %v6853
        %7012 = vmatpush.msra.mxu0 %v6852
        %7013 = vmatpush.msra.mxu0 %v6851
        %7014 = vmatmul.f32.gmra.mxu0 %v6893
        %v7015 = vpop.f32.mrf.mxu0
        %v7016 = vadd.f32 0.0, %v7015
        %7017 = vmatmul.f32.gmra.mxu0 %v6896
        %v7018 = vpop.f32.mrf.mxu0
        %v7019 = vadd.f32 0.0, %v7018
        %7020 = vmatmul.f32.gmra.mxu0 %v6899
        %v7021 = vpop.f32.mrf.mxu0
        %v7022 = vadd.f32 0.0, %v7021
        %7023 = vmatmul.f32.gmra.mxu0 %v6902
        %v7024 = vpop.f32.mrf.mxu0
        %v7025 = vadd.f32 0.0, %v7024
        %7026 = vmatmul.f32.gmra.mxu0 %v6905
        %v7027 = vpop.f32.mrf.mxu0
        %v7028 = vadd.f32 0.0, %v7027
        %7029 = vmatmul.f32.gmra.mxu0 %v6908
        %v7030 = vpop.f32.mrf.mxu0
        %v7031 = vadd.f32 0.0, %v7030
        %7032 = vmatmul.f32.gmra.mxu0 %v6911
        %v7033 = vpop.f32.mrf.mxu0
        %v7034 = vadd.f32 0.0, %v7033
        %7035 = vmatmul.f32.gmra.mxu0 %v6914
        %v7036 = vpop.f32.mrf.mxu0
        %v7037 = vadd.f32 0.0, %v7036
        %7038 = vdwg.mxu0
        %7039 = vmatpush.msra.mxu0 0.0
        %7040 = vmatpush.msra.mxu0 0.0
        %7041 = vmatpush.msra.mxu0 0.0
        %7042 = vmatpush.msra.mxu0 0.0
        %7043 = vmatpush.msra.mxu0 0.0
        %7044 = vmatpush.msra.mxu0 0.0
        %7045 = vmatpush.msra.mxu0 0.0
        %7046 = vmatpush.msra.mxu0 0.0
        %7047 = vmatpush.msra.mxu0 %v6850
        %7048 = vmatpush.msra.mxu0 %v6849
        %7049 = vmatpush.msra.mxu0 %v6848
        %7050 = vmatpush.msra.mxu0 %v6847
        %7051 = vmatpush.msra.mxu0 %v6846
        %7052 = vmatpush.msra.mxu0 %v6845
        %7053 = vmatpush.msra.mxu0 %v6844
        %7054 = vmatpush.msra.mxu0 %v6843
        %7055 = vmatmul.f32.gmra.mxu0 %v6893
        %v7056 = vpop.f32.mrf.mxu0
        %v7057 = vadd.f32 0.0, %v7056
        %7058 = vmatmul.f32.gmra.mxu0 %v6896
        %v7059 = vpop.f32.mrf.mxu0
        %v7060 = vadd.f32 0.0, %v7059
        %7061 = vmatmul.f32.gmra.mxu0 %v6899
        %v7062 = vpop.f32.mrf.mxu0
        %v7063 = vadd.f32 0.0, %v7062
        %7064 = vmatmul.f32.gmra.mxu0 %v6902
        %v7065 = vpop.f32.mrf.mxu0
        %v7066 = vadd.f32 0.0, %v7065
        %7067 = vmatmul.f32.gmra.mxu0 %v6905
        %v7068 = vpop.f32.mrf.mxu0
        %v7069 = vadd.f32 0.0, %v7068
        %7070 = vmatmul.f32.gmra.mxu0 %v6908
        %v7071 = vpop.f32.mrf.mxu0
        %v7072 = vadd.f32 0.0, %v7071
        %7073 = vmatmul.f32.gmra.mxu0 %v6911
        %v7074 = vpop.f32.mrf.mxu0
        %v7075 = vadd.f32 0.0, %v7074
        %7076 = vmatmul.f32.gmra.mxu0 %v6914
        %v7077 = vpop.f32.mrf.mxu0
        %v7078 = vadd.f32 0.0, %v7077
        %7079 = vdwg.mxu0
        %7080 = vmatpush.msra.mxu0 0.0
        %7081 = vmatpush.msra.mxu0 0.0
        %7082 = vmatpush.msra.mxu0 0.0
        %7083 = vmatpush.msra.mxu0 0.0
        %7084 = vmatpush.msra.mxu0 0.0
        %7085 = vmatpush.msra.mxu0 0.0
        %7086 = vmatpush.msra.mxu0 0.0
        %7087 = vmatpush.msra.mxu0 0.0
        %7088 = vmatpush.msra.mxu0 %v6842
        %7089 = vmatpush.msra.mxu0 %v6841
        %7090 = vmatpush.msra.mxu0 %v6840
        %7091 = vmatpush.msra.mxu0 %v6839
        %7092 = vmatpush.msra.mxu0 %v6838
        %7093 = vmatpush.msra.mxu0 %v6837
        %7094 = vmatpush.msra.mxu0 %v6836
        %7095 = vmatpush.msra.mxu0 %v6835
        %7096 = vmatmul.f32.gmra.mxu0 %v6893
        %v7097 = vpop.f32.mrf.mxu0
        %v7098 = vadd.f32 0.0, %v7097
        %7099 = vmatmul.f32.gmra.mxu0 %v6896
        %v7100 = vpop.f32.mrf.mxu0
        %v7101 = vadd.f32 0.0, %v7100
        %7102 = vmatmul.f32.gmra.mxu0 %v6899
        %v7103 = vpop.f32.mrf.mxu0
        %v7104 = vadd.f32 0.0, %v7103
        %7105 = vmatmul.f32.gmra.mxu0 %v6902
        %v7106 = vpop.f32.mrf.mxu0
        %v7107 = vadd.f32 0.0, %v7106
        %7108 = vmatmul.f32.gmra.mxu0 %v6905
        %v7109 = vpop.f32.mrf.mxu0
        %v7110 = vadd.f32 0.0, %v7109
        %7111 = vmatmul.f32.gmra.mxu0 %v6908
        %v7112 = vpop.f32.mrf.mxu0
        %v7113 = vadd.f32 0.0, %v7112
        %7114 = vmatmul.f32.gmra.mxu0 %v6911
        %v7115 = vpop.f32.mrf.mxu0
        %v7116 = vadd.f32 0.0, %v7115
        %7117 = vmatmul.f32.gmra.mxu0 %v6914
        %v7118 = vpop.f32.mrf.mxu0
        %v7119 = vadd.f32 0.0, %v7118
        %7120 = vdwg.mxu0
        %7121 = vmatpush.msra.mxu0 0.0
        %7122 = vmatpush.msra.mxu0 0.0
        %7123 = vmatpush.msra.mxu0 0.0
        %7124 = vmatpush.msra.mxu0 0.0
        %7125 = vmatpush.msra.mxu0 0.0
        %7126 = vmatpush.msra.mxu0 0.0
        %7127 = vmatpush.msra.mxu0 0.0
        %7128 = vmatpush.msra.mxu0 0.0
        %7129 = vmatpush.msra.mxu0 %v6882
        %7130 = vmatpush.msra.mxu0 %v6881
        %7131 = vmatpush.msra.mxu0 %v6880
        %7132 = vmatpush.msra.mxu0 %v6879
        %7133 = vmatpush.msra.mxu0 %v6878
        %7134 = vmatpush.msra.mxu0 %v6877
        %7135 = vmatpush.msra.mxu0 %v6876
        %7136 = vmatpush.msra.mxu0 %v6875
        %7137 = vmatmul.f32.gmra.mxu0 %v6893
        %v7138 = vpop.f32.mrf.mxu0
        %v7139 = vadd.f32 0.0, %v7138
        %7140 = vmatmul.f32.gmra.mxu0 %v6896
        %v7141 = vpop.f32.mrf.mxu0
        %v7142 = vadd.f32 0.0, %v7141
        %7143 = vmatmul.f32.gmra.mxu0 %v6899
        %v7144 = vpop.f32.mrf.mxu0
        %v7145 = vadd.f32 0.0, %v7144
        %7146 = vmatmul.f32.gmra.mxu0 %v6902
        %v7147 = vpop.f32.mrf.mxu0
        %v7148 = vadd.f32 0.0, %v7147
        %7149 = vmatmul.f32.gmra.mxu0 %v6905
        %v7150 = vpop.f32.mrf.mxu0
        %v7151 = vadd.f32 0.0, %v7150
        %7152 = vmatmul.f32.gmra.mxu0 %v6908
        %v7153 = vpop.f32.mrf.mxu0
        %v7154 = vadd.f32 0.0, %v7153
        %7155 = vmatmul.f32.gmra.mxu0 %v6911
        %v7156 = vpop.f32.mrf.mxu0
        %v7157 = vadd.f32 0.0, %v7156
        %7158 = vmatmul.f32.gmra.mxu0 %v6914
        %v7159 = vpop.f32.mrf.mxu0
        %v7160 = vadd.f32 0.0, %v7159
        %7161 = vdwg.mxu0
        %v7162 = vadd.f32 %v6691, %v6934
        %v7163 = vadd.f32 %v6692, %v6975
        %v7164 = vadd.f32 %v6693, %v7016
        %v7165 = vadd.f32 %v6694, %v7057
        %v7166 = vadd.f32 %v6695, %v7098
        %v7167 = vadd.f32 %v6696, %v7139
        %v7168 = vadd.f32 %v6697, %v6937
        %v7169 = vadd.f32 %v6698, %v6978
        %v7170 = vadd.f32 %v6699, %v7019
        %v7171 = vadd.f32 %v6700, %v7060
        %v7172 = vadd.f32 %v6701, %v7101
        %v7173 = vadd.f32 %v6702, %v7142
        %v7174 = vadd.f32 %v6703, %v6940
        %v7175 = vadd.f32 %v6704, %v6981
        %v7176 = vadd.f32 %v6705, %v7022
        %v7177 = vadd.f32 %v6706, %v7063
        %v7178 = vadd.f32 %v6707, %v7104
        %v7179 = vadd.f32 %v6708, %v7145
        %v7180 = vadd.f32 %v6709, %v6943
        %v7181 = vadd.f32 %v6710, %v6984
        %v7182 = vadd.f32 %v6711, %v7025
        %v7183 = vadd.f32 %v6712, %v7066
        %v7184 = vadd.f32 %v6713, %v7107
        %v7185 = vadd.f32 %v6714, %v7148
        %v7186 = vadd.f32 %v6715, %v6946
        %v7187 = vadd.f32 %v6716, %v6987
        %v7188 = vadd.f32 %v6717, %v7028
        %v7189 = vadd.f32 %v6718, %v7069
        %v7190 = vadd.f32 %v6719, %v7110
        %v7191 = vadd.f32 %v6720, %v7151
        %v7192 = vadd.f32 %v6721, %v6949
        %v7193 = vadd.f32 %v6722, %v6990
        %v7194 = vadd.f32 %v6723, %v7031
        %v7195 = vadd.f32 %v6724, %v7072
        %v7196 = vadd.f32 %v6725, %v7113
        %v7197 = vadd.f32 %v6726, %v7154
        %v7198 = vadd.f32 %v6727, %v6952
        %v7199 = vadd.f32 %v6728, %v6993
        %v7200 = vadd.f32 %v6729, %v7034
        %v7201 = vadd.f32 %v6730, %v7075
        %v7202 = vadd.f32 %v6731, %v7116
        %v7203 = vadd.f32 %v6732, %v7157
        %v7204 = vadd.f32 %v6733, %v6955
        %v7205 = vadd.f32 %v6734, %v6996
        %v7206 = vadd.f32 %v6735, %v7037
        %v7207 = vadd.f32 %v6736, %v7078
        %v7208 = vadd.f32 %v6737, %v7119
        %v7209 = vadd.f32 %v6738, %v7160
        %7210 = vrot.lane.b32.xlu0 %v4577, 111
        %v7211 = vpop.permute.xlu0 %7210
        %7212 = vrot.lane.b32.xlu0 %v4583, 111
        %v7213 = vpop.permute.xlu0 %7212
        %7214 = vrot.lane.b32.xlu0 %v4589, 111
        %v7215 = vpop.permute.xlu0 %7214
        %7216 = vrot.lane.b32.xlu0 %v4595, 111
        %v7217 = vpop.permute.xlu0 %7216
        %7218 = vrot.lane.b32.xlu0 %v4601, 111
        %v7219 = vpop.permute.xlu0 %7218
        %7220 = vrot.lane.b32.xlu0 %v4607, 111
        %v7221 = vpop.permute.xlu0 %7220
        %7222 = vrot.lane.b32.xlu0 %v4613, 111
        %v7223 = vpop.permute.xlu0 %7222
        %7224 = vrot.lane.b32.xlu0 %v4619, 111
        %v7225 = vpop.permute.xlu0 %7224
        %7226 = vrot.lane.b32.xlu0 %v4578, 111
        %v7227 = vpop.permute.xlu0 %7226
        %7228 = vrot.lane.b32.xlu0 %v4584, 111
        %v7229 = vpop.permute.xlu0 %7228
        %7230 = vrot.lane.b32.xlu0 %v4590, 111
        %v7231 = vpop.permute.xlu0 %7230
        %7232 = vrot.lane.b32.xlu0 %v4596, 111
        %v7233 = vpop.permute.xlu0 %7232
        %7234 = vrot.lane.b32.xlu0 %v4602, 111
        %v7235 = vpop.permute.xlu0 %7234
        %7236 = vrot.lane.b32.xlu0 %v4608, 111
        %v7237 = vpop.permute.xlu0 %7236
        %7238 = vrot.lane.b32.xlu0 %v4614, 111
        %v7239 = vpop.permute.xlu0 %7238
        %7240 = vrot.lane.b32.xlu0 %v4620, 111
        %v7241 = vpop.permute.xlu0 %7240
        %7242 = vrot.lane.b32.xlu0 %v4579, 111
        %v7243 = vpop.permute.xlu0 %7242
        %7244 = vrot.lane.b32.xlu0 %v4585, 111
        %v7245 = vpop.permute.xlu0 %7244
        %7246 = vrot.lane.b32.xlu0 %v4591, 111
        %v7247 = vpop.permute.xlu0 %7246
        %7248 = vrot.lane.b32.xlu0 %v4597, 111
        %v7249 = vpop.permute.xlu0 %7248
        %7250 = vrot.lane.b32.xlu0 %v4603, 111
        %v7251 = vpop.permute.xlu0 %7250
        %7252 = vrot.lane.b32.xlu0 %v4609, 111
        %v7253 = vpop.permute.xlu0 %7252
        %7254 = vrot.lane.b32.xlu0 %v4615, 111
        %v7255 = vpop.permute.xlu0 %7254
        %7256 = vrot.lane.b32.xlu0 %v4621, 111
        %v7257 = vpop.permute.xlu0 %7256
        %7258 = vrot.lane.b32.xlu0 %v4580, 111
        %v7259 = vpop.permute.xlu0 %7258
        %7260 = vrot.lane.b32.xlu0 %v4586, 111
        %v7261 = vpop.permute.xlu0 %7260
        %7262 = vrot.lane.b32.xlu0 %v4592, 111
        %v7263 = vpop.permute.xlu0 %7262
        %7264 = vrot.lane.b32.xlu0 %v4598, 111
        %v7265 = vpop.permute.xlu0 %7264
        %7266 = vrot.lane.b32.xlu0 %v4604, 111
        %v7267 = vpop.permute.xlu0 %7266
        %7268 = vrot.lane.b32.xlu0 %v4610, 111
        %v7269 = vpop.permute.xlu0 %7268
        %7270 = vrot.lane.b32.xlu0 %v4616, 111
        %v7271 = vpop.permute.xlu0 %7270
        %7272 = vrot.lane.b32.xlu0 %v4622, 111
        %v7273 = vpop.permute.xlu0 %7272
        %7274 = vrot.lane.b32.xlu0 %v4581, 111
        %v7275 = vpop.permute.xlu0 %7274
        %7276 = vrot.lane.b32.xlu0 %v4587, 111
        %v7277 = vpop.permute.xlu0 %7276
        %7278 = vrot.lane.b32.xlu0 %v4593, 111
        %v7279 = vpop.permute.xlu0 %7278
        %7280 = vrot.lane.b32.xlu0 %v4599, 111
        %v7281 = vpop.permute.xlu0 %7280
        %7282 = vrot.lane.b32.xlu0 %v4605, 111
        %v7283 = vpop.permute.xlu0 %7282
        %7284 = vrot.lane.b32.xlu0 %v4611, 111
        %v7285 = vpop.permute.xlu0 %7284
        %7286 = vrot.lane.b32.xlu0 %v4617, 111
        %v7287 = vpop.permute.xlu0 %7286
        %7288 = vrot.lane.b32.xlu0 %v4623, 111
        %v7289 = vpop.permute.xlu0 %7288
        %7290 = vrot.lane.b32.xlu0 %v4582, 111
        %v7291 = vpop.permute.xlu0 %7290
        %7292 = vrot.lane.b32.xlu0 %v4588, 111
        %v7293 = vpop.permute.xlu0 %7292
        %7294 = vrot.lane.b32.xlu0 %v4594, 111
        %v7295 = vpop.permute.xlu0 %7294
        %7296 = vrot.lane.b32.xlu0 %v4600, 111
        %v7297 = vpop.permute.xlu0 %7296
        %7298 = vrot.lane.b32.xlu0 %v4606, 111
        %v7299 = vpop.permute.xlu0 %7298
        %7300 = vrot.lane.b32.xlu0 %v4612, 111
        %v7301 = vpop.permute.xlu0 %7300
        %7302 = vrot.lane.b32.xlu0 %v4618, 111
        %v7303 = vpop.permute.xlu0 %7302
        %7304 = vrot.lane.b32.xlu0 %v4624, 111
        %v7305 = vpop.permute.xlu0 %7304
        %v7306 = vsel %vm3100, %v7275, %v7291
        %v7307 = vsel %vm3100, %v7277, %v7293
        %v7308 = vsel %vm3100, %v7279, %v7295
        %v7309 = vsel %vm3100, %v7281, %v7297
        %v7310 = vsel %vm3100, %v7283, %v7299
        %v7311 = vsel %vm3100, %v7285, %v7301
        %v7312 = vsel %vm3100, %v7287, %v7303
        %v7313 = vsel %vm3100, %v7289, %v7305
        %v7314 = vsel %vm3100, %v7259, %v7275
        %v7315 = vsel %vm3100, %v7261, %v7277
        %v7316 = vsel %vm3100, %v7263, %v7279
        %v7317 = vsel %vm3100, %v7265, %v7281
        %v7318 = vsel %vm3100, %v7267, %v7283
        %v7319 = vsel %vm3100, %v7269, %v7285
        %v7320 = vsel %vm3100, %v7271, %v7287
        %v7321 = vsel %vm3100, %v7273, %v7289
        %v7322 = vsel %vm3100, %v7243, %v7259
        %v7323 = vsel %vm3100, %v7245, %v7261
        %v7324 = vsel %vm3100, %v7247, %v7263
        %v7325 = vsel %vm3100, %v7249, %v7265
        %v7326 = vsel %vm3100, %v7251, %v7267
        %v7327 = vsel %vm3100, %v7253, %v7269
        %v7328 = vsel %vm3100, %v7255, %v7271
        %v7329 = vsel %vm3100, %v7257, %v7273
        %v7330 = vsel %vm3100, %v7227, %v7243
        %v7331 = vsel %vm3100, %v7229, %v7245
        %v7332 = vsel %vm3100, %v7231, %v7247
        %v7333 = vsel %vm3100, %v7233, %v7249
        %v7334 = vsel %vm3100, %v7235, %v7251
        %v7335 = vsel %vm3100, %v7237, %v7253
        %v7336 = vsel %vm3100, %v7239, %v7255
        %v7337 = vsel %vm3100, %v7241, %v7257
        %v7338 = vsel %vm3100, %v7211, %v7227
        %v7339 = vsel %vm3100, %v7213, %v7229
        %v7340 = vsel %vm3100, %v7215, %v7231
        %v7341 = vsel %vm3100, %v7217, %v7233
        %v7342 = vsel %vm3100, %v7219, %v7235
        %v7343 = vsel %vm3100, %v7221, %v7237
        %v7344 = vsel %vm3100, %v7223, %v7239
        %v7345 = vsel %vm3100, %v7225, %v7241
        %v7346 = vsel %vm3100, %v7291, %v7211
        %v7347 = vsel %vm3100, %v7293, %v7213
        %v7348 = vsel %vm3100, %v7295, %v7215
        %v7349 = vsel %vm3100, %v7297, %v7217
        %v7350 = vsel %vm3100, %v7299, %v7219
        %v7351 = vsel %vm3100, %v7301, %v7221
        %v7352 = vsel %vm3100, %v7303, %v7223
        %v7353 = vsel %vm3100, %v7305, %v7225
        %s7354 = scalar_lea.vmem %s4, 384
        %v7355 = vld [vmem:[%s7354] sm:$0xff]
        %v7356 = vld [vmem:[%s7354 + $0x8] sm:$0xff]
        %v7357 = vld [vmem:[%s7354 + $0x10] sm:$0xff]
        %v7358 = vld [vmem:[%s7354 + $0x18] sm:$0xff]
        %v7359 = vld [vmem:[%s7354 + $0x20] sm:$0xff]
        %v7360 = vld [vmem:[%s7354 + $0x28] sm:$0xff]
        %v7361 = vld [vmem:[%s7354 + $0x30] sm:$0xff]
        %v7362 = vld [vmem:[%s7354 + $0x38] sm:$0xff]
        %v7364 = vsel %vm720, %v7355, 0
        %v7367 = vsel %vm720, %v7356, 0
        %v7370 = vsel %vm720, %v7357, 0
        %v7373 = vsel %vm720, %v7358, 0
        %v7376 = vsel %vm720, %v7359, 0
        %v7379 = vsel %vm720, %v7360, 0
        %v7382 = vsel %vm720, %v7361, 0
        %v7385 = vsel %vm720, %v7362, 0
        %7387 = vmatpush.msra.mxu0 0.0
        %7388 = vmatpush.msra.mxu0 0.0
        %7389 = vmatpush.msra.mxu0 0.0
        %7390 = vmatpush.msra.mxu0 0.0
        %7391 = vmatpush.msra.mxu0 0.0
        %7392 = vmatpush.msra.mxu0 0.0
        %7393 = vmatpush.msra.mxu0 0.0
        %7394 = vmatpush.msra.mxu0 0.0
        %7395 = vmatpush.msra.mxu0 %v7345
        %7396 = vmatpush.msra.mxu0 %v7344
        %7397 = vmatpush.msra.mxu0 %v7343
        %7398 = vmatpush.msra.mxu0 %v7342
        %7399 = vmatpush.msra.mxu0 %v7341
        %7400 = vmatpush.msra.mxu0 %v7340
        %7401 = vmatpush.msra.mxu0 %v7339
        %7402 = vmatpush.msra.mxu0 %v7338
        %7403 = vmatmul.f32.gmra.mxu0 %v7364
        %v7404 = vpop.f32.mrf.mxu0
        %v7405 = vadd.f32 0.0, %v7404
        %7406 = vmatmul.f32.gmra.mxu0 %v7367
        %v7407 = vpop.f32.mrf.mxu0
        %v7408 = vadd.f32 0.0, %v7407
        %7409 = vmatmul.f32.gmra.mxu0 %v7370
        %v7410 = vpop.f32.mrf.mxu0
        %v7411 = vadd.f32 0.0, %v7410
        %7412 = vmatmul.f32.gmra.mxu0 %v7373
        %v7413 = vpop.f32.mrf.mxu0
        %v7414 = vadd.f32 0.0, %v7413
        %7415 = vmatmul.f32.gmra.mxu0 %v7376
        %v7416 = vpop.f32.mrf.mxu0
        %v7417 = vadd.f32 0.0, %v7416
        %7418 = vmatmul.f32.gmra.mxu0 %v7379
        %v7419 = vpop.f32.mrf.mxu0
        %v7420 = vadd.f32 0.0, %v7419
        %7421 = vmatmul.f32.gmra.mxu0 %v7382
        %v7422 = vpop.f32.mrf.mxu0
        %v7423 = vadd.f32 0.0, %v7422
        %7424 = vmatmul.f32.gmra.mxu0 %v7385
        %v7425 = vpop.f32.mrf.mxu0
        %v7426 = vadd.f32 0.0, %v7425
        %7427 = vdwg.mxu0
        %7428 = vmatpush.msra.mxu0 0.0
        %7429 = vmatpush.msra.mxu0 0.0
        %7430 = vmatpush.msra.mxu0 0.0
        %7431 = vmatpush.msra.mxu0 0.0
        %7432 = vmatpush.msra.mxu0 0.0
        %7433 = vmatpush.msra.mxu0 0.0
        %7434 = vmatpush.msra.mxu0 0.0
        %7435 = vmatpush.msra.mxu0 0.0
        %7436 = vmatpush.msra.mxu0 %v7337
        %7437 = vmatpush.msra.mxu0 %v7336
        %7438 = vmatpush.msra.mxu0 %v7335
        %7439 = vmatpush.msra.mxu0 %v7334
        %7440 = vmatpush.msra.mxu0 %v7333
        %7441 = vmatpush.msra.mxu0 %v7332
        %7442 = vmatpush.msra.mxu0 %v7331
        %7443 = vmatpush.msra.mxu0 %v7330
        %7444 = vmatmul.f32.gmra.mxu0 %v7364
        %v7445 = vpop.f32.mrf.mxu0
        %v7446 = vadd.f32 0.0, %v7445
        %7447 = vmatmul.f32.gmra.mxu0 %v7367
        %v7448 = vpop.f32.mrf.mxu0
        %v7449 = vadd.f32 0.0, %v7448
        %7450 = vmatmul.f32.gmra.mxu0 %v7370
        %v7451 = vpop.f32.mrf.mxu0
        %v7452 = vadd.f32 0.0, %v7451
        %7453 = vmatmul.f32.gmra.mxu0 %v7373
        %v7454 = vpop.f32.mrf.mxu0
        %v7455 = vadd.f32 0.0, %v7454
        %7456 = vmatmul.f32.gmra.mxu0 %v7376
        %v7457 = vpop.f32.mrf.mxu0
        %v7458 = vadd.f32 0.0, %v7457
        %7459 = vmatmul.f32.gmra.mxu0 %v7379
        %v7460 = vpop.f32.mrf.mxu0
        %v7461 = vadd.f32 0.0, %v7460
        %7462 = vmatmul.f32.gmra.mxu0 %v7382
        %v7463 = vpop.f32.mrf.mxu0
        %v7464 = vadd.f32 0.0, %v7463
        %7465 = vmatmul.f32.gmra.mxu0 %v7385
        %v7466 = vpop.f32.mrf.mxu0
        %v7467 = vadd.f32 0.0, %v7466
        %7468 = vdwg.mxu0
        %7469 = vmatpush.msra.mxu0 0.0
        %7470 = vmatpush.msra.mxu0 0.0
        %7471 = vmatpush.msra.mxu0 0.0
        %7472 = vmatpush.msra.mxu0 0.0
        %7473 = vmatpush.msra.mxu0 0.0
        %7474 = vmatpush.msra.mxu0 0.0
        %7475 = vmatpush.msra.mxu0 0.0
        %7476 = vmatpush.msra.mxu0 0.0
        %7477 = vmatpush.msra.mxu0 %v7329
        %7478 = vmatpush.msra.mxu0 %v7328
        %7479 = vmatpush.msra.mxu0 %v7327
        %7480 = vmatpush.msra.mxu0 %v7326
        %7481 = vmatpush.msra.mxu0 %v7325
        %7482 = vmatpush.msra.mxu0 %v7324
        %7483 = vmatpush.msra.mxu0 %v7323
        %7484 = vmatpush.msra.mxu0 %v7322
        %7485 = vmatmul.f32.gmra.mxu0 %v7364
        %v7486 = vpop.f32.mrf.mxu0
        %v7487 = vadd.f32 0.0, %v7486
        %7488 = vmatmul.f32.gmra.mxu0 %v7367
        %v7489 = vpop.f32.mrf.mxu0
        %v7490 = vadd.f32 0.0, %v7489
        %7491 = vmatmul.f32.gmra.mxu0 %v7370
        %v7492 = vpop.f32.mrf.mxu0
        %v7493 = vadd.f32 0.0, %v7492
        %7494 = vmatmul.f32.gmra.mxu0 %v7373
        %v7495 = vpop.f32.mrf.mxu0
        %v7496 = vadd.f32 0.0, %v7495
        %7497 = vmatmul.f32.gmra.mxu0 %v7376
        %v7498 = vpop.f32.mrf.mxu0
        %v7499 = vadd.f32 0.0, %v7498
        %7500 = vmatmul.f32.gmra.mxu0 %v7379
        %v7501 = vpop.f32.mrf.mxu0
        %v7502 = vadd.f32 0.0, %v7501
        %7503 = vmatmul.f32.gmra.mxu0 %v7382
        %v7504 = vpop.f32.mrf.mxu0
        %v7505 = vadd.f32 0.0, %v7504
        %7506 = vmatmul.f32.gmra.mxu0 %v7385
        %v7507 = vpop.f32.mrf.mxu0
        %v7508 = vadd.f32 0.0, %v7507
        %7509 = vdwg.mxu0
        %7510 = vmatpush.msra.mxu0 0.0
        %7511 = vmatpush.msra.mxu0 0.0
        %7512 = vmatpush.msra.mxu0 0.0
        %7513 = vmatpush.msra.mxu0 0.0
        %7514 = vmatpush.msra.mxu0 0.0
        %7515 = vmatpush.msra.mxu0 0.0
        %7516 = vmatpush.msra.mxu0 0.0
        %7517 = vmatpush.msra.mxu0 0.0
        %7518 = vmatpush.msra.mxu0 %v7321
        %7519 = vmatpush.msra.mxu0 %v7320
        %7520 = vmatpush.msra.mxu0 %v7319
        %7521 = vmatpush.msra.mxu0 %v7318
        %7522 = vmatpush.msra.mxu0 %v7317
        %7523 = vmatpush.msra.mxu0 %v7316
        %7524 = vmatpush.msra.mxu0 %v7315
        %7525 = vmatpush.msra.mxu0 %v7314
        %7526 = vmatmul.f32.gmra.mxu0 %v7364
        %v7527 = vpop.f32.mrf.mxu0
        %v7528 = vadd.f32 0.0, %v7527
        %7529 = vmatmul.f32.gmra.mxu0 %v7367
        %v7530 = vpop.f32.mrf.mxu0
        %v7531 = vadd.f32 0.0, %v7530
        %7532 = vmatmul.f32.gmra.mxu0 %v7370
        %v7533 = vpop.f32.mrf.mxu0
        %v7534 = vadd.f32 0.0, %v7533
        %7535 = vmatmul.f32.gmra.mxu0 %v7373
        %v7536 = vpop.f32.mrf.mxu0
        %v7537 = vadd.f32 0.0, %v7536
        %7538 = vmatmul.f32.gmra.mxu0 %v7376
        %v7539 = vpop.f32.mrf.mxu0
        %v7540 = vadd.f32 0.0, %v7539
        %7541 = vmatmul.f32.gmra.mxu0 %v7379
        %v7542 = vpop.f32.mrf.mxu0
        %v7543 = vadd.f32 0.0, %v7542
        %7544 = vmatmul.f32.gmra.mxu0 %v7382
        %v7545 = vpop.f32.mrf.mxu0
        %v7546 = vadd.f32 0.0, %v7545
        %7547 = vmatmul.f32.gmra.mxu0 %v7385
        %v7548 = vpop.f32.mrf.mxu0
        %v7549 = vadd.f32 0.0, %v7548
        %7550 = vdwg.mxu0
        %7551 = vmatpush.msra.mxu0 0.0
        %7552 = vmatpush.msra.mxu0 0.0
        %7553 = vmatpush.msra.mxu0 0.0
        %7554 = vmatpush.msra.mxu0 0.0
        %7555 = vmatpush.msra.mxu0 0.0
        %7556 = vmatpush.msra.mxu0 0.0
        %7557 = vmatpush.msra.mxu0 0.0
        %7558 = vmatpush.msra.mxu0 0.0
        %7559 = vmatpush.msra.mxu0 %v7313
        %7560 = vmatpush.msra.mxu0 %v7312
        %7561 = vmatpush.msra.mxu0 %v7311
        %7562 = vmatpush.msra.mxu0 %v7310
        %7563 = vmatpush.msra.mxu0 %v7309
        %7564 = vmatpush.msra.mxu0 %v7308
        %7565 = vmatpush.msra.mxu0 %v7307
        %7566 = vmatpush.msra.mxu0 %v7306
        %7567 = vmatmul.f32.gmra.mxu0 %v7364
        %v7568 = vpop.f32.mrf.mxu0
        %v7569 = vadd.f32 0.0, %v7568
        %7570 = vmatmul.f32.gmra.mxu0 %v7367
        %v7571 = vpop.f32.mrf.mxu0
        %v7572 = vadd.f32 0.0, %v7571
        %7573 = vmatmul.f32.gmra.mxu0 %v7370
        %v7574 = vpop.f32.mrf.mxu0
        %v7575 = vadd.f32 0.0, %v7574
        %7576 = vmatmul.f32.gmra.mxu0 %v7373
        %v7577 = vpop.f32.mrf.mxu0
        %v7578 = vadd.f32 0.0, %v7577
        %7579 = vmatmul.f32.gmra.mxu0 %v7376
        %v7580 = vpop.f32.mrf.mxu0
        %v7581 = vadd.f32 0.0, %v7580
        %7582 = vmatmul.f32.gmra.mxu0 %v7379
        %v7583 = vpop.f32.mrf.mxu0
        %v7584 = vadd.f32 0.0, %v7583
        %7585 = vmatmul.f32.gmra.mxu0 %v7382
        %v7586 = vpop.f32.mrf.mxu0
        %v7587 = vadd.f32 0.0, %v7586
        %7588 = vmatmul.f32.gmra.mxu0 %v7385
        %v7589 = vpop.f32.mrf.mxu0
        %v7590 = vadd.f32 0.0, %v7589
        %7591 = vdwg.mxu0
        %7592 = vmatpush.msra.mxu0 0.0
        %7593 = vmatpush.msra.mxu0 0.0
        %7594 = vmatpush.msra.mxu0 0.0
        %7595 = vmatpush.msra.mxu0 0.0
        %7596 = vmatpush.msra.mxu0 0.0
        %7597 = vmatpush.msra.mxu0 0.0
        %7598 = vmatpush.msra.mxu0 0.0
        %7599 = vmatpush.msra.mxu0 0.0
        %7600 = vmatpush.msra.mxu0 %v7353
        %7601 = vmatpush.msra.mxu0 %v7352
        %7602 = vmatpush.msra.mxu0 %v7351
        %7603 = vmatpush.msra.mxu0 %v7350
        %7604 = vmatpush.msra.mxu0 %v7349
        %7605 = vmatpush.msra.mxu0 %v7348
        %7606 = vmatpush.msra.mxu0 %v7347
        %7607 = vmatpush.msra.mxu0 %v7346
        %7608 = vmatmul.f32.gmra.mxu0 %v7364
        %v7609 = vpop.f32.mrf.mxu0
        %v7610 = vadd.f32 0.0, %v7609
        %7611 = vmatmul.f32.gmra.mxu0 %v7367
        %v7612 = vpop.f32.mrf.mxu0
        %v7613 = vadd.f32 0.0, %v7612
        %7614 = vmatmul.f32.gmra.mxu0 %v7370
        %v7615 = vpop.f32.mrf.mxu0
        %v7616 = vadd.f32 0.0, %v7615
        %7617 = vmatmul.f32.gmra.mxu0 %v7373
        %v7618 = vpop.f32.mrf.mxu0
        %v7619 = vadd.f32 0.0, %v7618
        %7620 = vmatmul.f32.gmra.mxu0 %v7376
        %v7621 = vpop.f32.mrf.mxu0
        %v7622 = vadd.f32 0.0, %v7621
        %7623 = vmatmul.f32.gmra.mxu0 %v7379
        %v7624 = vpop.f32.mrf.mxu0
        %v7625 = vadd.f32 0.0, %v7624
        %7626 = vmatmul.f32.gmra.mxu0 %v7382
        %v7627 = vpop.f32.mrf.mxu0
        %v7628 = vadd.f32 0.0, %v7627
        %7629 = vmatmul.f32.gmra.mxu0 %v7385
        %v7630 = vpop.f32.mrf.mxu0
        %v7631 = vadd.f32 0.0, %v7630
        %7632 = vdwg.mxu0
        %v7633 = vadd.f32 %v7162, %v7405
        %v7634 = vadd.f32 %v7163, %v7446
        %v7635 = vadd.f32 %v7164, %v7487
        %v7636 = vadd.f32 %v7165, %v7528
        %v7637 = vadd.f32 %v7166, %v7569
        %v7638 = vadd.f32 %v7167, %v7610
        %v7639 = vadd.f32 %v7168, %v7408
        %v7640 = vadd.f32 %v7169, %v7449
        %v7641 = vadd.f32 %v7170, %v7490
        %v7642 = vadd.f32 %v7171, %v7531
        %v7643 = vadd.f32 %v7172, %v7572
        %v7644 = vadd.f32 %v7173, %v7613
        %v7645 = vadd.f32 %v7174, %v7411
        %v7646 = vadd.f32 %v7175, %v7452
        %v7647 = vadd.f32 %v7176, %v7493
        %v7648 = vadd.f32 %v7177, %v7534
        %v7649 = vadd.f32 %v7178, %v7575
        %v7650 = vadd.f32 %v7179, %v7616
        %v7651 = vadd.f32 %v7180, %v7414
        %v7652 = vadd.f32 %v7181, %v7455
        %v7653 = vadd.f32 %v7182, %v7496
        %v7654 = vadd.f32 %v7183, %v7537
        %v7655 = vadd.f32 %v7184, %v7578
        %v7656 = vadd.f32 %v7185, %v7619
        %v7657 = vadd.f32 %v7186, %v7417
        %v7658 = vadd.f32 %v7187, %v7458
        %v7659 = vadd.f32 %v7188, %v7499
        %v7660 = vadd.f32 %v7189, %v7540
        %v7661 = vadd.f32 %v7190, %v7581
        %v7662 = vadd.f32 %v7191, %v7622
        %v7663 = vadd.f32 %v7192, %v7420
        %v7664 = vadd.f32 %v7193, %v7461
        %v7665 = vadd.f32 %v7194, %v7502
        %v7666 = vadd.f32 %v7195, %v7543
        %v7667 = vadd.f32 %v7196, %v7584
        %v7668 = vadd.f32 %v7197, %v7625
        %v7669 = vadd.f32 %v7198, %v7423
        %v7670 = vadd.f32 %v7199, %v7464
        %v7671 = vadd.f32 %v7200, %v7505
        %v7672 = vadd.f32 %v7201, %v7546
        %v7673 = vadd.f32 %v7202, %v7587
        %v7674 = vadd.f32 %v7203, %v7628
        %v7675 = vadd.f32 %v7204, %v7426
        %v7676 = vadd.f32 %v7205, %v7467
        %v7677 = vadd.f32 %v7206, %v7508
        %v7678 = vadd.f32 %v7207, %v7549
        %v7679 = vadd.f32 %v7208, %v7590
        %v7680 = vadd.f32 %v7209, %v7631
        %7681 = vrot.lane.b32.xlu0 %v4577, 110
        %v7682 = vpop.permute.xlu0 %7681
        %7683 = vrot.lane.b32.xlu0 %v4583, 110
        %v7684 = vpop.permute.xlu0 %7683
        %7685 = vrot.lane.b32.xlu0 %v4589, 110
        %v7686 = vpop.permute.xlu0 %7685
        %7687 = vrot.lane.b32.xlu0 %v4595, 110
        %v7688 = vpop.permute.xlu0 %7687
        %7689 = vrot.lane.b32.xlu0 %v4601, 110
        %v7690 = vpop.permute.xlu0 %7689
        %7691 = vrot.lane.b32.xlu0 %v4607, 110
        %v7692 = vpop.permute.xlu0 %7691
        %7693 = vrot.lane.b32.xlu0 %v4613, 110
        %v7694 = vpop.permute.xlu0 %7693
        %7695 = vrot.lane.b32.xlu0 %v4619, 110
        %v7696 = vpop.permute.xlu0 %7695
        %7697 = vrot.lane.b32.xlu0 %v4578, 110
        %v7698 = vpop.permute.xlu0 %7697
        %7699 = vrot.lane.b32.xlu0 %v4584, 110
        %v7700 = vpop.permute.xlu0 %7699
        %7701 = vrot.lane.b32.xlu0 %v4590, 110
        %v7702 = vpop.permute.xlu0 %7701
        %7703 = vrot.lane.b32.xlu0 %v4596, 110
        %v7704 = vpop.permute.xlu0 %7703
        %7705 = vrot.lane.b32.xlu0 %v4602, 110
        %v7706 = vpop.permute.xlu0 %7705
        %7707 = vrot.lane.b32.xlu0 %v4608, 110
        %v7708 = vpop.permute.xlu0 %7707
        %7709 = vrot.lane.b32.xlu0 %v4614, 110
        %v7710 = vpop.permute.xlu0 %7709
        %7711 = vrot.lane.b32.xlu0 %v4620, 110
        %v7712 = vpop.permute.xlu0 %7711
        %7713 = vrot.lane.b32.xlu0 %v4579, 110
        %v7714 = vpop.permute.xlu0 %7713
        %7715 = vrot.lane.b32.xlu0 %v4585, 110
        %v7716 = vpop.permute.xlu0 %7715
        %7717 = vrot.lane.b32.xlu0 %v4591, 110
        %v7718 = vpop.permute.xlu0 %7717
        %7719 = vrot.lane.b32.xlu0 %v4597, 110
        %v7720 = vpop.permute.xlu0 %7719
        %7721 = vrot.lane.b32.xlu0 %v4603, 110
        %v7722 = vpop.permute.xlu0 %7721
        %7723 = vrot.lane.b32.xlu0 %v4609, 110
        %v7724 = vpop.permute.xlu0 %7723
        %7725 = vrot.lane.b32.xlu0 %v4615, 110
        %v7726 = vpop.permute.xlu0 %7725
        %7727 = vrot.lane.b32.xlu0 %v4621, 110
        %v7728 = vpop.permute.xlu0 %7727
        %7729 = vrot.lane.b32.xlu0 %v4580, 110
        %v7730 = vpop.permute.xlu0 %7729
        %7731 = vrot.lane.b32.xlu0 %v4586, 110
        %v7732 = vpop.permute.xlu0 %7731
        %7733 = vrot.lane.b32.xlu0 %v4592, 110
        %v7734 = vpop.permute.xlu0 %7733
        %7735 = vrot.lane.b32.xlu0 %v4598, 110
        %v7736 = vpop.permute.xlu0 %7735
        %7737 = vrot.lane.b32.xlu0 %v4604, 110
        %v7738 = vpop.permute.xlu0 %7737
        %7739 = vrot.lane.b32.xlu0 %v4610, 110
        %v7740 = vpop.permute.xlu0 %7739
        %7741 = vrot.lane.b32.xlu0 %v4616, 110
        %v7742 = vpop.permute.xlu0 %7741
        %7743 = vrot.lane.b32.xlu0 %v4622, 110
        %v7744 = vpop.permute.xlu0 %7743
        %7745 = vrot.lane.b32.xlu0 %v4581, 110
        %v7746 = vpop.permute.xlu0 %7745
        %7747 = vrot.lane.b32.xlu0 %v4587, 110
        %v7748 = vpop.permute.xlu0 %7747
        %7749 = vrot.lane.b32.xlu0 %v4593, 110
        %v7750 = vpop.permute.xlu0 %7749
        %7751 = vrot.lane.b32.xlu0 %v4599, 110
        %v7752 = vpop.permute.xlu0 %7751
        %7753 = vrot.lane.b32.xlu0 %v4605, 110
        %v7754 = vpop.permute.xlu0 %7753
        %7755 = vrot.lane.b32.xlu0 %v4611, 110
        %v7756 = vpop.permute.xlu0 %7755
        %7757 = vrot.lane.b32.xlu0 %v4617, 110
        %v7758 = vpop.permute.xlu0 %7757
        %7759 = vrot.lane.b32.xlu0 %v4623, 110
        %v7760 = vpop.permute.xlu0 %7759
        %7761 = vrot.lane.b32.xlu0 %v4582, 110
        %v7762 = vpop.permute.xlu0 %7761
        %7763 = vrot.lane.b32.xlu0 %v4588, 110
        %v7764 = vpop.permute.xlu0 %7763
        %7765 = vrot.lane.b32.xlu0 %v4594, 110
        %v7766 = vpop.permute.xlu0 %7765
        %7767 = vrot.lane.b32.xlu0 %v4600, 110
        %v7768 = vpop.permute.xlu0 %7767
        %7769 = vrot.lane.b32.xlu0 %v4606, 110
        %v7770 = vpop.permute.xlu0 %7769
        %7771 = vrot.lane.b32.xlu0 %v4612, 110
        %v7772 = vpop.permute.xlu0 %7771
        %7773 = vrot.lane.b32.xlu0 %v4618, 110
        %v7774 = vpop.permute.xlu0 %7773
        %7775 = vrot.lane.b32.xlu0 %v4624, 110
        %v7776 = vpop.permute.xlu0 %7775
        %v7777 = vsel %vm3572, %v7746, %v7762
        %v7778 = vsel %vm3572, %v7748, %v7764
        %v7779 = vsel %vm3572, %v7750, %v7766
        %v7780 = vsel %vm3572, %v7752, %v7768
        %v7781 = vsel %vm3572, %v7754, %v7770
        %v7782 = vsel %vm3572, %v7756, %v7772
        %v7783 = vsel %vm3572, %v7758, %v7774
        %v7784 = vsel %vm3572, %v7760, %v7776
        %v7785 = vsel %vm3572, %v7730, %v7746
        %v7786 = vsel %vm3572, %v7732, %v7748
        %v7787 = vsel %vm3572, %v7734, %v7750
        %v7788 = vsel %vm3572, %v7736, %v7752
        %v7789 = vsel %vm3572, %v7738, %v7754
        %v7790 = vsel %vm3572, %v7740, %v7756
        %v7791 = vsel %vm3572, %v7742, %v7758
        %v7792 = vsel %vm3572, %v7744, %v7760
        %v7793 = vsel %vm3572, %v7714, %v7730
        %v7794 = vsel %vm3572, %v7716, %v7732
        %v7795 = vsel %vm3572, %v7718, %v7734
        %v7796 = vsel %vm3572, %v7720, %v7736
        %v7797 = vsel %vm3572, %v7722, %v7738
        %v7798 = vsel %vm3572, %v7724, %v7740
        %v7799 = vsel %vm3572, %v7726, %v7742
        %v7800 = vsel %vm3572, %v7728, %v7744
        %v7801 = vsel %vm3572, %v7698, %v7714
        %v7802 = vsel %vm3572, %v7700, %v7716
        %v7803 = vsel %vm3572, %v7702, %v7718
        %v7804 = vsel %vm3572, %v7704, %v7720
        %v7805 = vsel %vm3572, %v7706, %v7722
        %v7806 = vsel %vm3572, %v7708, %v7724
        %v7807 = vsel %vm3572, %v7710, %v7726
        %v7808 = vsel %vm3572, %v7712, %v7728
        %v7809 = vsel %vm3572, %v7682, %v7698
        %v7810 = vsel %vm3572, %v7684, %v7700
        %v7811 = vsel %vm3572, %v7686, %v7702
        %v7812 = vsel %vm3572, %v7688, %v7704
        %v7813 = vsel %vm3572, %v7690, %v7706
        %v7814 = vsel %vm3572, %v7692, %v7708
        %v7815 = vsel %vm3572, %v7694, %v7710
        %v7816 = vsel %vm3572, %v7696, %v7712
        %v7817 = vsel %vm3572, %v7762, %v7682
        %v7818 = vsel %vm3572, %v7764, %v7684
        %v7819 = vsel %vm3572, %v7766, %v7686
        %v7820 = vsel %vm3572, %v7768, %v7688
        %v7821 = vsel %vm3572, %v7770, %v7690
        %v7822 = vsel %vm3572, %v7772, %v7692
        %v7823 = vsel %vm3572, %v7774, %v7694
        %v7824 = vsel %vm3572, %v7776, %v7696
        %s7825 = scalar_lea.vmem %s4, 448
        %v7826 = vld [vmem:[%s7825] sm:$0xff]
        %v7827 = vld [vmem:[%s7825 + $0x8] sm:$0xff]
        %v7828 = vld [vmem:[%s7825 + $0x10] sm:$0xff]
        %v7829 = vld [vmem:[%s7825 + $0x18] sm:$0xff]
        %v7830 = vld [vmem:[%s7825 + $0x20] sm:$0xff]
        %v7831 = vld [vmem:[%s7825 + $0x28] sm:$0xff]
        %v7832 = vld [vmem:[%s7825 + $0x30] sm:$0xff]
        %v7833 = vld [vmem:[%s7825 + $0x38] sm:$0xff]
        %v7835 = vsel %vm720, %v7826, 0
        %v7838 = vsel %vm720, %v7827, 0
        %v7841 = vsel %vm720, %v7828, 0
        %v7844 = vsel %vm720, %v7829, 0
        %v7847 = vsel %vm720, %v7830, 0
        %v7850 = vsel %vm720, %v7831, 0
        %v7853 = vsel %vm720, %v7832, 0
        %v7856 = vsel %vm720, %v7833, 0
        %7858 = vmatpush.msra.mxu0 0.0
        %7859 = vmatpush.msra.mxu0 0.0
        %7860 = vmatpush.msra.mxu0 0.0
        %7861 = vmatpush.msra.mxu0 0.0
        %7862 = vmatpush.msra.mxu0 0.0
        %7863 = vmatpush.msra.mxu0 0.0
        %7864 = vmatpush.msra.mxu0 0.0
        %7865 = vmatpush.msra.mxu0 0.0
        %7866 = vmatpush.msra.mxu0 %v7816
        %7867 = vmatpush.msra.mxu0 %v7815
        %7868 = vmatpush.msra.mxu0 %v7814
        %7869 = vmatpush.msra.mxu0 %v7813
        %7870 = vmatpush.msra.mxu0 %v7812
        %7871 = vmatpush.msra.mxu0 %v7811
        %7872 = vmatpush.msra.mxu0 %v7810
        %7873 = vmatpush.msra.mxu0 %v7809
        %7874 = vmatmul.f32.gmra.mxu0 %v7835
        %v7875 = vpop.f32.mrf.mxu0
        %v7876 = vadd.f32 0.0, %v7875
        %7877 = vmatmul.f32.gmra.mxu0 %v7838
        %v7878 = vpop.f32.mrf.mxu0
        %v7879 = vadd.f32 0.0, %v7878
        %7880 = vmatmul.f32.gmra.mxu0 %v7841
        %v7881 = vpop.f32.mrf.mxu0
        %v7882 = vadd.f32 0.0, %v7881
        %7883 = vmatmul.f32.gmra.mxu0 %v7844
        %v7884 = vpop.f32.mrf.mxu0
        %v7885 = vadd.f32 0.0, %v7884
        %7886 = vmatmul.f32.gmra.mxu0 %v7847
        %v7887 = vpop.f32.mrf.mxu0
        %v7888 = vadd.f32 0.0, %v7887
        %7889 = vmatmul.f32.gmra.mxu0 %v7850
        %v7890 = vpop.f32.mrf.mxu0
        %v7891 = vadd.f32 0.0, %v7890
        %7892 = vmatmul.f32.gmra.mxu0 %v7853
        %v7893 = vpop.f32.mrf.mxu0
        %v7894 = vadd.f32 0.0, %v7893
        %7895 = vmatmul.f32.gmra.mxu0 %v7856
        %v7896 = vpop.f32.mrf.mxu0
        %v7897 = vadd.f32 0.0, %v7896
        %7898 = vdwg.mxu0
        %7899 = vmatpush.msra.mxu0 0.0
        %7900 = vmatpush.msra.mxu0 0.0
        %7901 = vmatpush.msra.mxu0 0.0
        %7902 = vmatpush.msra.mxu0 0.0
        %7903 = vmatpush.msra.mxu0 0.0
        %7904 = vmatpush.msra.mxu0 0.0
        %7905 = vmatpush.msra.mxu0 0.0
        %7906 = vmatpush.msra.mxu0 0.0
        %7907 = vmatpush.msra.mxu0 %v7808
        %7908 = vmatpush.msra.mxu0 %v7807
        %7909 = vmatpush.msra.mxu0 %v7806
        %7910 = vmatpush.msra.mxu0 %v7805
        %7911 = vmatpush.msra.mxu0 %v7804
        %7912 = vmatpush.msra.mxu0 %v7803
        %7913 = vmatpush.msra.mxu0 %v7802
        %7914 = vmatpush.msra.mxu0 %v7801
        %7915 = vmatmul.f32.gmra.mxu0 %v7835
        %v7916 = vpop.f32.mrf.mxu0
        %v7917 = vadd.f32 0.0, %v7916
        %7918 = vmatmul.f32.gmra.mxu0 %v7838
        %v7919 = vpop.f32.mrf.mxu0
        %v7920 = vadd.f32 0.0, %v7919
        %7921 = vmatmul.f32.gmra.mxu0 %v7841
        %v7922 = vpop.f32.mrf.mxu0
        %v7923 = vadd.f32 0.0, %v7922
        %7924 = vmatmul.f32.gmra.mxu0 %v7844
        %v7925 = vpop.f32.mrf.mxu0
        %v7926 = vadd.f32 0.0, %v7925
        %7927 = vmatmul.f32.gmra.mxu0 %v7847
        %v7928 = vpop.f32.mrf.mxu0
        %v7929 = vadd.f32 0.0, %v7928
        %7930 = vmatmul.f32.gmra.mxu0 %v7850
        %v7931 = vpop.f32.mrf.mxu0
        %v7932 = vadd.f32 0.0, %v7931
        %7933 = vmatmul.f32.gmra.mxu0 %v7853
        %v7934 = vpop.f32.mrf.mxu0
        %v7935 = vadd.f32 0.0, %v7934
        %7936 = vmatmul.f32.gmra.mxu0 %v7856
        %v7937 = vpop.f32.mrf.mxu0
        %v7938 = vadd.f32 0.0, %v7937
        %7939 = vdwg.mxu0
        %7940 = vmatpush.msra.mxu0 0.0
        %7941 = vmatpush.msra.mxu0 0.0
        %7942 = vmatpush.msra.mxu0 0.0
        %7943 = vmatpush.msra.mxu0 0.0
        %7944 = vmatpush.msra.mxu0 0.0
        %7945 = vmatpush.msra.mxu0 0.0
        %7946 = vmatpush.msra.mxu0 0.0
        %7947 = vmatpush.msra.mxu0 0.0
        %7948 = vmatpush.msra.mxu0 %v7800
        %7949 = vmatpush.msra.mxu0 %v7799
        %7950 = vmatpush.msra.mxu0 %v7798
        %7951 = vmatpush.msra.mxu0 %v7797
        %7952 = vmatpush.msra.mxu0 %v7796
        %7953 = vmatpush.msra.mxu0 %v7795
        %7954 = vmatpush.msra.mxu0 %v7794
        %7955 = vmatpush.msra.mxu0 %v7793
        %7956 = vmatmul.f32.gmra.mxu0 %v7835
        %v7957 = vpop.f32.mrf.mxu0
        %v7958 = vadd.f32 0.0, %v7957
        %7959 = vmatmul.f32.gmra.mxu0 %v7838
        %v7960 = vpop.f32.mrf.mxu0
        %v7961 = vadd.f32 0.0, %v7960
        %7962 = vmatmul.f32.gmra.mxu0 %v7841
        %v7963 = vpop.f32.mrf.mxu0
        %v7964 = vadd.f32 0.0, %v7963
        %7965 = vmatmul.f32.gmra.mxu0 %v7844
        %v7966 = vpop.f32.mrf.mxu0
        %v7967 = vadd.f32 0.0, %v7966
        %7968 = vmatmul.f32.gmra.mxu0 %v7847
        %v7969 = vpop.f32.mrf.mxu0
        %v7970 = vadd.f32 0.0, %v7969
        %7971 = vmatmul.f32.gmra.mxu0 %v7850
        %v7972 = vpop.f32.mrf.mxu0
        %v7973 = vadd.f32 0.0, %v7972
        %7974 = vmatmul.f32.gmra.mxu0 %v7853
        %v7975 = vpop.f32.mrf.mxu0
        %v7976 = vadd.f32 0.0, %v7975
        %7977 = vmatmul.f32.gmra.mxu0 %v7856
        %v7978 = vpop.f32.mrf.mxu0
        %v7979 = vadd.f32 0.0, %v7978
        %7980 = vdwg.mxu0
        %7981 = vmatpush.msra.mxu0 0.0
        %7982 = vmatpush.msra.mxu0 0.0
        %7983 = vmatpush.msra.mxu0 0.0
        %7984 = vmatpush.msra.mxu0 0.0
        %7985 = vmatpush.msra.mxu0 0.0
        %7986 = vmatpush.msra.mxu0 0.0
        %7987 = vmatpush.msra.mxu0 0.0
        %7988 = vmatpush.msra.mxu0 0.0
        %7989 = vmatpush.msra.mxu0 %v7792
        %7990 = vmatpush.msra.mxu0 %v7791
        %7991 = vmatpush.msra.mxu0 %v7790
        %7992 = vmatpush.msra.mxu0 %v7789
        %7993 = vmatpush.msra.mxu0 %v7788
        %7994 = vmatpush.msra.mxu0 %v7787
        %7995 = vmatpush.msra.mxu0 %v7786
        %7996 = vmatpush.msra.mxu0 %v7785
        %7997 = vmatmul.f32.gmra.mxu0 %v7835
        %v7998 = vpop.f32.mrf.mxu0
        %v7999 = vadd.f32 0.0, %v7998
        %8000 = vmatmul.f32.gmra.mxu0 %v7838
        %v8001 = vpop.f32.mrf.mxu0
        %v8002 = vadd.f32 0.0, %v8001
        %8003 = vmatmul.f32.gmra.mxu0 %v7841
        %v8004 = vpop.f32.mrf.mxu0
        %v8005 = vadd.f32 0.0, %v8004
        %8006 = vmatmul.f32.gmra.mxu0 %v7844
        %v8007 = vpop.f32.mrf.mxu0
        %v8008 = vadd.f32 0.0, %v8007
        %8009 = vmatmul.f32.gmra.mxu0 %v7847
        %v8010 = vpop.f32.mrf.mxu0
        %v8011 = vadd.f32 0.0, %v8010
        %8012 = vmatmul.f32.gmra.mxu0 %v7850
        %v8013 = vpop.f32.mrf.mxu0
        %v8014 = vadd.f32 0.0, %v8013
        %8015 = vmatmul.f32.gmra.mxu0 %v7853
        %v8016 = vpop.f32.mrf.mxu0
        %v8017 = vadd.f32 0.0, %v8016
        %8018 = vmatmul.f32.gmra.mxu0 %v7856
        %v8019 = vpop.f32.mrf.mxu0
        %v8020 = vadd.f32 0.0, %v8019
        %8021 = vdwg.mxu0
        %8022 = vmatpush.msra.mxu0 0.0
        %8023 = vmatpush.msra.mxu0 0.0
        %8024 = vmatpush.msra.mxu0 0.0
        %8025 = vmatpush.msra.mxu0 0.0
        %8026 = vmatpush.msra.mxu0 0.0
        %8027 = vmatpush.msra.mxu0 0.0
        %8028 = vmatpush.msra.mxu0 0.0
        %8029 = vmatpush.msra.mxu0 0.0
        %8030 = vmatpush.msra.mxu0 %v7784
        %8031 = vmatpush.msra.mxu0 %v7783
        %8032 = vmatpush.msra.mxu0 %v7782
        %8033 = vmatpush.msra.mxu0 %v7781
        %8034 = vmatpush.msra.mxu0 %v7780
        %8035 = vmatpush.msra.mxu0 %v7779
        %8036 = vmatpush.msra.mxu0 %v7778
        %8037 = vmatpush.msra.mxu0 %v7777
        %8038 = vmatmul.f32.gmra.mxu0 %v7835
        %v8039 = vpop.f32.mrf.mxu0
        %v8040 = vadd.f32 0.0, %v8039
        %8041 = vmatmul.f32.gmra.mxu0 %v7838
        %v8042 = vpop.f32.mrf.mxu0
        %v8043 = vadd.f32 0.0, %v8042
        %8044 = vmatmul.f32.gmra.mxu0 %v7841
        %v8045 = vpop.f32.mrf.mxu0
        %v8046 = vadd.f32 0.0, %v8045
        %8047 = vmatmul.f32.gmra.mxu0 %v7844
        %v8048 = vpop.f32.mrf.mxu0
        %v8049 = vadd.f32 0.0, %v8048
        %8050 = vmatmul.f32.gmra.mxu0 %v7847
        %v8051 = vpop.f32.mrf.mxu0
        %v8052 = vadd.f32 0.0, %v8051
        %8053 = vmatmul.f32.gmra.mxu0 %v7850
        %v8054 = vpop.f32.mrf.mxu0
        %v8055 = vadd.f32 0.0, %v8054
        %8056 = vmatmul.f32.gmra.mxu0 %v7853
        %v8057 = vpop.f32.mrf.mxu0
        %v8058 = vadd.f32 0.0, %v8057
        %8059 = vmatmul.f32.gmra.mxu0 %v7856
        %v8060 = vpop.f32.mrf.mxu0
        %v8061 = vadd.f32 0.0, %v8060
        %8062 = vdwg.mxu0
        %8063 = vmatpush.msra.mxu0 0.0
        %8064 = vmatpush.msra.mxu0 0.0
        %8065 = vmatpush.msra.mxu0 0.0
        %8066 = vmatpush.msra.mxu0 0.0
        %8067 = vmatpush.msra.mxu0 0.0
        %8068 = vmatpush.msra.mxu0 0.0
        %8069 = vmatpush.msra.mxu0 0.0
        %8070 = vmatpush.msra.mxu0 0.0
        %8071 = vmatpush.msra.mxu0 %v7824
        %8072 = vmatpush.msra.mxu0 %v7823
        %8073 = vmatpush.msra.mxu0 %v7822
        %8074 = vmatpush.msra.mxu0 %v7821
        %8075 = vmatpush.msra.mxu0 %v7820
        %8076 = vmatpush.msra.mxu0 %v7819
        %8077 = vmatpush.msra.mxu0 %v7818
        %8078 = vmatpush.msra.mxu0 %v7817
        %8079 = vmatmul.f32.gmra.mxu0 %v7835
        %v8080 = vpop.f32.mrf.mxu0
        %v8081 = vadd.f32 0.0, %v8080
        %8082 = vmatmul.f32.gmra.mxu0 %v7838
        %v8083 = vpop.f32.mrf.mxu0
        %v8084 = vadd.f32 0.0, %v8083
        %8085 = vmatmul.f32.gmra.mxu0 %v7841
        %v8086 = vpop.f32.mrf.mxu0
        %v8087 = vadd.f32 0.0, %v8086
        %8088 = vmatmul.f32.gmra.mxu0 %v7844
        %v8089 = vpop.f32.mrf.mxu0
        %v8090 = vadd.f32 0.0, %v8089
        %8091 = vmatmul.f32.gmra.mxu0 %v7847
        %v8092 = vpop.f32.mrf.mxu0
        %v8093 = vadd.f32 0.0, %v8092
        %8094 = vmatmul.f32.gmra.mxu0 %v7850
        %v8095 = vpop.f32.mrf.mxu0
        %v8096 = vadd.f32 0.0, %v8095
        %8097 = vmatmul.f32.gmra.mxu0 %v7853
        %v8098 = vpop.f32.mrf.mxu0
        %v8099 = vadd.f32 0.0, %v8098
        %8100 = vmatmul.f32.gmra.mxu0 %v7856
        %v8101 = vpop.f32.mrf.mxu0
        %v8102 = vadd.f32 0.0, %v8101
        %8103 = vdwg.mxu0
        %v8104 = vadd.f32 %v7633, %v7876
        %v8105 = vadd.f32 %v7634, %v7917
        %v8106 = vadd.f32 %v7635, %v7958
        %v8107 = vadd.f32 %v7636, %v7999
        %v8108 = vadd.f32 %v7637, %v8040
        %v8109 = vadd.f32 %v7638, %v8081
        %v8110 = vadd.f32 %v7639, %v7879
        %v8111 = vadd.f32 %v7640, %v7920
        %v8112 = vadd.f32 %v7641, %v7961
        %v8113 = vadd.f32 %v7642, %v8002
        %v8114 = vadd.f32 %v7643, %v8043
        %v8115 = vadd.f32 %v7644, %v8084
        %v8116 = vadd.f32 %v7645, %v7882
        %v8117 = vadd.f32 %v7646, %v7923
        %v8118 = vadd.f32 %v7647, %v7964
        %v8119 = vadd.f32 %v7648, %v8005
        %v8120 = vadd.f32 %v7649, %v8046
        %v8121 = vadd.f32 %v7650, %v8087
        %v8122 = vadd.f32 %v7651, %v7885
        %v8123 = vadd.f32 %v7652, %v7926
        %v8124 = vadd.f32 %v7653, %v7967
        %v8125 = vadd.f32 %v7654, %v8008
        %v8126 = vadd.f32 %v7655, %v8049
        %v8127 = vadd.f32 %v7656, %v8090
        %v8128 = vadd.f32 %v7657, %v7888
        %v8129 = vadd.f32 %v7658, %v7929
        %v8130 = vadd.f32 %v7659, %v7970
        %v8131 = vadd.f32 %v7660, %v8011
        %v8132 = vadd.f32 %v7661, %v8052
        %v8133 = vadd.f32 %v7662, %v8093
        %v8134 = vadd.f32 %v7663, %v7891
        %v8135 = vadd.f32 %v7664, %v7932
        %v8136 = vadd.f32 %v7665, %v7973
        %v8137 = vadd.f32 %v7666, %v8014
        %v8138 = vadd.f32 %v7667, %v8055
        %v8139 = vadd.f32 %v7668, %v8096
        %v8140 = vadd.f32 %v7669, %v7894
        %v8141 = vadd.f32 %v7670, %v7935
        %v8142 = vadd.f32 %v7671, %v7976
        %v8143 = vadd.f32 %v7672, %v8017
        %v8144 = vadd.f32 %v7673, %v8058
        %v8145 = vadd.f32 %v7674, %v8099
        %v8146 = vadd.f32 %v7675, %v7897
        %v8147 = vadd.f32 %v7676, %v7938
        %v8148 = vadd.f32 %v7677, %v7979
        %v8149 = vadd.f32 %v7678, %v8020
        %v8150 = vadd.f32 %v7679, %v8061
        %v8151 = vadd.f32 %v7680, %v8102
        %8152 = vrot.lane.b32.xlu0 %v4577, 109
        %v8153 = vpop.permute.xlu0 %8152
        %8154 = vrot.lane.b32.xlu0 %v4583, 109
        %v8155 = vpop.permute.xlu0 %8154
        %8156 = vrot.lane.b32.xlu0 %v4589, 109
        %v8157 = vpop.permute.xlu0 %8156
        %8158 = vrot.lane.b32.xlu0 %v4595, 109
        %v8159 = vpop.permute.xlu0 %8158
        %8160 = vrot.lane.b32.xlu0 %v4601, 109
        %v8161 = vpop.permute.xlu0 %8160
        %8162 = vrot.lane.b32.xlu0 %v4607, 109
        %v8163 = vpop.permute.xlu0 %8162
        %8164 = vrot.lane.b32.xlu0 %v4613, 109
        %v8165 = vpop.permute.xlu0 %8164
        %8166 = vrot.lane.b32.xlu0 %v4619, 109
        %v8167 = vpop.permute.xlu0 %8166
        %8168 = vrot.lane.b32.xlu0 %v4578, 109
        %v8169 = vpop.permute.xlu0 %8168
        %8170 = vrot.lane.b32.xlu0 %v4584, 109
        %v8171 = vpop.permute.xlu0 %8170
        %8172 = vrot.lane.b32.xlu0 %v4590, 109
        %v8173 = vpop.permute.xlu0 %8172
        %8174 = vrot.lane.b32.xlu0 %v4596, 109
        %v8175 = vpop.permute.xlu0 %8174
        %8176 = vrot.lane.b32.xlu0 %v4602, 109
        %v8177 = vpop.permute.xlu0 %8176
        %8178 = vrot.lane.b32.xlu0 %v4608, 109
        %v8179 = vpop.permute.xlu0 %8178
        %8180 = vrot.lane.b32.xlu0 %v4614, 109
        %v8181 = vpop.permute.xlu0 %8180
        %8182 = vrot.lane.b32.xlu0 %v4620, 109
        %v8183 = vpop.permute.xlu0 %8182
        %8184 = vrot.lane.b32.xlu0 %v4579, 109
        %v8185 = vpop.permute.xlu0 %8184
        %8186 = vrot.lane.b32.xlu0 %v4585, 109
        %v8187 = vpop.permute.xlu0 %8186
        %8188 = vrot.lane.b32.xlu0 %v4591, 109
        %v8189 = vpop.permute.xlu0 %8188
        %8190 = vrot.lane.b32.xlu0 %v4597, 109
        %v8191 = vpop.permute.xlu0 %8190
        %8192 = vrot.lane.b32.xlu0 %v4603, 109
        %v8193 = vpop.permute.xlu0 %8192
        %8194 = vrot.lane.b32.xlu0 %v4609, 109
        %v8195 = vpop.permute.xlu0 %8194
        %8196 = vrot.lane.b32.xlu0 %v4615, 109
        %v8197 = vpop.permute.xlu0 %8196
        %8198 = vrot.lane.b32.xlu0 %v4621, 109
        %v8199 = vpop.permute.xlu0 %8198
        %8200 = vrot.lane.b32.xlu0 %v4580, 109
        %v8201 = vpop.permute.xlu0 %8200
        %8202 = vrot.lane.b32.xlu0 %v4586, 109
        %v8203 = vpop.permute.xlu0 %8202
        %8204 = vrot.lane.b32.xlu0 %v4592, 109
        %v8205 = vpop.permute.xlu0 %8204
        %8206 = vrot.lane.b32.xlu0 %v4598, 109
        %v8207 = vpop.permute.xlu0 %8206
        %8208 = vrot.lane.b32.xlu0 %v4604, 109
        %v8209 = vpop.permute.xlu0 %8208
        %8210 = vrot.lane.b32.xlu0 %v4610, 109
        %v8211 = vpop.permute.xlu0 %8210
        %8212 = vrot.lane.b32.xlu0 %v4616, 109
        %v8213 = vpop.permute.xlu0 %8212
        %8214 = vrot.lane.b32.xlu0 %v4622, 109
        %v8215 = vpop.permute.xlu0 %8214
        %8216 = vrot.lane.b32.xlu0 %v4581, 109
        %v8217 = vpop.permute.xlu0 %8216
        %8218 = vrot.lane.b32.xlu0 %v4587, 109
        %v8219 = vpop.permute.xlu0 %8218
        %8220 = vrot.lane.b32.xlu0 %v4593, 109
        %v8221 = vpop.permute.xlu0 %8220
        %8222 = vrot.lane.b32.xlu0 %v4599, 109
        %v8223 = vpop.permute.xlu0 %8222
        %8224 = vrot.lane.b32.xlu0 %v4605, 109
        %v8225 = vpop.permute.xlu0 %8224
        %8226 = vrot.lane.b32.xlu0 %v4611, 109
        %v8227 = vpop.permute.xlu0 %8226
        %8228 = vrot.lane.b32.xlu0 %v4617, 109
        %v8229 = vpop.permute.xlu0 %8228
        %8230 = vrot.lane.b32.xlu0 %v4623, 109
        %v8231 = vpop.permute.xlu0 %8230
        %8232 = vrot.lane.b32.xlu0 %v4582, 109
        %v8233 = vpop.permute.xlu0 %8232
        %8234 = vrot.lane.b32.xlu0 %v4588, 109
        %v8235 = vpop.permute.xlu0 %8234
        %8236 = vrot.lane.b32.xlu0 %v4594, 109
        %v8237 = vpop.permute.xlu0 %8236
        %8238 = vrot.lane.b32.xlu0 %v4600, 109
        %v8239 = vpop.permute.xlu0 %8238
        %8240 = vrot.lane.b32.xlu0 %v4606, 109
        %v8241 = vpop.permute.xlu0 %8240
        %8242 = vrot.lane.b32.xlu0 %v4612, 109
        %v8243 = vpop.permute.xlu0 %8242
        %8244 = vrot.lane.b32.xlu0 %v4618, 109
        %v8245 = vpop.permute.xlu0 %8244
        %8246 = vrot.lane.b32.xlu0 %v4624, 109
        %v8247 = vpop.permute.xlu0 %8246
        %v8248 = vsel %vm4044, %v8217, %v8233
        %v8249 = vsel %vm4044, %v8219, %v8235
        %v8250 = vsel %vm4044, %v8221, %v8237
        %v8251 = vsel %vm4044, %v8223, %v8239
        %v8252 = vsel %vm4044, %v8225, %v8241
        %v8253 = vsel %vm4044, %v8227, %v8243
        %v8254 = vsel %vm4044, %v8229, %v8245
        %v8255 = vsel %vm4044, %v8231, %v8247
        %v8256 = vsel %vm4044, %v8201, %v8217
        %v8257 = vsel %vm4044, %v8203, %v8219
        %v8258 = vsel %vm4044, %v8205, %v8221
        %v8259 = vsel %vm4044, %v8207, %v8223
        %v8260 = vsel %vm4044, %v8209, %v8225
        %v8261 = vsel %vm4044, %v8211, %v8227
        %v8262 = vsel %vm4044, %v8213, %v8229
        %v8263 = vsel %vm4044, %v8215, %v8231
        %v8264 = vsel %vm4044, %v8185, %v8201
        %v8265 = vsel %vm4044, %v8187, %v8203
        %v8266 = vsel %vm4044, %v8189, %v8205
        %v8267 = vsel %vm4044, %v8191, %v8207
        %v8268 = vsel %vm4044, %v8193, %v8209
        %v8269 = vsel %vm4044, %v8195, %v8211
        %v8270 = vsel %vm4044, %v8197, %v8213
        %v8271 = vsel %vm4044, %v8199, %v8215
        %v8272 = vsel %vm4044, %v8169, %v8185
        %v8273 = vsel %vm4044, %v8171, %v8187
        %v8274 = vsel %vm4044, %v8173, %v8189
        %v8275 = vsel %vm4044, %v8175, %v8191
        %v8276 = vsel %vm4044, %v8177, %v8193
        %v8277 = vsel %vm4044, %v8179, %v8195
        %v8278 = vsel %vm4044, %v8181, %v8197
        %v8279 = vsel %vm4044, %v8183, %v8199
        %v8280 = vsel %vm4044, %v8153, %v8169
        %v8281 = vsel %vm4044, %v8155, %v8171
        %v8282 = vsel %vm4044, %v8157, %v8173
        %v8283 = vsel %vm4044, %v8159, %v8175
        %v8284 = vsel %vm4044, %v8161, %v8177
        %v8285 = vsel %vm4044, %v8163, %v8179
        %v8286 = vsel %vm4044, %v8165, %v8181
        %v8287 = vsel %vm4044, %v8167, %v8183
        %v8288 = vsel %vm4044, %v8233, %v8153
        %v8289 = vsel %vm4044, %v8235, %v8155
        %v8290 = vsel %vm4044, %v8237, %v8157
        %v8291 = vsel %vm4044, %v8239, %v8159
        %v8292 = vsel %vm4044, %v8241, %v8161
        %v8293 = vsel %vm4044, %v8243, %v8163
        %v8294 = vsel %vm4044, %v8245, %v8165
        %v8295 = vsel %vm4044, %v8247, %v8167
        %s8296 = scalar_lea.vmem %s4, 512
        %v8297 = vld [vmem:[%s8296] sm:$0xff]
        %v8298 = vld [vmem:[%s8296 + $0x8] sm:$0xff]
        %v8299 = vld [vmem:[%s8296 + $0x10] sm:$0xff]
        %v8300 = vld [vmem:[%s8296 + $0x18] sm:$0xff]
        %v8301 = vld [vmem:[%s8296 + $0x20] sm:$0xff]
        %v8302 = vld [vmem:[%s8296 + $0x28] sm:$0xff]
        %v8303 = vld [vmem:[%s8296 + $0x30] sm:$0xff]
        %v8304 = vld [vmem:[%s8296 + $0x38] sm:$0xff]
        %v8306 = vsel %vm720, %v8297, 0
        %v8309 = vsel %vm720, %v8298, 0
        %v8312 = vsel %vm720, %v8299, 0
        %v8315 = vsel %vm720, %v8300, 0
        %v8318 = vsel %vm720, %v8301, 0
        %v8321 = vsel %vm720, %v8302, 0
        %v8324 = vsel %vm720, %v8303, 0
        %v8327 = vsel %vm720, %v8304, 0
        %8329 = vmatpush.msra.mxu0 0.0
        %8330 = vmatpush.msra.mxu0 0.0
        %8331 = vmatpush.msra.mxu0 0.0
        %8332 = vmatpush.msra.mxu0 0.0
        %8333 = vmatpush.msra.mxu0 0.0
        %8334 = vmatpush.msra.mxu0 0.0
        %8335 = vmatpush.msra.mxu0 0.0
        %8336 = vmatpush.msra.mxu0 0.0
        %8337 = vmatpush.msra.mxu0 %v8287
        %8338 = vmatpush.msra.mxu0 %v8286
        %8339 = vmatpush.msra.mxu0 %v8285
        %8340 = vmatpush.msra.mxu0 %v8284
        %8341 = vmatpush.msra.mxu0 %v8283
        %8342 = vmatpush.msra.mxu0 %v8282
        %8343 = vmatpush.msra.mxu0 %v8281
        %8344 = vmatpush.msra.mxu0 %v8280
        %8345 = vmatmul.f32.gmra.mxu0 %v8306
        %v8346 = vpop.f32.mrf.mxu0
        %v8347 = vadd.f32 0.0, %v8346
        %8348 = vmatmul.f32.gmra.mxu0 %v8309
        %v8349 = vpop.f32.mrf.mxu0
        %v8350 = vadd.f32 0.0, %v8349
        %8351 = vmatmul.f32.gmra.mxu0 %v8312
        %v8352 = vpop.f32.mrf.mxu0
        %v8353 = vadd.f32 0.0, %v8352
        %8354 = vmatmul.f32.gmra.mxu0 %v8315
        %v8355 = vpop.f32.mrf.mxu0
        %v8356 = vadd.f32 0.0, %v8355
        %8357 = vmatmul.f32.gmra.mxu0 %v8318
        %v8358 = vpop.f32.mrf.mxu0
        %v8359 = vadd.f32 0.0, %v8358
        %8360 = vmatmul.f32.gmra.mxu0 %v8321
        %v8361 = vpop.f32.mrf.mxu0
        %v8362 = vadd.f32 0.0, %v8361
        %8363 = vmatmul.f32.gmra.mxu0 %v8324
        %v8364 = vpop.f32.mrf.mxu0
        %v8365 = vadd.f32 0.0, %v8364
        %8366 = vmatmul.f32.gmra.mxu0 %v8327
        %v8367 = vpop.f32.mrf.mxu0
        %v8368 = vadd.f32 0.0, %v8367
        %8369 = vdwg.mxu0
        %8370 = vmatpush.msra.mxu0 0.0
        %8371 = vmatpush.msra.mxu0 0.0
        %8372 = vmatpush.msra.mxu0 0.0
        %8373 = vmatpush.msra.mxu0 0.0
        %8374 = vmatpush.msra.mxu0 0.0
        %8375 = vmatpush.msra.mxu0 0.0
        %8376 = vmatpush.msra.mxu0 0.0
        %8377 = vmatpush.msra.mxu0 0.0
        %8378 = vmatpush.msra.mxu0 %v8279
        %8379 = vmatpush.msra.mxu0 %v8278
        %8380 = vmatpush.msra.mxu0 %v8277
        %8381 = vmatpush.msra.mxu0 %v8276
        %8382 = vmatpush.msra.mxu0 %v8275
        %8383 = vmatpush.msra.mxu0 %v8274
        %8384 = vmatpush.msra.mxu0 %v8273
        %8385 = vmatpush.msra.mxu0 %v8272
        %8386 = vmatmul.f32.gmra.mxu0 %v8306
        %v8387 = vpop.f32.mrf.mxu0
        %v8388 = vadd.f32 0.0, %v8387
        %8389 = vmatmul.f32.gmra.mxu0 %v8309
        %v8390 = vpop.f32.mrf.mxu0
        %v8391 = vadd.f32 0.0, %v8390
        %8392 = vmatmul.f32.gmra.mxu0 %v8312
        %v8393 = vpop.f32.mrf.mxu0
        %v8394 = vadd.f32 0.0, %v8393
        %8395 = vmatmul.f32.gmra.mxu0 %v8315
        %v8396 = vpop.f32.mrf.mxu0
        %v8397 = vadd.f32 0.0, %v8396
        %8398 = vmatmul.f32.gmra.mxu0 %v8318
        %v8399 = vpop.f32.mrf.mxu0
        %v8400 = vadd.f32 0.0, %v8399
        %8401 = vmatmul.f32.gmra.mxu0 %v8321
        %v8402 = vpop.f32.mrf.mxu0
        %v8403 = vadd.f32 0.0, %v8402
        %8404 = vmatmul.f32.gmra.mxu0 %v8324
        %v8405 = vpop.f32.mrf.mxu0
        %v8406 = vadd.f32 0.0, %v8405
        %8407 = vmatmul.f32.gmra.mxu0 %v8327
        %v8408 = vpop.f32.mrf.mxu0
        %v8409 = vadd.f32 0.0, %v8408
        %8410 = vdwg.mxu0
        %8411 = vmatpush.msra.mxu0 0.0
        %8412 = vmatpush.msra.mxu0 0.0
        %8413 = vmatpush.msra.mxu0 0.0
        %8414 = vmatpush.msra.mxu0 0.0
        %8415 = vmatpush.msra.mxu0 0.0
        %8416 = vmatpush.msra.mxu0 0.0
        %8417 = vmatpush.msra.mxu0 0.0
        %8418 = vmatpush.msra.mxu0 0.0
        %8419 = vmatpush.msra.mxu0 %v8271
        %8420 = vmatpush.msra.mxu0 %v8270
        %8421 = vmatpush.msra.mxu0 %v8269
        %8422 = vmatpush.msra.mxu0 %v8268
        %8423 = vmatpush.msra.mxu0 %v8267
        %8424 = vmatpush.msra.mxu0 %v8266
        %8425 = vmatpush.msra.mxu0 %v8265
        %8426 = vmatpush.msra.mxu0 %v8264
        %8427 = vmatmul.f32.gmra.mxu0 %v8306
        %v8428 = vpop.f32.mrf.mxu0
        %v8429 = vadd.f32 0.0, %v8428
        %8430 = vmatmul.f32.gmra.mxu0 %v8309
        %v8431 = vpop.f32.mrf.mxu0
        %v8432 = vadd.f32 0.0, %v8431
        %8433 = vmatmul.f32.gmra.mxu0 %v8312
        %v8434 = vpop.f32.mrf.mxu0
        %v8435 = vadd.f32 0.0, %v8434
        %8436 = vmatmul.f32.gmra.mxu0 %v8315
        %v8437 = vpop.f32.mrf.mxu0
        %v8438 = vadd.f32 0.0, %v8437
        %8439 = vmatmul.f32.gmra.mxu0 %v8318
        %v8440 = vpop.f32.mrf.mxu0
        %v8441 = vadd.f32 0.0, %v8440
        %8442 = vmatmul.f32.gmra.mxu0 %v8321
        %v8443 = vpop.f32.mrf.mxu0
        %v8444 = vadd.f32 0.0, %v8443
        %8445 = vmatmul.f32.gmra.mxu0 %v8324
        %v8446 = vpop.f32.mrf.mxu0
        %v8447 = vadd.f32 0.0, %v8446
        %8448 = vmatmul.f32.gmra.mxu0 %v8327
        %v8449 = vpop.f32.mrf.mxu0
        %v8450 = vadd.f32 0.0, %v8449
        %8451 = vdwg.mxu0
        %8452 = vmatpush.msra.mxu0 0.0
        %8453 = vmatpush.msra.mxu0 0.0
        %8454 = vmatpush.msra.mxu0 0.0
        %8455 = vmatpush.msra.mxu0 0.0
        %8456 = vmatpush.msra.mxu0 0.0
        %8457 = vmatpush.msra.mxu0 0.0
        %8458 = vmatpush.msra.mxu0 0.0
        %8459 = vmatpush.msra.mxu0 0.0
        %8460 = vmatpush.msra.mxu0 %v8263
        %8461 = vmatpush.msra.mxu0 %v8262
        %8462 = vmatpush.msra.mxu0 %v8261
        %8463 = vmatpush.msra.mxu0 %v8260
        %8464 = vmatpush.msra.mxu0 %v8259
        %8465 = vmatpush.msra.mxu0 %v8258
        %8466 = vmatpush.msra.mxu0 %v8257
        %8467 = vmatpush.msra.mxu0 %v8256
        %8468 = vmatmul.f32.gmra.mxu0 %v8306
        %v8469 = vpop.f32.mrf.mxu0
        %v8470 = vadd.f32 0.0, %v8469
        %8471 = vmatmul.f32.gmra.mxu0 %v8309
        %v8472 = vpop.f32.mrf.mxu0
        %v8473 = vadd.f32 0.0, %v8472
        %8474 = vmatmul.f32.gmra.mxu0 %v8312
        %v8475 = vpop.f32.mrf.mxu0
        %v8476 = vadd.f32 0.0, %v8475
        %8477 = vmatmul.f32.gmra.mxu0 %v8315
        %v8478 = vpop.f32.mrf.mxu0
        %v8479 = vadd.f32 0.0, %v8478
        %8480 = vmatmul.f32.gmra.mxu0 %v8318
        %v8481 = vpop.f32.mrf.mxu0
        %v8482 = vadd.f32 0.0, %v8481
        %8483 = vmatmul.f32.gmra.mxu0 %v8321
        %v8484 = vpop.f32.mrf.mxu0
        %v8485 = vadd.f32 0.0, %v8484
        %8486 = vmatmul.f32.gmra.mxu0 %v8324
        %v8487 = vpop.f32.mrf.mxu0
        %v8488 = vadd.f32 0.0, %v8487
        %8489 = vmatmul.f32.gmra.mxu0 %v8327
        %v8490 = vpop.f32.mrf.mxu0
        %v8491 = vadd.f32 0.0, %v8490
        %8492 = vdwg.mxu0
        %8493 = vmatpush.msra.mxu0 0.0
        %8494 = vmatpush.msra.mxu0 0.0
        %8495 = vmatpush.msra.mxu0 0.0
        %8496 = vmatpush.msra.mxu0 0.0
        %8497 = vmatpush.msra.mxu0 0.0
        %8498 = vmatpush.msra.mxu0 0.0
        %8499 = vmatpush.msra.mxu0 0.0
        %8500 = vmatpush.msra.mxu0 0.0
        %8501 = vmatpush.msra.mxu0 %v8255
        %8502 = vmatpush.msra.mxu0 %v8254
        %8503 = vmatpush.msra.mxu0 %v8253
        %8504 = vmatpush.msra.mxu0 %v8252
        %8505 = vmatpush.msra.mxu0 %v8251
        %8506 = vmatpush.msra.mxu0 %v8250
        %8507 = vmatpush.msra.mxu0 %v8249
        %8508 = vmatpush.msra.mxu0 %v8248
        %8509 = vmatmul.f32.gmra.mxu0 %v8306
        %v8510 = vpop.f32.mrf.mxu0
        %v8511 = vadd.f32 0.0, %v8510
        %8512 = vmatmul.f32.gmra.mxu0 %v8309
        %v8513 = vpop.f32.mrf.mxu0
        %v8514 = vadd.f32 0.0, %v8513
        %8515 = vmatmul.f32.gmra.mxu0 %v8312
        %v8516 = vpop.f32.mrf.mxu0
        %v8517 = vadd.f32 0.0, %v8516
        %8518 = vmatmul.f32.gmra.mxu0 %v8315
        %v8519 = vpop.f32.mrf.mxu0
        %v8520 = vadd.f32 0.0, %v8519
        %8521 = vmatmul.f32.gmra.mxu0 %v8318
        %v8522 = vpop.f32.mrf.mxu0
        %v8523 = vadd.f32 0.0, %v8522
        %8524 = vmatmul.f32.gmra.mxu0 %v8321
        %v8525 = vpop.f32.mrf.mxu0
        %v8526 = vadd.f32 0.0, %v8525
        %8527 = vmatmul.f32.gmra.mxu0 %v8324
        %v8528 = vpop.f32.mrf.mxu0
        %v8529 = vadd.f32 0.0, %v8528
        %8530 = vmatmul.f32.gmra.mxu0 %v8327
        %v8531 = vpop.f32.mrf.mxu0
        %v8532 = vadd.f32 0.0, %v8531
        %8533 = vdwg.mxu0
        %8534 = vmatpush.msra.mxu0 0.0
        %8535 = vmatpush.msra.mxu0 0.0
        %8536 = vmatpush.msra.mxu0 0.0
        %8537 = vmatpush.msra.mxu0 0.0
        %8538 = vmatpush.msra.mxu0 0.0
        %8539 = vmatpush.msra.mxu0 0.0
        %8540 = vmatpush.msra.mxu0 0.0
        %8541 = vmatpush.msra.mxu0 0.0
        %8542 = vmatpush.msra.mxu0 %v8295
        %8543 = vmatpush.msra.mxu0 %v8294
        %8544 = vmatpush.msra.mxu0 %v8293
        %8545 = vmatpush.msra.mxu0 %v8292
        %8546 = vmatpush.msra.mxu0 %v8291
        %8547 = vmatpush.msra.mxu0 %v8290
        %8548 = vmatpush.msra.mxu0 %v8289
        %8549 = vmatpush.msra.mxu0 %v8288
        %8550 = vmatmul.f32.gmra.mxu0 %v8306
        %v8551 = vpop.f32.mrf.mxu0
        %v8552 = vadd.f32 0.0, %v8551
        %8553 = vmatmul.f32.gmra.mxu0 %v8309
        %v8554 = vpop.f32.mrf.mxu0
        %v8555 = vadd.f32 0.0, %v8554
        %8556 = vmatmul.f32.gmra.mxu0 %v8312
        %v8557 = vpop.f32.mrf.mxu0
        %v8558 = vadd.f32 0.0, %v8557
        %8559 = vmatmul.f32.gmra.mxu0 %v8315
        %v8560 = vpop.f32.mrf.mxu0
        %v8561 = vadd.f32 0.0, %v8560
        %8562 = vmatmul.f32.gmra.mxu0 %v8318
        %v8563 = vpop.f32.mrf.mxu0
        %v8564 = vadd.f32 0.0, %v8563
        %8565 = vmatmul.f32.gmra.mxu0 %v8321
        %v8566 = vpop.f32.mrf.mxu0
        %v8567 = vadd.f32 0.0, %v8566
        %8568 = vmatmul.f32.gmra.mxu0 %v8324
        %v8569 = vpop.f32.mrf.mxu0
        %v8570 = vadd.f32 0.0, %v8569
        %8571 = vmatmul.f32.gmra.mxu0 %v8327
        %v8572 = vpop.f32.mrf.mxu0
        %v8573 = vadd.f32 0.0, %v8572
        %8574 = vdwg.mxu0
        %v8575 = vadd.f32 %v8104, %v8347
        %v8576 = vadd.f32 %v8105, %v8388
        %v8577 = vadd.f32 %v8106, %v8429
        %v8578 = vadd.f32 %v8107, %v8470
        %v8579 = vadd.f32 %v8108, %v8511
        %v8580 = vadd.f32 %v8109, %v8552
        %v8581 = vadd.f32 %v8110, %v8350
        %v8582 = vadd.f32 %v8111, %v8391
        %v8583 = vadd.f32 %v8112, %v8432
        %v8584 = vadd.f32 %v8113, %v8473
        %v8585 = vadd.f32 %v8114, %v8514
        %v8586 = vadd.f32 %v8115, %v8555
        %v8587 = vadd.f32 %v8116, %v8353
        %v8588 = vadd.f32 %v8117, %v8394
        %v8589 = vadd.f32 %v8118, %v8435
        %v8590 = vadd.f32 %v8119, %v8476
        %v8591 = vadd.f32 %v8120, %v8517
        %v8592 = vadd.f32 %v8121, %v8558
        %v8593 = vadd.f32 %v8122, %v8356
        %v8594 = vadd.f32 %v8123, %v8397
        %v8595 = vadd.f32 %v8124, %v8438
        %v8596 = vadd.f32 %v8125, %v8479
        %v8597 = vadd.f32 %v8126, %v8520
        %v8598 = vadd.f32 %v8127, %v8561
        %v8599 = vadd.f32 %v8128, %v8359
        %v8600 = vadd.f32 %v8129, %v8400
        %v8601 = vadd.f32 %v8130, %v8441
        %v8602 = vadd.f32 %v8131, %v8482
        %v8603 = vadd.f32 %v8132, %v8523
        %v8604 = vadd.f32 %v8133, %v8564
        %v8605 = vadd.f32 %v8134, %v8362
        %v8606 = vadd.f32 %v8135, %v8403
        %v8607 = vadd.f32 %v8136, %v8444
        %v8608 = vadd.f32 %v8137, %v8485
        %v8609 = vadd.f32 %v8138, %v8526
        %v8610 = vadd.f32 %v8139, %v8567
        %v8611 = vadd.f32 %v8140, %v8365
        %v8612 = vadd.f32 %v8141, %v8406
        %v8613 = vadd.f32 %v8142, %v8447
        %v8614 = vadd.f32 %v8143, %v8488
        %v8615 = vadd.f32 %v8144, %v8529
        %v8616 = vadd.f32 %v8145, %v8570
        %v8617 = vadd.f32 %v8146, %v8368
        %v8618 = vadd.f32 %v8147, %v8409
        %v8619 = vadd.f32 %v8148, %v8450
        %v8620 = vadd.f32 %v8149, %v8491
        %v8621 = vadd.f32 %v8150, %v8532
        %v8622 = vadd.f32 %v8151, %v8573
        %v8623 = vld [vmem:[%s5] sm:$0xff]
        %v8624 = vld [vmem:[%s5 + $0x8] sm:$0xff]
        %v8625 = vld [vmem:[%s5 + $0x10] sm:$0xff]
        %v8626 = vld [vmem:[%s5 + $0x18] sm:$0xff]
        %v8627 = vld [vmem:[%s5 + $0x20] sm:$0xff]
        %v8628 = vld [vmem:[%s5 + $0x28] sm:$0xff]
        %v8629 = vld [vmem:[%s5 + $0x30] sm:$0xff]
        %v8630 = vld [vmem:[%s5 + $0x38] sm:$0xff]
        %8632 = vset.pattern.permute.xlu0 0
        %8633 = vperm.xlu0 %8632, %v8623
        %v8634 = vpop.permute.xlu0 %8633
        %8637 = vset.pattern.permute.xlu0 0
        %8638 = vperm.xlu0 %8637, %v8624
        %v8639 = vpop.permute.xlu0 %8638
        %8642 = vset.pattern.permute.xlu0 0
        %8643 = vperm.xlu0 %8642, %v8625
        %v8644 = vpop.permute.xlu0 %8643
        %8647 = vset.pattern.permute.xlu0 0
        %8648 = vperm.xlu0 %8647, %v8626
        %v8649 = vpop.permute.xlu0 %8648
        %8652 = vset.pattern.permute.xlu0 0
        %8653 = vperm.xlu0 %8652, %v8627
        %v8654 = vpop.permute.xlu0 %8653
        %8657 = vset.pattern.permute.xlu0 0
        %8658 = vperm.xlu0 %8657, %v8628
        %v8659 = vpop.permute.xlu0 %8658
        %8662 = vset.pattern.permute.xlu0 0
        %8663 = vperm.xlu0 %8662, %v8629
        %v8664 = vpop.permute.xlu0 %8663
        %8667 = vset.pattern.permute.xlu0 0
        %8668 = vperm.xlu0 %8667, %v8630
        %v8669 = vpop.permute.xlu0 %8668
        %v8671 = vadd.f32 %v8575, %v8634
        %v8672 = vadd.f32 %v8576, %v8634
        %v8673 = vadd.f32 %v8577, %v8634
        %v8674 = vadd.f32 %v8578, %v8634
        %v8675 = vadd.f32 %v8579, %v8634
        %v8676 = vadd.f32 %v8580, %v8634
        %v8677 = vadd.f32 %v8581, %v8639
        %v8678 = vadd.f32 %v8582, %v8639
        %v8679 = vadd.f32 %v8583, %v8639
        %v8680 = vadd.f32 %v8584, %v8639
        %v8681 = vadd.f32 %v8585, %v8639
        %v8682 = vadd.f32 %v8586, %v8639
        %v8683 = vadd.f32 %v8587, %v8644
        %v8684 = vadd.f32 %v8588, %v8644
        %v8685 = vadd.f32 %v8589, %v8644
        %v8686 = vadd.f32 %v8590, %v8644
        %v8687 = vadd.f32 %v8591, %v8644
        %v8688 = vadd.f32 %v8592, %v8644
        %v8689 = vadd.f32 %v8593, %v8649
        %v8690 = vadd.f32 %v8594, %v8649
        %v8691 = vadd.f32 %v8595, %v8649
        %v8692 = vadd.f32 %v8596, %v8649
        %v8693 = vadd.f32 %v8597, %v8649
        %v8694 = vadd.f32 %v8598, %v8649
        %v8695 = vadd.f32 %v8599, %v8654
        %v8696 = vadd.f32 %v8600, %v8654
        %v8697 = vadd.f32 %v8601, %v8654
        %v8698 = vadd.f32 %v8602, %v8654
        %v8699 = vadd.f32 %v8603, %v8654
        %v8700 = vadd.f32 %v8604, %v8654
        %v8701 = vadd.f32 %v8605, %v8659
        %v8702 = vadd.f32 %v8606, %v8659
        %v8703 = vadd.f32 %v8607, %v8659
        %v8704 = vadd.f32 %v8608, %v8659
        %v8705 = vadd.f32 %v8609, %v8659
        %v8706 = vadd.f32 %v8610, %v8659
        %v8707 = vadd.f32 %v8611, %v8664
        %v8708 = vadd.f32 %v8612, %v8664
        %v8709 = vadd.f32 %v8613, %v8664
        %v8710 = vadd.f32 %v8614, %v8664
        %v8711 = vadd.f32 %v8615, %v8664
        %v8712 = vadd.f32 %v8616, %v8664
        %v8713 = vadd.f32 %v8617, %v8669
        %v8714 = vadd.f32 %v8618, %v8669
        %v8715 = vadd.f32 %v8619, %v8669
        %v8716 = vadd.f32 %v8620, %v8669
        %v8717 = vadd.f32 %v8621, %v8669
        %v8718 = vadd.f32 %v8622, %v8669
        %v8719 = vadd.f32 %v8671, %v362
        %v8720 = vadd.f32 %v8672, %v363
        %v8721 = vadd.f32 %v8673, %v364
        %v8722 = vadd.f32 %v8674, %v365
        %v8723 = vadd.f32 %v8675, %v366
        %v8724 = vadd.f32 %v8676, %v367
        %v8725 = vadd.f32 %v8677, %v368
        %v8726 = vadd.f32 %v8678, %v369
        %v8727 = vadd.f32 %v8679, %v370
        %v8728 = vadd.f32 %v8680, %v371
        %v8729 = vadd.f32 %v8681, %v372
        %v8730 = vadd.f32 %v8682, %v373
        %v8731 = vadd.f32 %v8683, %v374
        %v8732 = vadd.f32 %v8684, %v375
        %v8733 = vadd.f32 %v8685, %v376
        %v8734 = vadd.f32 %v8686, %v377
        %v8735 = vadd.f32 %v8687, %v378
        %v8736 = vadd.f32 %v8688, %v379
        %v8737 = vadd.f32 %v8689, %v380
        %v8738 = vadd.f32 %v8690, %v381
        %v8739 = vadd.f32 %v8691, %v382
        %v8740 = vadd.f32 %v8692, %v383
        %v8741 = vadd.f32 %v8693, %v384
        %v8742 = vadd.f32 %v8694, %v385
        %v8743 = vadd.f32 %v8695, %v386
        %v8744 = vadd.f32 %v8696, %v387
        %v8745 = vadd.f32 %v8697, %v388
        %v8746 = vadd.f32 %v8698, %v389
        %v8747 = vadd.f32 %v8699, %v390
        %v8748 = vadd.f32 %v8700, %v391
        %v8749 = vadd.f32 %v8701, %v392
        %v8750 = vadd.f32 %v8702, %v393
        %v8751 = vadd.f32 %v8703, %v394
        %v8752 = vadd.f32 %v8704, %v395
        %v8753 = vadd.f32 %v8705, %v396
        %v8754 = vadd.f32 %v8706, %v397
        %v8755 = vadd.f32 %v8707, %v398
        %v8756 = vadd.f32 %v8708, %v399
        %v8757 = vadd.f32 %v8709, %v400
        %v8758 = vadd.f32 %v8710, %v401
        %v8759 = vadd.f32 %v8711, %v402
        %v8760 = vadd.f32 %v8712, %v403
        %v8761 = vadd.f32 %v8713, %v404
        %v8762 = vadd.f32 %v8714, %v405
        %v8763 = vadd.f32 %v8715, %v406
        %v8764 = vadd.f32 %v8716, %v407
        %v8765 = vadd.f32 %v8717, %v408
        %v8766 = vadd.f32 %v8718, %v409
        %v8767 = vmax.f32 %v8719, 0.0
        %v8768 = vmax.f32 %v8720, 0.0
        %v8769 = vmax.f32 %v8721, 0.0
        %v8770 = vmax.f32 %v8722, 0.0
        %v8771 = vmax.f32 %v8723, 0.0
        %v8772 = vmax.f32 %v8724, 0.0
        %v8773 = vmax.f32 %v8725, 0.0
        %v8774 = vmax.f32 %v8726, 0.0
        %v8775 = vmax.f32 %v8727, 0.0
        %v8776 = vmax.f32 %v8728, 0.0
        %v8777 = vmax.f32 %v8729, 0.0
        %v8778 = vmax.f32 %v8730, 0.0
        %v8779 = vmax.f32 %v8731, 0.0
        %v8780 = vmax.f32 %v8732, 0.0
        %v8781 = vmax.f32 %v8733, 0.0
        %v8782 = vmax.f32 %v8734, 0.0
        %v8783 = vmax.f32 %v8735, 0.0
        %v8784 = vmax.f32 %v8736, 0.0
        %v8785 = vmax.f32 %v8737, 0.0
        %v8786 = vmax.f32 %v8738, 0.0
        %v8787 = vmax.f32 %v8739, 0.0
        %v8788 = vmax.f32 %v8740, 0.0
        %v8789 = vmax.f32 %v8741, 0.0
        %v8790 = vmax.f32 %v8742, 0.0
        %v8791 = vmax.f32 %v8743, 0.0
        %v8792 = vmax.f32 %v8744, 0.0
        %v8793 = vmax.f32 %v8745, 0.0
        %v8794 = vmax.f32 %v8746, 0.0
        %v8795 = vmax.f32 %v8747, 0.0
        %v8796 = vmax.f32 %v8748, 0.0
        %v8797 = vmax.f32 %v8749, 0.0
        %v8798 = vmax.f32 %v8750, 0.0
        %v8799 = vmax.f32 %v8751, 0.0
        %v8800 = vmax.f32 %v8752, 0.0
        %v8801 = vmax.f32 %v8753, 0.0
        %v8802 = vmax.f32 %v8754, 0.0
        %v8803 = vmax.f32 %v8755, 0.0
        %v8804 = vmax.f32 %v8756, 0.0
        %v8805 = vmax.f32 %v8757, 0.0
        %v8806 = vmax.f32 %v8758, 0.0
        %v8807 = vmax.f32 %v8759, 0.0
        %v8808 = vmax.f32 %v8760, 0.0
        %v8809 = vmax.f32 %v8761, 0.0
        %v8810 = vmax.f32 %v8762, 0.0
        %v8811 = vmax.f32 %v8763, 0.0
        %v8812 = vmax.f32 %v8764, 0.0
        %v8813 = vmax.f32 %v8765, 0.0
        %v8814 = vmax.f32 %v8766, 0.0
        %8815 = vst [vmem:[%s359] sm:$0xff] %v8767
        %8816 = vst [vmem:[%s359 + $0x8] sm:$0xff] %v8768
        %8817 = vst [vmem:[%s359 + $0x10] sm:$0xff] %v8769
        %8818 = vst [vmem:[%s359 + $0x18] sm:$0xff] %v8770
        %8819 = vst [vmem:[%s359 + $0x20] sm:$0xff] %v8771
        %8820 = vst [vmem:[%s359 + $0x28] sm:$0xff] %v8772
        %8821 = vst [vmem:[%s359 + $0x30] sm:$0xff] %v8773
        %8822 = vst [vmem:[%s359 + $0x38] sm:$0xff] %v8774
        %8823 = vst [vmem:[%s359 + $0x40] sm:$0xff] %v8775
        %8824 = vst [vmem:[%s359 + $0x48] sm:$0xff] %v8776
        %8825 = vst [vmem:[%s359 + $0x50] sm:$0xff] %v8777
        %8826 = vst [vmem:[%s359 + $0x58] sm:$0xff] %v8778
        %8827 = vst [vmem:[%s359 + $0x60] sm:$0xff] %v8779
        %8828 = vst [vmem:[%s359 + $0x68] sm:$0xff] %v8780
        %8829 = vst [vmem:[%s359 + $0x70] sm:$0xff] %v8781
        %8830 = vst [vmem:[%s359 + $0x78] sm:$0xff] %v8782
        %8831 = vst [vmem:[%s359 + $0x80] sm:$0xff] %v8783
        %8832 = vst [vmem:[%s359 + $0x88] sm:$0xff] %v8784
        %8833 = vst [vmem:[%s359 + $0x90] sm:$0xff] %v8785
        %8834 = vst [vmem:[%s359 + $0x98] sm:$0xff] %v8786
        %8835 = vst [vmem:[%s359 + $0xa0] sm:$0xff] %v8787
        %8836 = vst [vmem:[%s359 + $0xa8] sm:$0xff] %v8788
        %8837 = vst [vmem:[%s359 + $0xb0] sm:$0xff] %v8789
        %8838 = vst [vmem:[%s359 + $0xb8] sm:$0xff] %v8790
        %8839 = vst [vmem:[%s359 + $0xc0] sm:$0xff] %v8791
        %8840 = vst [vmem:[%s359 + $0xc8] sm:$0xff] %v8792
        %8841 = vst [vmem:[%s359 + $0xd0] sm:$0xff] %v8793
        %8842 = vst [vmem:[%s359 + $0xd8] sm:$0xff] %v8794
        %8843 = vst [vmem:[%s359 + $0xe0] sm:$0xff] %v8795
        %8844 = vst [vmem:[%s359 + $0xe8] sm:$0xff] %v8796
        %8845 = vst [vmem:[%s359 + $0xf0] sm:$0xff] %v8797
        %8846 = vst [vmem:[%s359 + $0xf8] sm:$0xff] %v8798
        %8847 = vst [vmem:[%s359 + $0x100] sm:$0xff] %v8799
        %8848 = vst [vmem:[%s359 + $0x108] sm:$0xff] %v8800
        %8849 = vst [vmem:[%s359 + $0x110] sm:$0xff] %v8801
        %8850 = vst [vmem:[%s359 + $0x118] sm:$0xff] %v8802
        %8851 = vst [vmem:[%s359 + $0x120] sm:$0xff] %v8803
        %8852 = vst [vmem:[%s359 + $0x128] sm:$0xff] %v8804
        %8853 = vst [vmem:[%s359 + $0x130] sm:$0xff] %v8805
        %8854 = vst [vmem:[%s359 + $0x138] sm:$0xff] %v8806
        %8855 = vst [vmem:[%s359 + $0x140] sm:$0xff] %v8807
        %8856 = vst [vmem:[%s359 + $0x148] sm:$0xff] %v8808
        %8857 = vst [vmem:[%s359 + $0x150] sm:$0xff] %v8809
        %8858 = vst [vmem:[%s359 + $0x158] sm:$0xff] %v8810
        %8859 = vst [vmem:[%s359 + $0x160] sm:$0xff] %v8811
        %8860 = vst [vmem:[%s359 + $0x168] sm:$0xff] %v8812
        %8861 = vst [vmem:[%s359 + $0x170] sm:$0xff] %v8813
        %8862 = vst [vmem:[%s359 + $0x178] sm:$0xff] %v8814
        %s8863 = sand.u32 %s156, 1
        %s8864 = sand.u32 %s156, 1
        %s8865 = smul.addr %s8864, 384
        %s8866 = scalar_lea.vmem [#allocation3], %s8865
        // Predicated region
        $region68: #{basic_block_forward.1} parent=62 // pred_check
          %p8867 = pneg %p166
        $region69: #{basic_block_forward.1} parent=62 // pred_check_branch
          %8869 = sbr.rel (%p8867) target = $region71
        $region70: #{basic_block_forward.1} parent=62 // pred_region
          %s8870 = smul.u32 6, %s17
          %s8871 = smul.addr %s8870, 8
          %s8872 = scalar_lea.vmem %s6, %s8871
          // Predicated region
          $region72: #{basic_block_forward.1} parent=70 // pred_check
            _
          $region73: #{basic_block_forward.1} parent=70 // pred_check_branch
            %8874 = sbr.rel (0) target = $region75
          $region74: #{basic_block_forward.1} parent=70 // pred_region
            // Predicated region
            $region76: #{basic_block_forward.1} parent=74 // pred_check
              _
            $region77: #{basic_block_forward.1} parent=74 // pred_check_branch
              %8876 = sbr.rel (0) target = $region79
            $region78: #{basic_block_forward.1} parent=74 // pred_region
              loop: start=0, step=1, limit=1
              $region80: #{basic_block_forward.1} parent=78 // loop_pre_header
                _
              $region81: #{basic_block_forward.1} parent=78 // loop_header
                %s8878 = sphi 0, %s8882
                %p8879 = scmp.ge.s32.totalorder %s8878, 1
                %s8883 = sphi %s8866, %s8866
                %s8884 = sphi %s8872, %s8872
              $region82: #{basic_block_forward.1} parent=78 // loop_header_branch
                %8881 = sbr.rel (%p8879) target = $region86
              $region83: #{basic_block_forward.1} parent=78 // loop_body
                %v8885 = vld [vmem:[%s8883] sm:$0xff]
                %8886 = vst [vmem:[%s8884] sm:$0xff] %v8885
                %v8887 = vld [vmem:[%s8883 + $0x8] sm:$0xff]
                %8888 = vst [vmem:[%s8884 + $0x8] sm:$0xff] %v8887
                %v8889 = vld [vmem:[%s8883 + $0x10] sm:$0xff]
                %8890 = vst [vmem:[%s8884 + $0x10] sm:$0xff] %v8889
                %v8891 = vld [vmem:[%s8883 + $0x18] sm:$0xff]
                %8892 = vst [vmem:[%s8884 + $0x18] sm:$0xff] %v8891
                %v8893 = vld [vmem:[%s8883 + $0x20] sm:$0xff]
                %8894 = vst [vmem:[%s8884 + $0x20] sm:$0xff] %v8893
                %v8895 = vld [vmem:[%s8883 + $0x28] sm:$0xff]
                %8896 = vst [vmem:[%s8884 + $0x28] sm:$0xff] %v8895
                %v8897 = vld [vmem:[%s8883 + $0x30] sm:$0xff]
                %8898 = vst [vmem:[%s8884 + $0x60] sm:$0xff] %v8897
                %v8899 = vld [vmem:[%s8883 + $0x38] sm:$0xff]
                %8900 = vst [vmem:[%s8884 + $0x68] sm:$0xff] %v8899
                %v8901 = vld [vmem:[%s8883 + $0x40] sm:$0xff]
                %8902 = vst [vmem:[%s8884 + $0x70] sm:$0xff] %v8901
                %v8903 = vld [vmem:[%s8883 + $0x48] sm:$0xff]
                %8904 = vst [vmem:[%s8884 + $0x78] sm:$0xff] %v8903
                %v8905 = vld [vmem:[%s8883 + $0x50] sm:$0xff]
                %8906 = vst [vmem:[%s8884 + $0x80] sm:$0xff] %v8905
                %v8907 = vld [vmem:[%s8883 + $0x58] sm:$0xff]
                %8908 = vst [vmem:[%s8884 + $0x88] sm:$0xff] %v8907
                %v8909 = vld [vmem:[%s8883 + $0x60] sm:$0xff]
                %8910 = vst [vmem:[%s8884 + $0xc0] sm:$0xff] %v8909
                %v8911 = vld [vmem:[%s8883 + $0x68] sm:$0xff]
                %8912 = vst [vmem:[%s8884 + $0xc8] sm:$0xff] %v8911
                %v8913 = vld [vmem:[%s8883 + $0x70] sm:$0xff]
                %8914 = vst [vmem:[%s8884 + $0xd0] sm:$0xff] %v8913
                %v8915 = vld [vmem:[%s8883 + $0x78] sm:$0xff]
                %8916 = vst [vmem:[%s8884 + $0xd8] sm:$0xff] %v8915
                %v8917 = vld [vmem:[%s8883 + $0x80] sm:$0xff]
                %8918 = vst [vmem:[%s8884 + $0xe0] sm:$0xff] %v8917
                %v8919 = vld [vmem:[%s8883 + $0x88] sm:$0xff]
                %8920 = vst [vmem:[%s8884 + $0xe8] sm:$0xff] %v8919
                %v8921 = vld [vmem:[%s8883 + $0x90] sm:$0xff]
                %8922 = vst [vmem:[%s8884 + $0x120] sm:$0xff] %v8921
                %v8923 = vld [vmem:[%s8883 + $0x98] sm:$0xff]
                %8924 = vst [vmem:[%s8884 + $0x128] sm:$0xff] %v8923
                %v8925 = vld [vmem:[%s8883 + $0xa0] sm:$0xff]
                %8926 = vst [vmem:[%s8884 + $0x130] sm:$0xff] %v8925
                %v8927 = vld [vmem:[%s8883 + $0xa8] sm:$0xff]
                %8928 = vst [vmem:[%s8884 + $0x138] sm:$0xff] %v8927
                %v8929 = vld [vmem:[%s8883 + $0xb0] sm:$0xff]
                %8930 = vst [vmem:[%s8884 + $0x140] sm:$0xff] %v8929
                %v8931 = vld [vmem:[%s8883 + $0xb8] sm:$0xff]
                %8932 = vst [vmem:[%s8884 + $0x148] sm:$0xff] %v8931
                %v8933 = vld [vmem:[%s8883 + $0xc0] sm:$0xff]
                %8934 = vst [vmem:[%s8884 + $0x180] sm:$0xff] %v8933
                %v8935 = vld [vmem:[%s8883 + $0xc8] sm:$0xff]
                %8936 = vst [vmem:[%s8884 + $0x188] sm:$0xff] %v8935
                %v8937 = vld [vmem:[%s8883 + $0xd0] sm:$0xff]
                %8938 = vst [vmem:[%s8884 + $0x190] sm:$0xff] %v8937
                %v8939 = vld [vmem:[%s8883 + $0xd8] sm:$0xff]
                %8940 = vst [vmem:[%s8884 + $0x198] sm:$0xff] %v8939
                %v8941 = vld [vmem:[%s8883 + $0xe0] sm:$0xff]
                %8942 = vst [vmem:[%s8884 + $0x1a0] sm:$0xff] %v8941
                %v8943 = vld [vmem:[%s8883 + $0xe8] sm:$0xff]
                %8944 = vst [vmem:[%s8884 + $0x1a8] sm:$0xff] %v8943
                %v8945 = vld [vmem:[%s8883 + $0xf0] sm:$0xff]
                %8946 = vst [vmem:[%s8884 + $0x1e0] sm:$0xff] %v8945
                %v8947 = vld [vmem:[%s8883 + $0xf8] sm:$0xff]
                %8948 = vst [vmem:[%s8884 + $0x1e8] sm:$0xff] %v8947
                %v8949 = vld [vmem:[%s8883 + $0x100] sm:$0xff]
                %8950 = vst [vmem:[%s8884 + $0x1f0] sm:$0xff] %v8949
                %v8951 = vld [vmem:[%s8883 + $0x108] sm:$0xff]
                %8952 = vst [vmem:[%s8884 + $0x1f8] sm:$0xff] %v8951
                %v8953 = vld [vmem:[%s8883 + $0x110] sm:$0xff]
                %8954 = vst [vmem:[%s8884 + $0x200] sm:$0xff] %v8953
                %v8955 = vld [vmem:[%s8883 + $0x118] sm:$0xff]
                %8956 = vst [vmem:[%s8884 + $0x208] sm:$0xff] %v8955
                %v8957 = vld [vmem:[%s8883 + $0x120] sm:$0xff]
                %8958 = vst [vmem:[%s8884 + $0x240] sm:$0xff] %v8957
                %v8959 = vld [vmem:[%s8883 + $0x128] sm:$0xff]
                %8960 = vst [vmem:[%s8884 + $0x248] sm:$0xff] %v8959
                %v8961 = vld [vmem:[%s8883 + $0x130] sm:$0xff]
                %8962 = vst [vmem:[%s8884 + $0x250] sm:$0xff] %v8961
                %v8963 = vld [vmem:[%s8883 + $0x138] sm:$0xff]
                %8964 = vst [vmem:[%s8884 + $0x258] sm:$0xff] %v8963
                %v8965 = vld [vmem:[%s8883 + $0x140] sm:$0xff]
                %8966 = vst [vmem:[%s8884 + $0x260] sm:$0xff] %v8965
                %v8967 = vld [vmem:[%s8883 + $0x148] sm:$0xff]
                %8968 = vst [vmem:[%s8884 + $0x268] sm:$0xff] %v8967
                %v8969 = vld [vmem:[%s8883 + $0x150] sm:$0xff]
                %8970 = vst [vmem:[%s8884 + $0x2a0] sm:$0xff] %v8969
                %v8971 = vld [vmem:[%s8883 + $0x158] sm:$0xff]
                %8972 = vst [vmem:[%s8884 + $0x2a8] sm:$0xff] %v8971
                %v8973 = vld [vmem:[%s8883 + $0x160] sm:$0xff]
                %8974 = vst [vmem:[%s8884 + $0x2b0] sm:$0xff] %v8973
                %v8975 = vld [vmem:[%s8883 + $0x168] sm:$0xff]
                %8976 = vst [vmem:[%s8884 + $0x2b8] sm:$0xff] %v8975
                %v8977 = vld [vmem:[%s8883 + $0x170] sm:$0xff]
                %8978 = vst [vmem:[%s8884 + $0x2c0] sm:$0xff] %v8977
                %v8979 = vld [vmem:[%s8883 + $0x178] sm:$0xff]
                %8980 = vst [vmem:[%s8884 + $0x2c8] sm:$0xff] %v8979
              $region84: #{basic_block_forward.1} parent=78 // loop_footer
                %s8882 = sadd.s32 1, %s8878
              $region85: #{basic_block_forward.1} parent=78 // loop_footer_branch
                %8877 = sbr.rel target = $region81
              $region86: #{basic_block_forward.1} parent=78 // loop_exit
                _
            $region79: #{basic_block_forward.1} parent=74 // pred_fallthru
              _
            // Predicated region
            $region87: #{basic_block_forward.1} parent=74 // pred_check
              _
            $region88: #{basic_block_forward.1} parent=74 // pred_check_branch
              %8982 = sbr.rel target = $region90
            $region89: #{basic_block_forward.1} parent=74 // pred_region
              _
            $region90: #{basic_block_forward.1} parent=74 // pred_fallthru
              _
          $region75: #{basic_block_forward.1} parent=70 // pred_fallthru
            _
          %8983 = vnop
        $region71: #{basic_block_forward.1} parent=62 // pred_fallthru
          _
      $region63: #{basic_block_forward.1} parent=5 // pred_fallthru
        _
      %p8984 = scmp.le.s32.totalorder 2, %s12
      // Predicated region
      $region91: #{basic_block_forward.1} parent=5 // pred_check
        %p8985 = pneg %p8984
      $region92: #{basic_block_forward.1} parent=5 // pred_check_branch
        %8987 = sbr.rel (%p8985) target = $region94
      $region93: #{basic_block_forward.1} parent=5 // pred_region
        %s8988 = ssub.s32 %s12, 2
        // Predicated region
        $region95: #{basic_block_forward.1} parent=93 // pred_check
          %p8989 = pneg %p172
        $region96: #{basic_block_forward.1} parent=93 // pred_check_branch
          %8991 = sbr.rel (%p8989) target = $region98
        $region97: #{basic_block_forward.1} parent=93 // pred_region
          %s8992 = sand.u32 %s157, 1
          %s8993 = sand.u32 %s157, 1
          %s8994 = smul.addr %s8993, 384
          %s8995 = scalar_lea.vmem [#allocation3], %s8994
        $region98: #{basic_block_forward.1} parent=93 // pred_fallthru
          _
      $region94: #{basic_block_forward.1} parent=5 // pred_fallthru
        _
    $region6: #{basic_block_forward.1} parent=1 // loop_footer
      %s16 = sadd.s32 1, %s12
    $region7: #{basic_block_forward.1} parent=1 // loop_footer_branch
      %11 = sbr.rel target = $region3
    $region8: #{basic_block_forward.1} parent=1 // loop_exit
      _

</llo_original>
